<compile_context>
chip_gen: v6e
topology: v6e:2x2x1
jax: 0.10.0
libtpu: 0.0.40
codegen_flags: <defaults>
</compile_context>

<pallas_src>
import functools

import jax
import jax.numpy as jnp
from jax.experimental import pallas as pl
from jax.experimental.pallas import tpu as pltpu


INPUT_DIM = (1, 28, 28)            # implied by en_fc1 in_features == 2048
INPUT_DIM_FLAT = 1 * 28 * 28       # 784
NUM_CLASSES = 10
LATENT_DIM = 20

LATENT_PAD = 128                   # lane-padded latent dim
NC_PAD = 128                       # lane-padded num_classes
DE_PAD = 1664                      # lane-padded 2*784 = 1568 -> 13*128


def _round_up(x, m):
    return (x + m - 1) // m * m


# ----------------------------------------------------------------------------
# Pallas kernel 1: M-tiled matmul + bias + optional ReLU (used for the 3 convs)
# ----------------------------------------------------------------------------
def _matmul_bias_act_kernel(x_ref, w_ref, b_ref, o_ref, *, activation):
    acc = jnp.dot(x_ref[...], w_ref[...], preferred_element_type=jnp.float32)
    acc = acc + b_ref[...]
    if activation == "relu":
        acc = jnp.maximum(acc, 0.0)
    o_ref[...] = acc.astype(o_ref.dtype)


def pallas_matmul_bias_act(x, w, b, activation="none",
                           out_dtype=jnp.float32, tm=512):
    """act(x @ w + b).  x:(M,K), w:(K,N) bf16, b:(N,) f32.  M-tiled grid."""
    M, K = x.shape
    K2, N = w.shape
    assert K == K2, (x.shape, w.shape)
    tm_eff = min(tm, _round_up(M, 8))
    Mp = _round_up(M, tm_eff)
    if Mp != M:
        x = jnp.pad(x, ((0, Mp - M), (0, 0)))
    kernel = functools.partial(_matmul_bias_act_kernel, activation=activation)
    out = pl.pallas_call(
        kernel,
        grid=(Mp // tm_eff,),
        out_shape=jax.ShapeDtypeStruct((Mp, N), out_dtype),
        in_specs=[
            pl.BlockSpec((tm_eff, K), lambda i: (i, 0)),
            pl.BlockSpec((K, N), lambda i: (0, 0)),
            pl.BlockSpec((1, N), lambda i: (0, 0)),
        ],
        out_specs=pl.BlockSpec((tm_eff, N), lambda i: (i, 0)),
        compiler_params=pltpu.CompilerParams(
            dimension_semantics=("parallel",)),
    )(x.astype(jnp.bfloat16), w, b.reshape(1, N).astype(jnp.float32))
    return out[:M] if Mp != M else out


# ----------------------------------------------------------------------------
# Pallas kernel 2: fully fused post-conv head
#   fc1 -> (mu|logvar) -> reparameterize -> de1 -> de2(sig/tanh) -> ax1 -> ax2
# ----------------------------------------------------------------------------
def _fused_head_kernel(x_ref, eps_ref,
                       fc1_w, fc1_b, mulv_w, mulv_b,
                       de1_w, de1_b, de2_w, de2_b,
                       ax1_w, ax1_b, ax2_w, ax2_b,
                       mu_ref, lv_ref, de_ref, y_ref):
    # en_fc1 + ReLU  (bf16 MXU, f32 accumulate, f32 activations)
    h = jnp.dot(x_ref[...].astype(jnp.bfloat16), fc1_w[...],
                preferred_element_type=jnp.float32) + fc1_b[...]
    h = jnp.maximum(h, 0.0)
    hb = h.astype(jnp.bfloat16)

    # en_mu | en_logvar fused into one (128 x 256) matmul; halves split at 128.
    ml = jnp.dot(hb, mulv_w[...], preferred_element_type=jnp.float32) + mulv_b[...]
    mu = ml[:, :LATENT_PAD]
    lv = ml[:, LATENT_PAD:]
    mu_ref[...] = mu
    lv_ref[...] = lv

    # reparameterize while values are still in vregs (exp rides the EUP slot)
    z = mu + eps_ref[...] * jnp.exp(0.5 * lv)
    zb = z.astype(jnp.bfloat16)

    # decoder: de_fc1 + ReLU, de_fc2 (single 128x1664 matmul), sigmoid|tanh halves
    d = jnp.maximum(
        jnp.dot(zb, de1_w[...], preferred_element_type=jnp.float32) + de1_b[...],
        0.0)
    de = jnp.dot(d.astype(jnp.bfloat16), de2_w[...],
                 preferred_element_type=jnp.float32) + de2_b[...]
    col = jax.lax.broadcasted_iota(jnp.int32, de.shape, 1)
    de_ref[...] = jnp.where(col < INPUT_DIM_FLAT,
                            jax.nn.sigmoid(de), jnp.tanh(de))

    # auxiliary classifier
    a = jnp.maximum(
        jnp.dot(zb, ax1_w[...], preferred_element_type=jnp.float32) + ax1_b[...],
        0.0)
    y_ref[...] = jnp.dot(a.astype(jnp.bfloat16), ax2_w[...],
                         preferred_element_type=jnp.float32) + ax2_b[...]


def fused_head(p, x_flat, eps_pad, tb=256):
    """x_flat:(B,2048) bf16 (NHWC-flat; fc1_w already permuted), eps_pad:(B,128)."""
    B = x_flat.shape[0]
    tb_eff = min(tb, _round_up(B, 8))
    Bp = _round_up(B, tb_eff)
    if Bp != B:
        x_flat = jnp.pad(x_flat, ((0, Bp - B), (0, 0)))
        eps_pad = jnp.pad(eps_pad, ((0, Bp - B), (0, 0)))

    def row_spec(n):
        return pl.BlockSpec((tb_eff, n), lambda i: (i, 0))

    def full_spec(shape):
        return pl.BlockSpec(shape, lambda i: (0, 0))

    weights = (p["fc1_w"], p["fc1_b"], p["mulv_w"], p["mulv_b"],
               p["de1_w"], p["de1_b"], p["de2_w"], p["de2_b"],
               p["ax1_w"], p["ax1_b"], p["ax2_w"], p["ax2_b"])

    in_specs = ([row_spec(x_flat.shape[1]), row_spec(LATENT_PAD)]
                + [full_spec(w.shape) for w in weights])
    out_specs = (row_spec(LATENT_PAD), row_spec(LATENT_PAD),
                 row_spec(DE_PAD), row_spec(NC_PAD))
    out_shape = (jax.ShapeDtypeStruct((Bp, LATENT_PAD), jnp.float32),
                 jax.ShapeDtypeStruct((Bp, LATENT_PAD), jnp.float32),
                 jax.ShapeDtypeStruct((Bp, DE_PAD), jnp.float32),
                 jax.ShapeDtypeStruct((Bp, NC_PAD), jnp.float32))

    mu, lv, de, y = pl.pallas_call(
        _fused_head_kernel,
        grid=(Bp // tb_eff,),
        out_shape=out_shape,
        in_specs=in_specs,
        out_specs=out_specs,
        compiler_params=pltpu.CompilerParams(
            dimension_semantics=("parallel",)),
    )(x_flat, eps_pad, *weights)
    if Bp != B:
        mu, lv, de, y = mu[:B], lv[:B], de[:B], y[:B]
    return mu, lv, de, y


# ----------------------------------------------------------------------------
# Conv stage: patch extraction (plain JAX rearrangement) + Pallas matmul
# ----------------------------------------------------------------------------
def conv2d_relu(x_nhwc, w_mat, b, k, stride, pad):
    """w_mat: (Cin*kh*kw, Cout) bf16, rows ordered (c, ki, kj) to match
    conv_general_dilated_patches' channel-major feature ordering."""
    patches = jax.lax.conv_general_dilated_patches(
        x_nhwc, (k, k), (stride, stride), [(pad, pad), (pad, pad)],
        dimension_numbers=("NHWC", "HWIO", "NHWC"))
    B, Ho, Wo, F = patches.shape
    cols = patches.reshape(B * Ho * Wo, F)
    out = pallas_matmul_bias_act(cols, w_mat, b, activation="relu",
                                 out_dtype=jnp.bfloat16)
    return out.reshape(B, Ho, Wo, w_mat.shape[1])


# ----------------------------------------------------------------------------
# Deterministic parameter init (torch-equivalent layout) + kernel-layout prep
# ----------------------------------------------------------------------------
def _kaiming_conv(key, cout, cin, kh, kw):
    fan_out = cout * kh * kw
    std = (2.0 / fan_out) ** 0.5
    return std * jax.random.normal(key, (cout, cin, kh, kw), jnp.float32)


def _uniform(key, shape, bound):
    return jax.random.uniform(key, shape, jnp.float32, -bound, bound)


def _linear_params(key, in_f, out_f):
    kw_, kb_ = jax.random.split(key)
    bound = 1.0 / (in_f ** 0.5)
    w = _uniform(kw_, (out_f, in_f), bound)        # torch (out, in)
    b = _uniform(kb_, (out_f,), bound)
    return jnp.transpose(w), b                     # stored as (in, out)


def init_params(key):
    keys = jax.random.split(key, 16)
    p = {}
    p["c1_w"] = _kaiming_conv(keys[0], 64, 1, 8, 8)
    p["c1_b"] = _uniform(keys[1], (64,), 1.0 / (1 * 8 * 8) ** 0.5)
    p["c2_w"] = _kaiming_conv(keys[2], 128, 64, 6, 6)
    p["c2_b"] = _uniform(keys[3], (128,), 1.0 / (64 * 6 * 6) ** 0.5)
    p["c3_w"] = _kaiming_conv(keys[4], 128, 128, 5, 5)
    p["c3_b"] = _uniform(keys[5], (128,), 1.0 / (128 * 5 * 5) ** 0.5)
    p["fc1_w"], p["fc1_b"] = _linear_params(keys[6], 2048, 128)
    p["mu_w"], p["mu_b"] = _linear_params(keys[7], 128, LATENT_DIM)
    p["lv_w"], p["lv_b"] = _linear_params(keys[8], 128, LATENT_DIM)
    p["de1_w"], p["de1_b"] = _linear_params(keys[9], LATENT_DIM, 128)
    p["de2_w"], p["de2_b"] = _linear_params(keys[10], 128, INPUT_DIM_FLAT * 2)
    p["ax1_w"], p["ax1_b"] = _linear_params(keys[11], LATENT_DIM, 128)
    p["ax2_w"], p["ax2_b"] = _linear_params(keys[12], 128, NUM_CLASSES)
    return p


def prepare_params(raw):
    """Fuse / lane-pad / permute / bf16-cast weights into kernel-ready form."""
    p = {}
    # conv weight matrices: rows ordered (c, ki, kj) -> matches patches' feature order
    for name in ("c1", "c2", "c3"):
        w = raw[f"{name}_w"]                                   # (Cout, Cin, kh, kw)
        cout, cin, kh, kw = w.shape
        p[f"{name}_wm"] = (jnp.transpose(w, (1, 2, 3, 0))
                           .reshape(cin * kh * kw, cout).astype(jnp.bfloat16))
        p[f"{name}_b"] = raw[f"{name}_b"].astype(jnp.float32)

    # en_fc1: fold torch's NCHW flatten into the weight rows (NHWC order input)
    fc1_w = raw["fc1_w"]                                       # (2048, 128), rows = (c,h,w)
    fc1_w = fc1_w.reshape(128, 4, 4, 128).transpose(1, 2, 0, 3).reshape(2048, 128)
    p["fc1_w"] = fc1_w.astype(jnp.bfloat16)
    p["fc1_b"] = raw["fc1_b"].reshape(1, 128).astype(jnp.float32)

    # en_mu | en_logvar fused, each half lane-padded 20 -> 128
    mulv_w = jnp.zeros((128, 2 * LATENT_PAD), jnp.float32)
    mulv_w = mulv_w.at[:, :LATENT_DIM].set(raw["mu_w"])
    mulv_w = mulv_w.at[:, LATENT_PAD:LATENT_PAD + LATENT_DIM].set(raw["lv_w"])
    p["mulv_w"] = mulv_w.astype(jnp.bfloat16)
    mulv_b = jnp.zeros((1, 2 * LATENT_PAD), jnp.float32)
    mulv_b = mulv_b.at[0, :LATENT_DIM].set(raw["mu_b"])
    mulv_b = mulv_b.at[0, LATENT_PAD:LATENT_PAD + LATENT_DIM].set(raw["lv_b"])
    p["mulv_b"] = mulv_b

    # de_fc1 / ax_fc1: pad latent input rows 20 -> 128 with zeros
    p["de1_w"] = (jnp.zeros((LATENT_PAD, 128), jnp.float32)
                  .at[:LATENT_DIM].set(raw["de1_w"]).astype(jnp.bfloat16))
    p["de1_b"] = raw["de1_b"].reshape(1, 128).astype(jnp.float32)
    p["ax1_w"] = (jnp.zeros((LATENT_PAD, 128), jnp.float32)
                  .at[:LATENT_DIM].set(raw["ax1_w"]).astype(jnp.bfloat16))
    p["ax1_b"] = raw["ax1_b"].reshape(1, 128).astype(jnp.float32)

    # de_fc2: one (128 x 1568) matmul, lane-padded to 1664
    p["de2_w"] = (jnp.zeros((128, DE_PAD), jnp.float32)
                  .at[:, :2 * INPUT_DIM_FLAT].set(raw["de2_w"]).astype(jnp.bfloat16))
    p["de2_b"] = (jnp.zeros((1, DE_PAD), jnp.float32)
                  .at[0, :2 * INPUT_DIM_FLAT].set(raw["de2_b"]))

    # ax_fc2: lane-pad classes 10 -> 128
    p["ax2_w"] = (jnp.zeros((128, NC_PAD), jnp.float32)
                  .at[:, :NUM_CLASSES].set(raw["ax2_w"]).astype(jnp.bfloat16))
    p["ax2_b"] = (jnp.zeros((1, NC_PAD), jnp.float32)
                  .at[0, :NUM_CLASSES].set(raw["ax2_b"]))
    return p


# ----------------------------------------------------------------------------
# Forward pass (== ClassAuxVAE.forward)
# ----------------------------------------------------------------------------
def class_aux_vae_forward(params, x_nchw, eps):
    B = x_nchw.shape[0]
    x = jnp.transpose(x_nchw, (0, 2, 3, 1)).astype(jnp.bfloat16)       # NCHW -> NHWC
    # encoder convs (im2col via identity-kernel patches + Pallas matmul+ReLU)
    x = conv2d_relu(x, params["c1_wm"], params["c1_b"], 8, 2, 3)       # (B,14,14, 64)
    x = conv2d_relu(x, params["c2_wm"], params["c2_b"], 6, 2, 3)       # (B, 8, 8,128)
    x = conv2d_relu(x, params["c3_wm"], params["c3_b"], 5, 1, 0)       # (B, 4, 4,128)
    x_flat = x.reshape(B, -1)      # NHWC-flat; fc1_w rows were permuted to match

    eps_pad = jnp.pad(eps.astype(jnp.float32),
                      ((0, 0), (0, LATENT_PAD - LATENT_DIM)))
    mu_p, lv_p, de_p, y_p = fused_head(params, x_flat, eps_pad)

    en_mu = mu_p[:, :LATENT_DIM]
    en_logvar = lv_p[:, :LATENT_DIM]
    de_mu = de_p[:, :INPUT_DIM_FLAT].reshape((B,) + INPUT_DIM)
    de_logvar = de_p[:, INPUT_DIM_FLAT:2 * INPUT_DIM_FLAT].reshape((B,) + INPUT_DIM)
    y = y_p[:, :NUM_CLASSES]
    return en_mu, en_logvar, de_mu, de_logvar, y


if __name__ == "__main__":
    key = jax.random.PRNGKey(0)
    k_param, k_x, k_eps = jax.random.split(key, 3)

    raw = init_params(k_param)
    params = prepare_params(raw)

    batch = 2
    x = jax.random.uniform(k_x, (batch, 1, 28, 28), jnp.float32)      # NCHW MNIST-like
    eps = jax.random.normal(k_eps, (batch, LATENT_DIM), jnp.float32)

    fwd = jax.jit(class_aux_vae_forward)
    outs = jax.block_until_ready(fwd(params, x, eps))

    en_mu, en_logvar, de_mu, de_logvar, y = outs
    assert en_mu.shape == (batch, LATENT_DIM)
    assert en_logvar.shape == (batch, LATENT_DIM)
    assert de_mu.shape == (batch,) + INPUT_DIM
    assert de_logvar.shape == (batch,) + INPUT_DIM
    assert y.shape == (batch, NUM_CLASSES)
    assert all(bool(jnp.all(jnp.isfinite(o))) for o in outs)

    print("KERNEL_OK")
</pallas_src>

<mosaic_0001>
module attributes {stable_mosaic.version = 11 : i64} {
  func.func @_matmul_bias_act_kernel(%arg0: i32, %arg1: memref<392x64xbf16, #tpu.memory_space<vmem>>, %arg2: memref<64x64xbf16, #tpu.memory_space<vmem>>, %arg3: memref<1x64xf32, #tpu.memory_space<vmem>>, %arg4: memref<392x64xbf16, #tpu.memory_space<vmem>>) attributes {dimension_semantics = [#tpu.dimension_semantics<parallel>], iteration_bounds = array<i64: 1>, scalar_prefetch = 0 : i64, scratch_operands = 0 : i64, tpu.core_type = #tpu.core_type<tc>, window_params = [{transform_indices = @transform_0, window_bounds = array<i64: 392, 64>}, {pipeline_mode = #tpu.pipeline_mode<synchronous>, transform_indices = @transform_1, window_bounds = array<i64: 64, 64>}, {pipeline_mode = #tpu.pipeline_mode<synchronous>, transform_indices = @transform_2, window_bounds = array<i64: 1, 64>}, {transform_indices = @transform_3, window_bounds = array<i64: 392, 64>}]} {
    %c0 = arith.constant 0 : index
    %c0_0 = arith.constant 0 : index
    %0 = vector.load %arg1[%c0, %c0_0] : memref<392x64xbf16, #tpu.memory_space<vmem>>, vector<392x64xbf16>
    %c0_1 = arith.constant 0 : index
    %c0_2 = arith.constant 0 : index
    %1 = vector.load %arg2[%c0_1, %c0_2] : memref<64x64xbf16, #tpu.memory_space<vmem>>, vector<64x64xbf16>
    %cst = arith.constant dense<0.000000e+00> : vector<392x64xf32>
    %2 = tpu.matmul %0, %1, %cst {dimension_numbers = #tpu.dot_dimension_numbers<[1], [0], [0], [1], [0, 0, 1, 1], [], []>} : vector<392x64xbf16>, vector<64x64xbf16>, vector<392x64xf32> -> vector<392x64xf32>
    %c0_3 = arith.constant 0 : index
    %c0_4 = arith.constant 0 : index
    %3 = vector.load %arg3[%c0_3, %c0_4] : memref<1x64xf32, #tpu.memory_space<vmem>>, vector<1x64xf32>
    %4 = vector.broadcast %3 : vector<1x64xf32> to vector<392x64xf32>
    %5 = arith.addf %2, %4 : vector<392x64xf32>
    %cst_5 = arith.constant 0.000000e+00 : f32
    %6 = vector.broadcast %cst_5 : f32 to vector<392x64xf32>
    %7 = arith.maximumf %5, %6 : vector<392x64xf32>
    %8 = arith.truncf %7 : vector<392x64xf32> to vector<392x64xbf16>
    %c0_6 = arith.constant 0 : index
    %c0_7 = arith.constant 0 : index
    %9 = vector.load %arg4[%c0_6, %c0_7] : memref<392x64xbf16, #tpu.memory_space<vmem>>, vector<392x64xbf16>
    tpu.vector_store %arg4[%c0_6, %c0_7], %8 {strides = array<i32>} : memref<392x64xbf16, #tpu.memory_space<vmem>>, vector<392x64xbf16>,
    return
  }
  func.func @transform_0(%arg0: i32) -> (i32, i32) {
    %c0_i32 = arith.constant 0 : i32
    %c0_i32_0 = arith.constant 0 : i32
    return %arg0, %c0_i32 : i32, i32
  }
  func.func @transform_1(%arg0: i32) -> (i32, i32) {
    %c0_i32 = arith.constant 0 : i32
    %c0_i32_0 = arith.constant 0 : i32
    %c0_i32_1 = arith.constant 0 : i32
    return %c0_i32, %c0_i32_0 : i32, i32
  }
  func.func @transform_2(%arg0: i32) -> (i32, i32) {
    %c0_i32 = arith.constant 0 : i32
    %c0_i32_0 = arith.constant 0 : i32
    %c0_i32_1 = arith.constant 0 : i32
    return %c0_i32, %c0_i32_0 : i32, i32
  }
  func.func @transform_3(%arg0: i32) -> (i32, i32) {
    %c0_i32 = arith.constant 0 : i32
    %c0_i32_0 = arith.constant 0 : i32
    return %arg0, %c0_i32 : i32, i32
  }
}

module attributes {stable_mosaic.version = 11 : i64} {
  func.func @_matmul_bias_act_kernel(%arg0: i32, %arg1: memref<128x2304xbf16, #tpu.memory_space<vmem>>, %arg2: memref<2304x128xbf16, #tpu.memory_space<vmem>>, %arg3: memref<1x128xf32, #tpu.memory_space<vmem>>, %arg4: memref<128x128xbf16, #tpu.memory_space<vmem>>) attributes {dimension_semantics = [#tpu.dimension_semantics<parallel>], iteration_bounds = array<i64: 1>, scalar_prefetch = 0 : i64, scratch_operands = 0 : i64, tpu.core_type = #tpu.core_type<tc>, window_params = [{transform_indices = @transform_0, window_bounds = array<i64: 128, 2304>}, {pipeline_mode = #tpu.pipeline_mode<synchronous>, transform_indices = @transform_1, window_bounds = array<i64: 2304, 128>}, {pipeline_mode = #tpu.pipeline_mode<synchronous>, transform_indices = @transform_2, window_bounds = array<i64: 1, 128>}, {transform_indices = @transform_3, window_bounds = array<i64: 128, 128>}]} {
    %c0 = arith.constant 0 : index
    %c0_0 = arith.constant 0 : index
    %0 = vector.load %arg1[%c0, %c0_0] : memref<128x2304xbf16, #tpu.memory_space<vmem>>, vector<128x2304xbf16>
    %c0_1 = arith.constant 0 : index
    %c0_2 = arith.constant 0 : index
    %1 = vector.load %arg2[%c0_1, %c0_2] : memref<2304x128xbf16, #tpu.memory_space<vmem>>, vector<2304x128xbf16>
    %cst = arith.constant dense<0.000000e+00> : vector<128x128xf32>
    %2 = tpu.matmul %0, %1, %cst {dimension_numbers = #tpu.dot_dimension_numbers<[1], [0], [0], [1], [0, 0, 1, 1], [], []>} : vector<128x2304xbf16>, vector<2304x128xbf16>, vector<128x128xf32> -> vector<128x128xf32>
    %c0_3 = arith.constant 0 : index
    %c0_4 = arith.constant 0 : index
    %3 = vector.load %arg3[%c0_3, %c0_4] : memref<1x128xf32, #tpu.memory_space<vmem>>, vector<1x128xf32>
    %4 = vector.broadcast %3 : vector<1x128xf32> to vector<128x128xf32>
    %5 = arith.addf %2, %4 : vector<128x128xf32>
    %cst_5 = arith.constant 0.000000e+00 : f32
    %6 = vector.broadcast %cst_5 : f32 to vector<128x128xf32>
    %7 = arith.maximumf %5, %6 : vector<128x128xf32>
    %8 = arith.truncf %7 : vector<128x128xf32> to vector<128x128xbf16>
    %c0_6 = arith.constant 0 : index
    %c0_7 = arith.constant 0 : index
    %9 = vector.load %arg4[%c0_6, %c0_7] : memref<128x128xbf16, #tpu.memory_space<vmem>>, vector<128x128xbf16>
    tpu.vector_store %arg4[%c0_6, %c0_7], %8 {strides = array<i32>} : memref<128x128xbf16, #tpu.memory_space<vmem>>, vector<128x128xbf16>,
    return
  }
  func.func @transform_0(%arg0: i32) -> (i32, i32) {
    %c0_i32 = arith.constant 0 : i32
    %c0_i32_0 = arith.constant 0 : i32
    return %arg0, %c0_i32 : i32, i32
  }
  func.func @transform_1(%arg0: i32) -> (i32, i32) {
    %c0_i32 = arith.constant 0 : i32
    %c0_i32_0 = arith.constant 0 : i32
    %c0_i32_1 = arith.constant 0 : i32
    return %c0_i32, %c0_i32_0 : i32, i32
  }
  func.func @transform_2(%arg0: i32) -> (i32, i32) {
    %c0_i32 = arith.constant 0 : i32
    %c0_i32_0 = arith.constant 0 : i32
    %c0_i32_1 = arith.constant 0 : i32
    return %c0_i32, %c0_i32_0 : i32, i32
  }
  func.func @transform_3(%arg0: i32) -> (i32, i32) {
    %c0_i32 = arith.constant 0 : i32
    %c0_i32_0 = arith.constant 0 : i32
    return %arg0, %c0_i32 : i32, i32
  }
}

module attributes {stable_mosaic.version = 11 : i64} {
  func.func @_matmul_bias_act_kernel(%arg0: i32, %arg1: memref<32x3200xbf16, #tpu.memory_space<vmem>>, %arg2: memref<3200x128xbf16, #tpu.memory_space<vmem>>, %arg3: memref<1x128xf32, #tpu.memory_space<vmem>>, %arg4: memref<32x128xbf16, #tpu.memory_space<vmem>>) attributes {dimension_semantics = [#tpu.dimension_semantics<parallel>], iteration_bounds = array<i64: 1>, scalar_prefetch = 0 : i64, scratch_operands = 0 : i64, tpu.core_type = #tpu.core_type<tc>, window_params = [{transform_indices = @transform_0, window_bounds = array<i64: 32, 3200>}, {pipeline_mode = #tpu.pipeline_mode<synchronous>, transform_indices = @transform_1, window_bounds = array<i64: 3200, 128>}, {pipeline_mode = #tpu.pipeline_mode<synchronous>, transform_indices = @transform_2, window_bounds = array<i64: 1, 128>}, {transform_indices = @transform_3, window_bounds = array<i64: 32, 128>}]} {
    %c0 = arith.constant 0 : index
    %c0_0 = arith.constant 0 : index
    %0 = vector.load %arg1[%c0, %c0_0] : memref<32x3200xbf16, #tpu.memory_space<vmem>>, vector<32x3200xbf16>
    %c0_1 = arith.constant 0 : index
    %c0_2 = arith.constant 0 : index
    %1 = vector.load %arg2[%c0_1, %c0_2] : memref<3200x128xbf16, #tpu.memory_space<vmem>>, vector<3200x128xbf16>
    %cst = arith.constant dense<0.000000e+00> : vector<32x128xf32>
    %2 = tpu.matmul %0, %1, %cst {dimension_numbers = #tpu.dot_dimension_numbers<[1], [0], [0], [1], [0, 0, 1, 1], [], []>} : vector<32x3200xbf16>, vector<3200x128xbf16>, vector<32x128xf32> -> vector<32x128xf32>
    %c0_3 = arith.constant 0 : index
    %c0_4 = arith.constant 0 : index
    %3 = vector.load %arg3[%c0_3, %c0_4] : memref<1x128xf32, #tpu.memory_space<vmem>>, vector<1x128xf32>
    %4 = vector.broadcast %3 : vector<1x128xf32> to vector<32x128xf32>
    %5 = arith.addf %2, %4 : vector<32x128xf32>
    %cst_5 = arith.constant 0.000000e+00 : f32
    %6 = vector.broadcast %cst_5 : f32 to vector<32x128xf32>
    %7 = arith.maximumf %5, %6 : vector<32x128xf32>
    %8 = arith.truncf %7 : vector<32x128xf32> to vector<32x128xbf16>
    %c0_6 = arith.constant 0 : index
    %c0_7 = arith.constant 0 : index
    %9 = vector.load %arg4[%c0_6, %c0_7] : memref<32x128xbf16, #tpu.memory_space<vmem>>, vector<32x128xbf16>
    tpu.vector_store %arg4[%c0_6, %c0_7], %8 {strides = array<i32>} : memref<32x128xbf16, #tpu.memory_space<vmem>>, vector<32x128xbf16>,
    return
  }
  func.func @transform_0(%arg0: i32) -> (i32, i32) {
    %c0_i32 = arith.constant 0 : i32
    %c0_i32_0 = arith.constant 0 : i32
    return %arg0, %c0_i32 : i32, i32
  }
  func.func @transform_1(%arg0: i32) -> (i32, i32) {
    %c0_i32 = arith.constant 0 : i32
    %c0_i32_0 = arith.constant 0 : i32
    %c0_i32_1 = arith.constant 0 : i32
    return %c0_i32, %c0_i32_0 : i32, i32
  }
  func.func @transform_2(%arg0: i32) -> (i32, i32) {
    %c0_i32 = arith.constant 0 : i32
    %c0_i32_0 = arith.constant 0 : i32
    %c0_i32_1 = arith.constant 0 : i32
    return %c0_i32, %c0_i32_0 : i32, i32
  }
  func.func @transform_3(%arg0: i32) -> (i32, i32) {
    %c0_i32 = arith.constant 0 : i32
    %c0_i32_0 = arith.constant 0 : i32
    return %arg0, %c0_i32 : i32, i32
  }
}

module attributes {stable_mosaic.version = 11 : i64} {
  func.func @_fused_head_kernel(%arg0: i32, %arg1: memref<8x2048xbf16, #tpu.memory_space<vmem>>, %arg2: memref<8x128xf32, #tpu.memory_space<vmem>>, %arg3: memref<2048x128xbf16, #tpu.memory_space<vmem>>, %arg4: memref<1x128xf32, #tpu.memory_space<vmem>>, %arg5: memref<128x256xbf16, #tpu.memory_space<vmem>>, %arg6: memref<1x256xf32, #tpu.memory_space<vmem>>, %arg7: memref<128x128xbf16, #tpu.memory_space<vmem>>, %arg8: memref<1x128xf32, #tpu.memory_space<vmem>>, %arg9: memref<128x1664xbf16, #tpu.memory_space<vmem>>, %arg10: memref<1x1664xf32, #tpu.memory_space<vmem>>, %arg11: memref<128x128xbf16, #tpu.memory_space<vmem>>, %arg12: memref<1x128xf32, #tpu.memory_space<vmem>>, %arg13: memref<128x128xbf16, #tpu.memory_space<vmem>>, %arg14: memref<1x128xf32, #tpu.memory_space<vmem>>, %arg15: memref<8x128xf32, #tpu.memory_space<vmem>>, %arg16: memref<8x128xf32, #tpu.memory_space<vmem>>, %arg17: memref<8x1664xf32, #tpu.memory_space<vmem>>, %arg18: memref<8x128xf32, #tpu.memory_space<vmem>>) attributes {dimension_semantics = [#tpu.dimension_semantics<parallel>], iteration_bounds = array<i64: 1>, scalar_prefetch = 0 : i64, scratch_operands = 0 : i64, tpu.core_type = #tpu.core_type<tc>, window_params = [{transform_indices = @transform_0, window_bounds = array<i64: 8, 2048>}, {transform_indices = @transform_1, window_bounds = array<i64: 8, 128>}, {pipeline_mode = #tpu.pipeline_mode<synchronous>, transform_indices = @transform_2, window_bounds = array<i64: 2048, 128>}, {pipeline_mode = #tpu.pipeline_mode<synchronous>, transform_indices = @transform_3, window_bounds = array<i64: 1, 128>}, {pipeline_mode = #tpu.pipeline_mode<synchronous>, transform_indices = @transform_4, window_bounds = array<i64: 128, 256>}, {pipeline_mode = #tpu.pipeline_mode<synchronous>, transform_indices = @transform_5, window_bounds = array<i64: 1, 256>}, {pipeline_mode = #tpu.pipeline_mode<synchronous>, transform_indices = @transform_6, window_bounds = array<i64: 128, 128>}, {pipeline_mode = #tpu.pipeline_mode<synchronous>, transform_indices = @transform_7, window_bounds = array<i64: 1, 128>}, {pipeline_mode = #tpu.pipeline_mode<synchronous>, transform_indices = @transform_8, window_bounds = array<i64: 128, 1664>}, {pipeline_mode = #tpu.pipeline_mode<synchronous>, transform_indices = @transform_9, window_bounds = array<i64: 1, 1664>}, {pipeline_mode = #tpu.pipeline_mode<synchronous>, transform_indices = @transform_10, window_bounds = array<i64: 128, 128>}, {pipeline_mode = #tpu.pipeline_mode<synchronous>, transform_indices = @transform_11, window_bounds = array<i64: 1, 128>}, {pipeline_mode = #tpu.pipeline_mode<synchronous>, transform_indices = @transform_12, window_bounds = array<i64: 128, 128>}, {pipeline_mode = #tpu.pipeline_mode<synchronous>, transform_indices = @transform_13, window_bounds = array<i64: 1, 128>}, {transform_indices = @transform_14, window_bounds = array<i64: 8, 128>}, {transform_indices = @transform_15, window_bounds = array<i64: 8, 128>}, {transform_indices = @transform_16, window_bounds = array<i64: 8, 1664>}, {transform_indices = @transform_17, window_bounds = array<i64: 8, 128>}]} {
    %c0 = arith.constant 0 : index
    %c0_0 = arith.constant 0 : index
    %0 = vector.load %arg1[%c0, %c0_0] : memref<8x2048xbf16, #tpu.memory_space<vmem>>, vector<8x2048xbf16>
    %c0_1 = arith.constant 0 : index
    %c0_2 = arith.constant 0 : index
    %1 = vector.load %arg3[%c0_1, %c0_2] : memref<2048x128xbf16, #tpu.memory_space<vmem>>, vector<2048x128xbf16>
    %cst = arith.constant dense<0.000000e+00> : vector<8x128xf32>
    %2 = tpu.matmul %0, %1, %cst {dimension_numbers = #tpu.dot_dimension_numbers<[1], [0], [0], [1], [0, 0, 1, 1], [], []>} : vector<8x2048xbf16>, vector<2048x128xbf16>, vector<8x128xf32> -> vector<8x128xf32>
    %c0_3 = arith.constant 0 : index
    %c0_4 = arith.constant 0 : index
    %3 = vector.load %arg4[%c0_3, %c0_4] : memref<1x128xf32, #tpu.memory_space<vmem>>, vector<1x128xf32>
    %4 = vector.broadcast %3 : vector<1x128xf32> to vector<8x128xf32>
    %5 = arith.addf %2, %4 : vector<8x128xf32>
    %cst_5 = arith.constant 0.000000e+00 : f32
    %6 = vector.broadcast %cst_5 : f32 to vector<8x128xf32>
    %7 = arith.maximumf %5, %6 : vector<8x128xf32>
    %8 = arith.truncf %7 : vector<8x128xf32> to vector<8x128xbf16>
    %c0_6 = arith.constant 0 : index
    %c0_7 = arith.constant 0 : index
    %9 = vector.load %arg5[%c0_6, %c0_7] : memref<128x256xbf16, #tpu.memory_space<vmem>>, vector<128x256xbf16>
    %cst_8 = arith.constant dense<0.000000e+00> : vector<8x256xf32>
    %10 = tpu.matmul %8, %9, %cst_8 {dimension_numbers = #tpu.dot_dimension_numbers<[1], [0], [0], [1], [0, 0, 1, 1], [], []>} : vector<8x128xbf16>, vector<128x256xbf16>, vector<8x256xf32> -> vector<8x256xf32>
    %c0_9 = arith.constant 0 : index
    %c0_10 = arith.constant 0 : index
    %11 = vector.load %arg6[%c0_9, %c0_10] : memref<1x256xf32, #tpu.memory_space<vmem>>, vector<1x256xf32>
    %12 = vector.broadcast %11 : vector<1x256xf32> to vector<8x256xf32>
    %13 = arith.addf %10, %12 : vector<8x256xf32>
    %14 = vector.extract_strided_slice %13 {offsets = [0, 0], sizes = [8, 128], strides = [1, 1]} : vector<8x256xf32> to vector<8x128xf32>
    %15 = vector.extract_strided_slice %13 {offsets = [0, 128], sizes = [8, 128], strides = [1, 1]} : vector<8x256xf32> to vector<8x128xf32>
    %c0_11 = arith.constant 0 : index
    %c0_12 = arith.constant 0 : index
    %16 = vector.load %arg15[%c0_11, %c0_12] : memref<8x128xf32, #tpu.memory_space<vmem>>, vector<8x128xf32>
    tpu.vector_store %arg15[%c0_11, %c0_12], %14 {strides = array<i32>} : memref<8x128xf32, #tpu.memory_space<vmem>>, vector<8x128xf32>,
    %c0_13 = arith.constant 0 : index
    %c0_14 = arith.constant 0 : index
    %17 = vector.load %arg16[%c0_13, %c0_14] : memref<8x128xf32, #tpu.memory_space<vmem>>, vector<8x128xf32>
    tpu.vector_store %arg16[%c0_13, %c0_14], %15 {strides = array<i32>} : memref<8x128xf32, #tpu.memory_space<vmem>>, vector<8x128xf32>,
    %c0_15 = arith.constant 0 : index
    %c0_16 = arith.constant 0 : index
    %18 = vector.load %arg2[%c0_15, %c0_16] : memref<8x128xf32, #tpu.memory_space<vmem>>, vector<8x128xf32>
    %cst_17 = arith.constant 5.000000e-01 : f32
    %19 = vector.broadcast %cst_17 : f32 to vector<8x128xf32>
    %20 = arith.mulf %19, %15 : vector<8x128xf32>
    %21 = math.exp %20 : vector<8x128xf32>
    %22 = arith.mulf %18, %21 : vector<8x128xf32>
    %23 = arith.addf %14, %22 : vector<8x128xf32>
    %24 = arith.truncf %23 : vector<8x128xf32> to vector<8x128xbf16>
    %c0_18 = arith.constant 0 : index
    %c0_19 = arith.constant 0 : index
    %25 = vector.load %arg7[%c0_18, %c0_19] : memref<128x128xbf16, #tpu.memory_space<vmem>>, vector<128x128xbf16>
    %cst_20 = arith.constant dense<0.000000e+00> : vector<8x128xf32>
    %26 = tpu.matmul %24, %25, %cst_20 {dimension_numbers = #tpu.dot_dimension_numbers<[1], [0], [0], [1], [0, 0, 1, 1], [], []>} : vector<8x128xbf16>, vector<128x128xbf16>, vector<8x128xf32> -> vector<8x128xf32>
    %c0_21 = arith.constant 0 : index
    %c0_22 = arith.constant 0 : index
    %27 = vector.load %arg8[%c0_21, %c0_22] : memref<1x128xf32, #tpu.memory_space<vmem>>, vector<1x128xf32>
    %28 = vector.broadcast %27 : vector<1x128xf32> to vector<8x128xf32>
    %29 = arith.addf %26, %28 : vector<8x128xf32>
    %cst_23 = arith.constant 0.000000e+00 : f32
    %30 = vector.broadcast %cst_23 : f32 to vector<8x128xf32>
    %31 = arith.maximumf %29, %30 : vector<8x128xf32>
    %32 = arith.truncf %31 : vector<8x128xf32> to vector<8x128xbf16>
    %c0_24 = arith.constant 0 : index
    %c0_25 = arith.constant 0 : index
    %33 = vector.load %arg9[%c0_24, %c0_25] : memref<128x1664xbf16, #tpu.memory_space<vmem>>, vector<128x1664xbf16>
    %cst_26 = arith.constant dense<0.000000e+00> : vector<8x1664xf32>
    %34 = tpu.matmul %32, %33, %cst_26 {dimension_numbers = #tpu.dot_dimension_numbers<[1], [0], [0], [1], [0, 0, 1, 1], [], []>} : vector<8x128xbf16>, vector<128x1664xbf16>, vector<8x1664xf32> -> vector<8x1664xf32>
    %c0_27 = arith.constant 0 : index
    %c0_28 = arith.constant 0 : index
    %35 = vector.load %arg10[%c0_27, %c0_28] : memref<1x1664xf32, #tpu.memory_space<vmem>>, vector<1x1664xf32>
    %36 = vector.broadcast %35 : vector<1x1664xf32> to vector<8x1664xf32>
    %37 = arith.addf %34, %36 : vector<8x1664xf32>
    %38 = tpu.iota {dimensions = array<i32: 1>} : vector<8x1664xi32>
    %c784_i32 = arith.constant 784 : i32
    %39 = vector.broadcast %c784_i32 : i32 to vector<8x1664xi32>
    %40 = arith.cmpi slt, %38, %39 : vector<8x1664xi32>
    %41 = arith.negf %37 : vector<8x1664xf32>
    %42 = math.exp %41 : vector<8x1664xf32>
    %cst_29 = arith.constant 1.000000e+00 : f32
    %43 = vector.broadcast %cst_29 : f32 to vector<8x1664xf32>
    %44 = arith.addf %43, %42 : vector<8x1664xf32>
    %45 = arith.divf %43, %44 : vector<8x1664xf32>
    %46 = math.tanh %37 : vector<8x1664xf32>
    %47 = arith.select %40, %45, %46 : vector<8x1664xi1>, vector<8x1664xf32>
    %c0_30 = arith.constant 0 : index
    %c0_31 = arith.constant 0 : index
    %48 = vector.load %arg17[%c0_30, %c0_31] : memref<8x1664xf32, #tpu.memory_space<vmem>>, vector<8x1664xf32>
    tpu.vector_store %arg17[%c0_30, %c0_31], %47 {strides = array<i32>} : memref<8x1664xf32, #tpu.memory_space<vmem>>, vector<8x1664xf32>,
    %c0_32 = arith.constant 0 : index
    %c0_33 = arith.constant 0 : index
    %49 = vector.load %arg11[%c0_32, %c0_33] : memref<128x128xbf16, #tpu.memory_space<vmem>>, vector<128x128xbf16>
    %cst_34 = arith.constant dense<0.000000e+00> : vector<8x128xf32>
    %50 = tpu.matmul %24, %49, %cst_34 {dimension_numbers = #tpu.dot_dimension_numbers<[1], [0], [0], [1], [0, 0, 1, 1], [], []>} : vector<8x128xbf16>, vector<128x128xbf16>, vector<8x128xf32> -> vector<8x128xf32>
    %c0_35 = arith.constant 0 : index
    %c0_36 = arith.constant 0 : index
    %51 = vector.load %arg12[%c0_35, %c0_36] : memref<1x128xf32, #tpu.memory_space<vmem>>, vector<1x128xf32>
    %52 = vector.broadcast %51 : vector<1x128xf32> to vector<8x128xf32>
    %53 = arith.addf %50, %52 : vector<8x128xf32>
    %cst_37 = arith.constant 0.000000e+00 : f32
    %54 = vector.broadcast %cst_37 : f32 to vector<8x128xf32>
    %55 = arith.maximumf %53, %54 : vector<8x128xf32>
    %56 = arith.truncf %55 : vector<8x128xf32> to vector<8x128xbf16>
    %c0_38 = arith.constant 0 : index
    %c0_39 = arith.constant 0 : index
    %57 = vector.load %arg13[%c0_38, %c0_39] : memref<128x128xbf16, #tpu.memory_space<vmem>>, vector<128x128xbf16>
    %cst_40 = arith.constant dense<0.000000e+00> : vector<8x128xf32>
    %58 = tpu.matmul %56, %57, %cst_40 {dimension_numbers = #tpu.dot_dimension_numbers<[1], [0], [0], [1], [0, 0, 1, 1], [], []>} : vector<8x128xbf16>, vector<128x128xbf16>, vector<8x128xf32> -> vector<8x128xf32>
    %c0_41 = arith.constant 0 : index
    %c0_42 = arith.constant 0 : index
    %59 = vector.load %arg14[%c0_41, %c0_42] : memref<1x128xf32, #tpu.memory_space<vmem>>, vector<1x128xf32>
    %60 = vector.broadcast %59 : vector<1x128xf32> to vector<8x128xf32>
    %61 = arith.addf %58, %60 : vector<8x128xf32>
    %c0_43 = arith.constant 0 : index
    %c0_44 = arith.constant 0 : index
    %62 = vector.load %arg18[%c0_43, %c0_44] : memref<8x128xf32, #tpu.memory_space<vmem>>, vector<8x128xf32>
    tpu.vector_store %arg18[%c0_43, %c0_44], %61 {strides = array<i32>} : memref<8x128xf32, #tpu.memory_space<vmem>>, vector<8x128xf32>,
    return
  }
  func.func @transform_0(%arg0: i32) -> (i32, i32) {
    %c0_i32 = arith.constant 0 : i32
    %c0_i32_0 = arith.constant 0 : i32
    return %arg0, %c0_i32 : i32, i32
  }
  func.func @transform_1(%arg0: i32) -> (i32, i32) {
    %c0_i32 = arith.constant 0 : i32
    %c0_i32_0 = arith.constant 0 : i32
    return %arg0, %c0_i32 : i32, i32
  }
  func.func @transform_2(%arg0: i32) -> (i32, i32) {
    %c0_i32 = arith.constant 0 : i32
    %c0_i32_0 = arith.constant 0 : i32
    %c0_i32_1 = arith.constant 0 : i32
    return %c0_i32, %c0_i32_0 : i32, i32
  }
  func.func @transform_3(%arg0: i32) -> (i32, i32) {
    %c0_i32 = arith.constant 0 : i32
    %c0_i32_0 = arith.constant 0 : i32
    %c0_i32_1 = arith.constant 0 : i32
    return %c0_i32, %c0_i32_0 : i32, i32
  }
  func.func @transform_4(%arg0: i32) -> (i32, i32) {
    %c0_i32 = arith.constant 0 : i32
    %c0_i32_0 = arith.constant 0 : i32
    %c0_i32_1 = arith.constant 0 : i32
    return %c0_i32, %c0_i32_0 : i32, i32
  }
  func.func @transform_5(%arg0: i32) -> (i32, i32) {
    %c0_i32 = arith.constant 0 : i32
    %c0_i32_0 = arith.constant 0 : i32
    %c0_i32_1 = arith.constant 0 : i32
    return %c0_i32, %c0_i32_0 : i32, i32
  }
  func.func @transform_6(%arg0: i32) -> (i32, i32) {
    %c0_i32 = arith.constant 0 : i32
    %c0_i32_0 = arith.constant 0 : i32
    %c0_i32_1 = arith.constant 0 : i32
    return %c0_i32, %c0_i32_0 : i32, i32
  }
  func.func @transform_7(%arg0: i32) -> (i32, i32) {
    %c0_i32 = arith.constant 0 : i32
    %c0_i32_0 = arith.constant 0 : i32
    %c0_i32_1 = arith.constant 0 : i32
    return %c0_i32, %c0_i32_0 : i32, i32
  }
  func.func @transform_8(%arg0: i32) -> (i32, i32) {
    %c0_i32 = arith.constant 0 : i32
    %c0_i32_0 = arith.constant 0 : i32
    %c0_i32_1 = arith.constant 0 : i32
    return %c0_i32, %c0_i32_0 : i32, i32
  }
  func.func @transform_9(%arg0: i32) -> (i32, i32) {
    %c0_i32 = arith.constant 0 : i32
    %c0_i32_0 = arith.constant 0 : i32
    %c0_i32_1 = arith.constant 0 : i32
    return %c0_i32, %c0_i32_0 : i32, i32
  }
  func.func @transform_10(%arg0: i32) -> (i32, i32) {
    %c0_i32 = arith.constant 0 : i32
    %c0_i32_0 = arith.constant 0 : i32
    %c0_i32_1 = arith.constant 0 : i32
    return %c0_i32, %c0_i32_0 : i32, i32
  }
  func.func @transform_11(%arg0: i32) -> (i32, i32) {
    %c0_i32 = arith.constant 0 : i32
    %c0_i32_0 = arith.constant 0 : i32
    %c0_i32_1 = arith.constant 0 : i32
    return %c0_i32, %c0_i32_0 : i32, i32
  }
  func.func @transform_12(%arg0: i32) -> (i32, i32) {
    %c0_i32 = arith.constant 0 : i32
    %c0_i32_0 = arith.constant 0 : i32
    %c0_i32_1 = arith.constant 0 : i32
    return %c0_i32, %c0_i32_0 : i32, i32
  }
  func.func @transform_13(%arg0: i32) -> (i32, i32) {
    %c0_i32 = arith.constant 0 : i32
    %c0_i32_0 = arith.constant 0 : i32
    %c0_i32_1 = arith.constant 0 : i32
    return %c0_i32, %c0_i32_0 : i32, i32
  }
  func.func @transform_14(%arg0: i32) -> (i32, i32) {
    %c0_i32 = arith.constant 0 : i32
    %c0_i32_0 = arith.constant 0 : i32
    return %arg0, %c0_i32 : i32, i32
  }
  func.func @transform_15(%arg0: i32) -> (i32, i32) {
    %c0_i32 = arith.constant 0 : i32
    %c0_i32_0 = arith.constant 0 : i32
    return %arg0, %c0_i32 : i32, i32
  }
  func.func @transform_16(%arg0: i32) -> (i32, i32) {
    %c0_i32 = arith.constant 0 : i32
    %c0_i32_0 = arith.constant 0 : i32
    return %arg0, %c0_i32 : i32, i32
  }
  func.func @transform_17(%arg0: i32) -> (i32, i32) {
    %c0_i32 = arith.constant 0 : i32
    %c0_i32_0 = arith.constant 0 : i32
    return %arg0, %c0_i32 : i32, i32
  }
}

</mosaic_0001>

<llo_original>
// kernel: class_aux_vae_forward.4
$region0: #{class_aux_vae_forward.4}
  #allocation0 [shape = 'u32[]', space=smem, size = 0x4, offset = 0x4, fixed_abs, tag = 'smem constant byte address 0x4 - core index']
  #allocation1 [shape = 'u32[144,128]{1,0:T(1,128)}', space=vmem, size = 0x12000, scoped, tag = 'internal scratch']
  %s0 = inlined_call_operand.vmem [shape: bf16[392,64], index: 0, kind: input, shape index: {}]
  %s1 = inlined_call_operand.vmem [shape: bf16[64,64], index: 1, kind: input, shape index: {}]
  %s2 = inlined_call_operand.vmem [shape: f32[1,64], index: 2, kind: input, shape index: {}]
  %s3 = inlined_call_operand.vmem [shape: bf16[392,64], index: 3, kind: output, shape index: {}]
  %s4 = sld [smem:[#allocation0]]
  $region22: #{class_aux_vae_forward.4} parent=0
    _
  %s6 = ssub.s32 1, %s4
  %s7 = scalar_select 0, %s6, %s4
  // Predicated region
  $region2: #{class_aux_vae_forward.4} parent=0 // pred_check
    _
  $region3: #{class_aux_vae_forward.4} parent=0 // pred_check_branch
    %9 = sbr.rel (0) target = $region5
  $region4: #{class_aux_vae_forward.4} parent=0 // pred_region
    _
  $region5: #{class_aux_vae_forward.4} parent=0 // pred_fallthru
    _
  // Predicated region
  $region6: #{class_aux_vae_forward.4} parent=0 // pred_check
    _
  $region7: #{class_aux_vae_forward.4} parent=0 // pred_check_branch
    %11 = sbr.rel (0) target = $region9
  $region8: #{class_aux_vae_forward.4} parent=0 // pred_region
    _
  $region9: #{class_aux_vae_forward.4} parent=0 // pred_fallthru
    _
  // Predicated region
  $region10: #{class_aux_vae_forward.4} parent=0 // pred_check
    _
  $region11: #{class_aux_vae_forward.4} parent=0 // pred_check_branch
    %13 = sbr.rel (0) target = $region13
  $region12: #{class_aux_vae_forward.4} parent=0 // pred_region
    _
  $region13: #{class_aux_vae_forward.4} parent=0 // pred_fallthru
    _
  %v15 = vld [vmem:[%s0] sm:$0xf]
  %v16 = vld [vmem:[%s0 + $0x4] sm:$0xf]
  %v17 = vld [vmem:[%s0 + $0x8] sm:$0xf]
  %v18 = vld [vmem:[%s0 + $0xc] sm:$0xf]
  %v19 = vld [vmem:[%s0 + $0x10] sm:$0xf]
  %v20 = vld [vmem:[%s0 + $0x14] sm:$0xf]
  %v21 = vld [vmem:[%s0 + $0x18] sm:$0xf]
  %v22 = vld [vmem:[%s0 + $0x1c] sm:$0xf]
  %v23 = vld [vmem:[%s0 + $0x20] sm:$0xf]
  %v24 = vld [vmem:[%s0 + $0x24] sm:$0xf]
  %v25 = vld [vmem:[%s0 + $0x28] sm:$0xf]
  %v26 = vld [vmem:[%s0 + $0x2c] sm:$0xf]
  %v27 = vld [vmem:[%s0 + $0x30] sm:$0xf]
  %v28 = vld [vmem:[%s0 + $0x34] sm:$0xf]
  %v29 = vld [vmem:[%s0 + $0x38] sm:$0xf]
  %v30 = vld [vmem:[%s0 + $0x3c] sm:$0xf]
  %v31 = vld [vmem:[%s0 + $0x40] sm:$0xf]
  %v32 = vld [vmem:[%s0 + $0x44] sm:$0xf]
  %v33 = vld [vmem:[%s0 + $0x48] sm:$0xf]
  %v34 = vld [vmem:[%s0 + $0x4c] sm:$0xf]
  %v35 = vld [vmem:[%s0 + $0x50] sm:$0xf]
  %v36 = vld [vmem:[%s0 + $0x54] sm:$0xf]
  %v37 = vld [vmem:[%s0 + $0x58] sm:$0xf]
  %v38 = vld [vmem:[%s0 + $0x5c] sm:$0xf]
  %v39 = vld [vmem:[%s0 + $0x60] sm:$0xf]
  %v40 = vld [vmem:[%s0 + $0x64] sm:$0xf]
  %v41 = vld [vmem:[%s0 + $0x68] sm:$0xf]
  %v42 = vld [vmem:[%s0 + $0x6c] sm:$0xf]
  %v43 = vld [vmem:[%s0 + $0x70] sm:$0xf]
  %v44 = vld [vmem:[%s0 + $0x74] sm:$0xf]
  %v45 = vld [vmem:[%s0 + $0x78] sm:$0xf]
  %v46 = vld [vmem:[%s0 + $0x7c] sm:$0xf]
  %v47 = vld [vmem:[%s0 + $0x80] sm:$0xf]
  %v48 = vld [vmem:[%s0 + $0x84] sm:$0xf]
  %v49 = vld [vmem:[%s0 + $0x88] sm:$0xf]
  %v50 = vld [vmem:[%s0 + $0x8c] sm:$0xf]
  %v51 = vld [vmem:[%s0 + $0x90] sm:$0xf]
  %v52 = vld [vmem:[%s0 + $0x94] sm:$0xf]
  %v53 = vld [vmem:[%s0 + $0x98] sm:$0xf]
  %v54 = vld [vmem:[%s0 + $0x9c] sm:$0xf]
  %v55 = vld [vmem:[%s0 + $0xa0] sm:$0xf]
  %v56 = vld [vmem:[%s0 + $0xa4] sm:$0xf]
  %v57 = vld [vmem:[%s0 + $0xa8] sm:$0xf]
  %v58 = vld [vmem:[%s0 + $0xac] sm:$0xf]
  %v59 = vld [vmem:[%s0 + $0xb0] sm:$0xf]
  %v60 = vld [vmem:[%s0 + $0xb4] sm:$0xf]
  %v61 = vld [vmem:[%s0 + $0xb8] sm:$0xf]
  %v62 = vld [vmem:[%s0 + $0xbc] sm:$0xf]
  %v63 = vld [vmem:[%s0 + $0xc0] sm:$0xf]
  %v64 = vld [vmem:[%s1] sm:$0xf]
  %v65 = vld [vmem:[%s1 + $0x4] sm:$0xf]
  %v66 = vld [vmem:[%s1 + $0x8] sm:$0xf]
  %v67 = vld [vmem:[%s1 + $0xc] sm:$0xf]
  %v68 = vld [vmem:[%s1 + $0x10] sm:$0xf]
  %v69 = vld [vmem:[%s1 + $0x14] sm:$0xf]
  %v70 = vld [vmem:[%s1 + $0x18] sm:$0xf]
  %v71 = vld [vmem:[%s1 + $0x1c] sm:$0xf]
  %v72 = vld [vmem:[%s2] sm:$0x1]
  %v74 = vlaneseq
  %v75 = vshrl.u32 %v74, 7
  %v76 = vsub.s32 0, %v75
  %v77 = vrot.slane %v72, %v76
  %v128 = vunpack.c.l.b16 %v15
  %v129 = vunpack.c.l.b16 %v16
  %v130 = vunpack.c.l.b16 %v17
  %v131 = vunpack.c.l.b16 %v18
  %v132 = vunpack.c.l.b16 %v19
  %v133 = vunpack.c.l.b16 %v20
  %v134 = vunpack.c.l.b16 %v21
  %v135 = vunpack.c.l.b16 %v22
  %v136 = vunpack.c.l.b16 %v23
  %v137 = vunpack.c.l.b16 %v24
  %v138 = vunpack.c.l.b16 %v25
  %v139 = vunpack.c.l.b16 %v26
  %v140 = vunpack.c.l.b16 %v27
  %v141 = vunpack.c.l.b16 %v28
  %v142 = vunpack.c.l.b16 %v29
  %v143 = vunpack.c.l.b16 %v30
  %v144 = vunpack.c.l.b16 %v31
  %v145 = vunpack.c.l.b16 %v32
  %v146 = vunpack.c.l.b16 %v33
  %v147 = vunpack.c.l.b16 %v34
  %v148 = vunpack.c.l.b16 %v35
  %v149 = vunpack.c.l.b16 %v36
  %v150 = vunpack.c.l.b16 %v37
  %v151 = vunpack.c.l.b16 %v38
  %v152 = vunpack.c.l.b16 %v39
  %v153 = vunpack.c.l.b16 %v40
  %v154 = vunpack.c.l.b16 %v41
  %v155 = vunpack.c.l.b16 %v42
  %v156 = vunpack.c.l.b16 %v43
  %v157 = vunpack.c.l.b16 %v44
  %v158 = vunpack.c.l.b16 %v45
  %v159 = vunpack.c.l.b16 %v46
  %v160 = vunpack.c.l.b16 %v47
  %v161 = vunpack.c.l.b16 %v48
  %v162 = vunpack.c.l.b16 %v49
  %v163 = vunpack.c.l.b16 %v50
  %v164 = vunpack.c.l.b16 %v51
  %v165 = vunpack.c.l.b16 %v52
  %v166 = vunpack.c.l.b16 %v53
  %v167 = vunpack.c.l.b16 %v54
  %v168 = vunpack.c.l.b16 %v55
  %v169 = vunpack.c.l.b16 %v56
  %v170 = vunpack.c.l.b16 %v57
  %v171 = vunpack.c.l.b16 %v58
  %v172 = vunpack.c.l.b16 %v59
  %v173 = vunpack.c.l.b16 %v60
  %v174 = vunpack.c.l.b16 %v61
  %v175 = vunpack.c.l.b16 %v62
  %v176 = vunpack.c.l.b16 %v63
  %v177 = vpack.c.b16 %v129, %v128
  %v178 = vpack.c.b16 %v131, %v130
  %v179 = vpack.c.b16 %v133, %v132
  %v180 = vpack.c.b16 %v135, %v134
  %v181 = vpack.c.b16 %v137, %v136
  %v182 = vpack.c.b16 %v139, %v138
  %v183 = vpack.c.b16 %v141, %v140
  %v184 = vpack.c.b16 %v143, %v142
  %v185 = vpack.c.b16 %v145, %v144
  %v186 = vpack.c.b16 %v147, %v146
  %v187 = vpack.c.b16 %v149, %v148
  %v188 = vpack.c.b16 %v151, %v150
  %v189 = vpack.c.b16 %v153, %v152
  %v190 = vpack.c.b16 %v155, %v154
  %v191 = vpack.c.b16 %v157, %v156
  %v192 = vpack.c.b16 %v159, %v158
  %v193 = vpack.c.b16 %v161, %v160
  %v194 = vpack.c.b16 %v163, %v162
  %v195 = vpack.c.b16 %v165, %v164
  %v196 = vpack.c.b16 %v167, %v166
  %v197 = vpack.c.b16 %v169, %v168
  %v198 = vpack.c.b16 %v171, %v170
  %v199 = vpack.c.b16 %v173, %v172
  %v200 = vpack.c.b16 %v175, %v174
  %v201 = vpack.c.b16 %v176, %v176
  %v210 = vunpack.c.l.b16 %v64
  %v211 = vunpack.c.l.b16 %v65
  %v212 = vunpack.c.l.b16 %v66
  %v213 = vunpack.c.l.b16 %v67
  %v214 = vunpack.c.l.b16 %v68
  %v215 = vunpack.c.l.b16 %v69
  %v216 = vunpack.c.l.b16 %v70
  %v217 = vunpack.c.l.b16 %v71
  %v218 = vpack.c.b16 %v211, %v210
  %v219 = vpack.c.b16 %v213, %v212
  %v220 = vpack.c.b16 %v215, %v214
  %v221 = vpack.c.b16 %v217, %v216
  %vm226 = vcmask 523264
  %v228 = vsel %vm226, %v177, 0
  %v231 = vsel %vm226, %v178, 0
  %v234 = vsel %vm226, %v179, 0
  %v237 = vsel %vm226, %v180, 0
  %v240 = vsel %vm226, %v181, 0
  %v243 = vsel %vm226, %v182, 0
  %v246 = vsel %vm226, %v183, 0
  %v249 = vsel %vm226, %v184, 0
  %v252 = vsel %vm226, %v185, 0
  %v255 = vsel %vm226, %v186, 0
  %v258 = vsel %vm226, %v187, 0
  %v261 = vsel %vm226, %v188, 0
  %v264 = vsel %vm226, %v189, 0
  %v267 = vsel %vm226, %v190, 0
  %v270 = vsel %vm226, %v191, 0
  %v273 = vsel %vm226, %v192, 0
  %v276 = vsel %vm226, %v193, 0
  %v279 = vsel %vm226, %v194, 0
  %v282 = vsel %vm226, %v195, 0
  %v285 = vsel %vm226, %v196, 0
  %v288 = vsel %vm226, %v197, 0
  %v291 = vsel %vm226, %v198, 0
  %v294 = vsel %vm226, %v199, 0
  %v297 = vsel %vm226, %v200, 0
  %v300 = vsel %vm226, %v201, 0
  %302 = vmatprep.subr.bf16.mxu0 0
  %303 = vmatpush1.bf16.msra.mxu0 0
  %304 = vmatprep.subr.bf16.mxu0 0
  %305 = vmatpush1.bf16.msra.mxu0 0
  %306 = vmatprep.subr.bf16.mxu0 0
  %307 = vmatpush1.bf16.msra.mxu0 0
  %308 = vmatprep.subr.bf16.mxu0 0
  %309 = vmatpush1.bf16.msra.mxu0 0
  %310 = vmatprep.subr.bf16.mxu0 0
  %311 = vmatpush1.bf16.msra.mxu0 %v221
  %312 = vmatprep.subr.bf16.mxu0 0
  %313 = vmatpush1.bf16.msra.mxu0 %v220
  %314 = vmatprep.subr.bf16.mxu0 0
  %315 = vmatpush1.bf16.msra.mxu0 %v219
  %316 = vmatprep.subr.bf16.mxu0 0
  %317 = vmatpush1.bf16.msra.mxu0 %v218
  %318 = vmatprep.subr.bf16.mxu0 0
  %319 = vmatpush2.bf16.msra.mxu0 0
  %320 = vmatprep.subr.bf16.mxu0 0
  %321 = vmatpush2.bf16.msra.mxu0 0
  %322 = vmatprep.subr.bf16.mxu0 0
  %323 = vmatpush2.bf16.msra.mxu0 0
  %324 = vmatprep.subr.bf16.mxu0 0
  %325 = vmatpush2.bf16.msra.mxu0 0
  %326 = vmatprep.subr.bf16.mxu0 0
  %327 = vmatpush2.bf16.msra.mxu0 0
  %328 = vmatprep.subr.bf16.mxu0 0
  %329 = vmatpush2.bf16.msra.mxu0 0
  %330 = vmatprep.subr.bf16.mxu0 0
  %331 = vmatpush2.bf16.msra.mxu0 0
  %332 = vmatprep.subr.bf16.mxu0 0
  %333 = vmatpush2.bf16.msra.mxu0 0
  %334 = vmatprep.mubr.bf16.mxu0 0
  %335 = vmatmul.mubr.bf16.gmra.mxu0 %v228
  %v336 = vpop.f32.mrf.mxu0
  %v337 = vadd.f32 %v77, %v336
  %v338 = vpop.f32.mrf.mxu0
  %v339 = vpop.f32.mrf.mxu0
  %v340 = vadd.f32 %v77, %v339
  %v341 = vpop.f32.mrf.mxu0
  %342 = vmatprep.mubr.bf16.mxu0 0
  %343 = vmatmul.mubr.bf16.gmra.mxu0 %v231
  %v344 = vpop.f32.mrf.mxu0
  %v345 = vadd.f32 %v77, %v344
  %v346 = vpop.f32.mrf.mxu0
  %v347 = vpop.f32.mrf.mxu0
  %v348 = vadd.f32 %v77, %v347
  %v349 = vpop.f32.mrf.mxu0
  %350 = vmatprep.mubr.bf16.mxu0 0
  %351 = vmatmul.mubr.bf16.gmra.mxu0 %v234
  %v352 = vpop.f32.mrf.mxu0
  %v353 = vadd.f32 %v77, %v352
  %v354 = vpop.f32.mrf.mxu0
  %v355 = vpop.f32.mrf.mxu0
  %v356 = vadd.f32 %v77, %v355
  %v357 = vpop.f32.mrf.mxu0
  %358 = vmatprep.mubr.bf16.mxu0 0
  %359 = vmatmul.mubr.bf16.gmra.mxu0 %v237
  %v360 = vpop.f32.mrf.mxu0
  %v361 = vadd.f32 %v77, %v360
  %v362 = vpop.f32.mrf.mxu0
  %v363 = vpop.f32.mrf.mxu0
  %v364 = vadd.f32 %v77, %v363
  %v365 = vpop.f32.mrf.mxu0
  %366 = vmatprep.mubr.bf16.mxu0 0
  %367 = vmatmul.mubr.bf16.gmra.mxu0 %v240
  %v368 = vpop.f32.mrf.mxu0
  %v369 = vadd.f32 %v77, %v368
  %v370 = vpop.f32.mrf.mxu0
  %v371 = vpop.f32.mrf.mxu0
  %v372 = vadd.f32 %v77, %v371
  %v373 = vpop.f32.mrf.mxu0
  %374 = vmatprep.mubr.bf16.mxu0 0
  %375 = vmatmul.mubr.bf16.gmra.mxu0 %v243
  %v376 = vpop.f32.mrf.mxu0
  %v377 = vadd.f32 %v77, %v376
  %v378 = vpop.f32.mrf.mxu0
  %v379 = vpop.f32.mrf.mxu0
  %v380 = vadd.f32 %v77, %v379
  %v381 = vpop.f32.mrf.mxu0
  %382 = vmatprep.mubr.bf16.mxu0 0
  %383 = vmatmul.mubr.bf16.gmra.mxu0 %v246
  %v384 = vpop.f32.mrf.mxu0
  %v385 = vadd.f32 %v77, %v384
  %v386 = vpop.f32.mrf.mxu0
  %v387 = vpop.f32.mrf.mxu0
  %v388 = vadd.f32 %v77, %v387
  %v389 = vpop.f32.mrf.mxu0
  %390 = vmatprep.mubr.bf16.mxu0 0
  %391 = vmatmul.mubr.bf16.gmra.mxu0 %v249
  %v392 = vpop.f32.mrf.mxu0
  %v393 = vadd.f32 %v77, %v392
  %v394 = vpop.f32.mrf.mxu0
  %v395 = vpop.f32.mrf.mxu0
  %v396 = vadd.f32 %v77, %v395
  %v397 = vpop.f32.mrf.mxu0
  %398 = vmatprep.mubr.bf16.mxu0 0
  %399 = vmatmul.mubr.bf16.gmra.mxu0 %v252
  %v400 = vpop.f32.mrf.mxu0
  %v401 = vadd.f32 %v77, %v400
  %v402 = vpop.f32.mrf.mxu0
  %v403 = vpop.f32.mrf.mxu0
  %v404 = vadd.f32 %v77, %v403
  %v405 = vpop.f32.mrf.mxu0
  %406 = vmatprep.mubr.bf16.mxu0 0
  %407 = vmatmul.mubr.bf16.gmra.mxu0 %v255
  %v408 = vpop.f32.mrf.mxu0
  %v409 = vadd.f32 %v77, %v408
  %v410 = vpop.f32.mrf.mxu0
  %v411 = vpop.f32.mrf.mxu0
  %v412 = vadd.f32 %v77, %v411
  %v413 = vpop.f32.mrf.mxu0
  %414 = vmatprep.mubr.bf16.mxu0 0
  %415 = vmatmul.mubr.bf16.gmra.mxu0 %v258
  %v416 = vpop.f32.mrf.mxu0
  %v417 = vadd.f32 %v77, %v416
  %v418 = vpop.f32.mrf.mxu0
  %v419 = vpop.f32.mrf.mxu0
  %v420 = vadd.f32 %v77, %v419
  %v421 = vpop.f32.mrf.mxu0
  %422 = vmatprep.mubr.bf16.mxu0 0
  %423 = vmatmul.mubr.bf16.gmra.mxu0 %v261
  %v424 = vpop.f32.mrf.mxu0
  %v425 = vadd.f32 %v77, %v424
  %v426 = vpop.f32.mrf.mxu0
  %v427 = vpop.f32.mrf.mxu0
  %v428 = vadd.f32 %v77, %v427
  %v429 = vpop.f32.mrf.mxu0
  %430 = vmatprep.mubr.bf16.mxu0 0
  %431 = vmatmul.mubr.bf16.gmra.mxu0 %v264
  %v432 = vpop.f32.mrf.mxu0
  %v433 = vadd.f32 %v77, %v432
  %v434 = vpop.f32.mrf.mxu0
  %v435 = vpop.f32.mrf.mxu0
  %v436 = vadd.f32 %v77, %v435
  %v437 = vpop.f32.mrf.mxu0
  %438 = vmatprep.mubr.bf16.mxu0 0
  %439 = vmatmul.mubr.bf16.gmra.mxu0 %v267
  %v440 = vpop.f32.mrf.mxu0
  %v441 = vadd.f32 %v77, %v440
  %v442 = vpop.f32.mrf.mxu0
  %v443 = vpop.f32.mrf.mxu0
  %v444 = vadd.f32 %v77, %v443
  %v445 = vpop.f32.mrf.mxu0
  %446 = vmatprep.mubr.bf16.mxu0 0
  %447 = vmatmul.mubr.bf16.gmra.mxu0 %v270
  %v448 = vpop.f32.mrf.mxu0
  %v449 = vadd.f32 %v77, %v448
  %v450 = vpop.f32.mrf.mxu0
  %v451 = vpop.f32.mrf.mxu0
  %v452 = vadd.f32 %v77, %v451
  %v453 = vpop.f32.mrf.mxu0
  %454 = vmatprep.mubr.bf16.mxu0 0
  %455 = vmatmul.mubr.bf16.gmra.mxu0 %v273
  %v456 = vpop.f32.mrf.mxu0
  %v457 = vadd.f32 %v77, %v456
  %v458 = vpop.f32.mrf.mxu0
  %v459 = vpop.f32.mrf.mxu0
  %v460 = vadd.f32 %v77, %v459
  %v461 = vpop.f32.mrf.mxu0
  %462 = vmatprep.mubr.bf16.mxu0 0
  %463 = vmatmul.mubr.bf16.gmra.mxu0 %v276
  %v464 = vpop.f32.mrf.mxu0
  %v465 = vadd.f32 %v77, %v464
  %v466 = vpop.f32.mrf.mxu0
  %v467 = vpop.f32.mrf.mxu0
  %v468 = vadd.f32 %v77, %v467
  %v469 = vpop.f32.mrf.mxu0
  %470 = vmatprep.mubr.bf16.mxu0 0
  %471 = vmatmul.mubr.bf16.gmra.mxu0 %v279
  %v472 = vpop.f32.mrf.mxu0
  %v473 = vadd.f32 %v77, %v472
  %v474 = vpop.f32.mrf.mxu0
  %v475 = vpop.f32.mrf.mxu0
  %v476 = vadd.f32 %v77, %v475
  %v477 = vpop.f32.mrf.mxu0
  %478 = vmatprep.mubr.bf16.mxu0 0
  %479 = vmatmul.mubr.bf16.gmra.mxu0 %v282
  %v480 = vpop.f32.mrf.mxu0
  %v481 = vadd.f32 %v77, %v480
  %v482 = vpop.f32.mrf.mxu0
  %v483 = vpop.f32.mrf.mxu0
  %v484 = vadd.f32 %v77, %v483
  %v485 = vpop.f32.mrf.mxu0
  %486 = vmatprep.mubr.bf16.mxu0 0
  %487 = vmatmul.mubr.bf16.gmra.mxu0 %v285
  %v488 = vpop.f32.mrf.mxu0
  %v489 = vadd.f32 %v77, %v488
  %v490 = vpop.f32.mrf.mxu0
  %v491 = vpop.f32.mrf.mxu0
  %v492 = vadd.f32 %v77, %v491
  %v493 = vpop.f32.mrf.mxu0
  %494 = vmatprep.mubr.bf16.mxu0 0
  %495 = vmatmul.mubr.bf16.gmra.mxu0 %v288
  %v496 = vpop.f32.mrf.mxu0
  %v497 = vadd.f32 %v77, %v496
  %v498 = vpop.f32.mrf.mxu0
  %v499 = vpop.f32.mrf.mxu0
  %v500 = vadd.f32 %v77, %v499
  %v501 = vpop.f32.mrf.mxu0
  %502 = vmatprep.mubr.bf16.mxu0 0
  %503 = vmatmul.mubr.bf16.gmra.mxu0 %v291
  %v504 = vpop.f32.mrf.mxu0
  %v505 = vadd.f32 %v77, %v504
  %v506 = vpop.f32.mrf.mxu0
  %v507 = vpop.f32.mrf.mxu0
  %v508 = vadd.f32 %v77, %v507
  %v509 = vpop.f32.mrf.mxu0
  %510 = vmatprep.mubr.bf16.mxu0 0
  %511 = vmatmul.mubr.bf16.gmra.mxu0 %v294
  %v512 = vpop.f32.mrf.mxu0
  %v513 = vadd.f32 %v77, %v512
  %v514 = vpop.f32.mrf.mxu0
  %v515 = vpop.f32.mrf.mxu0
  %v516 = vadd.f32 %v77, %v515
  %v517 = vpop.f32.mrf.mxu0
  %518 = vmatprep.mubr.bf16.mxu0 0
  %519 = vmatmul.mubr.bf16.gmra.mxu0 %v297
  %v520 = vpop.f32.mrf.mxu0
  %v521 = vadd.f32 %v77, %v520
  %v522 = vpop.f32.mrf.mxu0
  %v523 = vpop.f32.mrf.mxu0
  %v524 = vadd.f32 %v77, %v523
  %v525 = vpop.f32.mrf.mxu0
  %526 = vmatprep.mubr.bf16.mxu0 0
  %527 = vmatmul.mubr.bf16.gmra.mxu0 %v300
  %v528 = vpop.f32.mrf.mxu0
  %v529 = vadd.f32 %v77, %v528
  %v530 = vpop.f32.mrf.mxu0
  %v531 = vpop.f32.mrf.mxu0
  %v532 = vpop.f32.mrf.mxu0
  %533 = vdwg.mxu0
  %v534 = vmax.f32 %v337, 0.0
  %v535 = vmax.f32 %v340, 0.0
  %v536 = vmax.f32 %v345, 0.0
  %v537 = vmax.f32 %v348, 0.0
  %v538 = vmax.f32 %v353, 0.0
  %v539 = vmax.f32 %v356, 0.0
  %v540 = vmax.f32 %v361, 0.0
  %v541 = vmax.f32 %v364, 0.0
  %v542 = vmax.f32 %v369, 0.0
  %v543 = vmax.f32 %v372, 0.0
  %v544 = vmax.f32 %v377, 0.0
  %v545 = vmax.f32 %v380, 0.0
  %v546 = vmax.f32 %v385, 0.0
  %v547 = vmax.f32 %v388, 0.0
  %v548 = vmax.f32 %v393, 0.0
  %v549 = vmax.f32 %v396, 0.0
  %v550 = vmax.f32 %v401, 0.0
  %v551 = vmax.f32 %v404, 0.0
  %v552 = vmax.f32 %v409, 0.0
  %v553 = vmax.f32 %v412, 0.0
  %v554 = vmax.f32 %v417, 0.0
  %v555 = vmax.f32 %v420, 0.0
  %v556 = vmax.f32 %v425, 0.0
  %v557 = vmax.f32 %v428, 0.0
  %v558 = vmax.f32 %v433, 0.0
  %v559 = vmax.f32 %v436, 0.0
  %v560 = vmax.f32 %v441, 0.0
  %v561 = vmax.f32 %v444, 0.0
  %v562 = vmax.f32 %v449, 0.0
  %v563 = vmax.f32 %v452, 0.0
  %v564 = vmax.f32 %v457, 0.0
  %v565 = vmax.f32 %v460, 0.0
  %v566 = vmax.f32 %v465, 0.0
  %v567 = vmax.f32 %v468, 0.0
  %v568 = vmax.f32 %v473, 0.0
  %v569 = vmax.f32 %v476, 0.0
  %v570 = vmax.f32 %v481, 0.0
  %v571 = vmax.f32 %v484, 0.0
  %v572 = vmax.f32 %v489, 0.0
  %v573 = vmax.f32 %v492, 0.0
  %v574 = vmax.f32 %v497, 0.0
  %v575 = vmax.f32 %v500, 0.0
  %v576 = vmax.f32 %v505, 0.0
  %v577 = vmax.f32 %v508, 0.0
  %v578 = vmax.f32 %v513, 0.0
  %v579 = vmax.f32 %v516, 0.0
  %v580 = vmax.f32 %v521, 0.0
  %v581 = vmax.f32 %v524, 0.0
  %v582 = vmax.f32 %v529, 0.0
  %v583 = vpack.c.bf16 %v535, %v534
  %v584 = vpack.c.bf16 %v537, %v536
  %v585 = vpack.c.bf16 %v539, %v538
  %v586 = vpack.c.bf16 %v541, %v540
  %v587 = vpack.c.bf16 %v543, %v542
  %v588 = vpack.c.bf16 %v545, %v544
  %v589 = vpack.c.bf16 %v547, %v546
  %v590 = vpack.c.bf16 %v549, %v548
  %v591 = vpack.c.bf16 %v551, %v550
  %v592 = vpack.c.bf16 %v553, %v552
  %v593 = vpack.c.bf16 %v555, %v554
  %v594 = vpack.c.bf16 %v557, %v556
  %v595 = vpack.c.bf16 %v559, %v558
  %v596 = vpack.c.bf16 %v561, %v560
  %v597 = vpack.c.bf16 %v563, %v562
  %v598 = vpack.c.bf16 %v565, %v564
  %v599 = vpack.c.bf16 %v567, %v566
  %v600 = vpack.c.bf16 %v569, %v568
  %v601 = vpack.c.bf16 %v571, %v570
  %v602 = vpack.c.bf16 %v573, %v572
  %v603 = vpack.c.bf16 %v575, %v574
  %v604 = vpack.c.bf16 %v577, %v576
  %v605 = vpack.c.bf16 %v579, %v578
  %v606 = vpack.c.bf16 %v581, %v580
  %v607 = vpack.c.bf16 %v582, %v582
  %v633 = vunpack.c.l.b16 %v583
  %v634 = vunpack.c.h.b16 %v583
  %v635 = vunpack.c.l.b16 %v584
  %v636 = vunpack.c.h.b16 %v584
  %v637 = vunpack.c.l.b16 %v585
  %v638 = vunpack.c.h.b16 %v585
  %v639 = vunpack.c.l.b16 %v586
  %v640 = vunpack.c.h.b16 %v586
  %v641 = vunpack.c.l.b16 %v587
  %v642 = vunpack.c.h.b16 %v587
  %v643 = vunpack.c.l.b16 %v588
  %v644 = vunpack.c.h.b16 %v588
  %v645 = vunpack.c.l.b16 %v589
  %v646 = vunpack.c.h.b16 %v589
  %v647 = vunpack.c.l.b16 %v590
  %v648 = vunpack.c.h.b16 %v590
  %v649 = vunpack.c.l.b16 %v591
  %v650 = vunpack.c.h.b16 %v591
  %v651 = vunpack.c.l.b16 %v592
  %v652 = vunpack.c.h.b16 %v592
  %v653 = vunpack.c.l.b16 %v593
  %v654 = vunpack.c.h.b16 %v593
  %v655 = vunpack.c.l.b16 %v594
  %v656 = vunpack.c.h.b16 %v594
  %v657 = vunpack.c.l.b16 %v595
  %v658 = vunpack.c.h.b16 %v595
  %v659 = vunpack.c.l.b16 %v596
  %v660 = vunpack.c.h.b16 %v596
  %v661 = vunpack.c.l.b16 %v597
  %v662 = vunpack.c.h.b16 %v597
  %v663 = vunpack.c.l.b16 %v598
  %v664 = vunpack.c.h.b16 %v598
  %v665 = vunpack.c.l.b16 %v599
  %v666 = vunpack.c.h.b16 %v599
  %v667 = vunpack.c.l.b16 %v600
  %v668 = vunpack.c.h.b16 %v600
  %v669 = vunpack.c.l.b16 %v601
  %v670 = vunpack.c.h.b16 %v601
  %v671 = vunpack.c.l.b16 %v602
  %v672 = vunpack.c.h.b16 %v602
  %v673 = vunpack.c.l.b16 %v603
  %v674 = vunpack.c.h.b16 %v603
  %v675 = vunpack.c.l.b16 %v604
  %v676 = vunpack.c.h.b16 %v604
  %v677 = vunpack.c.l.b16 %v605
  %v678 = vunpack.c.h.b16 %v605
  %v679 = vunpack.c.l.b16 %v606
  %v680 = vunpack.c.h.b16 %v606
  %v681 = vunpack.c.l.b16 %v607
  %v682 = vpack.c.b16 %v633, %v633
  %v683 = vpack.c.b16 %v634, %v634
  %v684 = vpack.c.b16 %v635, %v635
  %v685 = vpack.c.b16 %v636, %v636
  %v686 = vpack.c.b16 %v637, %v637
  %v687 = vpack.c.b16 %v638, %v638
  %v688 = vpack.c.b16 %v639, %v639
  %v689 = vpack.c.b16 %v640, %v640
  %v690 = vpack.c.b16 %v641, %v641
  %v691 = vpack.c.b16 %v642, %v642
  %v692 = vpack.c.b16 %v643, %v643
  %v693 = vpack.c.b16 %v644, %v644
  %v694 = vpack.c.b16 %v645, %v645
  %v695 = vpack.c.b16 %v646, %v646
  %v696 = vpack.c.b16 %v647, %v647
  %v697 = vpack.c.b16 %v648, %v648
  %v698 = vpack.c.b16 %v649, %v649
  %v699 = vpack.c.b16 %v650, %v650
  %v700 = vpack.c.b16 %v651, %v651
  %v701 = vpack.c.b16 %v652, %v652
  %v702 = vpack.c.b16 %v653, %v653
  %v703 = vpack.c.b16 %v654, %v654
  %v704 = vpack.c.b16 %v655, %v655
  %v705 = vpack.c.b16 %v656, %v656
  %v706 = vpack.c.b16 %v657, %v657
  %v707 = vpack.c.b16 %v658, %v658
  %v708 = vpack.c.b16 %v659, %v659
  %v709 = vpack.c.b16 %v660, %v660
  %v710 = vpack.c.b16 %v661, %v661
  %v711 = vpack.c.b16 %v662, %v662
  %v712 = vpack.c.b16 %v663, %v663
  %v713 = vpack.c.b16 %v664, %v664
  %v714 = vpack.c.b16 %v665, %v665
  %v715 = vpack.c.b16 %v666, %v666
  %v716 = vpack.c.b16 %v667, %v667
  %v717 = vpack.c.b16 %v668, %v668
  %v718 = vpack.c.b16 %v669, %v669
  %v719 = vpack.c.b16 %v670, %v670
  %v720 = vpack.c.b16 %v671, %v671
  %v721 = vpack.c.b16 %v672, %v672
  %v722 = vpack.c.b16 %v673, %v673
  %v723 = vpack.c.b16 %v674, %v674
  %v724 = vpack.c.b16 %v675, %v675
  %v725 = vpack.c.b16 %v676, %v676
  %v726 = vpack.c.b16 %v677, %v677
  %v727 = vpack.c.b16 %v678, %v678
  %v728 = vpack.c.b16 %v679, %v679
  %v729 = vpack.c.b16 %v680, %v680
  %v730 = vpack.c.b16 %v681, %v681
  %vm780 = vcmask 519168
  %781 = vst.msk [vmem:[%s3] sm:$0xf] %vm780, %v682
  %782 = vst.msk [vmem:[%s3 + $0x4] sm:$0xf] %vm780, %v683
  %783 = vst.msk [vmem:[%s3 + $0x8] sm:$0xf] %vm780, %v684
  %784 = vst.msk [vmem:[%s3 + $0xc] sm:$0xf] %vm780, %v685
  %785 = vst.msk [vmem:[%s3 + $0x10] sm:$0xf] %vm780, %v686
  %786 = vst.msk [vmem:[%s3 + $0x14] sm:$0xf] %vm780, %v687
  %787 = vst.msk [vmem:[%s3 + $0x18] sm:$0xf] %vm780, %v688
  %788 = vst.msk [vmem:[%s3 + $0x1c] sm:$0xf] %vm780, %v689
  %789 = vst.msk [vmem:[%s3 + $0x20] sm:$0xf] %vm780, %v690
  %790 = vst.msk [vmem:[%s3 + $0x24] sm:$0xf] %vm780, %v691
  %791 = vst.msk [vmem:[%s3 + $0x28] sm:$0xf] %vm780, %v692
  %792 = vst.msk [vmem:[%s3 + $0x2c] sm:$0xf] %vm780, %v693
  %793 = vst.msk [vmem:[%s3 + $0x30] sm:$0xf] %vm780, %v694
  %794 = vst.msk [vmem:[%s3 + $0x34] sm:$0xf] %vm780, %v695
  %795 = vst.msk [vmem:[%s3 + $0x38] sm:$0xf] %vm780, %v696
  %796 = vst.msk [vmem:[%s3 + $0x3c] sm:$0xf] %vm780, %v697
  %797 = vst.msk [vmem:[%s3 + $0x40] sm:$0xf] %vm780, %v698
  %798 = vst.msk [vmem:[%s3 + $0x44] sm:$0xf] %vm780, %v699
  %799 = vst.msk [vmem:[%s3 + $0x48] sm:$0xf] %vm780, %v700
  %800 = vst.msk [vmem:[%s3 + $0x4c] sm:$0xf] %vm780, %v701
  %801 = vst.msk [vmem:[%s3 + $0x50] sm:$0xf] %vm780, %v702
  %802 = vst.msk [vmem:[%s3 + $0x54] sm:$0xf] %vm780, %v703
  %803 = vst.msk [vmem:[%s3 + $0x58] sm:$0xf] %vm780, %v704
  %804 = vst.msk [vmem:[%s3 + $0x5c] sm:$0xf] %vm780, %v705
  %805 = vst.msk [vmem:[%s3 + $0x60] sm:$0xf] %vm780, %v706
  %806 = vst.msk [vmem:[%s3 + $0x64] sm:$0xf] %vm780, %v707
  %807 = vst.msk [vmem:[%s3 + $0x68] sm:$0xf] %vm780, %v708
  %808 = vst.msk [vmem:[%s3 + $0x6c] sm:$0xf] %vm780, %v709
  %809 = vst.msk [vmem:[%s3 + $0x70] sm:$0xf] %vm780, %v710
  %810 = vst.msk [vmem:[%s3 + $0x74] sm:$0xf] %vm780, %v711
  %811 = vst.msk [vmem:[%s3 + $0x78] sm:$0xf] %vm780, %v712
  %812 = vst.msk [vmem:[%s3 + $0x7c] sm:$0xf] %vm780, %v713
  %813 = vst.msk [vmem:[%s3 + $0x80] sm:$0xf] %vm780, %v714
  %814 = vst.msk [vmem:[%s3 + $0x84] sm:$0xf] %vm780, %v715
  %815 = vst.msk [vmem:[%s3 + $0x88] sm:$0xf] %vm780, %v716
  %816 = vst.msk [vmem:[%s3 + $0x8c] sm:$0xf] %vm780, %v717
  %817 = vst.msk [vmem:[%s3 + $0x90] sm:$0xf] %vm780, %v718
  %818 = vst.msk [vmem:[%s3 + $0x94] sm:$0xf] %vm780, %v719
  %819 = vst.msk [vmem:[%s3 + $0x98] sm:$0xf] %vm780, %v720
  %820 = vst.msk [vmem:[%s3 + $0x9c] sm:$0xf] %vm780, %v721
  %821 = vst.msk [vmem:[%s3 + $0xa0] sm:$0xf] %vm780, %v722
  %822 = vst.msk [vmem:[%s3 + $0xa4] sm:$0xf] %vm780, %v723
  %823 = vst.msk [vmem:[%s3 + $0xa8] sm:$0xf] %vm780, %v724
  %824 = vst.msk [vmem:[%s3 + $0xac] sm:$0xf] %vm780, %v725
  %825 = vst.msk [vmem:[%s3 + $0xb0] sm:$0xf] %vm780, %v726
  %826 = vst.msk [vmem:[%s3 + $0xb4] sm:$0xf] %vm780, %v727
  %827 = vst.msk [vmem:[%s3 + $0xb8] sm:$0xf] %vm780, %v728
  %828 = vst.msk [vmem:[%s3 + $0xbc] sm:$0xf] %vm780, %v729
  %829 = vst.msk [vmem:[%s3 + $0xc0] sm:$0xf] %vm780, %v730
  // Predicated region
  $region14: #{class_aux_vae_forward.4} parent=0 // pred_check
    _
  $region15: #{class_aux_vae_forward.4} parent=0 // pred_check_branch
    %831 = sbr.rel (0) target = $region17
  $region16: #{class_aux_vae_forward.4} parent=0 // pred_region
    _
  $region17: #{class_aux_vae_forward.4} parent=0 // pred_fallthru
    _
  // Predicated region
  $region18: #{class_aux_vae_forward.4} parent=0 // pred_check
    _
  $region19: #{class_aux_vae_forward.4} parent=0 // pred_check_branch
    %833 = sbr.rel (0) target = $region21
  $region20: #{class_aux_vae_forward.4} parent=0 // pred_region
    _
  $region21: #{class_aux_vae_forward.4} parent=0 // pred_fallthru
    _

// kernel: class_aux_vae_forward.5
$region0: #{class_aux_vae_forward.5}
  #allocation0 [shape = 'u32[]', space=smem, size = 0x4, offset = 0x4, fixed_abs, tag = 'smem constant byte address 0x4 - core index']
  #allocation1 [shape = 'u32[144,128]{1,0:T(1,128)}', space=vmem, size = 0x12000, scoped, tag = 'internal scratch']
  %s0 = inlined_call_operand.vmem [shape: bf16[128,2304], index: 0, kind: input, shape index: {}]
  %s1 = inlined_call_operand.vmem [shape: bf16[2304,128], index: 1, kind: input, shape index: {}]
  %s2 = inlined_call_operand.vmem [shape: f32[1,128], index: 2, kind: input, shape index: {}]
  %s3 = inlined_call_operand.vmem [shape: bf16[128,128], index: 3, kind: output, shape index: {}]
  %s4 = sld [smem:[#allocation0]]
  $region22: #{class_aux_vae_forward.5} parent=0
    _
  %s6 = ssub.s32 1, %s4
  %s7 = scalar_select 0, %s6, %s4
  // Predicated region
  $region2: #{class_aux_vae_forward.5} parent=0 // pred_check
    _
  $region3: #{class_aux_vae_forward.5} parent=0 // pred_check_branch
    %9 = sbr.rel (0) target = $region5
  $region4: #{class_aux_vae_forward.5} parent=0 // pred_region
    _
  $region5: #{class_aux_vae_forward.5} parent=0 // pred_fallthru
    _
  // Predicated region
  $region6: #{class_aux_vae_forward.5} parent=0 // pred_check
    _
  $region7: #{class_aux_vae_forward.5} parent=0 // pred_check_branch
    %11 = sbr.rel (0) target = $region9
  $region8: #{class_aux_vae_forward.5} parent=0 // pred_region
    _
  $region9: #{class_aux_vae_forward.5} parent=0 // pred_fallthru
    _
  // Predicated region
  $region10: #{class_aux_vae_forward.5} parent=0 // pred_check
    _
  $region11: #{class_aux_vae_forward.5} parent=0 // pred_check_branch
    %13 = sbr.rel (0) target = $region13
  $region12: #{class_aux_vae_forward.5} parent=0 // pred_region
    _
  $region13: #{class_aux_vae_forward.5} parent=0 // pred_fallthru
    _
  %v15 = vld [vmem:[%s0] sm:$0xff]
  %v16 = vld [vmem:[%s0 + $0x8] sm:$0xff]
  %v17 = vld [vmem:[%s0 + $0x10] sm:$0xff]
  %v18 = vld [vmem:[%s0 + $0x18] sm:$0xff]
  %v19 = vld [vmem:[%s0 + $0x20] sm:$0xff]
  %v20 = vld [vmem:[%s0 + $0x28] sm:$0xff]
  %v21 = vld [vmem:[%s0 + $0x30] sm:$0xff]
  %v22 = vld [vmem:[%s0 + $0x38] sm:$0xff]
  %v23 = vld [vmem:[%s0 + $0x40] sm:$0xff]
  %v24 = vld [vmem:[%s0 + $0x48] sm:$0xff]
  %v25 = vld [vmem:[%s0 + $0x50] sm:$0xff]
  %v26 = vld [vmem:[%s0 + $0x58] sm:$0xff]
  %v27 = vld [vmem:[%s0 + $0x60] sm:$0xff]
  %v28 = vld [vmem:[%s0 + $0x68] sm:$0xff]
  %v29 = vld [vmem:[%s0 + $0x70] sm:$0xff]
  %v30 = vld [vmem:[%s0 + $0x78] sm:$0xff]
  %v31 = vld [vmem:[%s0 + $0x80] sm:$0xff]
  %v32 = vld [vmem:[%s0 + $0x88] sm:$0xff]
  %v33 = vld [vmem:[%s0 + $0x90] sm:$0xff]
  %v34 = vld [vmem:[%s0 + $0x98] sm:$0xff]
  %v35 = vld [vmem:[%s0 + $0xa0] sm:$0xff]
  %v36 = vld [vmem:[%s0 + $0xa8] sm:$0xff]
  %v37 = vld [vmem:[%s0 + $0xb0] sm:$0xff]
  %v38 = vld [vmem:[%s0 + $0xb8] sm:$0xff]
  %v39 = vld [vmem:[%s0 + $0xc0] sm:$0xff]
  %v40 = vld [vmem:[%s0 + $0xc8] sm:$0xff]
  %v41 = vld [vmem:[%s0 + $0xd0] sm:$0xff]
  %v42 = vld [vmem:[%s0 + $0xd8] sm:$0xff]
  %v43 = vld [vmem:[%s0 + $0xe0] sm:$0xff]
  %v44 = vld [vmem:[%s0 + $0xe8] sm:$0xff]
  %v45 = vld [vmem:[%s0 + $0xf0] sm:$0xff]
  %v46 = vld [vmem:[%s0 + $0xf8] sm:$0xff]
  %v47 = vld [vmem:[%s0 + $0x100] sm:$0xff]
  %v48 = vld [vmem:[%s0 + $0x108] sm:$0xff]
  %v49 = vld [vmem:[%s0 + $0x110] sm:$0xff]
  %v50 = vld [vmem:[%s0 + $0x118] sm:$0xff]
  %v51 = vld [vmem:[%s0 + $0x120] sm:$0xff]
  %v52 = vld [vmem:[%s0 + $0x128] sm:$0xff]
  %v53 = vld [vmem:[%s0 + $0x130] sm:$0xff]
  %v54 = vld [vmem:[%s0 + $0x138] sm:$0xff]
  %v55 = vld [vmem:[%s0 + $0x140] sm:$0xff]
  %v56 = vld [vmem:[%s0 + $0x148] sm:$0xff]
  %v57 = vld [vmem:[%s0 + $0x150] sm:$0xff]
  %v58 = vld [vmem:[%s0 + $0x158] sm:$0xff]
  %v59 = vld [vmem:[%s0 + $0x160] sm:$0xff]
  %v60 = vld [vmem:[%s0 + $0x168] sm:$0xff]
  %v61 = vld [vmem:[%s0 + $0x170] sm:$0xff]
  %v62 = vld [vmem:[%s0 + $0x178] sm:$0xff]
  %v63 = vld [vmem:[%s0 + $0x180] sm:$0xff]
  %v64 = vld [vmem:[%s0 + $0x188] sm:$0xff]
  %v65 = vld [vmem:[%s0 + $0x190] sm:$0xff]
  %v66 = vld [vmem:[%s0 + $0x198] sm:$0xff]
  %v67 = vld [vmem:[%s0 + $0x1a0] sm:$0xff]
  %v68 = vld [vmem:[%s0 + $0x1a8] sm:$0xff]
  %v69 = vld [vmem:[%s0 + $0x1b0] sm:$0xff]
  %v70 = vld [vmem:[%s0 + $0x1b8] sm:$0xff]
  %v71 = vld [vmem:[%s0 + $0x1c0] sm:$0xff]
  %v72 = vld [vmem:[%s0 + $0x1c8] sm:$0xff]
  %v73 = vld [vmem:[%s0 + $0x1d0] sm:$0xff]
  %v74 = vld [vmem:[%s0 + $0x1d8] sm:$0xff]
  %v75 = vld [vmem:[%s0 + $0x1e0] sm:$0xff]
  %v76 = vld [vmem:[%s0 + $0x1e8] sm:$0xff]
  %v77 = vld [vmem:[%s0 + $0x1f0] sm:$0xff]
  %v78 = vld [vmem:[%s0 + $0x1f8] sm:$0xff]
  %v79 = vld [vmem:[%s0 + $0x200] sm:$0xff]
  %v80 = vld [vmem:[%s0 + $0x208] sm:$0xff]
  %v81 = vld [vmem:[%s0 + $0x210] sm:$0xff]
  %v82 = vld [vmem:[%s0 + $0x218] sm:$0xff]
  %v83 = vld [vmem:[%s0 + $0x220] sm:$0xff]
  %v84 = vld [vmem:[%s0 + $0x228] sm:$0xff]
  %v85 = vld [vmem:[%s0 + $0x230] sm:$0xff]
  %v86 = vld [vmem:[%s0 + $0x238] sm:$0xff]
  %v87 = vld [vmem:[%s0 + $0x240] sm:$0xff]
  %v88 = vld [vmem:[%s0 + $0x248] sm:$0xff]
  %v89 = vld [vmem:[%s0 + $0x250] sm:$0xff]
  %v90 = vld [vmem:[%s0 + $0x258] sm:$0xff]
  %v91 = vld [vmem:[%s0 + $0x260] sm:$0xff]
  %v92 = vld [vmem:[%s0 + $0x268] sm:$0xff]
  %v93 = vld [vmem:[%s0 + $0x270] sm:$0xff]
  %v94 = vld [vmem:[%s0 + $0x278] sm:$0xff]
  %v95 = vld [vmem:[%s0 + $0x280] sm:$0xff]
  %v96 = vld [vmem:[%s0 + $0x288] sm:$0xff]
  %v97 = vld [vmem:[%s0 + $0x290] sm:$0xff]
  %v98 = vld [vmem:[%s0 + $0x298] sm:$0xff]
  %v99 = vld [vmem:[%s0 + $0x2a0] sm:$0xff]
  %v100 = vld [vmem:[%s0 + $0x2a8] sm:$0xff]
  %v101 = vld [vmem:[%s0 + $0x2b0] sm:$0xff]
  %v102 = vld [vmem:[%s0 + $0x2b8] sm:$0xff]
  %v103 = vld [vmem:[%s0 + $0x2c0] sm:$0xff]
  %v104 = vld [vmem:[%s0 + $0x2c8] sm:$0xff]
  %v105 = vld [vmem:[%s0 + $0x2d0] sm:$0xff]
  %v106 = vld [vmem:[%s0 + $0x2d8] sm:$0xff]
  %v107 = vld [vmem:[%s0 + $0x2e0] sm:$0xff]
  %v108 = vld [vmem:[%s0 + $0x2e8] sm:$0xff]
  %v109 = vld [vmem:[%s0 + $0x2f0] sm:$0xff]
  %v110 = vld [vmem:[%s0 + $0x2f8] sm:$0xff]
  %v111 = vld [vmem:[%s0 + $0x300] sm:$0xff]
  %v112 = vld [vmem:[%s0 + $0x308] sm:$0xff]
  %v113 = vld [vmem:[%s0 + $0x310] sm:$0xff]
  %v114 = vld [vmem:[%s0 + $0x318] sm:$0xff]
  %v115 = vld [vmem:[%s0 + $0x320] sm:$0xff]
  %v116 = vld [vmem:[%s0 + $0x328] sm:$0xff]
  %v117 = vld [vmem:[%s0 + $0x330] sm:$0xff]
  %v118 = vld [vmem:[%s0 + $0x338] sm:$0xff]
  %v119 = vld [vmem:[%s0 + $0x340] sm:$0xff]
  %v120 = vld [vmem:[%s0 + $0x348] sm:$0xff]
  %v121 = vld [vmem:[%s0 + $0x350] sm:$0xff]
  %v122 = vld [vmem:[%s0 + $0x358] sm:$0xff]
  %v123 = vld [vmem:[%s0 + $0x360] sm:$0xff]
  %v124 = vld [vmem:[%s0 + $0x368] sm:$0xff]
  %v125 = vld [vmem:[%s0 + $0x370] sm:$0xff]
  %v126 = vld [vmem:[%s0 + $0x378] sm:$0xff]
  %v127 = vld [vmem:[%s0 + $0x380] sm:$0xff]
  %v128 = vld [vmem:[%s0 + $0x388] sm:$0xff]
  %v129 = vld [vmem:[%s0 + $0x390] sm:$0xff]
  %v130 = vld [vmem:[%s0 + $0x398] sm:$0xff]
  %v131 = vld [vmem:[%s0 + $0x3a0] sm:$0xff]
  %v132 = vld [vmem:[%s0 + $0x3a8] sm:$0xff]
  %v133 = vld [vmem:[%s0 + $0x3b0] sm:$0xff]
  %v134 = vld [vmem:[%s0 + $0x3b8] sm:$0xff]
  %v135 = vld [vmem:[%s0 + $0x3c0] sm:$0xff]
  %v136 = vld [vmem:[%s0 + $0x3c8] sm:$0xff]
  %v137 = vld [vmem:[%s0 + $0x3d0] sm:$0xff]
  %v138 = vld [vmem:[%s0 + $0x3d8] sm:$0xff]
  %v139 = vld [vmem:[%s0 + $0x3e0] sm:$0xff]
  %v140 = vld [vmem:[%s0 + $0x3e8] sm:$0xff]
  %v141 = vld [vmem:[%s0 + $0x3f0] sm:$0xff]
  %v142 = vld [vmem:[%s0 + $0x3f8] sm:$0xff]
  %v143 = vld [vmem:[%s0 + $0x400] sm:$0xff]
  %v144 = vld [vmem:[%s0 + $0x408] sm:$0xff]
  %v145 = vld [vmem:[%s0 + $0x410] sm:$0xff]
  %v146 = vld [vmem:[%s0 + $0x418] sm:$0xff]
  %v147 = vld [vmem:[%s0 + $0x420] sm:$0xff]
  %v148 = vld [vmem:[%s0 + $0x428] sm:$0xff]
  %v149 = vld [vmem:[%s0 + $0x430] sm:$0xff]
  %v150 = vld [vmem:[%s0 + $0x438] sm:$0xff]
  %v151 = vld [vmem:[%s0 + $0x440] sm:$0xff]
  %v152 = vld [vmem:[%s0 + $0x448] sm:$0xff]
  %v153 = vld [vmem:[%s0 + $0x450] sm:$0xff]
  %v154 = vld [vmem:[%s0 + $0x458] sm:$0xff]
  %v155 = vld [vmem:[%s0 + $0x460] sm:$0xff]
  %v156 = vld [vmem:[%s0 + $0x468] sm:$0xff]
  %v157 = vld [vmem:[%s0 + $0x470] sm:$0xff]
  %v158 = vld [vmem:[%s0 + $0x478] sm:$0xff]
  %v159 = vld [vmem:[%s1] sm:$0xf]
  %v160 = vld [vmem:[%s1 + $0x4] sm:$0xf]
  %v161 = vld [vmem:[%s1 + $0x8] sm:$0xf]
  %v162 = vld [vmem:[%s1 + $0xc] sm:$0xf]
  %v163 = vld [vmem:[%s1 + $0x10] sm:$0xf]
  %v164 = vld [vmem:[%s1 + $0x14] sm:$0xf]
  %v165 = vld [vmem:[%s1 + $0x18] sm:$0xf]
  %v166 = vld [vmem:[%s1 + $0x1c] sm:$0xf]
  %v167 = vld [vmem:[%s1 + $0x20] sm:$0xf]
  %v168 = vld [vmem:[%s1 + $0x24] sm:$0xf]
  %v169 = vld [vmem:[%s1 + $0x28] sm:$0xf]
  %v170 = vld [vmem:[%s1 + $0x2c] sm:$0xf]
  %v171 = vld [vmem:[%s1 + $0x30] sm:$0xf]
  %v172 = vld [vmem:[%s1 + $0x34] sm:$0xf]
  %v173 = vld [vmem:[%s1 + $0x38] sm:$0xf]
  %v174 = vld [vmem:[%s1 + $0x3c] sm:$0xf]
  %v175 = vld [vmem:[%s1 + $0x40] sm:$0xf]
  %v176 = vld [vmem:[%s1 + $0x44] sm:$0xf]
  %v177 = vld [vmem:[%s1 + $0x48] sm:$0xf]
  %v178 = vld [vmem:[%s1 + $0x4c] sm:$0xf]
  %v179 = vld [vmem:[%s1 + $0x50] sm:$0xf]
  %v180 = vld [vmem:[%s1 + $0x54] sm:$0xf]
  %v181 = vld [vmem:[%s1 + $0x58] sm:$0xf]
  %v182 = vld [vmem:[%s1 + $0x5c] sm:$0xf]
  %v183 = vld [vmem:[%s1 + $0x60] sm:$0xf]
  %v184 = vld [vmem:[%s1 + $0x64] sm:$0xf]
  %v185 = vld [vmem:[%s1 + $0x68] sm:$0xf]
  %v186 = vld [vmem:[%s1 + $0x6c] sm:$0xf]
  %v187 = vld [vmem:[%s1 + $0x70] sm:$0xf]
  %v188 = vld [vmem:[%s1 + $0x74] sm:$0xf]
  %v189 = vld [vmem:[%s1 + $0x78] sm:$0xf]
  %v190 = vld [vmem:[%s1 + $0x7c] sm:$0xf]
  %v191 = vld [vmem:[%s1 + $0x80] sm:$0xf]
  %v192 = vld [vmem:[%s1 + $0x84] sm:$0xf]
  %v193 = vld [vmem:[%s1 + $0x88] sm:$0xf]
  %v194 = vld [vmem:[%s1 + $0x8c] sm:$0xf]
  %v195 = vld [vmem:[%s1 + $0x90] sm:$0xf]
  %v196 = vld [vmem:[%s1 + $0x94] sm:$0xf]
  %v197 = vld [vmem:[%s1 + $0x98] sm:$0xf]
  %v198 = vld [vmem:[%s1 + $0x9c] sm:$0xf]
  %v199 = vld [vmem:[%s1 + $0xa0] sm:$0xf]
  %v200 = vld [vmem:[%s1 + $0xa4] sm:$0xf]
  %v201 = vld [vmem:[%s1 + $0xa8] sm:$0xf]
  %v202 = vld [vmem:[%s1 + $0xac] sm:$0xf]
  %v203 = vld [vmem:[%s1 + $0xb0] sm:$0xf]
  %v204 = vld [vmem:[%s1 + $0xb4] sm:$0xf]
  %v205 = vld [vmem:[%s1 + $0xb8] sm:$0xf]
  %v206 = vld [vmem:[%s1 + $0xbc] sm:$0xf]
  %v207 = vld [vmem:[%s1 + $0xc0] sm:$0xf]
  %v208 = vld [vmem:[%s1 + $0xc4] sm:$0xf]
  %v209 = vld [vmem:[%s1 + $0xc8] sm:$0xf]
  %v210 = vld [vmem:[%s1 + $0xcc] sm:$0xf]
  %v211 = vld [vmem:[%s1 + $0xd0] sm:$0xf]
  %v212 = vld [vmem:[%s1 + $0xd4] sm:$0xf]
  %v213 = vld [vmem:[%s1 + $0xd8] sm:$0xf]
  %v214 = vld [vmem:[%s1 + $0xdc] sm:$0xf]
  %v215 = vld [vmem:[%s1 + $0xe0] sm:$0xf]
  %v216 = vld [vmem:[%s1 + $0xe4] sm:$0xf]
  %v217 = vld [vmem:[%s1 + $0xe8] sm:$0xf]
  %v218 = vld [vmem:[%s1 + $0xec] sm:$0xf]
  %v219 = vld [vmem:[%s1 + $0xf0] sm:$0xf]
  %v220 = vld [vmem:[%s1 + $0xf4] sm:$0xf]
  %v221 = vld [vmem:[%s1 + $0xf8] sm:$0xf]
  %v222 = vld [vmem:[%s1 + $0xfc] sm:$0xf]
  %v223 = vld [vmem:[%s1 + $0x100] sm:$0xf]
  %v224 = vld [vmem:[%s1 + $0x104] sm:$0xf]
  %v225 = vld [vmem:[%s1 + $0x108] sm:$0xf]
  %v226 = vld [vmem:[%s1 + $0x10c] sm:$0xf]
  %v227 = vld [vmem:[%s1 + $0x110] sm:$0xf]
  %v228 = vld [vmem:[%s1 + $0x114] sm:$0xf]
  %v229 = vld [vmem:[%s1 + $0x118] sm:$0xf]
  %v230 = vld [vmem:[%s1 + $0x11c] sm:$0xf]
  %v231 = vld [vmem:[%s1 + $0x120] sm:$0xf]
  %v232 = vld [vmem:[%s1 + $0x124] sm:$0xf]
  %v233 = vld [vmem:[%s1 + $0x128] sm:$0xf]
  %v234 = vld [vmem:[%s1 + $0x12c] sm:$0xf]
  %v235 = vld [vmem:[%s1 + $0x130] sm:$0xf]
  %v236 = vld [vmem:[%s1 + $0x134] sm:$0xf]
  %v237 = vld [vmem:[%s1 + $0x138] sm:$0xf]
  %v238 = vld [vmem:[%s1 + $0x13c] sm:$0xf]
  %v239 = vld [vmem:[%s1 + $0x140] sm:$0xf]
  %v240 = vld [vmem:[%s1 + $0x144] sm:$0xf]
  %v241 = vld [vmem:[%s1 + $0x148] sm:$0xf]
  %v242 = vld [vmem:[%s1 + $0x14c] sm:$0xf]
  %v243 = vld [vmem:[%s1 + $0x150] sm:$0xf]
  %v244 = vld [vmem:[%s1 + $0x154] sm:$0xf]
  %v245 = vld [vmem:[%s1 + $0x158] sm:$0xf]
  %v246 = vld [vmem:[%s1 + $0x15c] sm:$0xf]
  %v247 = vld [vmem:[%s1 + $0x160] sm:$0xf]
  %v248 = vld [vmem:[%s1 + $0x164] sm:$0xf]
  %v249 = vld [vmem:[%s1 + $0x168] sm:$0xf]
  %v250 = vld [vmem:[%s1 + $0x16c] sm:$0xf]
  %v251 = vld [vmem:[%s1 + $0x170] sm:$0xf]
  %v252 = vld [vmem:[%s1 + $0x174] sm:$0xf]
  %v253 = vld [vmem:[%s1 + $0x178] sm:$0xf]
  %v254 = vld [vmem:[%s1 + $0x17c] sm:$0xf]
  %v255 = vld [vmem:[%s1 + $0x180] sm:$0xf]
  %v256 = vld [vmem:[%s1 + $0x184] sm:$0xf]
  %v257 = vld [vmem:[%s1 + $0x188] sm:$0xf]
  %v258 = vld [vmem:[%s1 + $0x18c] sm:$0xf]
  %v259 = vld [vmem:[%s1 + $0x190] sm:$0xf]
  %v260 = vld [vmem:[%s1 + $0x194] sm:$0xf]
  %v261 = vld [vmem:[%s1 + $0x198] sm:$0xf]
  %v262 = vld [vmem:[%s1 + $0x19c] sm:$0xf]
  %v263 = vld [vmem:[%s1 + $0x1a0] sm:$0xf]
  %v264 = vld [vmem:[%s1 + $0x1a4] sm:$0xf]
  %v265 = vld [vmem:[%s1 + $0x1a8] sm:$0xf]
  %v266 = vld [vmem:[%s1 + $0x1ac] sm:$0xf]
  %v267 = vld [vmem:[%s1 + $0x1b0] sm:$0xf]
  %v268 = vld [vmem:[%s1 + $0x1b4] sm:$0xf]
  %v269 = vld [vmem:[%s1 + $0x1b8] sm:$0xf]
  %v270 = vld [vmem:[%s1 + $0x1bc] sm:$0xf]
  %v271 = vld [vmem:[%s1 + $0x1c0] sm:$0xf]
  %v272 = vld [vmem:[%s1 + $0x1c4] sm:$0xf]
  %v273 = vld [vmem:[%s1 + $0x1c8] sm:$0xf]
  %v274 = vld [vmem:[%s1 + $0x1cc] sm:$0xf]
  %v275 = vld [vmem:[%s1 + $0x1d0] sm:$0xf]
  %v276 = vld [vmem:[%s1 + $0x1d4] sm:$0xf]
  %v277 = vld [vmem:[%s1 + $0x1d8] sm:$0xf]
  %v278 = vld [vmem:[%s1 + $0x1dc] sm:$0xf]
  %v279 = vld [vmem:[%s1 + $0x1e0] sm:$0xf]
  %v280 = vld [vmem:[%s1 + $0x1e4] sm:$0xf]
  %v281 = vld [vmem:[%s1 + $0x1e8] sm:$0xf]
  %v282 = vld [vmem:[%s1 + $0x1ec] sm:$0xf]
  %v283 = vld [vmem:[%s1 + $0x1f0] sm:$0xf]
  %v284 = vld [vmem:[%s1 + $0x1f4] sm:$0xf]
  %v285 = vld [vmem:[%s1 + $0x1f8] sm:$0xf]
  %v286 = vld [vmem:[%s1 + $0x1fc] sm:$0xf]
  %v287 = vld [vmem:[%s1 + $0x200] sm:$0xf]
  %v288 = vld [vmem:[%s1 + $0x204] sm:$0xf]
  %v289 = vld [vmem:[%s1 + $0x208] sm:$0xf]
  %v290 = vld [vmem:[%s1 + $0x20c] sm:$0xf]
  %v291 = vld [vmem:[%s1 + $0x210] sm:$0xf]
  %v292 = vld [vmem:[%s1 + $0x214] sm:$0xf]
  %v293 = vld [vmem:[%s1 + $0x218] sm:$0xf]
  %v294 = vld [vmem:[%s1 + $0x21c] sm:$0xf]
  %v295 = vld [vmem:[%s1 + $0x220] sm:$0xf]
  %v296 = vld [vmem:[%s1 + $0x224] sm:$0xf]
  %v297 = vld [vmem:[%s1 + $0x228] sm:$0xf]
  %v298 = vld [vmem:[%s1 + $0x22c] sm:$0xf]
  %v299 = vld [vmem:[%s1 + $0x230] sm:$0xf]
  %v300 = vld [vmem:[%s1 + $0x234] sm:$0xf]
  %v301 = vld [vmem:[%s1 + $0x238] sm:$0xf]
  %v302 = vld [vmem:[%s1 + $0x23c] sm:$0xf]
  %v303 = vld [vmem:[%s1 + $0x240] sm:$0xf]
  %v304 = vld [vmem:[%s1 + $0x244] sm:$0xf]
  %v305 = vld [vmem:[%s1 + $0x248] sm:$0xf]
  %v306 = vld [vmem:[%s1 + $0x24c] sm:$0xf]
  %v307 = vld [vmem:[%s1 + $0x250] sm:$0xf]
  %v308 = vld [vmem:[%s1 + $0x254] sm:$0xf]
  %v309 = vld [vmem:[%s1 + $0x258] sm:$0xf]
  %v310 = vld [vmem:[%s1 + $0x25c] sm:$0xf]
  %v311 = vld [vmem:[%s1 + $0x260] sm:$0xf]
  %v312 = vld [vmem:[%s1 + $0x264] sm:$0xf]
  %v313 = vld [vmem:[%s1 + $0x268] sm:$0xf]
  %v314 = vld [vmem:[%s1 + $0x26c] sm:$0xf]
  %v315 = vld [vmem:[%s1 + $0x270] sm:$0xf]
  %v316 = vld [vmem:[%s1 + $0x274] sm:$0xf]
  %v317 = vld [vmem:[%s1 + $0x278] sm:$0xf]
  %v318 = vld [vmem:[%s1 + $0x27c] sm:$0xf]
  %v319 = vld [vmem:[%s1 + $0x280] sm:$0xf]
  %v320 = vld [vmem:[%s1 + $0x284] sm:$0xf]
  %v321 = vld [vmem:[%s1 + $0x288] sm:$0xf]
  %v322 = vld [vmem:[%s1 + $0x28c] sm:$0xf]
  %v323 = vld [vmem:[%s1 + $0x290] sm:$0xf]
  %v324 = vld [vmem:[%s1 + $0x294] sm:$0xf]
  %v325 = vld [vmem:[%s1 + $0x298] sm:$0xf]
  %v326 = vld [vmem:[%s1 + $0x29c] sm:$0xf]
  %v327 = vld [vmem:[%s1 + $0x2a0] sm:$0xf]
  %v328 = vld [vmem:[%s1 + $0x2a4] sm:$0xf]
  %v329 = vld [vmem:[%s1 + $0x2a8] sm:$0xf]
  %v330 = vld [vmem:[%s1 + $0x2ac] sm:$0xf]
  %v331 = vld [vmem:[%s1 + $0x2b0] sm:$0xf]
  %v332 = vld [vmem:[%s1 + $0x2b4] sm:$0xf]
  %v333 = vld [vmem:[%s1 + $0x2b8] sm:$0xf]
  %v334 = vld [vmem:[%s1 + $0x2bc] sm:$0xf]
  %v335 = vld [vmem:[%s1 + $0x2c0] sm:$0xf]
  %v336 = vld [vmem:[%s1 + $0x2c4] sm:$0xf]
  %v337 = vld [vmem:[%s1 + $0x2c8] sm:$0xf]
  %v338 = vld [vmem:[%s1 + $0x2cc] sm:$0xf]
  %v339 = vld [vmem:[%s1 + $0x2d0] sm:$0xf]
  %v340 = vld [vmem:[%s1 + $0x2d4] sm:$0xf]
  %v341 = vld [vmem:[%s1 + $0x2d8] sm:$0xf]
  %v342 = vld [vmem:[%s1 + $0x2dc] sm:$0xf]
  %v343 = vld [vmem:[%s1 + $0x2e0] sm:$0xf]
  %v344 = vld [vmem:[%s1 + $0x2e4] sm:$0xf]
  %v345 = vld [vmem:[%s1 + $0x2e8] sm:$0xf]
  %v346 = vld [vmem:[%s1 + $0x2ec] sm:$0xf]
  %v347 = vld [vmem:[%s1 + $0x2f0] sm:$0xf]
  %v348 = vld [vmem:[%s1 + $0x2f4] sm:$0xf]
  %v349 = vld [vmem:[%s1 + $0x2f8] sm:$0xf]
  %v350 = vld [vmem:[%s1 + $0x2fc] sm:$0xf]
  %v351 = vld [vmem:[%s1 + $0x300] sm:$0xf]
  %v352 = vld [vmem:[%s1 + $0x304] sm:$0xf]
  %v353 = vld [vmem:[%s1 + $0x308] sm:$0xf]
  %v354 = vld [vmem:[%s1 + $0x30c] sm:$0xf]
  %v355 = vld [vmem:[%s1 + $0x310] sm:$0xf]
  %v356 = vld [vmem:[%s1 + $0x314] sm:$0xf]
  %v357 = vld [vmem:[%s1 + $0x318] sm:$0xf]
  %v358 = vld [vmem:[%s1 + $0x31c] sm:$0xf]
  %v359 = vld [vmem:[%s1 + $0x320] sm:$0xf]
  %v360 = vld [vmem:[%s1 + $0x324] sm:$0xf]
  %v361 = vld [vmem:[%s1 + $0x328] sm:$0xf]
  %v362 = vld [vmem:[%s1 + $0x32c] sm:$0xf]
  %v363 = vld [vmem:[%s1 + $0x330] sm:$0xf]
  %v364 = vld [vmem:[%s1 + $0x334] sm:$0xf]
  %v365 = vld [vmem:[%s1 + $0x338] sm:$0xf]
  %v366 = vld [vmem:[%s1 + $0x33c] sm:$0xf]
  %v367 = vld [vmem:[%s1 + $0x340] sm:$0xf]
  %v368 = vld [vmem:[%s1 + $0x344] sm:$0xf]
  %v369 = vld [vmem:[%s1 + $0x348] sm:$0xf]
  %v370 = vld [vmem:[%s1 + $0x34c] sm:$0xf]
  %v371 = vld [vmem:[%s1 + $0x350] sm:$0xf]
  %v372 = vld [vmem:[%s1 + $0x354] sm:$0xf]
  %v373 = vld [vmem:[%s1 + $0x358] sm:$0xf]
  %v374 = vld [vmem:[%s1 + $0x35c] sm:$0xf]
  %v375 = vld [vmem:[%s1 + $0x360] sm:$0xf]
  %v376 = vld [vmem:[%s1 + $0x364] sm:$0xf]
  %v377 = vld [vmem:[%s1 + $0x368] sm:$0xf]
  %v378 = vld [vmem:[%s1 + $0x36c] sm:$0xf]
  %v379 = vld [vmem:[%s1 + $0x370] sm:$0xf]
  %v380 = vld [vmem:[%s1 + $0x374] sm:$0xf]
  %v381 = vld [vmem:[%s1 + $0x378] sm:$0xf]
  %v382 = vld [vmem:[%s1 + $0x37c] sm:$0xf]
  %v383 = vld [vmem:[%s1 + $0x380] sm:$0xf]
  %v384 = vld [vmem:[%s1 + $0x384] sm:$0xf]
  %v385 = vld [vmem:[%s1 + $0x388] sm:$0xf]
  %v386 = vld [vmem:[%s1 + $0x38c] sm:$0xf]
  %v387 = vld [vmem:[%s1 + $0x390] sm:$0xf]
  %v388 = vld [vmem:[%s1 + $0x394] sm:$0xf]
  %v389 = vld [vmem:[%s1 + $0x398] sm:$0xf]
  %v390 = vld [vmem:[%s1 + $0x39c] sm:$0xf]
  %v391 = vld [vmem:[%s1 + $0x3a0] sm:$0xf]
  %v392 = vld [vmem:[%s1 + $0x3a4] sm:$0xf]
  %v393 = vld [vmem:[%s1 + $0x3a8] sm:$0xf]
  %v394 = vld [vmem:[%s1 + $0x3ac] sm:$0xf]
  %v395 = vld [vmem:[%s1 + $0x3b0] sm:$0xf]
  %v396 = vld [vmem:[%s1 + $0x3b4] sm:$0xf]
  %v397 = vld [vmem:[%s1 + $0x3b8] sm:$0xf]
  %v398 = vld [vmem:[%s1 + $0x3bc] sm:$0xf]
  %v399 = vld [vmem:[%s1 + $0x3c0] sm:$0xf]
  %v400 = vld [vmem:[%s1 + $0x3c4] sm:$0xf]
  %v401 = vld [vmem:[%s1 + $0x3c8] sm:$0xf]
  %v402 = vld [vmem:[%s1 + $0x3cc] sm:$0xf]
  %v403 = vld [vmem:[%s1 + $0x3d0] sm:$0xf]
  %v404 = vld [vmem:[%s1 + $0x3d4] sm:$0xf]
  %v405 = vld [vmem:[%s1 + $0x3d8] sm:$0xf]
  %v406 = vld [vmem:[%s1 + $0x3dc] sm:$0xf]
  %v407 = vld [vmem:[%s1 + $0x3e0] sm:$0xf]
  %v408 = vld [vmem:[%s1 + $0x3e4] sm:$0xf]
  %v409 = vld [vmem:[%s1 + $0x3e8] sm:$0xf]
  %v410 = vld [vmem:[%s1 + $0x3ec] sm:$0xf]
  %v411 = vld [vmem:[%s1 + $0x3f0] sm:$0xf]
  %v412 = vld [vmem:[%s1 + $0x3f4] sm:$0xf]
  %v413 = vld [vmem:[%s1 + $0x3f8] sm:$0xf]
  %v414 = vld [vmem:[%s1 + $0x3fc] sm:$0xf]
  %v415 = vld [vmem:[%s1 + $0x400] sm:$0xf]
  %v416 = vld [vmem:[%s1 + $0x404] sm:$0xf]
  %v417 = vld [vmem:[%s1 + $0x408] sm:$0xf]
  %v418 = vld [vmem:[%s1 + $0x40c] sm:$0xf]
  %v419 = vld [vmem:[%s1 + $0x410] sm:$0xf]
  %v420 = vld [vmem:[%s1 + $0x414] sm:$0xf]
  %v421 = vld [vmem:[%s1 + $0x418] sm:$0xf]
  %v422 = vld [vmem:[%s1 + $0x41c] sm:$0xf]
  %v423 = vld [vmem:[%s1 + $0x420] sm:$0xf]
  %v424 = vld [vmem:[%s1 + $0x424] sm:$0xf]
  %v425 = vld [vmem:[%s1 + $0x428] sm:$0xf]
  %v426 = vld [vmem:[%s1 + $0x42c] sm:$0xf]
  %v427 = vld [vmem:[%s1 + $0x430] sm:$0xf]
  %v428 = vld [vmem:[%s1 + $0x434] sm:$0xf]
  %v429 = vld [vmem:[%s1 + $0x438] sm:$0xf]
  %v430 = vld [vmem:[%s1 + $0x43c] sm:$0xf]
  %v431 = vld [vmem:[%s1 + $0x440] sm:$0xf]
  %v432 = vld [vmem:[%s1 + $0x444] sm:$0xf]
  %v433 = vld [vmem:[%s1 + $0x448] sm:$0xf]
  %v434 = vld [vmem:[%s1 + $0x44c] sm:$0xf]
  %v435 = vld [vmem:[%s1 + $0x450] sm:$0xf]
  %v436 = vld [vmem:[%s1 + $0x454] sm:$0xf]
  %v437 = vld [vmem:[%s1 + $0x458] sm:$0xf]
  %v438 = vld [vmem:[%s1 + $0x45c] sm:$0xf]
  %v439 = vld [vmem:[%s1 + $0x460] sm:$0xf]
  %v440 = vld [vmem:[%s1 + $0x464] sm:$0xf]
  %v441 = vld [vmem:[%s1 + $0x468] sm:$0xf]
  %v442 = vld [vmem:[%s1 + $0x46c] sm:$0xf]
  %v443 = vld [vmem:[%s1 + $0x470] sm:$0xf]
  %v444 = vld [vmem:[%s1 + $0x474] sm:$0xf]
  %v445 = vld [vmem:[%s1 + $0x478] sm:$0xf]
  %v446 = vld [vmem:[%s1 + $0x47c] sm:$0xf]
  %v447 = vld [vmem:[%s2] sm:$0x1]
  %v449 = vlaneseq
  %v450 = vshrl.u32 %v449, 7
  %v451 = vsub.s32 0, %v450
  %v452 = vrot.slane %v447, %v451
  %v598 = vunpack.c.l.b16 %v15
  %v599 = vunpack.c.h.b16 %v15
  %v600 = vunpack.c.l.b16 %v16
  %v601 = vunpack.c.h.b16 %v16
  %v602 = vunpack.c.l.b16 %v17
  %v603 = vunpack.c.h.b16 %v17
  %v604 = vunpack.c.l.b16 %v18
  %v605 = vunpack.c.h.b16 %v18
  %v606 = vunpack.c.l.b16 %v19
  %v607 = vunpack.c.h.b16 %v19
  %v608 = vunpack.c.l.b16 %v20
  %v609 = vunpack.c.h.b16 %v20
  %v610 = vunpack.c.l.b16 %v21
  %v611 = vunpack.c.h.b16 %v21
  %v612 = vunpack.c.l.b16 %v22
  %v613 = vunpack.c.h.b16 %v22
  %v614 = vunpack.c.l.b16 %v23
  %v615 = vunpack.c.h.b16 %v23
  %v616 = vunpack.c.l.b16 %v24
  %v617 = vunpack.c.h.b16 %v24
  %v618 = vunpack.c.l.b16 %v25
  %v619 = vunpack.c.h.b16 %v25
  %v620 = vunpack.c.l.b16 %v26
  %v621 = vunpack.c.h.b16 %v26
  %v622 = vunpack.c.l.b16 %v27
  %v623 = vunpack.c.h.b16 %v27
  %v624 = vunpack.c.l.b16 %v28
  %v625 = vunpack.c.h.b16 %v28
  %v626 = vunpack.c.l.b16 %v29
  %v627 = vunpack.c.h.b16 %v29
  %v628 = vunpack.c.l.b16 %v30
  %v629 = vunpack.c.h.b16 %v30
  %v630 = vunpack.c.l.b16 %v31
  %v631 = vunpack.c.h.b16 %v31
  %v632 = vunpack.c.l.b16 %v32
  %v633 = vunpack.c.h.b16 %v32
  %v634 = vunpack.c.l.b16 %v33
  %v635 = vunpack.c.h.b16 %v33
  %v636 = vunpack.c.l.b16 %v34
  %v637 = vunpack.c.h.b16 %v34
  %v638 = vunpack.c.l.b16 %v35
  %v639 = vunpack.c.h.b16 %v35
  %v640 = vunpack.c.l.b16 %v36
  %v641 = vunpack.c.h.b16 %v36
  %v642 = vunpack.c.l.b16 %v37
  %v643 = vunpack.c.h.b16 %v37
  %v644 = vunpack.c.l.b16 %v38
  %v645 = vunpack.c.h.b16 %v38
  %v646 = vunpack.c.l.b16 %v39
  %v647 = vunpack.c.h.b16 %v39
  %v648 = vunpack.c.l.b16 %v40
  %v649 = vunpack.c.h.b16 %v40
  %v650 = vunpack.c.l.b16 %v41
  %v651 = vunpack.c.h.b16 %v41
  %v652 = vunpack.c.l.b16 %v42
  %v653 = vunpack.c.h.b16 %v42
  %v654 = vunpack.c.l.b16 %v43
  %v655 = vunpack.c.h.b16 %v43
  %v656 = vunpack.c.l.b16 %v44
  %v657 = vunpack.c.h.b16 %v44
  %v658 = vunpack.c.l.b16 %v45
  %v659 = vunpack.c.h.b16 %v45
  %v660 = vunpack.c.l.b16 %v46
  %v661 = vunpack.c.h.b16 %v46
  %v662 = vunpack.c.l.b16 %v47
  %v663 = vunpack.c.h.b16 %v47
  %v664 = vunpack.c.l.b16 %v48
  %v665 = vunpack.c.h.b16 %v48
  %v666 = vunpack.c.l.b16 %v49
  %v667 = vunpack.c.h.b16 %v49
  %v668 = vunpack.c.l.b16 %v50
  %v669 = vunpack.c.h.b16 %v50
  %v670 = vunpack.c.l.b16 %v51
  %v671 = vunpack.c.h.b16 %v51
  %v672 = vunpack.c.l.b16 %v52
  %v673 = vunpack.c.h.b16 %v52
  %v674 = vunpack.c.l.b16 %v53
  %v675 = vunpack.c.h.b16 %v53
  %v676 = vunpack.c.l.b16 %v54
  %v677 = vunpack.c.h.b16 %v54
  %v678 = vunpack.c.l.b16 %v55
  %v679 = vunpack.c.h.b16 %v55
  %v680 = vunpack.c.l.b16 %v56
  %v681 = vunpack.c.h.b16 %v56
  %v682 = vunpack.c.l.b16 %v57
  %v683 = vunpack.c.h.b16 %v57
  %v684 = vunpack.c.l.b16 %v58
  %v685 = vunpack.c.h.b16 %v58
  %v686 = vunpack.c.l.b16 %v59
  %v687 = vunpack.c.h.b16 %v59
  %v688 = vunpack.c.l.b16 %v60
  %v689 = vunpack.c.h.b16 %v60
  %v690 = vunpack.c.l.b16 %v61
  %v691 = vunpack.c.h.b16 %v61
  %v692 = vunpack.c.l.b16 %v62
  %v693 = vunpack.c.h.b16 %v62
  %v694 = vunpack.c.l.b16 %v63
  %v695 = vunpack.c.h.b16 %v63
  %v696 = vunpack.c.l.b16 %v64
  %v697 = vunpack.c.h.b16 %v64
  %v698 = vunpack.c.l.b16 %v65
  %v699 = vunpack.c.h.b16 %v65
  %v700 = vunpack.c.l.b16 %v66
  %v701 = vunpack.c.h.b16 %v66
  %v702 = vunpack.c.l.b16 %v67
  %v703 = vunpack.c.h.b16 %v67
  %v704 = vunpack.c.l.b16 %v68
  %v705 = vunpack.c.h.b16 %v68
  %v706 = vunpack.c.l.b16 %v69
  %v707 = vunpack.c.h.b16 %v69
  %v708 = vunpack.c.l.b16 %v70
  %v709 = vunpack.c.h.b16 %v70
  %v710 = vunpack.c.l.b16 %v71
  %v711 = vunpack.c.h.b16 %v71
  %v712 = vunpack.c.l.b16 %v72
  %v713 = vunpack.c.h.b16 %v72
  %v714 = vunpack.c.l.b16 %v73
  %v715 = vunpack.c.h.b16 %v73
  %v716 = vunpack.c.l.b16 %v74
  %v717 = vunpack.c.h.b16 %v74
  %v718 = vunpack.c.l.b16 %v75
  %v719 = vunpack.c.h.b16 %v75
  %v720 = vunpack.c.l.b16 %v76
  %v721 = vunpack.c.h.b16 %v76
  %v722 = vunpack.c.l.b16 %v77
  %v723 = vunpack.c.h.b16 %v77
  %v724 = vunpack.c.l.b16 %v78
  %v725 = vunpack.c.h.b16 %v78
  %v726 = vunpack.c.l.b16 %v79
  %v727 = vunpack.c.h.b16 %v79
  %v728 = vunpack.c.l.b16 %v80
  %v729 = vunpack.c.h.b16 %v80
  %v730 = vunpack.c.l.b16 %v81
  %v731 = vunpack.c.h.b16 %v81
  %v732 = vunpack.c.l.b16 %v82
  %v733 = vunpack.c.h.b16 %v82
  %v734 = vunpack.c.l.b16 %v83
  %v735 = vunpack.c.h.b16 %v83
  %v736 = vunpack.c.l.b16 %v84
  %v737 = vunpack.c.h.b16 %v84
  %v738 = vunpack.c.l.b16 %v85
  %v739 = vunpack.c.h.b16 %v85
  %v740 = vunpack.c.l.b16 %v86
  %v741 = vunpack.c.h.b16 %v86
  %v742 = vunpack.c.l.b16 %v87
  %v743 = vunpack.c.h.b16 %v87
  %v744 = vunpack.c.l.b16 %v88
  %v745 = vunpack.c.h.b16 %v88
  %v746 = vunpack.c.l.b16 %v89
  %v747 = vunpack.c.h.b16 %v89
  %v748 = vunpack.c.l.b16 %v90
  %v749 = vunpack.c.h.b16 %v90
  %v750 = vunpack.c.l.b16 %v91
  %v751 = vunpack.c.h.b16 %v91
  %v752 = vunpack.c.l.b16 %v92
  %v753 = vunpack.c.h.b16 %v92
  %v754 = vunpack.c.l.b16 %v93
  %v755 = vunpack.c.h.b16 %v93
  %v756 = vunpack.c.l.b16 %v94
  %v757 = vunpack.c.h.b16 %v94
  %v758 = vunpack.c.l.b16 %v95
  %v759 = vunpack.c.h.b16 %v95
  %v760 = vunpack.c.l.b16 %v96
  %v761 = vunpack.c.h.b16 %v96
  %v762 = vunpack.c.l.b16 %v97
  %v763 = vunpack.c.h.b16 %v97
  %v764 = vunpack.c.l.b16 %v98
  %v765 = vunpack.c.h.b16 %v98
  %v766 = vunpack.c.l.b16 %v99
  %v767 = vunpack.c.h.b16 %v99
  %v768 = vunpack.c.l.b16 %v100
  %v769 = vunpack.c.h.b16 %v100
  %v770 = vunpack.c.l.b16 %v101
  %v771 = vunpack.c.h.b16 %v101
  %v772 = vunpack.c.l.b16 %v102
  %v773 = vunpack.c.h.b16 %v102
  %v774 = vunpack.c.l.b16 %v103
  %v775 = vunpack.c.h.b16 %v103
  %v776 = vunpack.c.l.b16 %v104
  %v777 = vunpack.c.h.b16 %v104
  %v778 = vunpack.c.l.b16 %v105
  %v779 = vunpack.c.h.b16 %v105
  %v780 = vunpack.c.l.b16 %v106
  %v781 = vunpack.c.h.b16 %v106
  %v782 = vunpack.c.l.b16 %v107
  %v783 = vunpack.c.h.b16 %v107
  %v784 = vunpack.c.l.b16 %v108
  %v785 = vunpack.c.h.b16 %v108
  %v786 = vunpack.c.l.b16 %v109
  %v787 = vunpack.c.h.b16 %v109
  %v788 = vunpack.c.l.b16 %v110
  %v789 = vunpack.c.h.b16 %v110
  %v790 = vunpack.c.l.b16 %v111
  %v791 = vunpack.c.h.b16 %v111
  %v792 = vunpack.c.l.b16 %v112
  %v793 = vunpack.c.h.b16 %v112
  %v794 = vunpack.c.l.b16 %v113
  %v795 = vunpack.c.h.b16 %v113
  %v796 = vunpack.c.l.b16 %v114
  %v797 = vunpack.c.h.b16 %v114
  %v798 = vunpack.c.l.b16 %v115
  %v799 = vunpack.c.h.b16 %v115
  %v800 = vunpack.c.l.b16 %v116
  %v801 = vunpack.c.h.b16 %v116
  %v802 = vunpack.c.l.b16 %v117
  %v803 = vunpack.c.h.b16 %v117
  %v804 = vunpack.c.l.b16 %v118
  %v805 = vunpack.c.h.b16 %v118
  %v806 = vunpack.c.l.b16 %v119
  %v807 = vunpack.c.h.b16 %v119
  %v808 = vunpack.c.l.b16 %v120
  %v809 = vunpack.c.h.b16 %v120
  %v810 = vunpack.c.l.b16 %v121
  %v811 = vunpack.c.h.b16 %v121
  %v812 = vunpack.c.l.b16 %v122
  %v813 = vunpack.c.h.b16 %v122
  %v814 = vunpack.c.l.b16 %v123
  %v815 = vunpack.c.h.b16 %v123
  %v816 = vunpack.c.l.b16 %v124
  %v817 = vunpack.c.h.b16 %v124
  %v818 = vunpack.c.l.b16 %v125
  %v819 = vunpack.c.h.b16 %v125
  %v820 = vunpack.c.l.b16 %v126
  %v821 = vunpack.c.h.b16 %v126
  %v822 = vunpack.c.l.b16 %v127
  %v823 = vunpack.c.h.b16 %v127
  %v824 = vunpack.c.l.b16 %v128
  %v825 = vunpack.c.h.b16 %v128
  %v826 = vunpack.c.l.b16 %v129
  %v827 = vunpack.c.h.b16 %v129
  %v828 = vunpack.c.l.b16 %v130
  %v829 = vunpack.c.h.b16 %v130
  %v830 = vunpack.c.l.b16 %v131
  %v831 = vunpack.c.h.b16 %v131
  %v832 = vunpack.c.l.b16 %v132
  %v833 = vunpack.c.h.b16 %v132
  %v834 = vunpack.c.l.b16 %v133
  %v835 = vunpack.c.h.b16 %v133
  %v836 = vunpack.c.l.b16 %v134
  %v837 = vunpack.c.h.b16 %v134
  %v838 = vunpack.c.l.b16 %v135
  %v839 = vunpack.c.h.b16 %v135
  %v840 = vunpack.c.l.b16 %v136
  %v841 = vunpack.c.h.b16 %v136
  %v842 = vunpack.c.l.b16 %v137
  %v843 = vunpack.c.h.b16 %v137
  %v844 = vunpack.c.l.b16 %v138
  %v845 = vunpack.c.h.b16 %v138
  %v846 = vunpack.c.l.b16 %v139
  %v847 = vunpack.c.h.b16 %v139
  %v848 = vunpack.c.l.b16 %v140
  %v849 = vunpack.c.h.b16 %v140
  %v850 = vunpack.c.l.b16 %v141
  %v851 = vunpack.c.h.b16 %v141
  %v852 = vunpack.c.l.b16 %v142
  %v853 = vunpack.c.h.b16 %v142
  %v854 = vunpack.c.l.b16 %v143
  %v855 = vunpack.c.h.b16 %v143
  %v856 = vunpack.c.l.b16 %v144
  %v857 = vunpack.c.h.b16 %v144
  %v858 = vunpack.c.l.b16 %v145
  %v859 = vunpack.c.h.b16 %v145
  %v860 = vunpack.c.l.b16 %v146
  %v861 = vunpack.c.h.b16 %v146
  %v862 = vunpack.c.l.b16 %v147
  %v863 = vunpack.c.h.b16 %v147
  %v864 = vunpack.c.l.b16 %v148
  %v865 = vunpack.c.h.b16 %v148
  %v866 = vunpack.c.l.b16 %v149
  %v867 = vunpack.c.h.b16 %v149
  %v868 = vunpack.c.l.b16 %v150
  %v869 = vunpack.c.h.b16 %v150
  %v870 = vunpack.c.l.b16 %v151
  %v871 = vunpack.c.h.b16 %v151
  %v872 = vunpack.c.l.b16 %v152
  %v873 = vunpack.c.h.b16 %v152
  %v874 = vunpack.c.l.b16 %v153
  %v875 = vunpack.c.h.b16 %v153
  %v876 = vunpack.c.l.b16 %v154
  %v877 = vunpack.c.h.b16 %v154
  %v878 = vunpack.c.l.b16 %v155
  %v879 = vunpack.c.h.b16 %v155
  %v880 = vunpack.c.l.b16 %v156
  %v881 = vunpack.c.h.b16 %v156
  %v882 = vunpack.c.l.b16 %v157
  %v883 = vunpack.c.h.b16 %v157
  %v884 = vunpack.c.l.b16 %v158
  %v885 = vunpack.c.h.b16 %v158
  %v886 = vpack.c.b16 %v616, %v598
  %v887 = vpack.c.b16 %v617, %v599
  %v888 = vpack.c.b16 %v618, %v600
  %v889 = vpack.c.b16 %v619, %v601
  %v890 = vpack.c.b16 %v620, %v602
  %v891 = vpack.c.b16 %v621, %v603
  %v892 = vpack.c.b16 %v622, %v604
  %v893 = vpack.c.b16 %v623, %v605
  %v894 = vpack.c.b16 %v624, %v606
  %v895 = vpack.c.b16 %v625, %v607
  %v896 = vpack.c.b16 %v626, %v608
  %v897 = vpack.c.b16 %v627, %v609
  %v898 = vpack.c.b16 %v628, %v610
  %v899 = vpack.c.b16 %v629, %v611
  %v900 = vpack.c.b16 %v630, %v612
  %v901 = vpack.c.b16 %v631, %v613
  %v902 = vpack.c.b16 %v632, %v614
  %v903 = vpack.c.b16 %v633, %v615
  %v904 = vpack.c.b16 %v652, %v634
  %v905 = vpack.c.b16 %v653, %v635
  %v906 = vpack.c.b16 %v654, %v636
  %v907 = vpack.c.b16 %v655, %v637
  %v908 = vpack.c.b16 %v656, %v638
  %v909 = vpack.c.b16 %v657, %v639
  %v910 = vpack.c.b16 %v658, %v640
  %v911 = vpack.c.b16 %v659, %v641
  %v912 = vpack.c.b16 %v660, %v642
  %v913 = vpack.c.b16 %v661, %v643
  %v914 = vpack.c.b16 %v662, %v644
  %v915 = vpack.c.b16 %v663, %v645
  %v916 = vpack.c.b16 %v664, %v646
  %v917 = vpack.c.b16 %v665, %v647
  %v918 = vpack.c.b16 %v666, %v648
  %v919 = vpack.c.b16 %v667, %v649
  %v920 = vpack.c.b16 %v668, %v650
  %v921 = vpack.c.b16 %v669, %v651
  %v922 = vpack.c.b16 %v688, %v670
  %v923 = vpack.c.b16 %v689, %v671
  %v924 = vpack.c.b16 %v690, %v672
  %v925 = vpack.c.b16 %v691, %v673
  %v926 = vpack.c.b16 %v692, %v674
  %v927 = vpack.c.b16 %v693, %v675
  %v928 = vpack.c.b16 %v694, %v676
  %v929 = vpack.c.b16 %v695, %v677
  %v930 = vpack.c.b16 %v696, %v678
  %v931 = vpack.c.b16 %v697, %v679
  %v932 = vpack.c.b16 %v698, %v680
  %v933 = vpack.c.b16 %v699, %v681
  %v934 = vpack.c.b16 %v700, %v682
  %v935 = vpack.c.b16 %v701, %v683
  %v936 = vpack.c.b16 %v702, %v684
  %v937 = vpack.c.b16 %v703, %v685
  %v938 = vpack.c.b16 %v704, %v686
  %v939 = vpack.c.b16 %v705, %v687
  %v940 = vpack.c.b16 %v724, %v706
  %v941 = vpack.c.b16 %v725, %v707
  %v942 = vpack.c.b16 %v726, %v708
  %v943 = vpack.c.b16 %v727, %v709
  %v944 = vpack.c.b16 %v728, %v710
  %v945 = vpack.c.b16 %v729, %v711
  %v946 = vpack.c.b16 %v730, %v712
  %v947 = vpack.c.b16 %v731, %v713
  %v948 = vpack.c.b16 %v732, %v714
  %v949 = vpack.c.b16 %v733, %v715
  %v950 = vpack.c.b16 %v734, %v716
  %v951 = vpack.c.b16 %v735, %v717
  %v952 = vpack.c.b16 %v736, %v718
  %v953 = vpack.c.b16 %v737, %v719
  %v954 = vpack.c.b16 %v738, %v720
  %v955 = vpack.c.b16 %v739, %v721
  %v956 = vpack.c.b16 %v740, %v722
  %v957 = vpack.c.b16 %v741, %v723
  %v958 = vpack.c.b16 %v760, %v742
  %v959 = vpack.c.b16 %v761, %v743
  %v960 = vpack.c.b16 %v762, %v744
  %v961 = vpack.c.b16 %v763, %v745
  %v962 = vpack.c.b16 %v764, %v746
  %v963 = vpack.c.b16 %v765, %v747
  %v964 = vpack.c.b16 %v766, %v748
  %v965 = vpack.c.b16 %v767, %v749
  %v966 = vpack.c.b16 %v768, %v750
  %v967 = vpack.c.b16 %v769, %v751
  %v968 = vpack.c.b16 %v770, %v752
  %v969 = vpack.c.b16 %v771, %v753
  %v970 = vpack.c.b16 %v772, %v754
  %v971 = vpack.c.b16 %v773, %v755
  %v972 = vpack.c.b16 %v774, %v756
  %v973 = vpack.c.b16 %v775, %v757
  %v974 = vpack.c.b16 %v776, %v758
  %v975 = vpack.c.b16 %v777, %v759
  %v976 = vpack.c.b16 %v796, %v778
  %v977 = vpack.c.b16 %v797, %v779
  %v978 = vpack.c.b16 %v798, %v780
  %v979 = vpack.c.b16 %v799, %v781
  %v980 = vpack.c.b16 %v800, %v782
  %v981 = vpack.c.b16 %v801, %v783
  %v982 = vpack.c.b16 %v802, %v784
  %v983 = vpack.c.b16 %v803, %v785
  %v984 = vpack.c.b16 %v804, %v786
  %v985 = vpack.c.b16 %v805, %v787
  %v986 = vpack.c.b16 %v806, %v788
  %v987 = vpack.c.b16 %v807, %v789
  %v988 = vpack.c.b16 %v808, %v790
  %v989 = vpack.c.b16 %v809, %v791
  %v990 = vpack.c.b16 %v810, %v792
  %v991 = vpack.c.b16 %v811, %v793
  %v992 = vpack.c.b16 %v812, %v794
  %v993 = vpack.c.b16 %v813, %v795
  %v994 = vpack.c.b16 %v832, %v814
  %v995 = vpack.c.b16 %v833, %v815
  %v996 = vpack.c.b16 %v834, %v816
  %v997 = vpack.c.b16 %v835, %v817
  %v998 = vpack.c.b16 %v836, %v818
  %v999 = vpack.c.b16 %v837, %v819
  %v1000 = vpack.c.b16 %v838, %v820
  %v1001 = vpack.c.b16 %v839, %v821
  %v1002 = vpack.c.b16 %v840, %v822
  %v1003 = vpack.c.b16 %v841, %v823
  %v1004 = vpack.c.b16 %v842, %v824
  %v1005 = vpack.c.b16 %v843, %v825
  %v1006 = vpack.c.b16 %v844, %v826
  %v1007 = vpack.c.b16 %v845, %v827
  %v1008 = vpack.c.b16 %v846, %v828
  %v1009 = vpack.c.b16 %v847, %v829
  %v1010 = vpack.c.b16 %v848, %v830
  %v1011 = vpack.c.b16 %v849, %v831
  %v1012 = vpack.c.b16 %v868, %v850
  %v1013 = vpack.c.b16 %v869, %v851
  %v1014 = vpack.c.b16 %v870, %v852
  %v1015 = vpack.c.b16 %v871, %v853
  %v1016 = vpack.c.b16 %v872, %v854
  %v1017 = vpack.c.b16 %v873, %v855
  %v1018 = vpack.c.b16 %v874, %v856
  %v1019 = vpack.c.b16 %v875, %v857
  %v1020 = vpack.c.b16 %v876, %v858
  %v1021 = vpack.c.b16 %v877, %v859
  %v1022 = vpack.c.b16 %v878, %v860
  %v1023 = vpack.c.b16 %v879, %v861
  %v1024 = vpack.c.b16 %v880, %v862
  %v1025 = vpack.c.b16 %v881, %v863
  %v1026 = vpack.c.b16 %v882, %v864
  %v1027 = vpack.c.b16 %v883, %v865
  %v1028 = vpack.c.b16 %v884, %v866
  %v1029 = vpack.c.b16 %v885, %v867
  %v1462 = vunpack.c.l.b16 %v159
  %v1463 = vunpack.c.l.b16 %v160
  %v1464 = vunpack.c.l.b16 %v161
  %v1465 = vunpack.c.l.b16 %v162
  %v1466 = vunpack.c.l.b16 %v163
  %v1467 = vunpack.c.l.b16 %v164
  %v1468 = vunpack.c.l.b16 %v165
  %v1469 = vunpack.c.l.b16 %v166
  %v1470 = vunpack.c.l.b16 %v167
  %v1471 = vunpack.c.l.b16 %v168
  %v1472 = vunpack.c.l.b16 %v169
  %v1473 = vunpack.c.l.b16 %v170
  %v1474 = vunpack.c.l.b16 %v171
  %v1475 = vunpack.c.l.b16 %v172
  %v1476 = vunpack.c.l.b16 %v173
  %v1477 = vunpack.c.l.b16 %v174
  %v1478 = vunpack.c.l.b16 %v175
  %v1479 = vunpack.c.l.b16 %v176
  %v1480 = vunpack.c.l.b16 %v177
  %v1481 = vunpack.c.l.b16 %v178
  %v1482 = vunpack.c.l.b16 %v179
  %v1483 = vunpack.c.l.b16 %v180
  %v1484 = vunpack.c.l.b16 %v181
  %v1485 = vunpack.c.l.b16 %v182
  %v1486 = vunpack.c.l.b16 %v183
  %v1487 = vunpack.c.l.b16 %v184
  %v1488 = vunpack.c.l.b16 %v185
  %v1489 = vunpack.c.l.b16 %v186
  %v1490 = vunpack.c.l.b16 %v187
  %v1491 = vunpack.c.l.b16 %v188
  %v1492 = vunpack.c.l.b16 %v189
  %v1493 = vunpack.c.l.b16 %v190
  %v1494 = vunpack.c.l.b16 %v191
  %v1495 = vunpack.c.l.b16 %v192
  %v1496 = vunpack.c.l.b16 %v193
  %v1497 = vunpack.c.l.b16 %v194
  %v1498 = vunpack.c.l.b16 %v195
  %v1499 = vunpack.c.l.b16 %v196
  %v1500 = vunpack.c.l.b16 %v197
  %v1501 = vunpack.c.l.b16 %v198
  %v1502 = vunpack.c.l.b16 %v199
  %v1503 = vunpack.c.l.b16 %v200
  %v1504 = vunpack.c.l.b16 %v201
  %v1505 = vunpack.c.l.b16 %v202
  %v1506 = vunpack.c.l.b16 %v203
  %v1507 = vunpack.c.l.b16 %v204
  %v1508 = vunpack.c.l.b16 %v205
  %v1509 = vunpack.c.l.b16 %v206
  %v1510 = vunpack.c.l.b16 %v207
  %v1511 = vunpack.c.l.b16 %v208
  %v1512 = vunpack.c.l.b16 %v209
  %v1513 = vunpack.c.l.b16 %v210
  %v1514 = vunpack.c.l.b16 %v211
  %v1515 = vunpack.c.l.b16 %v212
  %v1516 = vunpack.c.l.b16 %v213
  %v1517 = vunpack.c.l.b16 %v214
  %v1518 = vunpack.c.l.b16 %v215
  %v1519 = vunpack.c.l.b16 %v216
  %v1520 = vunpack.c.l.b16 %v217
  %v1521 = vunpack.c.l.b16 %v218
  %v1522 = vunpack.c.l.b16 %v219
  %v1523 = vunpack.c.l.b16 %v220
  %v1524 = vunpack.c.l.b16 %v221
  %v1525 = vunpack.c.l.b16 %v222
  %v1526 = vunpack.c.l.b16 %v223
  %v1527 = vunpack.c.l.b16 %v224
  %v1528 = vunpack.c.l.b16 %v225
  %v1529 = vunpack.c.l.b16 %v226
  %v1530 = vunpack.c.l.b16 %v227
  %v1531 = vunpack.c.l.b16 %v228
  %v1532 = vunpack.c.l.b16 %v229
  %v1533 = vunpack.c.l.b16 %v230
  %v1534 = vunpack.c.l.b16 %v231
  %v1535 = vunpack.c.l.b16 %v232
  %v1536 = vunpack.c.l.b16 %v233
  %v1537 = vunpack.c.l.b16 %v234
  %v1538 = vunpack.c.l.b16 %v235
  %v1539 = vunpack.c.l.b16 %v236
  %v1540 = vunpack.c.l.b16 %v237
  %v1541 = vunpack.c.l.b16 %v238
  %v1542 = vunpack.c.l.b16 %v239
  %v1543 = vunpack.c.l.b16 %v240
  %v1544 = vunpack.c.l.b16 %v241
  %v1545 = vunpack.c.l.b16 %v242
  %v1546 = vunpack.c.l.b16 %v243
  %v1547 = vunpack.c.l.b16 %v244
  %v1548 = vunpack.c.l.b16 %v245
  %v1549 = vunpack.c.l.b16 %v246
  %v1550 = vunpack.c.l.b16 %v247
  %v1551 = vunpack.c.l.b16 %v248
  %v1552 = vunpack.c.l.b16 %v249
  %v1553 = vunpack.c.l.b16 %v250
  %v1554 = vunpack.c.l.b16 %v251
  %v1555 = vunpack.c.l.b16 %v252
  %v1556 = vunpack.c.l.b16 %v253
  %v1557 = vunpack.c.l.b16 %v254
  %v1558 = vunpack.c.l.b16 %v255
  %v1559 = vunpack.c.l.b16 %v256
  %v1560 = vunpack.c.l.b16 %v257
  %v1561 = vunpack.c.l.b16 %v258
  %v1562 = vunpack.c.l.b16 %v259
  %v1563 = vunpack.c.l.b16 %v260
  %v1564 = vunpack.c.l.b16 %v261
  %v1565 = vunpack.c.l.b16 %v262
  %v1566 = vunpack.c.l.b16 %v263
  %v1567 = vunpack.c.l.b16 %v264
  %v1568 = vunpack.c.l.b16 %v265
  %v1569 = vunpack.c.l.b16 %v266
  %v1570 = vunpack.c.l.b16 %v267
  %v1571 = vunpack.c.l.b16 %v268
  %v1572 = vunpack.c.l.b16 %v269
  %v1573 = vunpack.c.l.b16 %v270
  %v1574 = vunpack.c.l.b16 %v271
  %v1575 = vunpack.c.l.b16 %v272
  %v1576 = vunpack.c.l.b16 %v273
  %v1577 = vunpack.c.l.b16 %v274
  %v1578 = vunpack.c.l.b16 %v275
  %v1579 = vunpack.c.l.b16 %v276
  %v1580 = vunpack.c.l.b16 %v277
  %v1581 = vunpack.c.l.b16 %v278
  %v1582 = vunpack.c.l.b16 %v279
  %v1583 = vunpack.c.l.b16 %v280
  %v1584 = vunpack.c.l.b16 %v281
  %v1585 = vunpack.c.l.b16 %v282
  %v1586 = vunpack.c.l.b16 %v283
  %v1587 = vunpack.c.l.b16 %v284
  %v1588 = vunpack.c.l.b16 %v285
  %v1589 = vunpack.c.l.b16 %v286
  %v1590 = vunpack.c.l.b16 %v287
  %v1591 = vunpack.c.l.b16 %v288
  %v1592 = vunpack.c.l.b16 %v289
  %v1593 = vunpack.c.l.b16 %v290
  %v1594 = vunpack.c.l.b16 %v291
  %v1595 = vunpack.c.l.b16 %v292
  %v1596 = vunpack.c.l.b16 %v293
  %v1597 = vunpack.c.l.b16 %v294
  %v1598 = vunpack.c.l.b16 %v295
  %v1599 = vunpack.c.l.b16 %v296
  %v1600 = vunpack.c.l.b16 %v297
  %v1601 = vunpack.c.l.b16 %v298
  %v1602 = vunpack.c.l.b16 %v299
  %v1603 = vunpack.c.l.b16 %v300
  %v1604 = vunpack.c.l.b16 %v301
  %v1605 = vunpack.c.l.b16 %v302
  %v1606 = vunpack.c.l.b16 %v303
  %v1607 = vunpack.c.l.b16 %v304
  %v1608 = vunpack.c.l.b16 %v305
  %v1609 = vunpack.c.l.b16 %v306
  %v1610 = vunpack.c.l.b16 %v307
  %v1611 = vunpack.c.l.b16 %v308
  %v1612 = vunpack.c.l.b16 %v309
  %v1613 = vunpack.c.l.b16 %v310
  %v1614 = vunpack.c.l.b16 %v311
  %v1615 = vunpack.c.l.b16 %v312
  %v1616 = vunpack.c.l.b16 %v313
  %v1617 = vunpack.c.l.b16 %v314
  %v1618 = vunpack.c.l.b16 %v315
  %v1619 = vunpack.c.l.b16 %v316
  %v1620 = vunpack.c.l.b16 %v317
  %v1621 = vunpack.c.l.b16 %v318
  %v1622 = vunpack.c.l.b16 %v319
  %v1623 = vunpack.c.l.b16 %v320
  %v1624 = vunpack.c.l.b16 %v321
  %v1625 = vunpack.c.l.b16 %v322
  %v1626 = vunpack.c.l.b16 %v323
  %v1627 = vunpack.c.l.b16 %v324
  %v1628 = vunpack.c.l.b16 %v325
  %v1629 = vunpack.c.l.b16 %v326
  %v1630 = vunpack.c.l.b16 %v327
  %v1631 = vunpack.c.l.b16 %v328
  %v1632 = vunpack.c.l.b16 %v329
  %v1633 = vunpack.c.l.b16 %v330
  %v1634 = vunpack.c.l.b16 %v331
  %v1635 = vunpack.c.l.b16 %v332
  %v1636 = vunpack.c.l.b16 %v333
  %v1637 = vunpack.c.l.b16 %v334
  %v1638 = vunpack.c.l.b16 %v335
  %v1639 = vunpack.c.l.b16 %v336
  %v1640 = vunpack.c.l.b16 %v337
  %v1641 = vunpack.c.l.b16 %v338
  %v1642 = vunpack.c.l.b16 %v339
  %v1643 = vunpack.c.l.b16 %v340
  %v1644 = vunpack.c.l.b16 %v341
  %v1645 = vunpack.c.l.b16 %v342
  %v1646 = vunpack.c.l.b16 %v343
  %v1647 = vunpack.c.l.b16 %v344
  %v1648 = vunpack.c.l.b16 %v345
  %v1649 = vunpack.c.l.b16 %v346
  %v1650 = vunpack.c.l.b16 %v347
  %v1651 = vunpack.c.l.b16 %v348
  %v1652 = vunpack.c.l.b16 %v349
  %v1653 = vunpack.c.l.b16 %v350
  %v1654 = vunpack.c.l.b16 %v351
  %v1655 = vunpack.c.l.b16 %v352
  %v1656 = vunpack.c.l.b16 %v353
  %v1657 = vunpack.c.l.b16 %v354
  %v1658 = vunpack.c.l.b16 %v355
  %v1659 = vunpack.c.l.b16 %v356
  %v1660 = vunpack.c.l.b16 %v357
  %v1661 = vunpack.c.l.b16 %v358
  %v1662 = vunpack.c.l.b16 %v359
  %v1663 = vunpack.c.l.b16 %v360
  %v1664 = vunpack.c.l.b16 %v361
  %v1665 = vunpack.c.l.b16 %v362
  %v1666 = vunpack.c.l.b16 %v363
  %v1667 = vunpack.c.l.b16 %v364
  %v1668 = vunpack.c.l.b16 %v365
  %v1669 = vunpack.c.l.b16 %v366
  %v1670 = vunpack.c.l.b16 %v367
  %v1671 = vunpack.c.l.b16 %v368
  %v1672 = vunpack.c.l.b16 %v369
  %v1673 = vunpack.c.l.b16 %v370
  %v1674 = vunpack.c.l.b16 %v371
  %v1675 = vunpack.c.l.b16 %v372
  %v1676 = vunpack.c.l.b16 %v373
  %v1677 = vunpack.c.l.b16 %v374
  %v1678 = vunpack.c.l.b16 %v375
  %v1679 = vunpack.c.l.b16 %v376
  %v1680 = vunpack.c.l.b16 %v377
  %v1681 = vunpack.c.l.b16 %v378
  %v1682 = vunpack.c.l.b16 %v379
  %v1683 = vunpack.c.l.b16 %v380
  %v1684 = vunpack.c.l.b16 %v381
  %v1685 = vunpack.c.l.b16 %v382
  %v1686 = vunpack.c.l.b16 %v383
  %v1687 = vunpack.c.l.b16 %v384
  %v1688 = vunpack.c.l.b16 %v385
  %v1689 = vunpack.c.l.b16 %v386
  %v1690 = vunpack.c.l.b16 %v387
  %v1691 = vunpack.c.l.b16 %v388
  %v1692 = vunpack.c.l.b16 %v389
  %v1693 = vunpack.c.l.b16 %v390
  %v1694 = vunpack.c.l.b16 %v391
  %v1695 = vunpack.c.l.b16 %v392
  %v1696 = vunpack.c.l.b16 %v393
  %v1697 = vunpack.c.l.b16 %v394
  %v1698 = vunpack.c.l.b16 %v395
  %v1699 = vunpack.c.l.b16 %v396
  %v1700 = vunpack.c.l.b16 %v397
  %v1701 = vunpack.c.l.b16 %v398
  %v1702 = vunpack.c.l.b16 %v399
  %v1703 = vunpack.c.l.b16 %v400
  %v1704 = vunpack.c.l.b16 %v401
  %v1705 = vunpack.c.l.b16 %v402
  %v1706 = vunpack.c.l.b16 %v403
  %v1707 = vunpack.c.l.b16 %v404
  %v1708 = vunpack.c.l.b16 %v405
  %v1709 = vunpack.c.l.b16 %v406
  %v1710 = vunpack.c.l.b16 %v407
  %v1711 = vunpack.c.l.b16 %v408
  %v1712 = vunpack.c.l.b16 %v409
  %v1713 = vunpack.c.l.b16 %v410
  %v1714 = vunpack.c.l.b16 %v411
  %v1715 = vunpack.c.l.b16 %v412
  %v1716 = vunpack.c.l.b16 %v413
  %v1717 = vunpack.c.l.b16 %v414
  %v1718 = vunpack.c.l.b16 %v415
  %v1719 = vunpack.c.l.b16 %v416
  %v1720 = vunpack.c.l.b16 %v417
  %v1721 = vunpack.c.l.b16 %v418
  %v1722 = vunpack.c.l.b16 %v419
  %v1723 = vunpack.c.l.b16 %v420
  %v1724 = vunpack.c.l.b16 %v421
  %v1725 = vunpack.c.l.b16 %v422
  %v1726 = vunpack.c.l.b16 %v423
  %v1727 = vunpack.c.l.b16 %v424
  %v1728 = vunpack.c.l.b16 %v425
  %v1729 = vunpack.c.l.b16 %v426
  %v1730 = vunpack.c.l.b16 %v427
  %v1731 = vunpack.c.l.b16 %v428
  %v1732 = vunpack.c.l.b16 %v429
  %v1733 = vunpack.c.l.b16 %v430
  %v1734 = vunpack.c.l.b16 %v431
  %v1735 = vunpack.c.l.b16 %v432
  %v1736 = vunpack.c.l.b16 %v433
  %v1737 = vunpack.c.l.b16 %v434
  %v1738 = vunpack.c.l.b16 %v435
  %v1739 = vunpack.c.l.b16 %v436
  %v1740 = vunpack.c.l.b16 %v437
  %v1741 = vunpack.c.l.b16 %v438
  %v1742 = vunpack.c.l.b16 %v439
  %v1743 = vunpack.c.l.b16 %v440
  %v1744 = vunpack.c.l.b16 %v441
  %v1745 = vunpack.c.l.b16 %v442
  %v1746 = vunpack.c.l.b16 %v443
  %v1747 = vunpack.c.l.b16 %v444
  %v1748 = vunpack.c.l.b16 %v445
  %v1749 = vunpack.c.l.b16 %v446
  %v1750 = vpack.c.b16 %v1463, %v1462
  %v1751 = vpack.c.b16 %v1465, %v1464
  %v1752 = vpack.c.b16 %v1467, %v1466
  %v1753 = vpack.c.b16 %v1469, %v1468
  %v1754 = vpack.c.b16 %v1471, %v1470
  %v1755 = vpack.c.b16 %v1473, %v1472
  %v1756 = vpack.c.b16 %v1475, %v1474
  %v1757 = vpack.c.b16 %v1477, %v1476
  %v1758 = vpack.c.b16 %v1479, %v1478
  %v1759 = vpack.c.b16 %v1481, %v1480
  %v1760 = vpack.c.b16 %v1483, %v1482
  %v1761 = vpack.c.b16 %v1485, %v1484
  %v1762 = vpack.c.b16 %v1487, %v1486
  %v1763 = vpack.c.b16 %v1489, %v1488
  %v1764 = vpack.c.b16 %v1491, %v1490
  %v1765 = vpack.c.b16 %v1493, %v1492
  %v1766 = vpack.c.b16 %v1495, %v1494
  %v1767 = vpack.c.b16 %v1497, %v1496
  %v1768 = vpack.c.b16 %v1499, %v1498
  %v1769 = vpack.c.b16 %v1501, %v1500
  %v1770 = vpack.c.b16 %v1503, %v1502
  %v1771 = vpack.c.b16 %v1505, %v1504
  %v1772 = vpack.c.b16 %v1507, %v1506
  %v1773 = vpack.c.b16 %v1509, %v1508
  %v1774 = vpack.c.b16 %v1511, %v1510
  %v1775 = vpack.c.b16 %v1513, %v1512
  %v1776 = vpack.c.b16 %v1515, %v1514
  %v1777 = vpack.c.b16 %v1517, %v1516
  %v1778 = vpack.c.b16 %v1519, %v1518
  %v1779 = vpack.c.b16 %v1521, %v1520
  %v1780 = vpack.c.b16 %v1523, %v1522
  %v1781 = vpack.c.b16 %v1525, %v1524
  %v1782 = vpack.c.b16 %v1527, %v1526
  %v1783 = vpack.c.b16 %v1529, %v1528
  %v1784 = vpack.c.b16 %v1531, %v1530
  %v1785 = vpack.c.b16 %v1533, %v1532
  %v1786 = vpack.c.b16 %v1535, %v1534
  %v1787 = vpack.c.b16 %v1537, %v1536
  %v1788 = vpack.c.b16 %v1539, %v1538
  %v1789 = vpack.c.b16 %v1541, %v1540
  %v1790 = vpack.c.b16 %v1543, %v1542
  %v1791 = vpack.c.b16 %v1545, %v1544
  %v1792 = vpack.c.b16 %v1547, %v1546
  %v1793 = vpack.c.b16 %v1549, %v1548
  %v1794 = vpack.c.b16 %v1551, %v1550
  %v1795 = vpack.c.b16 %v1553, %v1552
  %v1796 = vpack.c.b16 %v1555, %v1554
  %v1797 = vpack.c.b16 %v1557, %v1556
  %v1798 = vpack.c.b16 %v1559, %v1558
  %v1799 = vpack.c.b16 %v1561, %v1560
  %v1800 = vpack.c.b16 %v1563, %v1562
  %v1801 = vpack.c.b16 %v1565, %v1564
  %v1802 = vpack.c.b16 %v1567, %v1566
  %v1803 = vpack.c.b16 %v1569, %v1568
  %v1804 = vpack.c.b16 %v1571, %v1570
  %v1805 = vpack.c.b16 %v1573, %v1572
  %v1806 = vpack.c.b16 %v1575, %v1574
  %v1807 = vpack.c.b16 %v1577, %v1576
  %v1808 = vpack.c.b16 %v1579, %v1578
  %v1809 = vpack.c.b16 %v1581, %v1580
  %v1810 = vpack.c.b16 %v1583, %v1582
  %v1811 = vpack.c.b16 %v1585, %v1584
  %v1812 = vpack.c.b16 %v1587, %v1586
  %v1813 = vpack.c.b16 %v1589, %v1588
  %v1814 = vpack.c.b16 %v1591, %v1590
  %v1815 = vpack.c.b16 %v1593, %v1592
  %v1816 = vpack.c.b16 %v1595, %v1594
  %v1817 = vpack.c.b16 %v1597, %v1596
  %v1818 = vpack.c.b16 %v1599, %v1598
  %v1819 = vpack.c.b16 %v1601, %v1600
  %v1820 = vpack.c.b16 %v1603, %v1602
  %v1821 = vpack.c.b16 %v1605, %v1604
  %v1822 = vpack.c.b16 %v1607, %v1606
  %v1823 = vpack.c.b16 %v1609, %v1608
  %v1824 = vpack.c.b16 %v1611, %v1610
  %v1825 = vpack.c.b16 %v1613, %v1612
  %v1826 = vpack.c.b16 %v1615, %v1614
  %v1827 = vpack.c.b16 %v1617, %v1616
  %v1828 = vpack.c.b16 %v1619, %v1618
  %v1829 = vpack.c.b16 %v1621, %v1620
  %v1830 = vpack.c.b16 %v1623, %v1622
  %v1831 = vpack.c.b16 %v1625, %v1624
  %v1832 = vpack.c.b16 %v1627, %v1626
  %v1833 = vpack.c.b16 %v1629, %v1628
  %v1834 = vpack.c.b16 %v1631, %v1630
  %v1835 = vpack.c.b16 %v1633, %v1632
  %v1836 = vpack.c.b16 %v1635, %v1634
  %v1837 = vpack.c.b16 %v1637, %v1636
  %v1838 = vpack.c.b16 %v1639, %v1638
  %v1839 = vpack.c.b16 %v1641, %v1640
  %v1840 = vpack.c.b16 %v1643, %v1642
  %v1841 = vpack.c.b16 %v1645, %v1644
  %v1842 = vpack.c.b16 %v1647, %v1646
  %v1843 = vpack.c.b16 %v1649, %v1648
  %v1844 = vpack.c.b16 %v1651, %v1650
  %v1845 = vpack.c.b16 %v1653, %v1652
  %v1846 = vpack.c.b16 %v1655, %v1654
  %v1847 = vpack.c.b16 %v1657, %v1656
  %v1848 = vpack.c.b16 %v1659, %v1658
  %v1849 = vpack.c.b16 %v1661, %v1660
  %v1850 = vpack.c.b16 %v1663, %v1662
  %v1851 = vpack.c.b16 %v1665, %v1664
  %v1852 = vpack.c.b16 %v1667, %v1666
  %v1853 = vpack.c.b16 %v1669, %v1668
  %v1854 = vpack.c.b16 %v1671, %v1670
  %v1855 = vpack.c.b16 %v1673, %v1672
  %v1856 = vpack.c.b16 %v1675, %v1674
  %v1857 = vpack.c.b16 %v1677, %v1676
  %v1858 = vpack.c.b16 %v1679, %v1678
  %v1859 = vpack.c.b16 %v1681, %v1680
  %v1860 = vpack.c.b16 %v1683, %v1682
  %v1861 = vpack.c.b16 %v1685, %v1684
  %v1862 = vpack.c.b16 %v1687, %v1686
  %v1863 = vpack.c.b16 %v1689, %v1688
  %v1864 = vpack.c.b16 %v1691, %v1690
  %v1865 = vpack.c.b16 %v1693, %v1692
  %v1866 = vpack.c.b16 %v1695, %v1694
  %v1867 = vpack.c.b16 %v1697, %v1696
  %v1868 = vpack.c.b16 %v1699, %v1698
  %v1869 = vpack.c.b16 %v1701, %v1700
  %v1870 = vpack.c.b16 %v1703, %v1702
  %v1871 = vpack.c.b16 %v1705, %v1704
  %v1872 = vpack.c.b16 %v1707, %v1706
  %v1873 = vpack.c.b16 %v1709, %v1708
  %v1874 = vpack.c.b16 %v1711, %v1710
  %v1875 = vpack.c.b16 %v1713, %v1712
  %v1876 = vpack.c.b16 %v1715, %v1714
  %v1877 = vpack.c.b16 %v1717, %v1716
  %v1878 = vpack.c.b16 %v1719, %v1718
  %v1879 = vpack.c.b16 %v1721, %v1720
  %v1880 = vpack.c.b16 %v1723, %v1722
  %v1881 = vpack.c.b16 %v1725, %v1724
  %v1882 = vpack.c.b16 %v1727, %v1726
  %v1883 = vpack.c.b16 %v1729, %v1728
  %v1884 = vpack.c.b16 %v1731, %v1730
  %v1885 = vpack.c.b16 %v1733, %v1732
  %v1886 = vpack.c.b16 %v1735, %v1734
  %v1887 = vpack.c.b16 %v1737, %v1736
  %v1888 = vpack.c.b16 %v1739, %v1738
  %v1889 = vpack.c.b16 %v1741, %v1740
  %v1890 = vpack.c.b16 %v1743, %v1742
  %v1891 = vpack.c.b16 %v1745, %v1744
  %v1892 = vpack.c.b16 %v1747, %v1746
  %v1893 = vpack.c.b16 %v1749, %v1748
  %2038 = vmatprep.subr.bf16.mxu0 0
  %2039 = vmatpush1.bf16.msra.mxu0 %v1757
  %2040 = vmatprep.subr.bf16.mxu0 0
  %2041 = vmatpush1.bf16.msra.mxu0 %v1756
  %2042 = vmatprep.subr.bf16.mxu0 0
  %2043 = vmatpush1.bf16.msra.mxu0 %v1755
  %2044 = vmatprep.subr.bf16.mxu0 0
  %2045 = vmatpush1.bf16.msra.mxu0 %v1754
  %2046 = vmatprep.subr.bf16.mxu0 0
  %2047 = vmatpush1.bf16.msra.mxu0 %v1753
  %2048 = vmatprep.subr.bf16.mxu0 0
  %2049 = vmatpush1.bf16.msra.mxu0 %v1752
  %2050 = vmatprep.subr.bf16.mxu0 0
  %2051 = vmatpush1.bf16.msra.mxu0 %v1751
  %2052 = vmatprep.subr.bf16.mxu0 0
  %2053 = vmatpush1.bf16.msra.mxu0 %v1750
  %2054 = vmatprep.subr.bf16.mxu0 0
  %2055 = vmatpush2.bf16.msra.mxu0 %v1765
  %2056 = vmatprep.subr.bf16.mxu0 0
  %2057 = vmatpush2.bf16.msra.mxu0 %v1764
  %2058 = vmatprep.subr.bf16.mxu0 0
  %2059 = vmatpush2.bf16.msra.mxu0 %v1763
  %2060 = vmatprep.subr.bf16.mxu0 0
  %2061 = vmatpush2.bf16.msra.mxu0 %v1762
  %2062 = vmatprep.subr.bf16.mxu0 0
  %2063 = vmatpush2.bf16.msra.mxu0 %v1761
  %2064 = vmatprep.subr.bf16.mxu0 0
  %2065 = vmatpush2.bf16.msra.mxu0 %v1760
  %2066 = vmatprep.subr.bf16.mxu0 0
  %2067 = vmatpush2.bf16.msra.mxu0 %v1759
  %2068 = vmatprep.subr.bf16.mxu0 0
  %2069 = vmatpush2.bf16.msra.mxu0 %v1758
  %2070 = vmatprep.mubr.bf16.mxu0 %v887
  %2071 = vmatmul.mubr.bf16.gmra.mxu0 %v886
  %v2072 = vpop.f32.mrf.mxu0
  %v2073 = vadd.f32 %v452, %v2072
  %v2074 = vpop.f32.mrf.mxu0
  %v2075 = vpop.f32.mrf.mxu0
  %v2076 = vadd.f32 %v452, %v2075
  %v2077 = vpop.f32.mrf.mxu0
  %2078 = vmatprep.mubr.bf16.mxu0 %v905
  %2079 = vmatmul.mubr.bf16.gmra.mxu0 %v904
  %v2080 = vpop.f32.mrf.mxu0
  %v2081 = vadd.f32 %v452, %v2080
  %v2082 = vpop.f32.mrf.mxu0
  %v2083 = vpop.f32.mrf.mxu0
  %v2084 = vadd.f32 %v452, %v2083
  %v2085 = vpop.f32.mrf.mxu0
  %2086 = vmatprep.mubr.bf16.mxu0 %v923
  %2087 = vmatmul.mubr.bf16.gmra.mxu0 %v922
  %v2088 = vpop.f32.mrf.mxu0
  %v2089 = vadd.f32 %v452, %v2088
  %v2090 = vpop.f32.mrf.mxu0
  %v2091 = vpop.f32.mrf.mxu0
  %v2092 = vadd.f32 %v452, %v2091
  %v2093 = vpop.f32.mrf.mxu0
  %2094 = vmatprep.mubr.bf16.mxu0 %v941
  %2095 = vmatmul.mubr.bf16.gmra.mxu0 %v940
  %v2096 = vpop.f32.mrf.mxu0
  %v2097 = vadd.f32 %v452, %v2096
  %v2098 = vpop.f32.mrf.mxu0
  %v2099 = vpop.f32.mrf.mxu0
  %v2100 = vadd.f32 %v452, %v2099
  %v2101 = vpop.f32.mrf.mxu0
  %2102 = vmatprep.mubr.bf16.mxu0 %v959
  %2103 = vmatmul.mubr.bf16.gmra.mxu0 %v958
  %v2104 = vpop.f32.mrf.mxu0
  %v2105 = vadd.f32 %v452, %v2104
  %v2106 = vpop.f32.mrf.mxu0
  %v2107 = vpop.f32.mrf.mxu0
  %v2108 = vadd.f32 %v452, %v2107
  %v2109 = vpop.f32.mrf.mxu0
  %2110 = vmatprep.mubr.bf16.mxu0 %v977
  %2111 = vmatmul.mubr.bf16.gmra.mxu0 %v976
  %v2112 = vpop.f32.mrf.mxu0
  %v2113 = vadd.f32 %v452, %v2112
  %v2114 = vpop.f32.mrf.mxu0
  %v2115 = vpop.f32.mrf.mxu0
  %v2116 = vadd.f32 %v452, %v2115
  %v2117 = vpop.f32.mrf.mxu0
  %2118 = vmatprep.mubr.bf16.mxu0 %v995
  %2119 = vmatmul.mubr.bf16.gmra.mxu0 %v994
  %v2120 = vpop.f32.mrf.mxu0
  %v2121 = vadd.f32 %v452, %v2120
  %v2122 = vpop.f32.mrf.mxu0
  %v2123 = vpop.f32.mrf.mxu0
  %v2124 = vadd.f32 %v452, %v2123
  %v2125 = vpop.f32.mrf.mxu0
  %2126 = vmatprep.mubr.bf16.mxu0 %v1013
  %2127 = vmatmul.mubr.bf16.gmra.mxu0 %v1012
  %v2128 = vpop.f32.mrf.mxu0
  %v2129 = vadd.f32 %v452, %v2128
  %v2130 = vpop.f32.mrf.mxu0
  %v2131 = vpop.f32.mrf.mxu0
  %v2132 = vadd.f32 %v452, %v2131
  %v2133 = vpop.f32.mrf.mxu0
  %2134 = vdwg.mxu0
  %2135 = vmatprep.subr.bf16.mxu0 0
  %2136 = vmatpush1.bf16.msra.mxu0 %v1773
  %2137 = vmatprep.subr.bf16.mxu0 0
  %2138 = vmatpush1.bf16.msra.mxu0 %v1772
  %2139 = vmatprep.subr.bf16.mxu0 0
  %2140 = vmatpush1.bf16.msra.mxu0 %v1771
  %2141 = vmatprep.subr.bf16.mxu0 0
  %2142 = vmatpush1.bf16.msra.mxu0 %v1770
  %2143 = vmatprep.subr.bf16.mxu0 0
  %2144 = vmatpush1.bf16.msra.mxu0 %v1769
  %2145 = vmatprep.subr.bf16.mxu0 0
  %2146 = vmatpush1.bf16.msra.mxu0 %v1768
  %2147 = vmatprep.subr.bf16.mxu0 0
  %2148 = vmatpush1.bf16.msra.mxu0 %v1767
  %2149 = vmatprep.subr.bf16.mxu0 0
  %2150 = vmatpush1.bf16.msra.mxu0 %v1766
  %2151 = vmatprep.subr.bf16.mxu0 0
  %2152 = vmatpush2.bf16.msra.mxu0 %v1781
  %2153 = vmatprep.subr.bf16.mxu0 0
  %2154 = vmatpush2.bf16.msra.mxu0 %v1780
  %2155 = vmatprep.subr.bf16.mxu0 0
  %2156 = vmatpush2.bf16.msra.mxu0 %v1779
  %2157 = vmatprep.subr.bf16.mxu0 0
  %2158 = vmatpush2.bf16.msra.mxu0 %v1778
  %2159 = vmatprep.subr.bf16.mxu0 0
  %2160 = vmatpush2.bf16.msra.mxu0 %v1777
  %2161 = vmatprep.subr.bf16.mxu0 0
  %2162 = vmatpush2.bf16.msra.mxu0 %v1776
  %2163 = vmatprep.subr.bf16.mxu0 0
  %2164 = vmatpush2.bf16.msra.mxu0 %v1775
  %2165 = vmatprep.subr.bf16.mxu0 0
  %2166 = vmatpush2.bf16.msra.mxu0 %v1774
  %2167 = vmatprep.mubr.bf16.mxu0 %v889
  %2168 = vmatmul.mubr.bf16.gmra.mxu0 %v888
  %v2169 = vpop.f32.mrf.mxu0
  %v2170 = vadd.f32 %v2073, %v2169
  %v2171 = vpop.f32.mrf.mxu0
  %v2172 = vpop.f32.mrf.mxu0
  %v2173 = vadd.f32 %v2076, %v2172
  %v2174 = vpop.f32.mrf.mxu0
  %2175 = vmatprep.mubr.bf16.mxu0 %v907
  %2176 = vmatmul.mubr.bf16.gmra.mxu0 %v906
  %v2177 = vpop.f32.mrf.mxu0
  %v2178 = vadd.f32 %v2081, %v2177
  %v2179 = vpop.f32.mrf.mxu0
  %v2180 = vpop.f32.mrf.mxu0
  %v2181 = vadd.f32 %v2084, %v2180
  %v2182 = vpop.f32.mrf.mxu0
  %2183 = vmatprep.mubr.bf16.mxu0 %v925
  %2184 = vmatmul.mubr.bf16.gmra.mxu0 %v924
  %v2185 = vpop.f32.mrf.mxu0
  %v2186 = vadd.f32 %v2089, %v2185
  %v2187 = vpop.f32.mrf.mxu0
  %v2188 = vpop.f32.mrf.mxu0
  %v2189 = vadd.f32 %v2092, %v2188
  %v2190 = vpop.f32.mrf.mxu0
  %2191 = vmatprep.mubr.bf16.mxu0 %v943
  %2192 = vmatmul.mubr.bf16.gmra.mxu0 %v942
  %v2193 = vpop.f32.mrf.mxu0
  %v2194 = vadd.f32 %v2097, %v2193
  %v2195 = vpop.f32.mrf.mxu0
  %v2196 = vpop.f32.mrf.mxu0
  %v2197 = vadd.f32 %v2100, %v2196
  %v2198 = vpop.f32.mrf.mxu0
  %2199 = vmatprep.mubr.bf16.mxu0 %v961
  %2200 = vmatmul.mubr.bf16.gmra.mxu0 %v960
  %v2201 = vpop.f32.mrf.mxu0
  %v2202 = vadd.f32 %v2105, %v2201
  %v2203 = vpop.f32.mrf.mxu0
  %v2204 = vpop.f32.mrf.mxu0
  %v2205 = vadd.f32 %v2108, %v2204
  %v2206 = vpop.f32.mrf.mxu0
  %2207 = vmatprep.mubr.bf16.mxu0 %v979
  %2208 = vmatmul.mubr.bf16.gmra.mxu0 %v978
  %v2209 = vpop.f32.mrf.mxu0
  %v2210 = vadd.f32 %v2113, %v2209
  %v2211 = vpop.f32.mrf.mxu0
  %v2212 = vpop.f32.mrf.mxu0
  %v2213 = vadd.f32 %v2116, %v2212
  %v2214 = vpop.f32.mrf.mxu0
  %2215 = vmatprep.mubr.bf16.mxu0 %v997
  %2216 = vmatmul.mubr.bf16.gmra.mxu0 %v996
  %v2217 = vpop.f32.mrf.mxu0
  %v2218 = vadd.f32 %v2121, %v2217
  %v2219 = vpop.f32.mrf.mxu0
  %v2220 = vpop.f32.mrf.mxu0
  %v2221 = vadd.f32 %v2124, %v2220
  %v2222 = vpop.f32.mrf.mxu0
  %2223 = vmatprep.mubr.bf16.mxu0 %v1015
  %2224 = vmatmul.mubr.bf16.gmra.mxu0 %v1014
  %v2225 = vpop.f32.mrf.mxu0
  %v2226 = vadd.f32 %v2129, %v2225
  %v2227 = vpop.f32.mrf.mxu0
  %v2228 = vpop.f32.mrf.mxu0
  %v2229 = vadd.f32 %v2132, %v2228
  %v2230 = vpop.f32.mrf.mxu0
  %2231 = vdwg.mxu0
  %2232 = vmatprep.subr.bf16.mxu0 0
  %2233 = vmatpush1.bf16.msra.mxu0 %v1789
  %2234 = vmatprep.subr.bf16.mxu0 0
  %2235 = vmatpush1.bf16.msra.mxu0 %v1788
  %2236 = vmatprep.subr.bf16.mxu0 0
  %2237 = vmatpush1.bf16.msra.mxu0 %v1787
  %2238 = vmatprep.subr.bf16.mxu0 0
  %2239 = vmatpush1.bf16.msra.mxu0 %v1786
  %2240 = vmatprep.subr.bf16.mxu0 0
  %2241 = vmatpush1.bf16.msra.mxu0 %v1785
  %2242 = vmatprep.subr.bf16.mxu0 0
  %2243 = vmatpush1.bf16.msra.mxu0 %v1784
  %2244 = vmatprep.subr.bf16.mxu0 0
  %2245 = vmatpush1.bf16.msra.mxu0 %v1783
  %2246 = vmatprep.subr.bf16.mxu0 0
  %2247 = vmatpush1.bf16.msra.mxu0 %v1782
  %2248 = vmatprep.subr.bf16.mxu0 0
  %2249 = vmatpush2.bf16.msra.mxu0 %v1797
  %2250 = vmatprep.subr.bf16.mxu0 0
  %2251 = vmatpush2.bf16.msra.mxu0 %v1796
  %2252 = vmatprep.subr.bf16.mxu0 0
  %2253 = vmatpush2.bf16.msra.mxu0 %v1795
  %2254 = vmatprep.subr.bf16.mxu0 0
  %2255 = vmatpush2.bf16.msra.mxu0 %v1794
  %2256 = vmatprep.subr.bf16.mxu0 0
  %2257 = vmatpush2.bf16.msra.mxu0 %v1793
  %2258 = vmatprep.subr.bf16.mxu0 0
  %2259 = vmatpush2.bf16.msra.mxu0 %v1792
  %2260 = vmatprep.subr.bf16.mxu0 0
  %2261 = vmatpush2.bf16.msra.mxu0 %v1791
  %2262 = vmatprep.subr.bf16.mxu0 0
  %2263 = vmatpush2.bf16.msra.mxu0 %v1790
  %2264 = vmatprep.mubr.bf16.mxu0 %v891
  %2265 = vmatmul.mubr.bf16.gmra.mxu0 %v890
  %v2266 = vpop.f32.mrf.mxu0
  %v2267 = vadd.f32 %v2170, %v2266
  %v2268 = vpop.f32.mrf.mxu0
  %v2269 = vpop.f32.mrf.mxu0
  %v2270 = vadd.f32 %v2173, %v2269
  %v2271 = vpop.f32.mrf.mxu0
  %2272 = vmatprep.mubr.bf16.mxu0 %v909
  %2273 = vmatmul.mubr.bf16.gmra.mxu0 %v908
  %v2274 = vpop.f32.mrf.mxu0
  %v2275 = vadd.f32 %v2178, %v2274
  %v2276 = vpop.f32.mrf.mxu0
  %v2277 = vpop.f32.mrf.mxu0
  %v2278 = vadd.f32 %v2181, %v2277
  %v2279 = vpop.f32.mrf.mxu0
  %2280 = vmatprep.mubr.bf16.mxu0 %v927
  %2281 = vmatmul.mubr.bf16.gmra.mxu0 %v926
  %v2282 = vpop.f32.mrf.mxu0
  %v2283 = vadd.f32 %v2186, %v2282
  %v2284 = vpop.f32.mrf.mxu0
  %v2285 = vpop.f32.mrf.mxu0
  %v2286 = vadd.f32 %v2189, %v2285
  %v2287 = vpop.f32.mrf.mxu0
  %2288 = vmatprep.mubr.bf16.mxu0 %v945
  %2289 = vmatmul.mubr.bf16.gmra.mxu0 %v944
  %v2290 = vpop.f32.mrf.mxu0
  %v2291 = vadd.f32 %v2194, %v2290
  %v2292 = vpop.f32.mrf.mxu0
  %v2293 = vpop.f32.mrf.mxu0
  %v2294 = vadd.f32 %v2197, %v2293
  %v2295 = vpop.f32.mrf.mxu0
  %2296 = vmatprep.mubr.bf16.mxu0 %v963
  %2297 = vmatmul.mubr.bf16.gmra.mxu0 %v962
  %v2298 = vpop.f32.mrf.mxu0
  %v2299 = vadd.f32 %v2202, %v2298
  %v2300 = vpop.f32.mrf.mxu0
  %v2301 = vpop.f32.mrf.mxu0
  %v2302 = vadd.f32 %v2205, %v2301
  %v2303 = vpop.f32.mrf.mxu0
  %2304 = vmatprep.mubr.bf16.mxu0 %v981
  %2305 = vmatmul.mubr.bf16.gmra.mxu0 %v980
  %v2306 = vpop.f32.mrf.mxu0
  %v2307 = vadd.f32 %v2210, %v2306
  %v2308 = vpop.f32.mrf.mxu0
  %v2309 = vpop.f32.mrf.mxu0
  %v2310 = vadd.f32 %v2213, %v2309
  %v2311 = vpop.f32.mrf.mxu0
  %2312 = vmatprep.mubr.bf16.mxu0 %v999
  %2313 = vmatmul.mubr.bf16.gmra.mxu0 %v998
  %v2314 = vpop.f32.mrf.mxu0
  %v2315 = vadd.f32 %v2218, %v2314
  %v2316 = vpop.f32.mrf.mxu0
  %v2317 = vpop.f32.mrf.mxu0
  %v2318 = vadd.f32 %v2221, %v2317
  %v2319 = vpop.f32.mrf.mxu0
  %2320 = vmatprep.mubr.bf16.mxu0 %v1017
  %2321 = vmatmul.mubr.bf16.gmra.mxu0 %v1016
  %v2322 = vpop.f32.mrf.mxu0
  %v2323 = vadd.f32 %v2226, %v2322
  %v2324 = vpop.f32.mrf.mxu0
  %v2325 = vpop.f32.mrf.mxu0
  %v2326 = vadd.f32 %v2229, %v2325
  %v2327 = vpop.f32.mrf.mxu0
  %2328 = vdwg.mxu0
  %2329 = vmatprep.subr.bf16.mxu0 0
  %2330 = vmatpush1.bf16.msra.mxu0 %v1805
  %2331 = vmatprep.subr.bf16.mxu0 0
  %2332 = vmatpush1.bf16.msra.mxu0 %v1804
  %2333 = vmatprep.subr.bf16.mxu0 0
  %2334 = vmatpush1.bf16.msra.mxu0 %v1803
  %2335 = vmatprep.subr.bf16.mxu0 0
  %2336 = vmatpush1.bf16.msra.mxu0 %v1802
  %2337 = vmatprep.subr.bf16.mxu0 0
  %2338 = vmatpush1.bf16.msra.mxu0 %v1801
  %2339 = vmatprep.subr.bf16.mxu0 0
  %2340 = vmatpush1.bf16.msra.mxu0 %v1800
  %2341 = vmatprep.subr.bf16.mxu0 0
  %2342 = vmatpush1.bf16.msra.mxu0 %v1799
  %2343 = vmatprep.subr.bf16.mxu0 0
  %2344 = vmatpush1.bf16.msra.mxu0 %v1798
  %2345 = vmatprep.subr.bf16.mxu0 0
  %2346 = vmatpush2.bf16.msra.mxu0 %v1813
  %2347 = vmatprep.subr.bf16.mxu0 0
  %2348 = vmatpush2.bf16.msra.mxu0 %v1812
  %2349 = vmatprep.subr.bf16.mxu0 0
  %2350 = vmatpush2.bf16.msra.mxu0 %v1811
  %2351 = vmatprep.subr.bf16.mxu0 0
  %2352 = vmatpush2.bf16.msra.mxu0 %v1810
  %2353 = vmatprep.subr.bf16.mxu0 0
  %2354 = vmatpush2.bf16.msra.mxu0 %v1809
  %2355 = vmatprep.subr.bf16.mxu0 0
  %2356 = vmatpush2.bf16.msra.mxu0 %v1808
  %2357 = vmatprep.subr.bf16.mxu0 0
  %2358 = vmatpush2.bf16.msra.mxu0 %v1807
  %2359 = vmatprep.subr.bf16.mxu0 0
  %2360 = vmatpush2.bf16.msra.mxu0 %v1806
  %2361 = vmatprep.mubr.bf16.mxu0 %v893
  %2362 = vmatmul.mubr.bf16.gmra.mxu0 %v892
  %v2363 = vpop.f32.mrf.mxu0
  %v2364 = vadd.f32 %v2267, %v2363
  %v2365 = vpop.f32.mrf.mxu0
  %v2366 = vpop.f32.mrf.mxu0
  %v2367 = vadd.f32 %v2270, %v2366
  %v2368 = vpop.f32.mrf.mxu0
  %2369 = vmatprep.mubr.bf16.mxu0 %v911
  %2370 = vmatmul.mubr.bf16.gmra.mxu0 %v910
  %v2371 = vpop.f32.mrf.mxu0
  %v2372 = vadd.f32 %v2275, %v2371
  %v2373 = vpop.f32.mrf.mxu0
  %v2374 = vpop.f32.mrf.mxu0
  %v2375 = vadd.f32 %v2278, %v2374
  %v2376 = vpop.f32.mrf.mxu0
  %2377 = vmatprep.mubr.bf16.mxu0 %v929
  %2378 = vmatmul.mubr.bf16.gmra.mxu0 %v928
  %v2379 = vpop.f32.mrf.mxu0
  %v2380 = vadd.f32 %v2283, %v2379
  %v2381 = vpop.f32.mrf.mxu0
  %v2382 = vpop.f32.mrf.mxu0
  %v2383 = vadd.f32 %v2286, %v2382
  %v2384 = vpop.f32.mrf.mxu0
  %2385 = vmatprep.mubr.bf16.mxu0 %v947
  %2386 = vmatmul.mubr.bf16.gmra.mxu0 %v946
  %v2387 = vpop.f32.mrf.mxu0
  %v2388 = vadd.f32 %v2291, %v2387
  %v2389 = vpop.f32.mrf.mxu0
  %v2390 = vpop.f32.mrf.mxu0
  %v2391 = vadd.f32 %v2294, %v2390
  %v2392 = vpop.f32.mrf.mxu0
  %2393 = vmatprep.mubr.bf16.mxu0 %v965
  %2394 = vmatmul.mubr.bf16.gmra.mxu0 %v964
  %v2395 = vpop.f32.mrf.mxu0
  %v2396 = vadd.f32 %v2299, %v2395
  %v2397 = vpop.f32.mrf.mxu0
  %v2398 = vpop.f32.mrf.mxu0
  %v2399 = vadd.f32 %v2302, %v2398
  %v2400 = vpop.f32.mrf.mxu0
  %2401 = vmatprep.mubr.bf16.mxu0 %v983
  %2402 = vmatmul.mubr.bf16.gmra.mxu0 %v982
  %v2403 = vpop.f32.mrf.mxu0
  %v2404 = vadd.f32 %v2307, %v2403
  %v2405 = vpop.f32.mrf.mxu0
  %v2406 = vpop.f32.mrf.mxu0
  %v2407 = vadd.f32 %v2310, %v2406
  %v2408 = vpop.f32.mrf.mxu0
  %2409 = vmatprep.mubr.bf16.mxu0 %v1001
  %2410 = vmatmul.mubr.bf16.gmra.mxu0 %v1000
  %v2411 = vpop.f32.mrf.mxu0
  %v2412 = vadd.f32 %v2315, %v2411
  %v2413 = vpop.f32.mrf.mxu0
  %v2414 = vpop.f32.mrf.mxu0
  %v2415 = vadd.f32 %v2318, %v2414
  %v2416 = vpop.f32.mrf.mxu0
  %2417 = vmatprep.mubr.bf16.mxu0 %v1019
  %2418 = vmatmul.mubr.bf16.gmra.mxu0 %v1018
  %v2419 = vpop.f32.mrf.mxu0
  %v2420 = vadd.f32 %v2323, %v2419
  %v2421 = vpop.f32.mrf.mxu0
  %v2422 = vpop.f32.mrf.mxu0
  %v2423 = vadd.f32 %v2326, %v2422
  %v2424 = vpop.f32.mrf.mxu0
  %2425 = vdwg.mxu0
  %2426 = vmatprep.subr.bf16.mxu0 0
  %2427 = vmatpush1.bf16.msra.mxu0 %v1821
  %2428 = vmatprep.subr.bf16.mxu0 0
  %2429 = vmatpush1.bf16.msra.mxu0 %v1820
  %2430 = vmatprep.subr.bf16.mxu0 0
  %2431 = vmatpush1.bf16.msra.mxu0 %v1819
  %2432 = vmatprep.subr.bf16.mxu0 0
  %2433 = vmatpush1.bf16.msra.mxu0 %v1818
  %2434 = vmatprep.subr.bf16.mxu0 0
  %2435 = vmatpush1.bf16.msra.mxu0 %v1817
  %2436 = vmatprep.subr.bf16.mxu0 0
  %2437 = vmatpush1.bf16.msra.mxu0 %v1816
  %2438 = vmatprep.subr.bf16.mxu0 0
  %2439 = vmatpush1.bf16.msra.mxu0 %v1815
  %2440 = vmatprep.subr.bf16.mxu0 0
  %2441 = vmatpush1.bf16.msra.mxu0 %v1814
  %2442 = vmatprep.subr.bf16.mxu0 0
  %2443 = vmatpush2.bf16.msra.mxu0 %v1829
  %2444 = vmatprep.subr.bf16.mxu0 0
  %2445 = vmatpush2.bf16.msra.mxu0 %v1828
  %2446 = vmatprep.subr.bf16.mxu0 0
  %2447 = vmatpush2.bf16.msra.mxu0 %v1827
  %2448 = vmatprep.subr.bf16.mxu0 0
  %2449 = vmatpush2.bf16.msra.mxu0 %v1826
  %2450 = vmatprep.subr.bf16.mxu0 0
  %2451 = vmatpush2.bf16.msra.mxu0 %v1825
  %2452 = vmatprep.subr.bf16.mxu0 0
  %2453 = vmatpush2.bf16.msra.mxu0 %v1824
  %2454 = vmatprep.subr.bf16.mxu0 0
  %2455 = vmatpush2.bf16.msra.mxu0 %v1823
  %2456 = vmatprep.subr.bf16.mxu0 0
  %2457 = vmatpush2.bf16.msra.mxu0 %v1822
  %2458 = vmatprep.mubr.bf16.mxu0 %v895
  %2459 = vmatmul.mubr.bf16.gmra.mxu0 %v894
  %v2460 = vpop.f32.mrf.mxu0
  %v2461 = vadd.f32 %v2364, %v2460
  %v2462 = vpop.f32.mrf.mxu0
  %v2463 = vpop.f32.mrf.mxu0
  %v2464 = vadd.f32 %v2367, %v2463
  %v2465 = vpop.f32.mrf.mxu0
  %2466 = vmatprep.mubr.bf16.mxu0 %v913
  %2467 = vmatmul.mubr.bf16.gmra.mxu0 %v912
  %v2468 = vpop.f32.mrf.mxu0
  %v2469 = vadd.f32 %v2372, %v2468
  %v2470 = vpop.f32.mrf.mxu0
  %v2471 = vpop.f32.mrf.mxu0
  %v2472 = vadd.f32 %v2375, %v2471
  %v2473 = vpop.f32.mrf.mxu0
  %2474 = vmatprep.mubr.bf16.mxu0 %v931
  %2475 = vmatmul.mubr.bf16.gmra.mxu0 %v930
  %v2476 = vpop.f32.mrf.mxu0
  %v2477 = vadd.f32 %v2380, %v2476
  %v2478 = vpop.f32.mrf.mxu0
  %v2479 = vpop.f32.mrf.mxu0
  %v2480 = vadd.f32 %v2383, %v2479
  %v2481 = vpop.f32.mrf.mxu0
  %2482 = vmatprep.mubr.bf16.mxu0 %v949
  %2483 = vmatmul.mubr.bf16.gmra.mxu0 %v948
  %v2484 = vpop.f32.mrf.mxu0
  %v2485 = vadd.f32 %v2388, %v2484
  %v2486 = vpop.f32.mrf.mxu0
  %v2487 = vpop.f32.mrf.mxu0
  %v2488 = vadd.f32 %v2391, %v2487
  %v2489 = vpop.f32.mrf.mxu0
  %2490 = vmatprep.mubr.bf16.mxu0 %v967
  %2491 = vmatmul.mubr.bf16.gmra.mxu0 %v966
  %v2492 = vpop.f32.mrf.mxu0
  %v2493 = vadd.f32 %v2396, %v2492
  %v2494 = vpop.f32.mrf.mxu0
  %v2495 = vpop.f32.mrf.mxu0
  %v2496 = vadd.f32 %v2399, %v2495
  %v2497 = vpop.f32.mrf.mxu0
  %2498 = vmatprep.mubr.bf16.mxu0 %v985
  %2499 = vmatmul.mubr.bf16.gmra.mxu0 %v984
  %v2500 = vpop.f32.mrf.mxu0
  %v2501 = vadd.f32 %v2404, %v2500
  %v2502 = vpop.f32.mrf.mxu0
  %v2503 = vpop.f32.mrf.mxu0
  %v2504 = vadd.f32 %v2407, %v2503
  %v2505 = vpop.f32.mrf.mxu0
  %2506 = vmatprep.mubr.bf16.mxu0 %v1003
  %2507 = vmatmul.mubr.bf16.gmra.mxu0 %v1002
  %v2508 = vpop.f32.mrf.mxu0
  %v2509 = vadd.f32 %v2412, %v2508
  %v2510 = vpop.f32.mrf.mxu0
  %v2511 = vpop.f32.mrf.mxu0
  %v2512 = vadd.f32 %v2415, %v2511
  %v2513 = vpop.f32.mrf.mxu0
  %2514 = vmatprep.mubr.bf16.mxu0 %v1021
  %2515 = vmatmul.mubr.bf16.gmra.mxu0 %v1020
  %v2516 = vpop.f32.mrf.mxu0
  %v2517 = vadd.f32 %v2420, %v2516
  %v2518 = vpop.f32.mrf.mxu0
  %v2519 = vpop.f32.mrf.mxu0
  %v2520 = vadd.f32 %v2423, %v2519
  %v2521 = vpop.f32.mrf.mxu0
  %2522 = vdwg.mxu0
  %2523 = vmatprep.subr.bf16.mxu0 0
  %2524 = vmatpush1.bf16.msra.mxu0 %v1837
  %2525 = vmatprep.subr.bf16.mxu0 0
  %2526 = vmatpush1.bf16.msra.mxu0 %v1836
  %2527 = vmatprep.subr.bf16.mxu0 0
  %2528 = vmatpush1.bf16.msra.mxu0 %v1835
  %2529 = vmatprep.subr.bf16.mxu0 0
  %2530 = vmatpush1.bf16.msra.mxu0 %v1834
  %2531 = vmatprep.subr.bf16.mxu0 0
  %2532 = vmatpush1.bf16.msra.mxu0 %v1833
  %2533 = vmatprep.subr.bf16.mxu0 0
  %2534 = vmatpush1.bf16.msra.mxu0 %v1832
  %2535 = vmatprep.subr.bf16.mxu0 0
  %2536 = vmatpush1.bf16.msra.mxu0 %v1831
  %2537 = vmatprep.subr.bf16.mxu0 0
  %2538 = vmatpush1.bf16.msra.mxu0 %v1830
  %2539 = vmatprep.subr.bf16.mxu0 0
  %2540 = vmatpush2.bf16.msra.mxu0 %v1845
  %2541 = vmatprep.subr.bf16.mxu0 0
  %2542 = vmatpush2.bf16.msra.mxu0 %v1844
  %2543 = vmatprep.subr.bf16.mxu0 0
  %2544 = vmatpush2.bf16.msra.mxu0 %v1843
  %2545 = vmatprep.subr.bf16.mxu0 0
  %2546 = vmatpush2.bf16.msra.mxu0 %v1842
  %2547 = vmatprep.subr.bf16.mxu0 0
  %2548 = vmatpush2.bf16.msra.mxu0 %v1841
  %2549 = vmatprep.subr.bf16.mxu0 0
  %2550 = vmatpush2.bf16.msra.mxu0 %v1840
  %2551 = vmatprep.subr.bf16.mxu0 0
  %2552 = vmatpush2.bf16.msra.mxu0 %v1839
  %2553 = vmatprep.subr.bf16.mxu0 0
  %2554 = vmatpush2.bf16.msra.mxu0 %v1838
  %2555 = vmatprep.mubr.bf16.mxu0 %v897
  %2556 = vmatmul.mubr.bf16.gmra.mxu0 %v896
  %v2557 = vpop.f32.mrf.mxu0
  %v2558 = vadd.f32 %v2461, %v2557
  %v2559 = vpop.f32.mrf.mxu0
  %v2560 = vpop.f32.mrf.mxu0
  %v2561 = vadd.f32 %v2464, %v2560
  %v2562 = vpop.f32.mrf.mxu0
  %2563 = vmatprep.mubr.bf16.mxu0 %v915
  %2564 = vmatmul.mubr.bf16.gmra.mxu0 %v914
  %v2565 = vpop.f32.mrf.mxu0
  %v2566 = vadd.f32 %v2469, %v2565
  %v2567 = vpop.f32.mrf.mxu0
  %v2568 = vpop.f32.mrf.mxu0
  %v2569 = vadd.f32 %v2472, %v2568
  %v2570 = vpop.f32.mrf.mxu0
  %2571 = vmatprep.mubr.bf16.mxu0 %v933
  %2572 = vmatmul.mubr.bf16.gmra.mxu0 %v932
  %v2573 = vpop.f32.mrf.mxu0
  %v2574 = vadd.f32 %v2477, %v2573
  %v2575 = vpop.f32.mrf.mxu0
  %v2576 = vpop.f32.mrf.mxu0
  %v2577 = vadd.f32 %v2480, %v2576
  %v2578 = vpop.f32.mrf.mxu0
  %2579 = vmatprep.mubr.bf16.mxu0 %v951
  %2580 = vmatmul.mubr.bf16.gmra.mxu0 %v950
  %v2581 = vpop.f32.mrf.mxu0
  %v2582 = vadd.f32 %v2485, %v2581
  %v2583 = vpop.f32.mrf.mxu0
  %v2584 = vpop.f32.mrf.mxu0
  %v2585 = vadd.f32 %v2488, %v2584
  %v2586 = vpop.f32.mrf.mxu0
  %2587 = vmatprep.mubr.bf16.mxu0 %v969
  %2588 = vmatmul.mubr.bf16.gmra.mxu0 %v968
  %v2589 = vpop.f32.mrf.mxu0
  %v2590 = vadd.f32 %v2493, %v2589
  %v2591 = vpop.f32.mrf.mxu0
  %v2592 = vpop.f32.mrf.mxu0
  %v2593 = vadd.f32 %v2496, %v2592
  %v2594 = vpop.f32.mrf.mxu0
  %2595 = vmatprep.mubr.bf16.mxu0 %v987
  %2596 = vmatmul.mubr.bf16.gmra.mxu0 %v986
  %v2597 = vpop.f32.mrf.mxu0
  %v2598 = vadd.f32 %v2501, %v2597
  %v2599 = vpop.f32.mrf.mxu0
  %v2600 = vpop.f32.mrf.mxu0
  %v2601 = vadd.f32 %v2504, %v2600
  %v2602 = vpop.f32.mrf.mxu0
  %2603 = vmatprep.mubr.bf16.mxu0 %v1005
  %2604 = vmatmul.mubr.bf16.gmra.mxu0 %v1004
  %v2605 = vpop.f32.mrf.mxu0
  %v2606 = vadd.f32 %v2509, %v2605
  %v2607 = vpop.f32.mrf.mxu0
  %v2608 = vpop.f32.mrf.mxu0
  %v2609 = vadd.f32 %v2512, %v2608
  %v2610 = vpop.f32.mrf.mxu0
  %2611 = vmatprep.mubr.bf16.mxu0 %v1023
  %2612 = vmatmul.mubr.bf16.gmra.mxu0 %v1022
  %v2613 = vpop.f32.mrf.mxu0
  %v2614 = vadd.f32 %v2517, %v2613
  %v2615 = vpop.f32.mrf.mxu0
  %v2616 = vpop.f32.mrf.mxu0
  %v2617 = vadd.f32 %v2520, %v2616
  %v2618 = vpop.f32.mrf.mxu0
  %2619 = vdwg.mxu0
  %2620 = vmatprep.subr.bf16.mxu0 0
  %2621 = vmatpush1.bf16.msra.mxu0 %v1853
  %2622 = vmatprep.subr.bf16.mxu0 0
  %2623 = vmatpush1.bf16.msra.mxu0 %v1852
  %2624 = vmatprep.subr.bf16.mxu0 0
  %2625 = vmatpush1.bf16.msra.mxu0 %v1851
  %2626 = vmatprep.subr.bf16.mxu0 0
  %2627 = vmatpush1.bf16.msra.mxu0 %v1850
  %2628 = vmatprep.subr.bf16.mxu0 0
  %2629 = vmatpush1.bf16.msra.mxu0 %v1849
  %2630 = vmatprep.subr.bf16.mxu0 0
  %2631 = vmatpush1.bf16.msra.mxu0 %v1848
  %2632 = vmatprep.subr.bf16.mxu0 0
  %2633 = vmatpush1.bf16.msra.mxu0 %v1847
  %2634 = vmatprep.subr.bf16.mxu0 0
  %2635 = vmatpush1.bf16.msra.mxu0 %v1846
  %2636 = vmatprep.subr.bf16.mxu0 0
  %2637 = vmatpush2.bf16.msra.mxu0 %v1861
  %2638 = vmatprep.subr.bf16.mxu0 0
  %2639 = vmatpush2.bf16.msra.mxu0 %v1860
  %2640 = vmatprep.subr.bf16.mxu0 0
  %2641 = vmatpush2.bf16.msra.mxu0 %v1859
  %2642 = vmatprep.subr.bf16.mxu0 0
  %2643 = vmatpush2.bf16.msra.mxu0 %v1858
  %2644 = vmatprep.subr.bf16.mxu0 0
  %2645 = vmatpush2.bf16.msra.mxu0 %v1857
  %2646 = vmatprep.subr.bf16.mxu0 0
  %2647 = vmatpush2.bf16.msra.mxu0 %v1856
  %2648 = vmatprep.subr.bf16.mxu0 0
  %2649 = vmatpush2.bf16.msra.mxu0 %v1855
  %2650 = vmatprep.subr.bf16.mxu0 0
  %2651 = vmatpush2.bf16.msra.mxu0 %v1854
  %2652 = vmatprep.mubr.bf16.mxu0 %v899
  %2653 = vmatmul.mubr.bf16.gmra.mxu0 %v898
  %v2654 = vpop.f32.mrf.mxu0
  %v2655 = vadd.f32 %v2558, %v2654
  %v2656 = vpop.f32.mrf.mxu0
  %v2657 = vpop.f32.mrf.mxu0
  %v2658 = vadd.f32 %v2561, %v2657
  %v2659 = vpop.f32.mrf.mxu0
  %2660 = vmatprep.mubr.bf16.mxu0 %v917
  %2661 = vmatmul.mubr.bf16.gmra.mxu0 %v916
  %v2662 = vpop.f32.mrf.mxu0
  %v2663 = vadd.f32 %v2566, %v2662
  %v2664 = vpop.f32.mrf.mxu0
  %v2665 = vpop.f32.mrf.mxu0
  %v2666 = vadd.f32 %v2569, %v2665
  %v2667 = vpop.f32.mrf.mxu0
  %2668 = vmatprep.mubr.bf16.mxu0 %v935
  %2669 = vmatmul.mubr.bf16.gmra.mxu0 %v934
  %v2670 = vpop.f32.mrf.mxu0
  %v2671 = vadd.f32 %v2574, %v2670
  %v2672 = vpop.f32.mrf.mxu0
  %v2673 = vpop.f32.mrf.mxu0
  %v2674 = vadd.f32 %v2577, %v2673
  %v2675 = vpop.f32.mrf.mxu0
  %2676 = vmatprep.mubr.bf16.mxu0 %v953
  %2677 = vmatmul.mubr.bf16.gmra.mxu0 %v952
  %v2678 = vpop.f32.mrf.mxu0
  %v2679 = vadd.f32 %v2582, %v2678
  %v2680 = vpop.f32.mrf.mxu0
  %v2681 = vpop.f32.mrf.mxu0
  %v2682 = vadd.f32 %v2585, %v2681
  %v2683 = vpop.f32.mrf.mxu0
  %2684 = vmatprep.mubr.bf16.mxu0 %v971
  %2685 = vmatmul.mubr.bf16.gmra.mxu0 %v970
  %v2686 = vpop.f32.mrf.mxu0
  %v2687 = vadd.f32 %v2590, %v2686
  %v2688 = vpop.f32.mrf.mxu0
  %v2689 = vpop.f32.mrf.mxu0
  %v2690 = vadd.f32 %v2593, %v2689
  %v2691 = vpop.f32.mrf.mxu0
  %2692 = vmatprep.mubr.bf16.mxu0 %v989
  %2693 = vmatmul.mubr.bf16.gmra.mxu0 %v988
  %v2694 = vpop.f32.mrf.mxu0
  %v2695 = vadd.f32 %v2598, %v2694
  %v2696 = vpop.f32.mrf.mxu0
  %v2697 = vpop.f32.mrf.mxu0
  %v2698 = vadd.f32 %v2601, %v2697
  %v2699 = vpop.f32.mrf.mxu0
  %2700 = vmatprep.mubr.bf16.mxu0 %v1007
  %2701 = vmatmul.mubr.bf16.gmra.mxu0 %v1006
  %v2702 = vpop.f32.mrf.mxu0
  %v2703 = vadd.f32 %v2606, %v2702
  %v2704 = vpop.f32.mrf.mxu0
  %v2705 = vpop.f32.mrf.mxu0
  %v2706 = vadd.f32 %v2609, %v2705
  %v2707 = vpop.f32.mrf.mxu0
  %2708 = vmatprep.mubr.bf16.mxu0 %v1025
  %2709 = vmatmul.mubr.bf16.gmra.mxu0 %v1024
  %v2710 = vpop.f32.mrf.mxu0
  %v2711 = vadd.f32 %v2614, %v2710
  %v2712 = vpop.f32.mrf.mxu0
  %v2713 = vpop.f32.mrf.mxu0
  %v2714 = vadd.f32 %v2617, %v2713
  %v2715 = vpop.f32.mrf.mxu0
  %2716 = vdwg.mxu0
  %2717 = vmatprep.subr.bf16.mxu0 0
  %2718 = vmatpush1.bf16.msra.mxu0 %v1869
  %2719 = vmatprep.subr.bf16.mxu0 0
  %2720 = vmatpush1.bf16.msra.mxu0 %v1868
  %2721 = vmatprep.subr.bf16.mxu0 0
  %2722 = vmatpush1.bf16.msra.mxu0 %v1867
  %2723 = vmatprep.subr.bf16.mxu0 0
  %2724 = vmatpush1.bf16.msra.mxu0 %v1866
  %2725 = vmatprep.subr.bf16.mxu0 0
  %2726 = vmatpush1.bf16.msra.mxu0 %v1865
  %2727 = vmatprep.subr.bf16.mxu0 0
  %2728 = vmatpush1.bf16.msra.mxu0 %v1864
  %2729 = vmatprep.subr.bf16.mxu0 0
  %2730 = vmatpush1.bf16.msra.mxu0 %v1863
  %2731 = vmatprep.subr.bf16.mxu0 0
  %2732 = vmatpush1.bf16.msra.mxu0 %v1862
  %2733 = vmatprep.subr.bf16.mxu0 0
  %2734 = vmatpush2.bf16.msra.mxu0 %v1877
  %2735 = vmatprep.subr.bf16.mxu0 0
  %2736 = vmatpush2.bf16.msra.mxu0 %v1876
  %2737 = vmatprep.subr.bf16.mxu0 0
  %2738 = vmatpush2.bf16.msra.mxu0 %v1875
  %2739 = vmatprep.subr.bf16.mxu0 0
  %2740 = vmatpush2.bf16.msra.mxu0 %v1874
  %2741 = vmatprep.subr.bf16.mxu0 0
  %2742 = vmatpush2.bf16.msra.mxu0 %v1873
  %2743 = vmatprep.subr.bf16.mxu0 0
  %2744 = vmatpush2.bf16.msra.mxu0 %v1872
  %2745 = vmatprep.subr.bf16.mxu0 0
  %2746 = vmatpush2.bf16.msra.mxu0 %v1871
  %2747 = vmatprep.subr.bf16.mxu0 0
  %2748 = vmatpush2.bf16.msra.mxu0 %v1870
  %2749 = vmatprep.mubr.bf16.mxu0 %v901
  %2750 = vmatmul.mubr.bf16.gmra.mxu0 %v900
  %v2751 = vpop.f32.mrf.mxu0
  %v2752 = vadd.f32 %v2655, %v2751
  %v2753 = vpop.f32.mrf.mxu0
  %v2754 = vpop.f32.mrf.mxu0
  %v2755 = vadd.f32 %v2658, %v2754
  %v2756 = vpop.f32.mrf.mxu0
  %2757 = vmatprep.mubr.bf16.mxu0 %v919
  %2758 = vmatmul.mubr.bf16.gmra.mxu0 %v918
  %v2759 = vpop.f32.mrf.mxu0
  %v2760 = vadd.f32 %v2663, %v2759
  %v2761 = vpop.f32.mrf.mxu0
  %v2762 = vpop.f32.mrf.mxu0
  %v2763 = vadd.f32 %v2666, %v2762
  %v2764 = vpop.f32.mrf.mxu0
  %2765 = vmatprep.mubr.bf16.mxu0 %v937
  %2766 = vmatmul.mubr.bf16.gmra.mxu0 %v936
  %v2767 = vpop.f32.mrf.mxu0
  %v2768 = vadd.f32 %v2671, %v2767
  %v2769 = vpop.f32.mrf.mxu0
  %v2770 = vpop.f32.mrf.mxu0
  %v2771 = vadd.f32 %v2674, %v2770
  %v2772 = vpop.f32.mrf.mxu0
  %2773 = vmatprep.mubr.bf16.mxu0 %v955
  %2774 = vmatmul.mubr.bf16.gmra.mxu0 %v954
  %v2775 = vpop.f32.mrf.mxu0
  %v2776 = vadd.f32 %v2679, %v2775
  %v2777 = vpop.f32.mrf.mxu0
  %v2778 = vpop.f32.mrf.mxu0
  %v2779 = vadd.f32 %v2682, %v2778
  %v2780 = vpop.f32.mrf.mxu0
  %2781 = vmatprep.mubr.bf16.mxu0 %v973
  %2782 = vmatmul.mubr.bf16.gmra.mxu0 %v972
  %v2783 = vpop.f32.mrf.mxu0
  %v2784 = vadd.f32 %v2687, %v2783
  %v2785 = vpop.f32.mrf.mxu0
  %v2786 = vpop.f32.mrf.mxu0
  %v2787 = vadd.f32 %v2690, %v2786
  %v2788 = vpop.f32.mrf.mxu0
  %2789 = vmatprep.mubr.bf16.mxu0 %v991
  %2790 = vmatmul.mubr.bf16.gmra.mxu0 %v990
  %v2791 = vpop.f32.mrf.mxu0
  %v2792 = vadd.f32 %v2695, %v2791
  %v2793 = vpop.f32.mrf.mxu0
  %v2794 = vpop.f32.mrf.mxu0
  %v2795 = vadd.f32 %v2698, %v2794
  %v2796 = vpop.f32.mrf.mxu0
  %2797 = vmatprep.mubr.bf16.mxu0 %v1009
  %2798 = vmatmul.mubr.bf16.gmra.mxu0 %v1008
  %v2799 = vpop.f32.mrf.mxu0
  %v2800 = vadd.f32 %v2703, %v2799
  %v2801 = vpop.f32.mrf.mxu0
  %v2802 = vpop.f32.mrf.mxu0
  %v2803 = vadd.f32 %v2706, %v2802
  %v2804 = vpop.f32.mrf.mxu0
  %2805 = vmatprep.mubr.bf16.mxu0 %v1027
  %2806 = vmatmul.mubr.bf16.gmra.mxu0 %v1026
  %v2807 = vpop.f32.mrf.mxu0
  %v2808 = vadd.f32 %v2711, %v2807
  %v2809 = vpop.f32.mrf.mxu0
  %v2810 = vpop.f32.mrf.mxu0
  %v2811 = vadd.f32 %v2714, %v2810
  %v2812 = vpop.f32.mrf.mxu0
  %2813 = vdwg.mxu0
  %2814 = vmatprep.subr.bf16.mxu0 0
  %2815 = vmatpush1.bf16.msra.mxu0 %v1885
  %2816 = vmatprep.subr.bf16.mxu0 0
  %2817 = vmatpush1.bf16.msra.mxu0 %v1884
  %2818 = vmatprep.subr.bf16.mxu0 0
  %2819 = vmatpush1.bf16.msra.mxu0 %v1883
  %2820 = vmatprep.subr.bf16.mxu0 0
  %2821 = vmatpush1.bf16.msra.mxu0 %v1882
  %2822 = vmatprep.subr.bf16.mxu0 0
  %2823 = vmatpush1.bf16.msra.mxu0 %v1881
  %2824 = vmatprep.subr.bf16.mxu0 0
  %2825 = vmatpush1.bf16.msra.mxu0 %v1880
  %2826 = vmatprep.subr.bf16.mxu0 0
  %2827 = vmatpush1.bf16.msra.mxu0 %v1879
  %2828 = vmatprep.subr.bf16.mxu0 0
  %2829 = vmatpush1.bf16.msra.mxu0 %v1878
  %2830 = vmatprep.subr.bf16.mxu0 0
  %2831 = vmatpush2.bf16.msra.mxu0 %v1893
  %2832 = vmatprep.subr.bf16.mxu0 0
  %2833 = vmatpush2.bf16.msra.mxu0 %v1892
  %2834 = vmatprep.subr.bf16.mxu0 0
  %2835 = vmatpush2.bf16.msra.mxu0 %v1891
  %2836 = vmatprep.subr.bf16.mxu0 0
  %2837 = vmatpush2.bf16.msra.mxu0 %v1890
  %2838 = vmatprep.subr.bf16.mxu0 0
  %2839 = vmatpush2.bf16.msra.mxu0 %v1889
  %2840 = vmatprep.subr.bf16.mxu0 0
  %2841 = vmatpush2.bf16.msra.mxu0 %v1888
  %2842 = vmatprep.subr.bf16.mxu0 0
  %2843 = vmatpush2.bf16.msra.mxu0 %v1887
  %2844 = vmatprep.subr.bf16.mxu0 0
  %2845 = vmatpush2.bf16.msra.mxu0 %v1886
  %2846 = vmatprep.mubr.bf16.mxu0 %v903
  %2847 = vmatmul.mubr.bf16.gmra.mxu0 %v902
  %v2848 = vpop.f32.mrf.mxu0
  %v2849 = vadd.f32 %v2752, %v2848
  %v2850 = vpop.f32.mrf.mxu0
  %v2851 = vpop.f32.mrf.mxu0
  %v2852 = vadd.f32 %v2755, %v2851
  %v2853 = vpop.f32.mrf.mxu0
  %2854 = vmatprep.mubr.bf16.mxu0 %v921
  %2855 = vmatmul.mubr.bf16.gmra.mxu0 %v920
  %v2856 = vpop.f32.mrf.mxu0
  %v2857 = vadd.f32 %v2760, %v2856
  %v2858 = vpop.f32.mrf.mxu0
  %v2859 = vpop.f32.mrf.mxu0
  %v2860 = vadd.f32 %v2763, %v2859
  %v2861 = vpop.f32.mrf.mxu0
  %2862 = vmatprep.mubr.bf16.mxu0 %v939
  %2863 = vmatmul.mubr.bf16.gmra.mxu0 %v938
  %v2864 = vpop.f32.mrf.mxu0
  %v2865 = vadd.f32 %v2768, %v2864
  %v2866 = vpop.f32.mrf.mxu0
  %v2867 = vpop.f32.mrf.mxu0
  %v2868 = vadd.f32 %v2771, %v2867
  %v2869 = vpop.f32.mrf.mxu0
  %2870 = vmatprep.mubr.bf16.mxu0 %v957
  %2871 = vmatmul.mubr.bf16.gmra.mxu0 %v956
  %v2872 = vpop.f32.mrf.mxu0
  %v2873 = vadd.f32 %v2776, %v2872
  %v2874 = vpop.f32.mrf.mxu0
  %v2875 = vpop.f32.mrf.mxu0
  %v2876 = vadd.f32 %v2779, %v2875
  %v2877 = vpop.f32.mrf.mxu0
  %2878 = vmatprep.mubr.bf16.mxu0 %v975
  %2879 = vmatmul.mubr.bf16.gmra.mxu0 %v974
  %v2880 = vpop.f32.mrf.mxu0
  %v2881 = vadd.f32 %v2784, %v2880
  %v2882 = vpop.f32.mrf.mxu0
  %v2883 = vpop.f32.mrf.mxu0
  %v2884 = vadd.f32 %v2787, %v2883
  %v2885 = vpop.f32.mrf.mxu0
  %2886 = vmatprep.mubr.bf16.mxu0 %v993
  %2887 = vmatmul.mubr.bf16.gmra.mxu0 %v992
  %v2888 = vpop.f32.mrf.mxu0
  %v2889 = vadd.f32 %v2792, %v2888
  %v2890 = vpop.f32.mrf.mxu0
  %v2891 = vpop.f32.mrf.mxu0
  %v2892 = vadd.f32 %v2795, %v2891
  %v2893 = vpop.f32.mrf.mxu0
  %2894 = vmatprep.mubr.bf16.mxu0 %v1011
  %2895 = vmatmul.mubr.bf16.gmra.mxu0 %v1010
  %v2896 = vpop.f32.mrf.mxu0
  %v2897 = vadd.f32 %v2800, %v2896
  %v2898 = vpop.f32.mrf.mxu0
  %v2899 = vpop.f32.mrf.mxu0
  %v2900 = vadd.f32 %v2803, %v2899
  %v2901 = vpop.f32.mrf.mxu0
  %2902 = vmatprep.mubr.bf16.mxu0 %v1029
  %2903 = vmatmul.mubr.bf16.gmra.mxu0 %v1028
  %v2904 = vpop.f32.mrf.mxu0
  %v2905 = vadd.f32 %v2808, %v2904
  %v2906 = vpop.f32.mrf.mxu0
  %v2907 = vpop.f32.mrf.mxu0
  %v2908 = vadd.f32 %v2811, %v2907
  %v2909 = vpop.f32.mrf.mxu0
  %2910 = vdwg.mxu0
  %v2911 = vmax.f32 %v2849, 0.0
  %v2912 = vmax.f32 %v2852, 0.0
  %v2913 = vmax.f32 %v2857, 0.0
  %v2914 = vmax.f32 %v2860, 0.0
  %v2915 = vmax.f32 %v2865, 0.0
  %v2916 = vmax.f32 %v2868, 0.0
  %v2917 = vmax.f32 %v2873, 0.0
  %v2918 = vmax.f32 %v2876, 0.0
  %v2919 = vmax.f32 %v2881, 0.0
  %v2920 = vmax.f32 %v2884, 0.0
  %v2921 = vmax.f32 %v2889, 0.0
  %v2922 = vmax.f32 %v2892, 0.0
  %v2923 = vmax.f32 %v2897, 0.0
  %v2924 = vmax.f32 %v2900, 0.0
  %v2925 = vmax.f32 %v2905, 0.0
  %v2926 = vmax.f32 %v2908, 0.0
  %v2927 = vpack.c.bf16 %v2912, %v2911
  %v2928 = vpack.c.bf16 %v2914, %v2913
  %v2929 = vpack.c.bf16 %v2916, %v2915
  %v2930 = vpack.c.bf16 %v2918, %v2917
  %v2931 = vpack.c.bf16 %v2920, %v2919
  %v2932 = vpack.c.bf16 %v2922, %v2921
  %v2933 = vpack.c.bf16 %v2924, %v2923
  %v2934 = vpack.c.bf16 %v2926, %v2925
  %v2943 = vunpack.c.l.b16 %v2927
  %v2944 = vunpack.c.h.b16 %v2927
  %v2945 = vunpack.c.l.b16 %v2928
  %v2946 = vunpack.c.h.b16 %v2928
  %v2947 = vunpack.c.l.b16 %v2929
  %v2948 = vunpack.c.h.b16 %v2929
  %v2949 = vunpack.c.l.b16 %v2930
  %v2950 = vunpack.c.h.b16 %v2930
  %v2951 = vunpack.c.l.b16 %v2931
  %v2952 = vunpack.c.h.b16 %v2931
  %v2953 = vunpack.c.l.b16 %v2932
  %v2954 = vunpack.c.h.b16 %v2932
  %v2955 = vunpack.c.l.b16 %v2933
  %v2956 = vunpack.c.h.b16 %v2933
  %v2957 = vunpack.c.l.b16 %v2934
  %v2958 = vunpack.c.h.b16 %v2934
  %v2959 = vpack.c.b16 %v2943, %v2943
  %v2960 = vpack.c.b16 %v2944, %v2944
  %v2961 = vpack.c.b16 %v2945, %v2945
  %v2962 = vpack.c.b16 %v2946, %v2946
  %v2963 = vpack.c.b16 %v2947, %v2947
  %v2964 = vpack.c.b16 %v2948, %v2948
  %v2965 = vpack.c.b16 %v2949, %v2949
  %v2966 = vpack.c.b16 %v2950, %v2950
  %v2967 = vpack.c.b16 %v2951, %v2951
  %v2968 = vpack.c.b16 %v2952, %v2952
  %v2969 = vpack.c.b16 %v2953, %v2953
  %v2970 = vpack.c.b16 %v2954, %v2954
  %v2971 = vpack.c.b16 %v2955, %v2955
  %v2972 = vpack.c.b16 %v2956, %v2956
  %v2973 = vpack.c.b16 %v2957, %v2957
  %v2974 = vpack.c.b16 %v2958, %v2958
  %2991 = vst [vmem:[%s3] sm:$0xf] %v2959
  %2992 = vst [vmem:[%s3 + $0x4] sm:$0xf] %v2960
  %2993 = vst [vmem:[%s3 + $0x8] sm:$0xf] %v2961
  %2994 = vst [vmem:[%s3 + $0xc] sm:$0xf] %v2962
  %2995 = vst [vmem:[%s3 + $0x10] sm:$0xf] %v2963
  %2996 = vst [vmem:[%s3 + $0x14] sm:$0xf] %v2964
  %2997 = vst [vmem:[%s3 + $0x18] sm:$0xf] %v2965
  %2998 = vst [vmem:[%s3 + $0x1c] sm:$0xf] %v2966
  %2999 = vst [vmem:[%s3 + $0x20] sm:$0xf] %v2967
  %3000 = vst [vmem:[%s3 + $0x24] sm:$0xf] %v2968
  %3001 = vst [vmem:[%s3 + $0x28] sm:$0xf] %v2969
  %3002 = vst [vmem:[%s3 + $0x2c] sm:$0xf] %v2970
  %3003 = vst [vmem:[%s3 + $0x30] sm:$0xf] %v2971
  %3004 = vst [vmem:[%s3 + $0x34] sm:$0xf] %v2972
  %3005 = vst [vmem:[%s3 + $0x38] sm:$0xf] %v2973
  %3006 = vst [vmem:[%s3 + $0x3c] sm:$0xf] %v2974
  // Predicated region
  $region14: #{class_aux_vae_forward.5} parent=0 // pred_check
    _
  $region15: #{class_aux_vae_forward.5} parent=0 // pred_check_branch
    %3008 = sbr.rel (0) target = $region17
  $region16: #{class_aux_vae_forward.5} parent=0 // pred_region
    _
  $region17: #{class_aux_vae_forward.5} parent=0 // pred_fallthru
    _
  // Predicated region
  $region18: #{class_aux_vae_forward.5} parent=0 // pred_check
    _
  $region19: #{class_aux_vae_forward.5} parent=0 // pred_check_branch
    %3010 = sbr.rel (0) target = $region21
  $region20: #{class_aux_vae_forward.5} parent=0 // pred_region
    _
  $region21: #{class_aux_vae_forward.5} parent=0 // pred_fallthru
    _

// kernel: class_aux_vae_forward.6
$region0: #{class_aux_vae_forward.6}
  #allocation0 [shape = 'u32[]', space=smem, size = 0x4, offset = 0x4, fixed_abs, tag = 'smem constant byte address 0x4 - core index']
  #allocation1 [shape = 'u32[144,128]{1,0:T(1,128)}', space=vmem, size = 0x12000, scoped, tag = 'internal scratch']
  %s0 = inlined_call_operand.vmem [shape: bf16[32,3200], index: 0, kind: input, shape index: {}]
  %s1 = inlined_call_operand.vmem [shape: bf16[3200,128], index: 1, kind: input, shape index: {}]
  %s2 = inlined_call_operand.vmem [shape: f32[1,128], index: 2, kind: input, shape index: {}]
  %s3 = inlined_call_operand.vmem [shape: bf16[32,128], index: 3, kind: output, shape index: {}]
  %s4 = sld [smem:[#allocation0]]
  $region22: #{class_aux_vae_forward.6} parent=0
    _
  %s6 = ssub.s32 1, %s4
  %s7 = scalar_select 0, %s6, %s4
  // Predicated region
  $region2: #{class_aux_vae_forward.6} parent=0 // pred_check
    _
  $region3: #{class_aux_vae_forward.6} parent=0 // pred_check_branch
    %9 = sbr.rel (0) target = $region5
  $region4: #{class_aux_vae_forward.6} parent=0 // pred_region
    _
  $region5: #{class_aux_vae_forward.6} parent=0 // pred_fallthru
    _
  // Predicated region
  $region6: #{class_aux_vae_forward.6} parent=0 // pred_check
    _
  $region7: #{class_aux_vae_forward.6} parent=0 // pred_check_branch
    %11 = sbr.rel (0) target = $region9
  $region8: #{class_aux_vae_forward.6} parent=0 // pred_region
    _
  $region9: #{class_aux_vae_forward.6} parent=0 // pred_fallthru
    _
  // Predicated region
  $region10: #{class_aux_vae_forward.6} parent=0 // pred_check
    _
  $region11: #{class_aux_vae_forward.6} parent=0 // pred_check_branch
    %13 = sbr.rel (0) target = $region13
  $region12: #{class_aux_vae_forward.6} parent=0 // pred_region
    _
  $region13: #{class_aux_vae_forward.6} parent=0 // pred_fallthru
    _
  %v15 = vld [vmem:[%s0] sm:$0xff]
  %v16 = vld [vmem:[%s0 + $0x8] sm:$0xff]
  %v17 = vld [vmem:[%s0 + $0x10] sm:$0xff]
  %v18 = vld [vmem:[%s0 + $0x18] sm:$0xff]
  %v19 = vld [vmem:[%s0 + $0x20] sm:$0xff]
  %v20 = vld [vmem:[%s0 + $0x28] sm:$0xff]
  %v21 = vld [vmem:[%s0 + $0x30] sm:$0xff]
  %v22 = vld [vmem:[%s0 + $0x38] sm:$0xff]
  %v23 = vld [vmem:[%s0 + $0x40] sm:$0xff]
  %v24 = vld [vmem:[%s0 + $0x48] sm:$0xff]
  %v25 = vld [vmem:[%s0 + $0x50] sm:$0xff]
  %v26 = vld [vmem:[%s0 + $0x58] sm:$0xff]
  %v27 = vld [vmem:[%s0 + $0x60] sm:$0xf]
  %v28 = vld [vmem:[%s0 + $0x64] sm:$0xff]
  %v29 = vld [vmem:[%s0 + $0x6c] sm:$0xff]
  %v30 = vld [vmem:[%s0 + $0x74] sm:$0xff]
  %v31 = vld [vmem:[%s0 + $0x7c] sm:$0xff]
  %v32 = vld [vmem:[%s0 + $0x84] sm:$0xff]
  %v33 = vld [vmem:[%s0 + $0x8c] sm:$0xff]
  %v34 = vld [vmem:[%s0 + $0x94] sm:$0xff]
  %v35 = vld [vmem:[%s0 + $0x9c] sm:$0xff]
  %v36 = vld [vmem:[%s0 + $0xa4] sm:$0xff]
  %v37 = vld [vmem:[%s0 + $0xac] sm:$0xff]
  %v38 = vld [vmem:[%s0 + $0xb4] sm:$0xff]
  %v39 = vld [vmem:[%s0 + $0xbc] sm:$0xff]
  %v40 = vld [vmem:[%s0 + $0xc4] sm:$0xf]
  %v41 = vld [vmem:[%s0 + $0xc8] sm:$0xff]
  %v42 = vld [vmem:[%s0 + $0xd0] sm:$0xff]
  %v43 = vld [vmem:[%s0 + $0xd8] sm:$0xff]
  %v44 = vld [vmem:[%s0 + $0xe0] sm:$0xff]
  %v45 = vld [vmem:[%s0 + $0xe8] sm:$0xff]
  %v46 = vld [vmem:[%s0 + $0xf0] sm:$0xff]
  %v47 = vld [vmem:[%s0 + $0xf8] sm:$0xff]
  %v48 = vld [vmem:[%s0 + $0x100] sm:$0xff]
  %v49 = vld [vmem:[%s0 + $0x108] sm:$0xff]
  %v50 = vld [vmem:[%s0 + $0x110] sm:$0xff]
  %v51 = vld [vmem:[%s0 + $0x118] sm:$0xff]
  %v52 = vld [vmem:[%s0 + $0x120] sm:$0xff]
  %v53 = vld [vmem:[%s0 + $0x128] sm:$0xf]
  %v54 = vld [vmem:[%s0 + $0x12c] sm:$0xff]
  %v55 = vld [vmem:[%s0 + $0x134] sm:$0xff]
  %v56 = vld [vmem:[%s0 + $0x13c] sm:$0xff]
  %v57 = vld [vmem:[%s0 + $0x144] sm:$0xff]
  %v58 = vld [vmem:[%s0 + $0x14c] sm:$0xff]
  %v59 = vld [vmem:[%s0 + $0x154] sm:$0xff]
  %v60 = vld [vmem:[%s0 + $0x15c] sm:$0xff]
  %v61 = vld [vmem:[%s0 + $0x164] sm:$0xff]
  %v62 = vld [vmem:[%s0 + $0x16c] sm:$0xff]
  %v63 = vld [vmem:[%s0 + $0x174] sm:$0xff]
  %v64 = vld [vmem:[%s0 + $0x17c] sm:$0xff]
  %v65 = vld [vmem:[%s0 + $0x184] sm:$0xff]
  %v66 = vld [vmem:[%s0 + $0x18c] sm:$0xf]
  %v67 = vld [vmem:[%s1] sm:$0xf]
  %v68 = vld [vmem:[%s1 + $0x4] sm:$0xf]
  %v69 = vld [vmem:[%s1 + $0x8] sm:$0xf]
  %v70 = vld [vmem:[%s1 + $0xc] sm:$0xf]
  %v71 = vld [vmem:[%s1 + $0x10] sm:$0xf]
  %v72 = vld [vmem:[%s1 + $0x14] sm:$0xf]
  %v73 = vld [vmem:[%s1 + $0x18] sm:$0xf]
  %v74 = vld [vmem:[%s1 + $0x1c] sm:$0xf]
  %v75 = vld [vmem:[%s1 + $0x20] sm:$0xf]
  %v76 = vld [vmem:[%s1 + $0x24] sm:$0xf]
  %v77 = vld [vmem:[%s1 + $0x28] sm:$0xf]
  %v78 = vld [vmem:[%s1 + $0x2c] sm:$0xf]
  %v79 = vld [vmem:[%s1 + $0x30] sm:$0xf]
  %v80 = vld [vmem:[%s1 + $0x34] sm:$0xf]
  %v81 = vld [vmem:[%s1 + $0x38] sm:$0xf]
  %v82 = vld [vmem:[%s1 + $0x3c] sm:$0xf]
  %v83 = vld [vmem:[%s1 + $0x40] sm:$0xf]
  %v84 = vld [vmem:[%s1 + $0x44] sm:$0xf]
  %v85 = vld [vmem:[%s1 + $0x48] sm:$0xf]
  %v86 = vld [vmem:[%s1 + $0x4c] sm:$0xf]
  %v87 = vld [vmem:[%s1 + $0x50] sm:$0xf]
  %v88 = vld [vmem:[%s1 + $0x54] sm:$0xf]
  %v89 = vld [vmem:[%s1 + $0x58] sm:$0xf]
  %v90 = vld [vmem:[%s1 + $0x5c] sm:$0xf]
  %v91 = vld [vmem:[%s1 + $0x60] sm:$0xf]
  %v92 = vld [vmem:[%s1 + $0x64] sm:$0xf]
  %v93 = vld [vmem:[%s1 + $0x68] sm:$0xf]
  %v94 = vld [vmem:[%s1 + $0x6c] sm:$0xf]
  %v95 = vld [vmem:[%s1 + $0x70] sm:$0xf]
  %v96 = vld [vmem:[%s1 + $0x74] sm:$0xf]
  %v97 = vld [vmem:[%s1 + $0x78] sm:$0xf]
  %v98 = vld [vmem:[%s1 + $0x7c] sm:$0xf]
  %v99 = vld [vmem:[%s1 + $0x80] sm:$0xf]
  %v100 = vld [vmem:[%s1 + $0x84] sm:$0xf]
  %v101 = vld [vmem:[%s1 + $0x88] sm:$0xf]
  %v102 = vld [vmem:[%s1 + $0x8c] sm:$0xf]
  %v103 = vld [vmem:[%s1 + $0x90] sm:$0xf]
  %v104 = vld [vmem:[%s1 + $0x94] sm:$0xf]
  %v105 = vld [vmem:[%s1 + $0x98] sm:$0xf]
  %v106 = vld [vmem:[%s1 + $0x9c] sm:$0xf]
  %v107 = vld [vmem:[%s1 + $0xa0] sm:$0xf]
  %v108 = vld [vmem:[%s1 + $0xa4] sm:$0xf]
  %v109 = vld [vmem:[%s1 + $0xa8] sm:$0xf]
  %v110 = vld [vmem:[%s1 + $0xac] sm:$0xf]
  %v111 = vld [vmem:[%s1 + $0xb0] sm:$0xf]
  %v112 = vld [vmem:[%s1 + $0xb4] sm:$0xf]
  %v113 = vld [vmem:[%s1 + $0xb8] sm:$0xf]
  %v114 = vld [vmem:[%s1 + $0xbc] sm:$0xf]
  %v115 = vld [vmem:[%s1 + $0xc0] sm:$0xf]
  %v116 = vld [vmem:[%s1 + $0xc4] sm:$0xf]
  %v117 = vld [vmem:[%s1 + $0xc8] sm:$0xf]
  %v118 = vld [vmem:[%s1 + $0xcc] sm:$0xf]
  %v119 = vld [vmem:[%s1 + $0xd0] sm:$0xf]
  %v120 = vld [vmem:[%s1 + $0xd4] sm:$0xf]
  %v121 = vld [vmem:[%s1 + $0xd8] sm:$0xf]
  %v122 = vld [vmem:[%s1 + $0xdc] sm:$0xf]
  %v123 = vld [vmem:[%s1 + $0xe0] sm:$0xf]
  %v124 = vld [vmem:[%s1 + $0xe4] sm:$0xf]
  %v125 = vld [vmem:[%s1 + $0xe8] sm:$0xf]
  %v126 = vld [vmem:[%s1 + $0xec] sm:$0xf]
  %v127 = vld [vmem:[%s1 + $0xf0] sm:$0xf]
  %v128 = vld [vmem:[%s1 + $0xf4] sm:$0xf]
  %v129 = vld [vmem:[%s1 + $0xf8] sm:$0xf]
  %v130 = vld [vmem:[%s1 + $0xfc] sm:$0xf]
  %v131 = vld [vmem:[%s1 + $0x100] sm:$0xf]
  %v132 = vld [vmem:[%s1 + $0x104] sm:$0xf]
  %v133 = vld [vmem:[%s1 + $0x108] sm:$0xf]
  %v134 = vld [vmem:[%s1 + $0x10c] sm:$0xf]
  %v135 = vld [vmem:[%s1 + $0x110] sm:$0xf]
  %v136 = vld [vmem:[%s1 + $0x114] sm:$0xf]
  %v137 = vld [vmem:[%s1 + $0x118] sm:$0xf]
  %v138 = vld [vmem:[%s1 + $0x11c] sm:$0xf]
  %v139 = vld [vmem:[%s1 + $0x120] sm:$0xf]
  %v140 = vld [vmem:[%s1 + $0x124] sm:$0xf]
  %v141 = vld [vmem:[%s1 + $0x128] sm:$0xf]
  %v142 = vld [vmem:[%s1 + $0x12c] sm:$0xf]
  %v143 = vld [vmem:[%s1 + $0x130] sm:$0xf]
  %v144 = vld [vmem:[%s1 + $0x134] sm:$0xf]
  %v145 = vld [vmem:[%s1 + $0x138] sm:$0xf]
  %v146 = vld [vmem:[%s1 + $0x13c] sm:$0xf]
  %v147 = vld [vmem:[%s1 + $0x140] sm:$0xf]
  %v148 = vld [vmem:[%s1 + $0x144] sm:$0xf]
  %v149 = vld [vmem:[%s1 + $0x148] sm:$0xf]
  %v150 = vld [vmem:[%s1 + $0x14c] sm:$0xf]
  %v151 = vld [vmem:[%s1 + $0x150] sm:$0xf]
  %v152 = vld [vmem:[%s1 + $0x154] sm:$0xf]
  %v153 = vld [vmem:[%s1 + $0x158] sm:$0xf]
  %v154 = vld [vmem:[%s1 + $0x15c] sm:$0xf]
  %v155 = vld [vmem:[%s1 + $0x160] sm:$0xf]
  %v156 = vld [vmem:[%s1 + $0x164] sm:$0xf]
  %v157 = vld [vmem:[%s1 + $0x168] sm:$0xf]
  %v158 = vld [vmem:[%s1 + $0x16c] sm:$0xf]
  %v159 = vld [vmem:[%s1 + $0x170] sm:$0xf]
  %v160 = vld [vmem:[%s1 + $0x174] sm:$0xf]
  %v161 = vld [vmem:[%s1 + $0x178] sm:$0xf]
  %v162 = vld [vmem:[%s1 + $0x17c] sm:$0xf]
  %v163 = vld [vmem:[%s1 + $0x180] sm:$0xf]
  %v164 = vld [vmem:[%s1 + $0x184] sm:$0xf]
  %v165 = vld [vmem:[%s1 + $0x188] sm:$0xf]
  %v166 = vld [vmem:[%s1 + $0x18c] sm:$0xf]
  %v167 = vld [vmem:[%s1 + $0x190] sm:$0xf]
  %v168 = vld [vmem:[%s1 + $0x194] sm:$0xf]
  %v169 = vld [vmem:[%s1 + $0x198] sm:$0xf]
  %v170 = vld [vmem:[%s1 + $0x19c] sm:$0xf]
  %v171 = vld [vmem:[%s1 + $0x1a0] sm:$0xf]
  %v172 = vld [vmem:[%s1 + $0x1a4] sm:$0xf]
  %v173 = vld [vmem:[%s1 + $0x1a8] sm:$0xf]
  %v174 = vld [vmem:[%s1 + $0x1ac] sm:$0xf]
  %v175 = vld [vmem:[%s1 + $0x1b0] sm:$0xf]
  %v176 = vld [vmem:[%s1 + $0x1b4] sm:$0xf]
  %v177 = vld [vmem:[%s1 + $0x1b8] sm:$0xf]
  %v178 = vld [vmem:[%s1 + $0x1bc] sm:$0xf]
  %v179 = vld [vmem:[%s1 + $0x1c0] sm:$0xf]
  %v180 = vld [vmem:[%s1 + $0x1c4] sm:$0xf]
  %v181 = vld [vmem:[%s1 + $0x1c8] sm:$0xf]
  %v182 = vld [vmem:[%s1 + $0x1cc] sm:$0xf]
  %v183 = vld [vmem:[%s1 + $0x1d0] sm:$0xf]
  %v184 = vld [vmem:[%s1 + $0x1d4] sm:$0xf]
  %v185 = vld [vmem:[%s1 + $0x1d8] sm:$0xf]
  %v186 = vld [vmem:[%s1 + $0x1dc] sm:$0xf]
  %v187 = vld [vmem:[%s1 + $0x1e0] sm:$0xf]
  %v188 = vld [vmem:[%s1 + $0x1e4] sm:$0xf]
  %v189 = vld [vmem:[%s1 + $0x1e8] sm:$0xf]
  %v190 = vld [vmem:[%s1 + $0x1ec] sm:$0xf]
  %v191 = vld [vmem:[%s1 + $0x1f0] sm:$0xf]
  %v192 = vld [vmem:[%s1 + $0x1f4] sm:$0xf]
  %v193 = vld [vmem:[%s1 + $0x1f8] sm:$0xf]
  %v194 = vld [vmem:[%s1 + $0x1fc] sm:$0xf]
  %v195 = vld [vmem:[%s1 + $0x200] sm:$0xf]
  %v196 = vld [vmem:[%s1 + $0x204] sm:$0xf]
  %v197 = vld [vmem:[%s1 + $0x208] sm:$0xf]
  %v198 = vld [vmem:[%s1 + $0x20c] sm:$0xf]
  %v199 = vld [vmem:[%s1 + $0x210] sm:$0xf]
  %v200 = vld [vmem:[%s1 + $0x214] sm:$0xf]
  %v201 = vld [vmem:[%s1 + $0x218] sm:$0xf]
  %v202 = vld [vmem:[%s1 + $0x21c] sm:$0xf]
  %v203 = vld [vmem:[%s1 + $0x220] sm:$0xf]
  %v204 = vld [vmem:[%s1 + $0x224] sm:$0xf]
  %v205 = vld [vmem:[%s1 + $0x228] sm:$0xf]
  %v206 = vld [vmem:[%s1 + $0x22c] sm:$0xf]
  %v207 = vld [vmem:[%s1 + $0x230] sm:$0xf]
  %v208 = vld [vmem:[%s1 + $0x234] sm:$0xf]
  %v209 = vld [vmem:[%s1 + $0x238] sm:$0xf]
  %v210 = vld [vmem:[%s1 + $0x23c] sm:$0xf]
  %v211 = vld [vmem:[%s1 + $0x240] sm:$0xf]
  %v212 = vld [vmem:[%s1 + $0x244] sm:$0xf]
  %v213 = vld [vmem:[%s1 + $0x248] sm:$0xf]
  %v214 = vld [vmem:[%s1 + $0x24c] sm:$0xf]
  %v215 = vld [vmem:[%s1 + $0x250] sm:$0xf]
  %v216 = vld [vmem:[%s1 + $0x254] sm:$0xf]
  %v217 = vld [vmem:[%s1 + $0x258] sm:$0xf]
  %v218 = vld [vmem:[%s1 + $0x25c] sm:$0xf]
  %v219 = vld [vmem:[%s1 + $0x260] sm:$0xf]
  %v220 = vld [vmem:[%s1 + $0x264] sm:$0xf]
  %v221 = vld [vmem:[%s1 + $0x268] sm:$0xf]
  %v222 = vld [vmem:[%s1 + $0x26c] sm:$0xf]
  %v223 = vld [vmem:[%s1 + $0x270] sm:$0xf]
  %v224 = vld [vmem:[%s1 + $0x274] sm:$0xf]
  %v225 = vld [vmem:[%s1 + $0x278] sm:$0xf]
  %v226 = vld [vmem:[%s1 + $0x27c] sm:$0xf]
  %v227 = vld [vmem:[%s1 + $0x280] sm:$0xf]
  %v228 = vld [vmem:[%s1 + $0x284] sm:$0xf]
  %v229 = vld [vmem:[%s1 + $0x288] sm:$0xf]
  %v230 = vld [vmem:[%s1 + $0x28c] sm:$0xf]
  %v231 = vld [vmem:[%s1 + $0x290] sm:$0xf]
  %v232 = vld [vmem:[%s1 + $0x294] sm:$0xf]
  %v233 = vld [vmem:[%s1 + $0x298] sm:$0xf]
  %v234 = vld [vmem:[%s1 + $0x29c] sm:$0xf]
  %v235 = vld [vmem:[%s1 + $0x2a0] sm:$0xf]
  %v236 = vld [vmem:[%s1 + $0x2a4] sm:$0xf]
  %v237 = vld [vmem:[%s1 + $0x2a8] sm:$0xf]
  %v238 = vld [vmem:[%s1 + $0x2ac] sm:$0xf]
  %v239 = vld [vmem:[%s1 + $0x2b0] sm:$0xf]
  %v240 = vld [vmem:[%s1 + $0x2b4] sm:$0xf]
  %v241 = vld [vmem:[%s1 + $0x2b8] sm:$0xf]
  %v242 = vld [vmem:[%s1 + $0x2bc] sm:$0xf]
  %v243 = vld [vmem:[%s1 + $0x2c0] sm:$0xf]
  %v244 = vld [vmem:[%s1 + $0x2c4] sm:$0xf]
  %v245 = vld [vmem:[%s1 + $0x2c8] sm:$0xf]
  %v246 = vld [vmem:[%s1 + $0x2cc] sm:$0xf]
  %v247 = vld [vmem:[%s1 + $0x2d0] sm:$0xf]
  %v248 = vld [vmem:[%s1 + $0x2d4] sm:$0xf]
  %v249 = vld [vmem:[%s1 + $0x2d8] sm:$0xf]
  %v250 = vld [vmem:[%s1 + $0x2dc] sm:$0xf]
  %v251 = vld [vmem:[%s1 + $0x2e0] sm:$0xf]
  %v252 = vld [vmem:[%s1 + $0x2e4] sm:$0xf]
  %v253 = vld [vmem:[%s1 + $0x2e8] sm:$0xf]
  %v254 = vld [vmem:[%s1 + $0x2ec] sm:$0xf]
  %v255 = vld [vmem:[%s1 + $0x2f0] sm:$0xf]
  %v256 = vld [vmem:[%s1 + $0x2f4] sm:$0xf]
  %v257 = vld [vmem:[%s1 + $0x2f8] sm:$0xf]
  %v258 = vld [vmem:[%s1 + $0x2fc] sm:$0xf]
  %v259 = vld [vmem:[%s1 + $0x300] sm:$0xf]
  %v260 = vld [vmem:[%s1 + $0x304] sm:$0xf]
  %v261 = vld [vmem:[%s1 + $0x308] sm:$0xf]
  %v262 = vld [vmem:[%s1 + $0x30c] sm:$0xf]
  %v263 = vld [vmem:[%s1 + $0x310] sm:$0xf]
  %v264 = vld [vmem:[%s1 + $0x314] sm:$0xf]
  %v265 = vld [vmem:[%s1 + $0x318] sm:$0xf]
  %v266 = vld [vmem:[%s1 + $0x31c] sm:$0xf]
  %v267 = vld [vmem:[%s1 + $0x320] sm:$0xf]
  %v268 = vld [vmem:[%s1 + $0x324] sm:$0xf]
  %v269 = vld [vmem:[%s1 + $0x328] sm:$0xf]
  %v270 = vld [vmem:[%s1 + $0x32c] sm:$0xf]
  %v271 = vld [vmem:[%s1 + $0x330] sm:$0xf]
  %v272 = vld [vmem:[%s1 + $0x334] sm:$0xf]
  %v273 = vld [vmem:[%s1 + $0x338] sm:$0xf]
  %v274 = vld [vmem:[%s1 + $0x33c] sm:$0xf]
  %v275 = vld [vmem:[%s1 + $0x340] sm:$0xf]
  %v276 = vld [vmem:[%s1 + $0x344] sm:$0xf]
  %v277 = vld [vmem:[%s1 + $0x348] sm:$0xf]
  %v278 = vld [vmem:[%s1 + $0x34c] sm:$0xf]
  %v279 = vld [vmem:[%s1 + $0x350] sm:$0xf]
  %v280 = vld [vmem:[%s1 + $0x354] sm:$0xf]
  %v281 = vld [vmem:[%s1 + $0x358] sm:$0xf]
  %v282 = vld [vmem:[%s1 + $0x35c] sm:$0xf]
  %v283 = vld [vmem:[%s1 + $0x360] sm:$0xf]
  %v284 = vld [vmem:[%s1 + $0x364] sm:$0xf]
  %v285 = vld [vmem:[%s1 + $0x368] sm:$0xf]
  %v286 = vld [vmem:[%s1 + $0x36c] sm:$0xf]
  %v287 = vld [vmem:[%s1 + $0x370] sm:$0xf]
  %v288 = vld [vmem:[%s1 + $0x374] sm:$0xf]
  %v289 = vld [vmem:[%s1 + $0x378] sm:$0xf]
  %v290 = vld [vmem:[%s1 + $0x37c] sm:$0xf]
  %v291 = vld [vmem:[%s1 + $0x380] sm:$0xf]
  %v292 = vld [vmem:[%s1 + $0x384] sm:$0xf]
  %v293 = vld [vmem:[%s1 + $0x388] sm:$0xf]
  %v294 = vld [vmem:[%s1 + $0x38c] sm:$0xf]
  %v295 = vld [vmem:[%s1 + $0x390] sm:$0xf]
  %v296 = vld [vmem:[%s1 + $0x394] sm:$0xf]
  %v297 = vld [vmem:[%s1 + $0x398] sm:$0xf]
  %v298 = vld [vmem:[%s1 + $0x39c] sm:$0xf]
  %v299 = vld [vmem:[%s1 + $0x3a0] sm:$0xf]
  %v300 = vld [vmem:[%s1 + $0x3a4] sm:$0xf]
  %v301 = vld [vmem:[%s1 + $0x3a8] sm:$0xf]
  %v302 = vld [vmem:[%s1 + $0x3ac] sm:$0xf]
  %v303 = vld [vmem:[%s1 + $0x3b0] sm:$0xf]
  %v304 = vld [vmem:[%s1 + $0x3b4] sm:$0xf]
  %v305 = vld [vmem:[%s1 + $0x3b8] sm:$0xf]
  %v306 = vld [vmem:[%s1 + $0x3bc] sm:$0xf]
  %v307 = vld [vmem:[%s1 + $0x3c0] sm:$0xf]
  %v308 = vld [vmem:[%s1 + $0x3c4] sm:$0xf]
  %v309 = vld [vmem:[%s1 + $0x3c8] sm:$0xf]
  %v310 = vld [vmem:[%s1 + $0x3cc] sm:$0xf]
  %v311 = vld [vmem:[%s1 + $0x3d0] sm:$0xf]
  %v312 = vld [vmem:[%s1 + $0x3d4] sm:$0xf]
  %v313 = vld [vmem:[%s1 + $0x3d8] sm:$0xf]
  %v314 = vld [vmem:[%s1 + $0x3dc] sm:$0xf]
  %v315 = vld [vmem:[%s1 + $0x3e0] sm:$0xf]
  %v316 = vld [vmem:[%s1 + $0x3e4] sm:$0xf]
  %v317 = vld [vmem:[%s1 + $0x3e8] sm:$0xf]
  %v318 = vld [vmem:[%s1 + $0x3ec] sm:$0xf]
  %v319 = vld [vmem:[%s1 + $0x3f0] sm:$0xf]
  %v320 = vld [vmem:[%s1 + $0x3f4] sm:$0xf]
  %v321 = vld [vmem:[%s1 + $0x3f8] sm:$0xf]
  %v322 = vld [vmem:[%s1 + $0x3fc] sm:$0xf]
  %v323 = vld [vmem:[%s1 + $0x400] sm:$0xf]
  %v324 = vld [vmem:[%s1 + $0x404] sm:$0xf]
  %v325 = vld [vmem:[%s1 + $0x408] sm:$0xf]
  %v326 = vld [vmem:[%s1 + $0x40c] sm:$0xf]
  %v327 = vld [vmem:[%s1 + $0x410] sm:$0xf]
  %v328 = vld [vmem:[%s1 + $0x414] sm:$0xf]
  %v329 = vld [vmem:[%s1 + $0x418] sm:$0xf]
  %v330 = vld [vmem:[%s1 + $0x41c] sm:$0xf]
  %v331 = vld [vmem:[%s1 + $0x420] sm:$0xf]
  %v332 = vld [vmem:[%s1 + $0x424] sm:$0xf]
  %v333 = vld [vmem:[%s1 + $0x428] sm:$0xf]
  %v334 = vld [vmem:[%s1 + $0x42c] sm:$0xf]
  %v335 = vld [vmem:[%s1 + $0x430] sm:$0xf]
  %v336 = vld [vmem:[%s1 + $0x434] sm:$0xf]
  %v337 = vld [vmem:[%s1 + $0x438] sm:$0xf]
  %v338 = vld [vmem:[%s1 + $0x43c] sm:$0xf]
  %v339 = vld [vmem:[%s1 + $0x440] sm:$0xf]
  %v340 = vld [vmem:[%s1 + $0x444] sm:$0xf]
  %v341 = vld [vmem:[%s1 + $0x448] sm:$0xf]
  %v342 = vld [vmem:[%s1 + $0x44c] sm:$0xf]
  %v343 = vld [vmem:[%s1 + $0x450] sm:$0xf]
  %v344 = vld [vmem:[%s1 + $0x454] sm:$0xf]
  %v345 = vld [vmem:[%s1 + $0x458] sm:$0xf]
  %v346 = vld [vmem:[%s1 + $0x45c] sm:$0xf]
  %v347 = vld [vmem:[%s1 + $0x460] sm:$0xf]
  %v348 = vld [vmem:[%s1 + $0x464] sm:$0xf]
  %v349 = vld [vmem:[%s1 + $0x468] sm:$0xf]
  %v350 = vld [vmem:[%s1 + $0x46c] sm:$0xf]
  %v351 = vld [vmem:[%s1 + $0x470] sm:$0xf]
  %v352 = vld [vmem:[%s1 + $0x474] sm:$0xf]
  %v353 = vld [vmem:[%s1 + $0x478] sm:$0xf]
  %v354 = vld [vmem:[%s1 + $0x47c] sm:$0xf]
  %v355 = vld [vmem:[%s1 + $0x480] sm:$0xf]
  %v356 = vld [vmem:[%s1 + $0x484] sm:$0xf]
  %v357 = vld [vmem:[%s1 + $0x488] sm:$0xf]
  %v358 = vld [vmem:[%s1 + $0x48c] sm:$0xf]
  %v359 = vld [vmem:[%s1 + $0x490] sm:$0xf]
  %v360 = vld [vmem:[%s1 + $0x494] sm:$0xf]
  %v361 = vld [vmem:[%s1 + $0x498] sm:$0xf]
  %v362 = vld [vmem:[%s1 + $0x49c] sm:$0xf]
  %v363 = vld [vmem:[%s1 + $0x4a0] sm:$0xf]
  %v364 = vld [vmem:[%s1 + $0x4a4] sm:$0xf]
  %v365 = vld [vmem:[%s1 + $0x4a8] sm:$0xf]
  %v366 = vld [vmem:[%s1 + $0x4ac] sm:$0xf]
  %v367 = vld [vmem:[%s1 + $0x4b0] sm:$0xf]
  %v368 = vld [vmem:[%s1 + $0x4b4] sm:$0xf]
  %v369 = vld [vmem:[%s1 + $0x4b8] sm:$0xf]
  %v370 = vld [vmem:[%s1 + $0x4bc] sm:$0xf]
  %v371 = vld [vmem:[%s1 + $0x4c0] sm:$0xf]
  %v372 = vld [vmem:[%s1 + $0x4c4] sm:$0xf]
  %v373 = vld [vmem:[%s1 + $0x4c8] sm:$0xf]
  %v374 = vld [vmem:[%s1 + $0x4cc] sm:$0xf]
  %v375 = vld [vmem:[%s1 + $0x4d0] sm:$0xf]
  %v376 = vld [vmem:[%s1 + $0x4d4] sm:$0xf]
  %v377 = vld [vmem:[%s1 + $0x4d8] sm:$0xf]
  %v378 = vld [vmem:[%s1 + $0x4dc] sm:$0xf]
  %v379 = vld [vmem:[%s1 + $0x4e0] sm:$0xf]
  %v380 = vld [vmem:[%s1 + $0x4e4] sm:$0xf]
  %v381 = vld [vmem:[%s1 + $0x4e8] sm:$0xf]
  %v382 = vld [vmem:[%s1 + $0x4ec] sm:$0xf]
  %v383 = vld [vmem:[%s1 + $0x4f0] sm:$0xf]
  %v384 = vld [vmem:[%s1 + $0x4f4] sm:$0xf]
  %v385 = vld [vmem:[%s1 + $0x4f8] sm:$0xf]
  %v386 = vld [vmem:[%s1 + $0x4fc] sm:$0xf]
  %v387 = vld [vmem:[%s1 + $0x500] sm:$0xf]
  %v388 = vld [vmem:[%s1 + $0x504] sm:$0xf]
  %v389 = vld [vmem:[%s1 + $0x508] sm:$0xf]
  %v390 = vld [vmem:[%s1 + $0x50c] sm:$0xf]
  %v391 = vld [vmem:[%s1 + $0x510] sm:$0xf]
  %v392 = vld [vmem:[%s1 + $0x514] sm:$0xf]
  %v393 = vld [vmem:[%s1 + $0x518] sm:$0xf]
  %v394 = vld [vmem:[%s1 + $0x51c] sm:$0xf]
  %v395 = vld [vmem:[%s1 + $0x520] sm:$0xf]
  %v396 = vld [vmem:[%s1 + $0x524] sm:$0xf]
  %v397 = vld [vmem:[%s1 + $0x528] sm:$0xf]
  %v398 = vld [vmem:[%s1 + $0x52c] sm:$0xf]
  %v399 = vld [vmem:[%s1 + $0x530] sm:$0xf]
  %v400 = vld [vmem:[%s1 + $0x534] sm:$0xf]
  %v401 = vld [vmem:[%s1 + $0x538] sm:$0xf]
  %v402 = vld [vmem:[%s1 + $0x53c] sm:$0xf]
  %v403 = vld [vmem:[%s1 + $0x540] sm:$0xf]
  %v404 = vld [vmem:[%s1 + $0x544] sm:$0xf]
  %v405 = vld [vmem:[%s1 + $0x548] sm:$0xf]
  %v406 = vld [vmem:[%s1 + $0x54c] sm:$0xf]
  %v407 = vld [vmem:[%s1 + $0x550] sm:$0xf]
  %v408 = vld [vmem:[%s1 + $0x554] sm:$0xf]
  %v409 = vld [vmem:[%s1 + $0x558] sm:$0xf]
  %v410 = vld [vmem:[%s1 + $0x55c] sm:$0xf]
  %v411 = vld [vmem:[%s1 + $0x560] sm:$0xf]
  %v412 = vld [vmem:[%s1 + $0x564] sm:$0xf]
  %v413 = vld [vmem:[%s1 + $0x568] sm:$0xf]
  %v414 = vld [vmem:[%s1 + $0x56c] sm:$0xf]
  %v415 = vld [vmem:[%s1 + $0x570] sm:$0xf]
  %v416 = vld [vmem:[%s1 + $0x574] sm:$0xf]
  %v417 = vld [vmem:[%s1 + $0x578] sm:$0xf]
  %v418 = vld [vmem:[%s1 + $0x57c] sm:$0xf]
  %v419 = vld [vmem:[%s1 + $0x580] sm:$0xf]
  %v420 = vld [vmem:[%s1 + $0x584] sm:$0xf]
  %v421 = vld [vmem:[%s1 + $0x588] sm:$0xf]
  %v422 = vld [vmem:[%s1 + $0x58c] sm:$0xf]
  %v423 = vld [vmem:[%s1 + $0x590] sm:$0xf]
  %v424 = vld [vmem:[%s1 + $0x594] sm:$0xf]
  %v425 = vld [vmem:[%s1 + $0x598] sm:$0xf]
  %v426 = vld [vmem:[%s1 + $0x59c] sm:$0xf]
  %v427 = vld [vmem:[%s1 + $0x5a0] sm:$0xf]
  %v428 = vld [vmem:[%s1 + $0x5a4] sm:$0xf]
  %v429 = vld [vmem:[%s1 + $0x5a8] sm:$0xf]
  %v430 = vld [vmem:[%s1 + $0x5ac] sm:$0xf]
  %v431 = vld [vmem:[%s1 + $0x5b0] sm:$0xf]
  %v432 = vld [vmem:[%s1 + $0x5b4] sm:$0xf]
  %v433 = vld [vmem:[%s1 + $0x5b8] sm:$0xf]
  %v434 = vld [vmem:[%s1 + $0x5bc] sm:$0xf]
  %v435 = vld [vmem:[%s1 + $0x5c0] sm:$0xf]
  %v436 = vld [vmem:[%s1 + $0x5c4] sm:$0xf]
  %v437 = vld [vmem:[%s1 + $0x5c8] sm:$0xf]
  %v438 = vld [vmem:[%s1 + $0x5cc] sm:$0xf]
  %v439 = vld [vmem:[%s1 + $0x5d0] sm:$0xf]
  %v440 = vld [vmem:[%s1 + $0x5d4] sm:$0xf]
  %v441 = vld [vmem:[%s1 + $0x5d8] sm:$0xf]
  %v442 = vld [vmem:[%s1 + $0x5dc] sm:$0xf]
  %v443 = vld [vmem:[%s1 + $0x5e0] sm:$0xf]
  %v444 = vld [vmem:[%s1 + $0x5e4] sm:$0xf]
  %v445 = vld [vmem:[%s1 + $0x5e8] sm:$0xf]
  %v446 = vld [vmem:[%s1 + $0x5ec] sm:$0xf]
  %v447 = vld [vmem:[%s1 + $0x5f0] sm:$0xf]
  %v448 = vld [vmem:[%s1 + $0x5f4] sm:$0xf]
  %v449 = vld [vmem:[%s1 + $0x5f8] sm:$0xf]
  %v450 = vld [vmem:[%s1 + $0x5fc] sm:$0xf]
  %v451 = vld [vmem:[%s1 + $0x600] sm:$0xf]
  %v452 = vld [vmem:[%s1 + $0x604] sm:$0xf]
  %v453 = vld [vmem:[%s1 + $0x608] sm:$0xf]
  %v454 = vld [vmem:[%s1 + $0x60c] sm:$0xf]
  %v455 = vld [vmem:[%s1 + $0x610] sm:$0xf]
  %v456 = vld [vmem:[%s1 + $0x614] sm:$0xf]
  %v457 = vld [vmem:[%s1 + $0x618] sm:$0xf]
  %v458 = vld [vmem:[%s1 + $0x61c] sm:$0xf]
  %v459 = vld [vmem:[%s1 + $0x620] sm:$0xf]
  %v460 = vld [vmem:[%s1 + $0x624] sm:$0xf]
  %v461 = vld [vmem:[%s1 + $0x628] sm:$0xf]
  %v462 = vld [vmem:[%s1 + $0x62c] sm:$0xf]
  %v463 = vld [vmem:[%s1 + $0x630] sm:$0xf]
  %v464 = vld [vmem:[%s1 + $0x634] sm:$0xf]
  %v465 = vld [vmem:[%s1 + $0x638] sm:$0xf]
  %v466 = vld [vmem:[%s1 + $0x63c] sm:$0xf]
  %v467 = vld [vmem:[%s2] sm:$0x1]
  %v469 = vlaneseq
  %v470 = vshrl.u32 %v469, 7
  %v471 = vsub.s32 0, %v470
  %v472 = vrot.slane %v467, %v471
  %v526 = vunpack.c.l.b16 %v15
  %v527 = vunpack.c.h.b16 %v15
  %v528 = vunpack.c.l.b16 %v16
  %v529 = vunpack.c.h.b16 %v16
  %v530 = vunpack.c.l.b16 %v17
  %v531 = vunpack.c.h.b16 %v17
  %v532 = vunpack.c.l.b16 %v18
  %v533 = vunpack.c.h.b16 %v18
  %v534 = vunpack.c.l.b16 %v19
  %v535 = vunpack.c.h.b16 %v19
  %v536 = vunpack.c.l.b16 %v20
  %v537 = vunpack.c.h.b16 %v20
  %v538 = vunpack.c.l.b16 %v21
  %v539 = vunpack.c.h.b16 %v21
  %v540 = vunpack.c.l.b16 %v22
  %v541 = vunpack.c.h.b16 %v22
  %v542 = vunpack.c.l.b16 %v23
  %v543 = vunpack.c.h.b16 %v23
  %v544 = vunpack.c.l.b16 %v24
  %v545 = vunpack.c.h.b16 %v24
  %v546 = vunpack.c.l.b16 %v25
  %v547 = vunpack.c.h.b16 %v25
  %v548 = vunpack.c.l.b16 %v26
  %v549 = vunpack.c.h.b16 %v26
  %v550 = vunpack.c.l.b16 %v27
  %v551 = vunpack.c.l.b16 %v28
  %v552 = vunpack.c.h.b16 %v28
  %v553 = vunpack.c.l.b16 %v29
  %v554 = vunpack.c.h.b16 %v29
  %v555 = vunpack.c.l.b16 %v30
  %v556 = vunpack.c.h.b16 %v30
  %v557 = vunpack.c.l.b16 %v31
  %v558 = vunpack.c.h.b16 %v31
  %v559 = vunpack.c.l.b16 %v32
  %v560 = vunpack.c.h.b16 %v32
  %v561 = vunpack.c.l.b16 %v33
  %v562 = vunpack.c.h.b16 %v33
  %v563 = vunpack.c.l.b16 %v34
  %v564 = vunpack.c.h.b16 %v34
  %v565 = vunpack.c.l.b16 %v35
  %v566 = vunpack.c.h.b16 %v35
  %v567 = vunpack.c.l.b16 %v36
  %v568 = vunpack.c.h.b16 %v36
  %v569 = vunpack.c.l.b16 %v37
  %v570 = vunpack.c.h.b16 %v37
  %v571 = vunpack.c.l.b16 %v38
  %v572 = vunpack.c.h.b16 %v38
  %v573 = vunpack.c.l.b16 %v39
  %v574 = vunpack.c.h.b16 %v39
  %v575 = vunpack.c.l.b16 %v40
  %v576 = vunpack.c.l.b16 %v41
  %v577 = vunpack.c.h.b16 %v41
  %v578 = vunpack.c.l.b16 %v42
  %v579 = vunpack.c.h.b16 %v42
  %v580 = vunpack.c.l.b16 %v43
  %v581 = vunpack.c.h.b16 %v43
  %v582 = vunpack.c.l.b16 %v44
  %v583 = vunpack.c.h.b16 %v44
  %v584 = vunpack.c.l.b16 %v45
  %v585 = vunpack.c.h.b16 %v45
  %v586 = vunpack.c.l.b16 %v46
  %v587 = vunpack.c.h.b16 %v46
  %v588 = vunpack.c.l.b16 %v47
  %v589 = vunpack.c.h.b16 %v47
  %v590 = vunpack.c.l.b16 %v48
  %v591 = vunpack.c.h.b16 %v48
  %v592 = vunpack.c.l.b16 %v49
  %v593 = vunpack.c.h.b16 %v49
  %v594 = vunpack.c.l.b16 %v50
  %v595 = vunpack.c.h.b16 %v50
  %v596 = vunpack.c.l.b16 %v51
  %v597 = vunpack.c.h.b16 %v51
  %v598 = vunpack.c.l.b16 %v52
  %v599 = vunpack.c.h.b16 %v52
  %v600 = vunpack.c.l.b16 %v53
  %v601 = vunpack.c.l.b16 %v54
  %v602 = vunpack.c.h.b16 %v54
  %v603 = vunpack.c.l.b16 %v55
  %v604 = vunpack.c.h.b16 %v55
  %v605 = vunpack.c.l.b16 %v56
  %v606 = vunpack.c.h.b16 %v56
  %v607 = vunpack.c.l.b16 %v57
  %v608 = vunpack.c.h.b16 %v57
  %v609 = vunpack.c.l.b16 %v58
  %v610 = vunpack.c.h.b16 %v58
  %v611 = vunpack.c.l.b16 %v59
  %v612 = vunpack.c.h.b16 %v59
  %v613 = vunpack.c.l.b16 %v60
  %v614 = vunpack.c.h.b16 %v60
  %v615 = vunpack.c.l.b16 %v61
  %v616 = vunpack.c.h.b16 %v61
  %v617 = vunpack.c.l.b16 %v62
  %v618 = vunpack.c.h.b16 %v62
  %v619 = vunpack.c.l.b16 %v63
  %v620 = vunpack.c.h.b16 %v63
  %v621 = vunpack.c.l.b16 %v64
  %v622 = vunpack.c.h.b16 %v64
  %v623 = vunpack.c.l.b16 %v65
  %v624 = vunpack.c.h.b16 %v65
  %v625 = vunpack.c.l.b16 %v66
  %v626 = vpack.c.b16 %v551, %v526
  %v627 = vpack.c.b16 %v552, %v527
  %v628 = vpack.c.b16 %v553, %v528
  %v629 = vpack.c.b16 %v554, %v529
  %v630 = vpack.c.b16 %v555, %v530
  %v631 = vpack.c.b16 %v556, %v531
  %v632 = vpack.c.b16 %v557, %v532
  %v633 = vpack.c.b16 %v558, %v533
  %v634 = vpack.c.b16 %v559, %v534
  %v635 = vpack.c.b16 %v560, %v535
  %v636 = vpack.c.b16 %v561, %v536
  %v637 = vpack.c.b16 %v562, %v537
  %v638 = vpack.c.b16 %v563, %v538
  %v639 = vpack.c.b16 %v564, %v539
  %v640 = vpack.c.b16 %v565, %v540
  %v641 = vpack.c.b16 %v566, %v541
  %v642 = vpack.c.b16 %v567, %v542
  %v643 = vpack.c.b16 %v568, %v543
  %v644 = vpack.c.b16 %v569, %v544
  %v645 = vpack.c.b16 %v570, %v545
  %v646 = vpack.c.b16 %v571, %v546
  %v647 = vpack.c.b16 %v572, %v547
  %v648 = vpack.c.b16 %v573, %v548
  %v649 = vpack.c.b16 %v574, %v549
  %v650 = vpack.c.b16 %v575, %v550
  %v651 = vpack.c.b16 %v601, %v576
  %v652 = vpack.c.b16 %v602, %v577
  %v653 = vpack.c.b16 %v603, %v578
  %v654 = vpack.c.b16 %v604, %v579
  %v655 = vpack.c.b16 %v605, %v580
  %v656 = vpack.c.b16 %v606, %v581
  %v657 = vpack.c.b16 %v607, %v582
  %v658 = vpack.c.b16 %v608, %v583
  %v659 = vpack.c.b16 %v609, %v584
  %v660 = vpack.c.b16 %v610, %v585
  %v661 = vpack.c.b16 %v611, %v586
  %v662 = vpack.c.b16 %v612, %v587
  %v663 = vpack.c.b16 %v613, %v588
  %v664 = vpack.c.b16 %v614, %v589
  %v665 = vpack.c.b16 %v615, %v590
  %v666 = vpack.c.b16 %v616, %v591
  %v667 = vpack.c.b16 %v617, %v592
  %v668 = vpack.c.b16 %v618, %v593
  %v669 = vpack.c.b16 %v619, %v594
  %v670 = vpack.c.b16 %v620, %v595
  %v671 = vpack.c.b16 %v621, %v596
  %v672 = vpack.c.b16 %v622, %v597
  %v673 = vpack.c.b16 %v623, %v598
  %v674 = vpack.c.b16 %v624, %v599
  %v675 = vpack.c.b16 %v625, %v600
  %v1126 = vunpack.c.l.b16 %v67
  %v1127 = vunpack.c.l.b16 %v68
  %v1128 = vunpack.c.l.b16 %v69
  %v1129 = vunpack.c.l.b16 %v70
  %v1130 = vunpack.c.l.b16 %v71
  %v1131 = vunpack.c.l.b16 %v72
  %v1132 = vunpack.c.l.b16 %v73
  %v1133 = vunpack.c.l.b16 %v74
  %v1134 = vunpack.c.l.b16 %v75
  %v1135 = vunpack.c.l.b16 %v76
  %v1136 = vunpack.c.l.b16 %v77
  %v1137 = vunpack.c.l.b16 %v78
  %v1138 = vunpack.c.l.b16 %v79
  %v1139 = vunpack.c.l.b16 %v80
  %v1140 = vunpack.c.l.b16 %v81
  %v1141 = vunpack.c.l.b16 %v82
  %v1142 = vunpack.c.l.b16 %v83
  %v1143 = vunpack.c.l.b16 %v84
  %v1144 = vunpack.c.l.b16 %v85
  %v1145 = vunpack.c.l.b16 %v86
  %v1146 = vunpack.c.l.b16 %v87
  %v1147 = vunpack.c.l.b16 %v88
  %v1148 = vunpack.c.l.b16 %v89
  %v1149 = vunpack.c.l.b16 %v90
  %v1150 = vunpack.c.l.b16 %v91
  %v1151 = vunpack.c.l.b16 %v92
  %v1152 = vunpack.c.l.b16 %v93
  %v1153 = vunpack.c.l.b16 %v94
  %v1154 = vunpack.c.l.b16 %v95
  %v1155 = vunpack.c.l.b16 %v96
  %v1156 = vunpack.c.l.b16 %v97
  %v1157 = vunpack.c.l.b16 %v98
  %v1158 = vunpack.c.l.b16 %v99
  %v1159 = vunpack.c.l.b16 %v100
  %v1160 = vunpack.c.l.b16 %v101
  %v1161 = vunpack.c.l.b16 %v102
  %v1162 = vunpack.c.l.b16 %v103
  %v1163 = vunpack.c.l.b16 %v104
  %v1164 = vunpack.c.l.b16 %v105
  %v1165 = vunpack.c.l.b16 %v106
  %v1166 = vunpack.c.l.b16 %v107
  %v1167 = vunpack.c.l.b16 %v108
  %v1168 = vunpack.c.l.b16 %v109
  %v1169 = vunpack.c.l.b16 %v110
  %v1170 = vunpack.c.l.b16 %v111
  %v1171 = vunpack.c.l.b16 %v112
  %v1172 = vunpack.c.l.b16 %v113
  %v1173 = vunpack.c.l.b16 %v114
  %v1174 = vunpack.c.l.b16 %v115
  %v1175 = vunpack.c.l.b16 %v116
  %v1176 = vunpack.c.l.b16 %v117
  %v1177 = vunpack.c.l.b16 %v118
  %v1178 = vunpack.c.l.b16 %v119
  %v1179 = vunpack.c.l.b16 %v120
  %v1180 = vunpack.c.l.b16 %v121
  %v1181 = vunpack.c.l.b16 %v122
  %v1182 = vunpack.c.l.b16 %v123
  %v1183 = vunpack.c.l.b16 %v124
  %v1184 = vunpack.c.l.b16 %v125
  %v1185 = vunpack.c.l.b16 %v126
  %v1186 = vunpack.c.l.b16 %v127
  %v1187 = vunpack.c.l.b16 %v128
  %v1188 = vunpack.c.l.b16 %v129
  %v1189 = vunpack.c.l.b16 %v130
  %v1190 = vunpack.c.l.b16 %v131
  %v1191 = vunpack.c.l.b16 %v132
  %v1192 = vunpack.c.l.b16 %v133
  %v1193 = vunpack.c.l.b16 %v134
  %v1194 = vunpack.c.l.b16 %v135
  %v1195 = vunpack.c.l.b16 %v136
  %v1196 = vunpack.c.l.b16 %v137
  %v1197 = vunpack.c.l.b16 %v138
  %v1198 = vunpack.c.l.b16 %v139
  %v1199 = vunpack.c.l.b16 %v140
  %v1200 = vunpack.c.l.b16 %v141
  %v1201 = vunpack.c.l.b16 %v142
  %v1202 = vunpack.c.l.b16 %v143
  %v1203 = vunpack.c.l.b16 %v144
  %v1204 = vunpack.c.l.b16 %v145
  %v1205 = vunpack.c.l.b16 %v146
  %v1206 = vunpack.c.l.b16 %v147
  %v1207 = vunpack.c.l.b16 %v148
  %v1208 = vunpack.c.l.b16 %v149
  %v1209 = vunpack.c.l.b16 %v150
  %v1210 = vunpack.c.l.b16 %v151
  %v1211 = vunpack.c.l.b16 %v152
  %v1212 = vunpack.c.l.b16 %v153
  %v1213 = vunpack.c.l.b16 %v154
  %v1214 = vunpack.c.l.b16 %v155
  %v1215 = vunpack.c.l.b16 %v156
  %v1216 = vunpack.c.l.b16 %v157
  %v1217 = vunpack.c.l.b16 %v158
  %v1218 = vunpack.c.l.b16 %v159
  %v1219 = vunpack.c.l.b16 %v160
  %v1220 = vunpack.c.l.b16 %v161
  %v1221 = vunpack.c.l.b16 %v162
  %v1222 = vunpack.c.l.b16 %v163
  %v1223 = vunpack.c.l.b16 %v164
  %v1224 = vunpack.c.l.b16 %v165
  %v1225 = vunpack.c.l.b16 %v166
  %v1226 = vunpack.c.l.b16 %v167
  %v1227 = vunpack.c.l.b16 %v168
  %v1228 = vunpack.c.l.b16 %v169
  %v1229 = vunpack.c.l.b16 %v170
  %v1230 = vunpack.c.l.b16 %v171
  %v1231 = vunpack.c.l.b16 %v172
  %v1232 = vunpack.c.l.b16 %v173
  %v1233 = vunpack.c.l.b16 %v174
  %v1234 = vunpack.c.l.b16 %v175
  %v1235 = vunpack.c.l.b16 %v176
  %v1236 = vunpack.c.l.b16 %v177
  %v1237 = vunpack.c.l.b16 %v178
  %v1238 = vunpack.c.l.b16 %v179
  %v1239 = vunpack.c.l.b16 %v180
  %v1240 = vunpack.c.l.b16 %v181
  %v1241 = vunpack.c.l.b16 %v182
  %v1242 = vunpack.c.l.b16 %v183
  %v1243 = vunpack.c.l.b16 %v184
  %v1244 = vunpack.c.l.b16 %v185
  %v1245 = vunpack.c.l.b16 %v186
  %v1246 = vunpack.c.l.b16 %v187
  %v1247 = vunpack.c.l.b16 %v188
  %v1248 = vunpack.c.l.b16 %v189
  %v1249 = vunpack.c.l.b16 %v190
  %v1250 = vunpack.c.l.b16 %v191
  %v1251 = vunpack.c.l.b16 %v192
  %v1252 = vunpack.c.l.b16 %v193
  %v1253 = vunpack.c.l.b16 %v194
  %v1254 = vunpack.c.l.b16 %v195
  %v1255 = vunpack.c.l.b16 %v196
  %v1256 = vunpack.c.l.b16 %v197
  %v1257 = vunpack.c.l.b16 %v198
  %v1258 = vunpack.c.l.b16 %v199
  %v1259 = vunpack.c.l.b16 %v200
  %v1260 = vunpack.c.l.b16 %v201
  %v1261 = vunpack.c.l.b16 %v202
  %v1262 = vunpack.c.l.b16 %v203
  %v1263 = vunpack.c.l.b16 %v204
  %v1264 = vunpack.c.l.b16 %v205
  %v1265 = vunpack.c.l.b16 %v206
  %v1266 = vunpack.c.l.b16 %v207
  %v1267 = vunpack.c.l.b16 %v208
  %v1268 = vunpack.c.l.b16 %v209
  %v1269 = vunpack.c.l.b16 %v210
  %v1270 = vunpack.c.l.b16 %v211
  %v1271 = vunpack.c.l.b16 %v212
  %v1272 = vunpack.c.l.b16 %v213
  %v1273 = vunpack.c.l.b16 %v214
  %v1274 = vunpack.c.l.b16 %v215
  %v1275 = vunpack.c.l.b16 %v216
  %v1276 = vunpack.c.l.b16 %v217
  %v1277 = vunpack.c.l.b16 %v218
  %v1278 = vunpack.c.l.b16 %v219
  %v1279 = vunpack.c.l.b16 %v220
  %v1280 = vunpack.c.l.b16 %v221
  %v1281 = vunpack.c.l.b16 %v222
  %v1282 = vunpack.c.l.b16 %v223
  %v1283 = vunpack.c.l.b16 %v224
  %v1284 = vunpack.c.l.b16 %v225
  %v1285 = vunpack.c.l.b16 %v226
  %v1286 = vunpack.c.l.b16 %v227
  %v1287 = vunpack.c.l.b16 %v228
  %v1288 = vunpack.c.l.b16 %v229
  %v1289 = vunpack.c.l.b16 %v230
  %v1290 = vunpack.c.l.b16 %v231
  %v1291 = vunpack.c.l.b16 %v232
  %v1292 = vunpack.c.l.b16 %v233
  %v1293 = vunpack.c.l.b16 %v234
  %v1294 = vunpack.c.l.b16 %v235
  %v1295 = vunpack.c.l.b16 %v236
  %v1296 = vunpack.c.l.b16 %v237
  %v1297 = vunpack.c.l.b16 %v238
  %v1298 = vunpack.c.l.b16 %v239
  %v1299 = vunpack.c.l.b16 %v240
  %v1300 = vunpack.c.l.b16 %v241
  %v1301 = vunpack.c.l.b16 %v242
  %v1302 = vunpack.c.l.b16 %v243
  %v1303 = vunpack.c.l.b16 %v244
  %v1304 = vunpack.c.l.b16 %v245
  %v1305 = vunpack.c.l.b16 %v246
  %v1306 = vunpack.c.l.b16 %v247
  %v1307 = vunpack.c.l.b16 %v248
  %v1308 = vunpack.c.l.b16 %v249
  %v1309 = vunpack.c.l.b16 %v250
  %v1310 = vunpack.c.l.b16 %v251
  %v1311 = vunpack.c.l.b16 %v252
  %v1312 = vunpack.c.l.b16 %v253
  %v1313 = vunpack.c.l.b16 %v254
  %v1314 = vunpack.c.l.b16 %v255
  %v1315 = vunpack.c.l.b16 %v256
  %v1316 = vunpack.c.l.b16 %v257
  %v1317 = vunpack.c.l.b16 %v258
  %v1318 = vunpack.c.l.b16 %v259
  %v1319 = vunpack.c.l.b16 %v260
  %v1320 = vunpack.c.l.b16 %v261
  %v1321 = vunpack.c.l.b16 %v262
  %v1322 = vunpack.c.l.b16 %v263
  %v1323 = vunpack.c.l.b16 %v264
  %v1324 = vunpack.c.l.b16 %v265
  %v1325 = vunpack.c.l.b16 %v266
  %v1326 = vunpack.c.l.b16 %v267
  %v1327 = vunpack.c.l.b16 %v268
  %v1328 = vunpack.c.l.b16 %v269
  %v1329 = vunpack.c.l.b16 %v270
  %v1330 = vunpack.c.l.b16 %v271
  %v1331 = vunpack.c.l.b16 %v272
  %v1332 = vunpack.c.l.b16 %v273
  %v1333 = vunpack.c.l.b16 %v274
  %v1334 = vunpack.c.l.b16 %v275
  %v1335 = vunpack.c.l.b16 %v276
  %v1336 = vunpack.c.l.b16 %v277
  %v1337 = vunpack.c.l.b16 %v278
  %v1338 = vunpack.c.l.b16 %v279
  %v1339 = vunpack.c.l.b16 %v280
  %v1340 = vunpack.c.l.b16 %v281
  %v1341 = vunpack.c.l.b16 %v282
  %v1342 = vunpack.c.l.b16 %v283
  %v1343 = vunpack.c.l.b16 %v284
  %v1344 = vunpack.c.l.b16 %v285
  %v1345 = vunpack.c.l.b16 %v286
  %v1346 = vunpack.c.l.b16 %v287
  %v1347 = vunpack.c.l.b16 %v288
  %v1348 = vunpack.c.l.b16 %v289
  %v1349 = vunpack.c.l.b16 %v290
  %v1350 = vunpack.c.l.b16 %v291
  %v1351 = vunpack.c.l.b16 %v292
  %v1352 = vunpack.c.l.b16 %v293
  %v1353 = vunpack.c.l.b16 %v294
  %v1354 = vunpack.c.l.b16 %v295
  %v1355 = vunpack.c.l.b16 %v296
  %v1356 = vunpack.c.l.b16 %v297
  %v1357 = vunpack.c.l.b16 %v298
  %v1358 = vunpack.c.l.b16 %v299
  %v1359 = vunpack.c.l.b16 %v300
  %v1360 = vunpack.c.l.b16 %v301
  %v1361 = vunpack.c.l.b16 %v302
  %v1362 = vunpack.c.l.b16 %v303
  %v1363 = vunpack.c.l.b16 %v304
  %v1364 = vunpack.c.l.b16 %v305
  %v1365 = vunpack.c.l.b16 %v306
  %v1366 = vunpack.c.l.b16 %v307
  %v1367 = vunpack.c.l.b16 %v308
  %v1368 = vunpack.c.l.b16 %v309
  %v1369 = vunpack.c.l.b16 %v310
  %v1370 = vunpack.c.l.b16 %v311
  %v1371 = vunpack.c.l.b16 %v312
  %v1372 = vunpack.c.l.b16 %v313
  %v1373 = vunpack.c.l.b16 %v314
  %v1374 = vunpack.c.l.b16 %v315
  %v1375 = vunpack.c.l.b16 %v316
  %v1376 = vunpack.c.l.b16 %v317
  %v1377 = vunpack.c.l.b16 %v318
  %v1378 = vunpack.c.l.b16 %v319
  %v1379 = vunpack.c.l.b16 %v320
  %v1380 = vunpack.c.l.b16 %v321
  %v1381 = vunpack.c.l.b16 %v322
  %v1382 = vunpack.c.l.b16 %v323
  %v1383 = vunpack.c.l.b16 %v324
  %v1384 = vunpack.c.l.b16 %v325
  %v1385 = vunpack.c.l.b16 %v326
  %v1386 = vunpack.c.l.b16 %v327
  %v1387 = vunpack.c.l.b16 %v328
  %v1388 = vunpack.c.l.b16 %v329
  %v1389 = vunpack.c.l.b16 %v330
  %v1390 = vunpack.c.l.b16 %v331
  %v1391 = vunpack.c.l.b16 %v332
  %v1392 = vunpack.c.l.b16 %v333
  %v1393 = vunpack.c.l.b16 %v334
  %v1394 = vunpack.c.l.b16 %v335
  %v1395 = vunpack.c.l.b16 %v336
  %v1396 = vunpack.c.l.b16 %v337
  %v1397 = vunpack.c.l.b16 %v338
  %v1398 = vunpack.c.l.b16 %v339
  %v1399 = vunpack.c.l.b16 %v340
  %v1400 = vunpack.c.l.b16 %v341
  %v1401 = vunpack.c.l.b16 %v342
  %v1402 = vunpack.c.l.b16 %v343
  %v1403 = vunpack.c.l.b16 %v344
  %v1404 = vunpack.c.l.b16 %v345
  %v1405 = vunpack.c.l.b16 %v346
  %v1406 = vunpack.c.l.b16 %v347
  %v1407 = vunpack.c.l.b16 %v348
  %v1408 = vunpack.c.l.b16 %v349
  %v1409 = vunpack.c.l.b16 %v350
  %v1410 = vunpack.c.l.b16 %v351
  %v1411 = vunpack.c.l.b16 %v352
  %v1412 = vunpack.c.l.b16 %v353
  %v1413 = vunpack.c.l.b16 %v354
  %v1414 = vunpack.c.l.b16 %v355
  %v1415 = vunpack.c.l.b16 %v356
  %v1416 = vunpack.c.l.b16 %v357
  %v1417 = vunpack.c.l.b16 %v358
  %v1418 = vunpack.c.l.b16 %v359
  %v1419 = vunpack.c.l.b16 %v360
  %v1420 = vunpack.c.l.b16 %v361
  %v1421 = vunpack.c.l.b16 %v362
  %v1422 = vunpack.c.l.b16 %v363
  %v1423 = vunpack.c.l.b16 %v364
  %v1424 = vunpack.c.l.b16 %v365
  %v1425 = vunpack.c.l.b16 %v366
  %v1426 = vunpack.c.l.b16 %v367
  %v1427 = vunpack.c.l.b16 %v368
  %v1428 = vunpack.c.l.b16 %v369
  %v1429 = vunpack.c.l.b16 %v370
  %v1430 = vunpack.c.l.b16 %v371
  %v1431 = vunpack.c.l.b16 %v372
  %v1432 = vunpack.c.l.b16 %v373
  %v1433 = vunpack.c.l.b16 %v374
  %v1434 = vunpack.c.l.b16 %v375
  %v1435 = vunpack.c.l.b16 %v376
  %v1436 = vunpack.c.l.b16 %v377
  %v1437 = vunpack.c.l.b16 %v378
  %v1438 = vunpack.c.l.b16 %v379
  %v1439 = vunpack.c.l.b16 %v380
  %v1440 = vunpack.c.l.b16 %v381
  %v1441 = vunpack.c.l.b16 %v382
  %v1442 = vunpack.c.l.b16 %v383
  %v1443 = vunpack.c.l.b16 %v384
  %v1444 = vunpack.c.l.b16 %v385
  %v1445 = vunpack.c.l.b16 %v386
  %v1446 = vunpack.c.l.b16 %v387
  %v1447 = vunpack.c.l.b16 %v388
  %v1448 = vunpack.c.l.b16 %v389
  %v1449 = vunpack.c.l.b16 %v390
  %v1450 = vunpack.c.l.b16 %v391
  %v1451 = vunpack.c.l.b16 %v392
  %v1452 = vunpack.c.l.b16 %v393
  %v1453 = vunpack.c.l.b16 %v394
  %v1454 = vunpack.c.l.b16 %v395
  %v1455 = vunpack.c.l.b16 %v396
  %v1456 = vunpack.c.l.b16 %v397
  %v1457 = vunpack.c.l.b16 %v398
  %v1458 = vunpack.c.l.b16 %v399
  %v1459 = vunpack.c.l.b16 %v400
  %v1460 = vunpack.c.l.b16 %v401
  %v1461 = vunpack.c.l.b16 %v402
  %v1462 = vunpack.c.l.b16 %v403
  %v1463 = vunpack.c.l.b16 %v404
  %v1464 = vunpack.c.l.b16 %v405
  %v1465 = vunpack.c.l.b16 %v406
  %v1466 = vunpack.c.l.b16 %v407
  %v1467 = vunpack.c.l.b16 %v408
  %v1468 = vunpack.c.l.b16 %v409
  %v1469 = vunpack.c.l.b16 %v410
  %v1470 = vunpack.c.l.b16 %v411
  %v1471 = vunpack.c.l.b16 %v412
  %v1472 = vunpack.c.l.b16 %v413
  %v1473 = vunpack.c.l.b16 %v414
  %v1474 = vunpack.c.l.b16 %v415
  %v1475 = vunpack.c.l.b16 %v416
  %v1476 = vunpack.c.l.b16 %v417
  %v1477 = vunpack.c.l.b16 %v418
  %v1478 = vunpack.c.l.b16 %v419
  %v1479 = vunpack.c.l.b16 %v420
  %v1480 = vunpack.c.l.b16 %v421
  %v1481 = vunpack.c.l.b16 %v422
  %v1482 = vunpack.c.l.b16 %v423
  %v1483 = vunpack.c.l.b16 %v424
  %v1484 = vunpack.c.l.b16 %v425
  %v1485 = vunpack.c.l.b16 %v426
  %v1486 = vunpack.c.l.b16 %v427
  %v1487 = vunpack.c.l.b16 %v428
  %v1488 = vunpack.c.l.b16 %v429
  %v1489 = vunpack.c.l.b16 %v430
  %v1490 = vunpack.c.l.b16 %v431
  %v1491 = vunpack.c.l.b16 %v432
  %v1492 = vunpack.c.l.b16 %v433
  %v1493 = vunpack.c.l.b16 %v434
  %v1494 = vunpack.c.l.b16 %v435
  %v1495 = vunpack.c.l.b16 %v436
  %v1496 = vunpack.c.l.b16 %v437
  %v1497 = vunpack.c.l.b16 %v438
  %v1498 = vunpack.c.l.b16 %v439
  %v1499 = vunpack.c.l.b16 %v440
  %v1500 = vunpack.c.l.b16 %v441
  %v1501 = vunpack.c.l.b16 %v442
  %v1502 = vunpack.c.l.b16 %v443
  %v1503 = vunpack.c.l.b16 %v444
  %v1504 = vunpack.c.l.b16 %v445
  %v1505 = vunpack.c.l.b16 %v446
  %v1506 = vunpack.c.l.b16 %v447
  %v1507 = vunpack.c.l.b16 %v448
  %v1508 = vunpack.c.l.b16 %v449
  %v1509 = vunpack.c.l.b16 %v450
  %v1510 = vunpack.c.l.b16 %v451
  %v1511 = vunpack.c.l.b16 %v452
  %v1512 = vunpack.c.l.b16 %v453
  %v1513 = vunpack.c.l.b16 %v454
  %v1514 = vunpack.c.l.b16 %v455
  %v1515 = vunpack.c.l.b16 %v456
  %v1516 = vunpack.c.l.b16 %v457
  %v1517 = vunpack.c.l.b16 %v458
  %v1518 = vunpack.c.l.b16 %v459
  %v1519 = vunpack.c.l.b16 %v460
  %v1520 = vunpack.c.l.b16 %v461
  %v1521 = vunpack.c.l.b16 %v462
  %v1522 = vunpack.c.l.b16 %v463
  %v1523 = vunpack.c.l.b16 %v464
  %v1524 = vunpack.c.l.b16 %v465
  %v1525 = vunpack.c.l.b16 %v466
  %v1526 = vpack.c.b16 %v1127, %v1126
  %v1527 = vpack.c.b16 %v1129, %v1128
  %v1528 = vpack.c.b16 %v1131, %v1130
  %v1529 = vpack.c.b16 %v1133, %v1132
  %v1530 = vpack.c.b16 %v1135, %v1134
  %v1531 = vpack.c.b16 %v1137, %v1136
  %v1532 = vpack.c.b16 %v1139, %v1138
  %v1533 = vpack.c.b16 %v1141, %v1140
  %v1534 = vpack.c.b16 %v1143, %v1142
  %v1535 = vpack.c.b16 %v1145, %v1144
  %v1536 = vpack.c.b16 %v1147, %v1146
  %v1537 = vpack.c.b16 %v1149, %v1148
  %v1538 = vpack.c.b16 %v1151, %v1150
  %v1539 = vpack.c.b16 %v1153, %v1152
  %v1540 = vpack.c.b16 %v1155, %v1154
  %v1541 = vpack.c.b16 %v1157, %v1156
  %v1542 = vpack.c.b16 %v1159, %v1158
  %v1543 = vpack.c.b16 %v1161, %v1160
  %v1544 = vpack.c.b16 %v1163, %v1162
  %v1545 = vpack.c.b16 %v1165, %v1164
  %v1546 = vpack.c.b16 %v1167, %v1166
  %v1547 = vpack.c.b16 %v1169, %v1168
  %v1548 = vpack.c.b16 %v1171, %v1170
  %v1549 = vpack.c.b16 %v1173, %v1172
  %v1550 = vpack.c.b16 %v1175, %v1174
  %v1551 = vpack.c.b16 %v1177, %v1176
  %v1552 = vpack.c.b16 %v1179, %v1178
  %v1553 = vpack.c.b16 %v1181, %v1180
  %v1554 = vpack.c.b16 %v1183, %v1182
  %v1555 = vpack.c.b16 %v1185, %v1184
  %v1556 = vpack.c.b16 %v1187, %v1186
  %v1557 = vpack.c.b16 %v1189, %v1188
  %v1558 = vpack.c.b16 %v1191, %v1190
  %v1559 = vpack.c.b16 %v1193, %v1192
  %v1560 = vpack.c.b16 %v1195, %v1194
  %v1561 = vpack.c.b16 %v1197, %v1196
  %v1562 = vpack.c.b16 %v1199, %v1198
  %v1563 = vpack.c.b16 %v1201, %v1200
  %v1564 = vpack.c.b16 %v1203, %v1202
  %v1565 = vpack.c.b16 %v1205, %v1204
  %v1566 = vpack.c.b16 %v1207, %v1206
  %v1567 = vpack.c.b16 %v1209, %v1208
  %v1568 = vpack.c.b16 %v1211, %v1210
  %v1569 = vpack.c.b16 %v1213, %v1212
  %v1570 = vpack.c.b16 %v1215, %v1214
  %v1571 = vpack.c.b16 %v1217, %v1216
  %v1572 = vpack.c.b16 %v1219, %v1218
  %v1573 = vpack.c.b16 %v1221, %v1220
  %v1574 = vpack.c.b16 %v1223, %v1222
  %v1575 = vpack.c.b16 %v1225, %v1224
  %v1576 = vpack.c.b16 %v1227, %v1226
  %v1577 = vpack.c.b16 %v1229, %v1228
  %v1578 = vpack.c.b16 %v1231, %v1230
  %v1579 = vpack.c.b16 %v1233, %v1232
  %v1580 = vpack.c.b16 %v1235, %v1234
  %v1581 = vpack.c.b16 %v1237, %v1236
  %v1582 = vpack.c.b16 %v1239, %v1238
  %v1583 = vpack.c.b16 %v1241, %v1240
  %v1584 = vpack.c.b16 %v1243, %v1242
  %v1585 = vpack.c.b16 %v1245, %v1244
  %v1586 = vpack.c.b16 %v1247, %v1246
  %v1587 = vpack.c.b16 %v1249, %v1248
  %v1588 = vpack.c.b16 %v1251, %v1250
  %v1589 = vpack.c.b16 %v1253, %v1252
  %v1590 = vpack.c.b16 %v1255, %v1254
  %v1591 = vpack.c.b16 %v1257, %v1256
  %v1592 = vpack.c.b16 %v1259, %v1258
  %v1593 = vpack.c.b16 %v1261, %v1260
  %v1594 = vpack.c.b16 %v1263, %v1262
  %v1595 = vpack.c.b16 %v1265, %v1264
  %v1596 = vpack.c.b16 %v1267, %v1266
  %v1597 = vpack.c.b16 %v1269, %v1268
  %v1598 = vpack.c.b16 %v1271, %v1270
  %v1599 = vpack.c.b16 %v1273, %v1272
  %v1600 = vpack.c.b16 %v1275, %v1274
  %v1601 = vpack.c.b16 %v1277, %v1276
  %v1602 = vpack.c.b16 %v1279, %v1278
  %v1603 = vpack.c.b16 %v1281, %v1280
  %v1604 = vpack.c.b16 %v1283, %v1282
  %v1605 = vpack.c.b16 %v1285, %v1284
  %v1606 = vpack.c.b16 %v1287, %v1286
  %v1607 = vpack.c.b16 %v1289, %v1288
  %v1608 = vpack.c.b16 %v1291, %v1290
  %v1609 = vpack.c.b16 %v1293, %v1292
  %v1610 = vpack.c.b16 %v1295, %v1294
  %v1611 = vpack.c.b16 %v1297, %v1296
  %v1612 = vpack.c.b16 %v1299, %v1298
  %v1613 = vpack.c.b16 %v1301, %v1300
  %v1614 = vpack.c.b16 %v1303, %v1302
  %v1615 = vpack.c.b16 %v1305, %v1304
  %v1616 = vpack.c.b16 %v1307, %v1306
  %v1617 = vpack.c.b16 %v1309, %v1308
  %v1618 = vpack.c.b16 %v1311, %v1310
  %v1619 = vpack.c.b16 %v1313, %v1312
  %v1620 = vpack.c.b16 %v1315, %v1314
  %v1621 = vpack.c.b16 %v1317, %v1316
  %v1622 = vpack.c.b16 %v1319, %v1318
  %v1623 = vpack.c.b16 %v1321, %v1320
  %v1624 = vpack.c.b16 %v1323, %v1322
  %v1625 = vpack.c.b16 %v1325, %v1324
  %v1626 = vpack.c.b16 %v1327, %v1326
  %v1627 = vpack.c.b16 %v1329, %v1328
  %v1628 = vpack.c.b16 %v1331, %v1330
  %v1629 = vpack.c.b16 %v1333, %v1332
  %v1630 = vpack.c.b16 %v1335, %v1334
  %v1631 = vpack.c.b16 %v1337, %v1336
  %v1632 = vpack.c.b16 %v1339, %v1338
  %v1633 = vpack.c.b16 %v1341, %v1340
  %v1634 = vpack.c.b16 %v1343, %v1342
  %v1635 = vpack.c.b16 %v1345, %v1344
  %v1636 = vpack.c.b16 %v1347, %v1346
  %v1637 = vpack.c.b16 %v1349, %v1348
  %v1638 = vpack.c.b16 %v1351, %v1350
  %v1639 = vpack.c.b16 %v1353, %v1352
  %v1640 = vpack.c.b16 %v1355, %v1354
  %v1641 = vpack.c.b16 %v1357, %v1356
  %v1642 = vpack.c.b16 %v1359, %v1358
  %v1643 = vpack.c.b16 %v1361, %v1360
  %v1644 = vpack.c.b16 %v1363, %v1362
  %v1645 = vpack.c.b16 %v1365, %v1364
  %v1646 = vpack.c.b16 %v1367, %v1366
  %v1647 = vpack.c.b16 %v1369, %v1368
  %v1648 = vpack.c.b16 %v1371, %v1370
  %v1649 = vpack.c.b16 %v1373, %v1372
  %v1650 = vpack.c.b16 %v1375, %v1374
  %v1651 = vpack.c.b16 %v1377, %v1376
  %v1652 = vpack.c.b16 %v1379, %v1378
  %v1653 = vpack.c.b16 %v1381, %v1380
  %v1654 = vpack.c.b16 %v1383, %v1382
  %v1655 = vpack.c.b16 %v1385, %v1384
  %v1656 = vpack.c.b16 %v1387, %v1386
  %v1657 = vpack.c.b16 %v1389, %v1388
  %v1658 = vpack.c.b16 %v1391, %v1390
  %v1659 = vpack.c.b16 %v1393, %v1392
  %v1660 = vpack.c.b16 %v1395, %v1394
  %v1661 = vpack.c.b16 %v1397, %v1396
  %v1662 = vpack.c.b16 %v1399, %v1398
  %v1663 = vpack.c.b16 %v1401, %v1400
  %v1664 = vpack.c.b16 %v1403, %v1402
  %v1665 = vpack.c.b16 %v1405, %v1404
  %v1666 = vpack.c.b16 %v1407, %v1406
  %v1667 = vpack.c.b16 %v1409, %v1408
  %v1668 = vpack.c.b16 %v1411, %v1410
  %v1669 = vpack.c.b16 %v1413, %v1412
  %v1670 = vpack.c.b16 %v1415, %v1414
  %v1671 = vpack.c.b16 %v1417, %v1416
  %v1672 = vpack.c.b16 %v1419, %v1418
  %v1673 = vpack.c.b16 %v1421, %v1420
  %v1674 = vpack.c.b16 %v1423, %v1422
  %v1675 = vpack.c.b16 %v1425, %v1424
  %v1676 = vpack.c.b16 %v1427, %v1426
  %v1677 = vpack.c.b16 %v1429, %v1428
  %v1678 = vpack.c.b16 %v1431, %v1430
  %v1679 = vpack.c.b16 %v1433, %v1432
  %v1680 = vpack.c.b16 %v1435, %v1434
  %v1681 = vpack.c.b16 %v1437, %v1436
  %v1682 = vpack.c.b16 %v1439, %v1438
  %v1683 = vpack.c.b16 %v1441, %v1440
  %v1684 = vpack.c.b16 %v1443, %v1442
  %v1685 = vpack.c.b16 %v1445, %v1444
  %v1686 = vpack.c.b16 %v1447, %v1446
  %v1687 = vpack.c.b16 %v1449, %v1448
  %v1688 = vpack.c.b16 %v1451, %v1450
  %v1689 = vpack.c.b16 %v1453, %v1452
  %v1690 = vpack.c.b16 %v1455, %v1454
  %v1691 = vpack.c.b16 %v1457, %v1456
  %v1692 = vpack.c.b16 %v1459, %v1458
  %v1693 = vpack.c.b16 %v1461, %v1460
  %v1694 = vpack.c.b16 %v1463, %v1462
  %v1695 = vpack.c.b16 %v1465, %v1464
  %v1696 = vpack.c.b16 %v1467, %v1466
  %v1697 = vpack.c.b16 %v1469, %v1468
  %v1698 = vpack.c.b16 %v1471, %v1470
  %v1699 = vpack.c.b16 %v1473, %v1472
  %v1700 = vpack.c.b16 %v1475, %v1474
  %v1701 = vpack.c.b16 %v1477, %v1476
  %v1702 = vpack.c.b16 %v1479, %v1478
  %v1703 = vpack.c.b16 %v1481, %v1480
  %v1704 = vpack.c.b16 %v1483, %v1482
  %v1705 = vpack.c.b16 %v1485, %v1484
  %v1706 = vpack.c.b16 %v1487, %v1486
  %v1707 = vpack.c.b16 %v1489, %v1488
  %v1708 = vpack.c.b16 %v1491, %v1490
  %v1709 = vpack.c.b16 %v1493, %v1492
  %v1710 = vpack.c.b16 %v1495, %v1494
  %v1711 = vpack.c.b16 %v1497, %v1496
  %v1712 = vpack.c.b16 %v1499, %v1498
  %v1713 = vpack.c.b16 %v1501, %v1500
  %v1714 = vpack.c.b16 %v1503, %v1502
  %v1715 = vpack.c.b16 %v1505, %v1504
  %v1716 = vpack.c.b16 %v1507, %v1506
  %v1717 = vpack.c.b16 %v1509, %v1508
  %v1718 = vpack.c.b16 %v1511, %v1510
  %v1719 = vpack.c.b16 %v1513, %v1512
  %v1720 = vpack.c.b16 %v1515, %v1514
  %v1721 = vpack.c.b16 %v1517, %v1516
  %v1722 = vpack.c.b16 %v1519, %v1518
  %v1723 = vpack.c.b16 %v1521, %v1520
  %v1724 = vpack.c.b16 %v1523, %v1522
  %v1725 = vpack.c.b16 %v1525, %v1524
  %1926 = vmatprep.subr.bf16.mxu0 0
  %1927 = vmatpush1.bf16.msra.mxu0 %v1533
  %1928 = vmatprep.subr.bf16.mxu0 0
  %1929 = vmatpush1.bf16.msra.mxu0 %v1532
  %1930 = vmatprep.subr.bf16.mxu0 0
  %1931 = vmatpush1.bf16.msra.mxu0 %v1531
  %1932 = vmatprep.subr.bf16.mxu0 0
  %1933 = vmatpush1.bf16.msra.mxu0 %v1530
  %1934 = vmatprep.subr.bf16.mxu0 0
  %1935 = vmatpush1.bf16.msra.mxu0 %v1529
  %1936 = vmatprep.subr.bf16.mxu0 0
  %1937 = vmatpush1.bf16.msra.mxu0 %v1528
  %1938 = vmatprep.subr.bf16.mxu0 0
  %1939 = vmatpush1.bf16.msra.mxu0 %v1527
  %1940 = vmatprep.subr.bf16.mxu0 0
  %1941 = vmatpush1.bf16.msra.mxu0 %v1526
  %1942 = vmatprep.subr.bf16.mxu0 0
  %1943 = vmatpush2.bf16.msra.mxu0 %v1541
  %1944 = vmatprep.subr.bf16.mxu0 0
  %1945 = vmatpush2.bf16.msra.mxu0 %v1540
  %1946 = vmatprep.subr.bf16.mxu0 0
  %1947 = vmatpush2.bf16.msra.mxu0 %v1539
  %1948 = vmatprep.subr.bf16.mxu0 0
  %1949 = vmatpush2.bf16.msra.mxu0 %v1538
  %1950 = vmatprep.subr.bf16.mxu0 0
  %1951 = vmatpush2.bf16.msra.mxu0 %v1537
  %1952 = vmatprep.subr.bf16.mxu0 0
  %1953 = vmatpush2.bf16.msra.mxu0 %v1536
  %1954 = vmatprep.subr.bf16.mxu0 0
  %1955 = vmatpush2.bf16.msra.mxu0 %v1535
  %1956 = vmatprep.subr.bf16.mxu0 0
  %1957 = vmatpush2.bf16.msra.mxu0 %v1534
  %1958 = vmatprep.mubr.bf16.mxu0 %v627
  %1959 = vmatmul.mubr.bf16.gmra.mxu0 %v626
  %v1960 = vpop.f32.mrf.mxu0
  %v1961 = vadd.f32 %v472, %v1960
  %v1962 = vpop.f32.mrf.mxu0
  %v1963 = vpop.f32.mrf.mxu0
  %v1964 = vadd.f32 %v472, %v1963
  %v1965 = vpop.f32.mrf.mxu0
  %1966 = vmatprep.mubr.bf16.mxu0 %v652
  %1967 = vmatmul.mubr.bf16.gmra.mxu0 %v651
  %v1968 = vpop.f32.mrf.mxu0
  %v1969 = vadd.f32 %v472, %v1968
  %v1970 = vpop.f32.mrf.mxu0
  %v1971 = vpop.f32.mrf.mxu0
  %v1972 = vadd.f32 %v472, %v1971
  %v1973 = vpop.f32.mrf.mxu0
  %1974 = vdwg.mxu0
  %1975 = vmatprep.subr.bf16.mxu0 0
  %1976 = vmatpush1.bf16.msra.mxu0 %v1549
  %1977 = vmatprep.subr.bf16.mxu0 0
  %1978 = vmatpush1.bf16.msra.mxu0 %v1548
  %1979 = vmatprep.subr.bf16.mxu0 0
  %1980 = vmatpush1.bf16.msra.mxu0 %v1547
  %1981 = vmatprep.subr.bf16.mxu0 0
  %1982 = vmatpush1.bf16.msra.mxu0 %v1546
  %1983 = vmatprep.subr.bf16.mxu0 0
  %1984 = vmatpush1.bf16.msra.mxu0 %v1545
  %1985 = vmatprep.subr.bf16.mxu0 0
  %1986 = vmatpush1.bf16.msra.mxu0 %v1544
  %1987 = vmatprep.subr.bf16.mxu0 0
  %1988 = vmatpush1.bf16.msra.mxu0 %v1543
  %1989 = vmatprep.subr.bf16.mxu0 0
  %1990 = vmatpush1.bf16.msra.mxu0 %v1542
  %1991 = vmatprep.subr.bf16.mxu0 0
  %1992 = vmatpush2.bf16.msra.mxu0 %v1557
  %1993 = vmatprep.subr.bf16.mxu0 0
  %1994 = vmatpush2.bf16.msra.mxu0 %v1556
  %1995 = vmatprep.subr.bf16.mxu0 0
  %1996 = vmatpush2.bf16.msra.mxu0 %v1555
  %1997 = vmatprep.subr.bf16.mxu0 0
  %1998 = vmatpush2.bf16.msra.mxu0 %v1554
  %1999 = vmatprep.subr.bf16.mxu0 0
  %2000 = vmatpush2.bf16.msra.mxu0 %v1553
  %2001 = vmatprep.subr.bf16.mxu0 0
  %2002 = vmatpush2.bf16.msra.mxu0 %v1552
  %2003 = vmatprep.subr.bf16.mxu0 0
  %2004 = vmatpush2.bf16.msra.mxu0 %v1551
  %2005 = vmatprep.subr.bf16.mxu0 0
  %2006 = vmatpush2.bf16.msra.mxu0 %v1550
  %2007 = vmatprep.mubr.bf16.mxu0 %v629
  %2008 = vmatmul.mubr.bf16.gmra.mxu0 %v628
  %v2009 = vpop.f32.mrf.mxu0
  %v2010 = vadd.f32 %v1961, %v2009
  %v2011 = vpop.f32.mrf.mxu0
  %v2012 = vpop.f32.mrf.mxu0
  %v2013 = vadd.f32 %v1964, %v2012
  %v2014 = vpop.f32.mrf.mxu0
  %2015 = vmatprep.mubr.bf16.mxu0 %v654
  %2016 = vmatmul.mubr.bf16.gmra.mxu0 %v653
  %v2017 = vpop.f32.mrf.mxu0
  %v2018 = vadd.f32 %v1969, %v2017
  %v2019 = vpop.f32.mrf.mxu0
  %v2020 = vpop.f32.mrf.mxu0
  %v2021 = vadd.f32 %v1972, %v2020
  %v2022 = vpop.f32.mrf.mxu0
  %2023 = vdwg.mxu0
  %2024 = vmatprep.subr.bf16.mxu0 0
  %2025 = vmatpush1.bf16.msra.mxu0 %v1565
  %2026 = vmatprep.subr.bf16.mxu0 0
  %2027 = vmatpush1.bf16.msra.mxu0 %v1564
  %2028 = vmatprep.subr.bf16.mxu0 0
  %2029 = vmatpush1.bf16.msra.mxu0 %v1563
  %2030 = vmatprep.subr.bf16.mxu0 0
  %2031 = vmatpush1.bf16.msra.mxu0 %v1562
  %2032 = vmatprep.subr.bf16.mxu0 0
  %2033 = vmatpush1.bf16.msra.mxu0 %v1561
  %2034 = vmatprep.subr.bf16.mxu0 0
  %2035 = vmatpush1.bf16.msra.mxu0 %v1560
  %2036 = vmatprep.subr.bf16.mxu0 0
  %2037 = vmatpush1.bf16.msra.mxu0 %v1559
  %2038 = vmatprep.subr.bf16.mxu0 0
  %2039 = vmatpush1.bf16.msra.mxu0 %v1558
  %2040 = vmatprep.subr.bf16.mxu0 0
  %2041 = vmatpush2.bf16.msra.mxu0 %v1573
  %2042 = vmatprep.subr.bf16.mxu0 0
  %2043 = vmatpush2.bf16.msra.mxu0 %v1572
  %2044 = vmatprep.subr.bf16.mxu0 0
  %2045 = vmatpush2.bf16.msra.mxu0 %v1571
  %2046 = vmatprep.subr.bf16.mxu0 0
  %2047 = vmatpush2.bf16.msra.mxu0 %v1570
  %2048 = vmatprep.subr.bf16.mxu0 0
  %2049 = vmatpush2.bf16.msra.mxu0 %v1569
  %2050 = vmatprep.subr.bf16.mxu0 0
  %2051 = vmatpush2.bf16.msra.mxu0 %v1568
  %2052 = vmatprep.subr.bf16.mxu0 0
  %2053 = vmatpush2.bf16.msra.mxu0 %v1567
  %2054 = vmatprep.subr.bf16.mxu0 0
  %2055 = vmatpush2.bf16.msra.mxu0 %v1566
  %2056 = vmatprep.mubr.bf16.mxu0 %v631
  %2057 = vmatmul.mubr.bf16.gmra.mxu0 %v630
  %v2058 = vpop.f32.mrf.mxu0
  %v2059 = vadd.f32 %v2010, %v2058
  %v2060 = vpop.f32.mrf.mxu0
  %v2061 = vpop.f32.mrf.mxu0
  %v2062 = vadd.f32 %v2013, %v2061
  %v2063 = vpop.f32.mrf.mxu0
  %2064 = vmatprep.mubr.bf16.mxu0 %v656
  %2065 = vmatmul.mubr.bf16.gmra.mxu0 %v655
  %v2066 = vpop.f32.mrf.mxu0
  %v2067 = vadd.f32 %v2018, %v2066
  %v2068 = vpop.f32.mrf.mxu0
  %v2069 = vpop.f32.mrf.mxu0
  %v2070 = vadd.f32 %v2021, %v2069
  %v2071 = vpop.f32.mrf.mxu0
  %2072 = vdwg.mxu0
  %2073 = vmatprep.subr.bf16.mxu0 0
  %2074 = vmatpush1.bf16.msra.mxu0 %v1581
  %2075 = vmatprep.subr.bf16.mxu0 0
  %2076 = vmatpush1.bf16.msra.mxu0 %v1580
  %2077 = vmatprep.subr.bf16.mxu0 0
  %2078 = vmatpush1.bf16.msra.mxu0 %v1579
  %2079 = vmatprep.subr.bf16.mxu0 0
  %2080 = vmatpush1.bf16.msra.mxu0 %v1578
  %2081 = vmatprep.subr.bf16.mxu0 0
  %2082 = vmatpush1.bf16.msra.mxu0 %v1577
  %2083 = vmatprep.subr.bf16.mxu0 0
  %2084 = vmatpush1.bf16.msra.mxu0 %v1576
  %2085 = vmatprep.subr.bf16.mxu0 0
  %2086 = vmatpush1.bf16.msra.mxu0 %v1575
  %2087 = vmatprep.subr.bf16.mxu0 0
  %2088 = vmatpush1.bf16.msra.mxu0 %v1574
  %2089 = vmatprep.subr.bf16.mxu0 0
  %2090 = vmatpush2.bf16.msra.mxu0 %v1589
  %2091 = vmatprep.subr.bf16.mxu0 0
  %2092 = vmatpush2.bf16.msra.mxu0 %v1588
  %2093 = vmatprep.subr.bf16.mxu0 0
  %2094 = vmatpush2.bf16.msra.mxu0 %v1587
  %2095 = vmatprep.subr.bf16.mxu0 0
  %2096 = vmatpush2.bf16.msra.mxu0 %v1586
  %2097 = vmatprep.subr.bf16.mxu0 0
  %2098 = vmatpush2.bf16.msra.mxu0 %v1585
  %2099 = vmatprep.subr.bf16.mxu0 0
  %2100 = vmatpush2.bf16.msra.mxu0 %v1584
  %2101 = vmatprep.subr.bf16.mxu0 0
  %2102 = vmatpush2.bf16.msra.mxu0 %v1583
  %2103 = vmatprep.subr.bf16.mxu0 0
  %2104 = vmatpush2.bf16.msra.mxu0 %v1582
  %2105 = vmatprep.mubr.bf16.mxu0 %v633
  %2106 = vmatmul.mubr.bf16.gmra.mxu0 %v632
  %v2107 = vpop.f32.mrf.mxu0
  %v2108 = vadd.f32 %v2059, %v2107
  %v2109 = vpop.f32.mrf.mxu0
  %v2110 = vpop.f32.mrf.mxu0
  %v2111 = vadd.f32 %v2062, %v2110
  %v2112 = vpop.f32.mrf.mxu0
  %2113 = vmatprep.mubr.bf16.mxu0 %v658
  %2114 = vmatmul.mubr.bf16.gmra.mxu0 %v657
  %v2115 = vpop.f32.mrf.mxu0
  %v2116 = vadd.f32 %v2067, %v2115
  %v2117 = vpop.f32.mrf.mxu0
  %v2118 = vpop.f32.mrf.mxu0
  %v2119 = vadd.f32 %v2070, %v2118
  %v2120 = vpop.f32.mrf.mxu0
  %2121 = vdwg.mxu0
  %2122 = vmatprep.subr.bf16.mxu0 0
  %2123 = vmatpush1.bf16.msra.mxu0 %v1597
  %2124 = vmatprep.subr.bf16.mxu0 0
  %2125 = vmatpush1.bf16.msra.mxu0 %v1596
  %2126 = vmatprep.subr.bf16.mxu0 0
  %2127 = vmatpush1.bf16.msra.mxu0 %v1595
  %2128 = vmatprep.subr.bf16.mxu0 0
  %2129 = vmatpush1.bf16.msra.mxu0 %v1594
  %2130 = vmatprep.subr.bf16.mxu0 0
  %2131 = vmatpush1.bf16.msra.mxu0 %v1593
  %2132 = vmatprep.subr.bf16.mxu0 0
  %2133 = vmatpush1.bf16.msra.mxu0 %v1592
  %2134 = vmatprep.subr.bf16.mxu0 0
  %2135 = vmatpush1.bf16.msra.mxu0 %v1591
  %2136 = vmatprep.subr.bf16.mxu0 0
  %2137 = vmatpush1.bf16.msra.mxu0 %v1590
  %2138 = vmatprep.subr.bf16.mxu0 0
  %2139 = vmatpush2.bf16.msra.mxu0 %v1605
  %2140 = vmatprep.subr.bf16.mxu0 0
  %2141 = vmatpush2.bf16.msra.mxu0 %v1604
  %2142 = vmatprep.subr.bf16.mxu0 0
  %2143 = vmatpush2.bf16.msra.mxu0 %v1603
  %2144 = vmatprep.subr.bf16.mxu0 0
  %2145 = vmatpush2.bf16.msra.mxu0 %v1602
  %2146 = vmatprep.subr.bf16.mxu0 0
  %2147 = vmatpush2.bf16.msra.mxu0 %v1601
  %2148 = vmatprep.subr.bf16.mxu0 0
  %2149 = vmatpush2.bf16.msra.mxu0 %v1600
  %2150 = vmatprep.subr.bf16.mxu0 0
  %2151 = vmatpush2.bf16.msra.mxu0 %v1599
  %2152 = vmatprep.subr.bf16.mxu0 0
  %2153 = vmatpush2.bf16.msra.mxu0 %v1598
  %2154 = vmatprep.mubr.bf16.mxu0 %v635
  %2155 = vmatmul.mubr.bf16.gmra.mxu0 %v634
  %v2156 = vpop.f32.mrf.mxu0
  %v2157 = vadd.f32 %v2108, %v2156
  %v2158 = vpop.f32.mrf.mxu0
  %v2159 = vpop.f32.mrf.mxu0
  %v2160 = vadd.f32 %v2111, %v2159
  %v2161 = vpop.f32.mrf.mxu0
  %2162 = vmatprep.mubr.bf16.mxu0 %v660
  %2163 = vmatmul.mubr.bf16.gmra.mxu0 %v659
  %v2164 = vpop.f32.mrf.mxu0
  %v2165 = vadd.f32 %v2116, %v2164
  %v2166 = vpop.f32.mrf.mxu0
  %v2167 = vpop.f32.mrf.mxu0
  %v2168 = vadd.f32 %v2119, %v2167
  %v2169 = vpop.f32.mrf.mxu0
  %2170 = vdwg.mxu0
  %2171 = vmatprep.subr.bf16.mxu0 0
  %2172 = vmatpush1.bf16.msra.mxu0 %v1613
  %2173 = vmatprep.subr.bf16.mxu0 0
  %2174 = vmatpush1.bf16.msra.mxu0 %v1612
  %2175 = vmatprep.subr.bf16.mxu0 0
  %2176 = vmatpush1.bf16.msra.mxu0 %v1611
  %2177 = vmatprep.subr.bf16.mxu0 0
  %2178 = vmatpush1.bf16.msra.mxu0 %v1610
  %2179 = vmatprep.subr.bf16.mxu0 0
  %2180 = vmatpush1.bf16.msra.mxu0 %v1609
  %2181 = vmatprep.subr.bf16.mxu0 0
  %2182 = vmatpush1.bf16.msra.mxu0 %v1608
  %2183 = vmatprep.subr.bf16.mxu0 0
  %2184 = vmatpush1.bf16.msra.mxu0 %v1607
  %2185 = vmatprep.subr.bf16.mxu0 0
  %2186 = vmatpush1.bf16.msra.mxu0 %v1606
  %2187 = vmatprep.subr.bf16.mxu0 0
  %2188 = vmatpush2.bf16.msra.mxu0 %v1621
  %2189 = vmatprep.subr.bf16.mxu0 0
  %2190 = vmatpush2.bf16.msra.mxu0 %v1620
  %2191 = vmatprep.subr.bf16.mxu0 0
  %2192 = vmatpush2.bf16.msra.mxu0 %v1619
  %2193 = vmatprep.subr.bf16.mxu0 0
  %2194 = vmatpush2.bf16.msra.mxu0 %v1618
  %2195 = vmatprep.subr.bf16.mxu0 0
  %2196 = vmatpush2.bf16.msra.mxu0 %v1617
  %2197 = vmatprep.subr.bf16.mxu0 0
  %2198 = vmatpush2.bf16.msra.mxu0 %v1616
  %2199 = vmatprep.subr.bf16.mxu0 0
  %2200 = vmatpush2.bf16.msra.mxu0 %v1615
  %2201 = vmatprep.subr.bf16.mxu0 0
  %2202 = vmatpush2.bf16.msra.mxu0 %v1614
  %2203 = vmatprep.mubr.bf16.mxu0 %v637
  %2204 = vmatmul.mubr.bf16.gmra.mxu0 %v636
  %v2205 = vpop.f32.mrf.mxu0
  %v2206 = vadd.f32 %v2157, %v2205
  %v2207 = vpop.f32.mrf.mxu0
  %v2208 = vpop.f32.mrf.mxu0
  %v2209 = vadd.f32 %v2160, %v2208
  %v2210 = vpop.f32.mrf.mxu0
  %2211 = vmatprep.mubr.bf16.mxu0 %v662
  %2212 = vmatmul.mubr.bf16.gmra.mxu0 %v661
  %v2213 = vpop.f32.mrf.mxu0
  %v2214 = vadd.f32 %v2165, %v2213
  %v2215 = vpop.f32.mrf.mxu0
  %v2216 = vpop.f32.mrf.mxu0
  %v2217 = vadd.f32 %v2168, %v2216
  %v2218 = vpop.f32.mrf.mxu0
  %2219 = vdwg.mxu0
  %2220 = vmatprep.subr.bf16.mxu0 0
  %2221 = vmatpush1.bf16.msra.mxu0 %v1629
  %2222 = vmatprep.subr.bf16.mxu0 0
  %2223 = vmatpush1.bf16.msra.mxu0 %v1628
  %2224 = vmatprep.subr.bf16.mxu0 0
  %2225 = vmatpush1.bf16.msra.mxu0 %v1627
  %2226 = vmatprep.subr.bf16.mxu0 0
  %2227 = vmatpush1.bf16.msra.mxu0 %v1626
  %2228 = vmatprep.subr.bf16.mxu0 0
  %2229 = vmatpush1.bf16.msra.mxu0 %v1625
  %2230 = vmatprep.subr.bf16.mxu0 0
  %2231 = vmatpush1.bf16.msra.mxu0 %v1624
  %2232 = vmatprep.subr.bf16.mxu0 0
  %2233 = vmatpush1.bf16.msra.mxu0 %v1623
  %2234 = vmatprep.subr.bf16.mxu0 0
  %2235 = vmatpush1.bf16.msra.mxu0 %v1622
  %2236 = vmatprep.subr.bf16.mxu0 0
  %2237 = vmatpush2.bf16.msra.mxu0 %v1637
  %2238 = vmatprep.subr.bf16.mxu0 0
  %2239 = vmatpush2.bf16.msra.mxu0 %v1636
  %2240 = vmatprep.subr.bf16.mxu0 0
  %2241 = vmatpush2.bf16.msra.mxu0 %v1635
  %2242 = vmatprep.subr.bf16.mxu0 0
  %2243 = vmatpush2.bf16.msra.mxu0 %v1634
  %2244 = vmatprep.subr.bf16.mxu0 0
  %2245 = vmatpush2.bf16.msra.mxu0 %v1633
  %2246 = vmatprep.subr.bf16.mxu0 0
  %2247 = vmatpush2.bf16.msra.mxu0 %v1632
  %2248 = vmatprep.subr.bf16.mxu0 0
  %2249 = vmatpush2.bf16.msra.mxu0 %v1631
  %2250 = vmatprep.subr.bf16.mxu0 0
  %2251 = vmatpush2.bf16.msra.mxu0 %v1630
  %2252 = vmatprep.mubr.bf16.mxu0 %v639
  %2253 = vmatmul.mubr.bf16.gmra.mxu0 %v638
  %v2254 = vpop.f32.mrf.mxu0
  %v2255 = vadd.f32 %v2206, %v2254
  %v2256 = vpop.f32.mrf.mxu0
  %v2257 = vpop.f32.mrf.mxu0
  %v2258 = vadd.f32 %v2209, %v2257
  %v2259 = vpop.f32.mrf.mxu0
  %2260 = vmatprep.mubr.bf16.mxu0 %v664
  %2261 = vmatmul.mubr.bf16.gmra.mxu0 %v663
  %v2262 = vpop.f32.mrf.mxu0
  %v2263 = vadd.f32 %v2214, %v2262
  %v2264 = vpop.f32.mrf.mxu0
  %v2265 = vpop.f32.mrf.mxu0
  %v2266 = vadd.f32 %v2217, %v2265
  %v2267 = vpop.f32.mrf.mxu0
  %2268 = vdwg.mxu0
  %2269 = vmatprep.subr.bf16.mxu0 0
  %2270 = vmatpush1.bf16.msra.mxu0 %v1645
  %2271 = vmatprep.subr.bf16.mxu0 0
  %2272 = vmatpush1.bf16.msra.mxu0 %v1644
  %2273 = vmatprep.subr.bf16.mxu0 0
  %2274 = vmatpush1.bf16.msra.mxu0 %v1643
  %2275 = vmatprep.subr.bf16.mxu0 0
  %2276 = vmatpush1.bf16.msra.mxu0 %v1642
  %2277 = vmatprep.subr.bf16.mxu0 0
  %2278 = vmatpush1.bf16.msra.mxu0 %v1641
  %2279 = vmatprep.subr.bf16.mxu0 0
  %2280 = vmatpush1.bf16.msra.mxu0 %v1640
  %2281 = vmatprep.subr.bf16.mxu0 0
  %2282 = vmatpush1.bf16.msra.mxu0 %v1639
  %2283 = vmatprep.subr.bf16.mxu0 0
  %2284 = vmatpush1.bf16.msra.mxu0 %v1638
  %2285 = vmatprep.subr.bf16.mxu0 0
  %2286 = vmatpush2.bf16.msra.mxu0 %v1653
  %2287 = vmatprep.subr.bf16.mxu0 0
  %2288 = vmatpush2.bf16.msra.mxu0 %v1652
  %2289 = vmatprep.subr.bf16.mxu0 0
  %2290 = vmatpush2.bf16.msra.mxu0 %v1651
  %2291 = vmatprep.subr.bf16.mxu0 0
  %2292 = vmatpush2.bf16.msra.mxu0 %v1650
  %2293 = vmatprep.subr.bf16.mxu0 0
  %2294 = vmatpush2.bf16.msra.mxu0 %v1649
  %2295 = vmatprep.subr.bf16.mxu0 0
  %2296 = vmatpush2.bf16.msra.mxu0 %v1648
  %2297 = vmatprep.subr.bf16.mxu0 0
  %2298 = vmatpush2.bf16.msra.mxu0 %v1647
  %2299 = vmatprep.subr.bf16.mxu0 0
  %2300 = vmatpush2.bf16.msra.mxu0 %v1646
  %2301 = vmatprep.mubr.bf16.mxu0 %v641
  %2302 = vmatmul.mubr.bf16.gmra.mxu0 %v640
  %v2303 = vpop.f32.mrf.mxu0
  %v2304 = vadd.f32 %v2255, %v2303
  %v2305 = vpop.f32.mrf.mxu0
  %v2306 = vpop.f32.mrf.mxu0
  %v2307 = vadd.f32 %v2258, %v2306
  %v2308 = vpop.f32.mrf.mxu0
  %2309 = vmatprep.mubr.bf16.mxu0 %v666
  %2310 = vmatmul.mubr.bf16.gmra.mxu0 %v665
  %v2311 = vpop.f32.mrf.mxu0
  %v2312 = vadd.f32 %v2263, %v2311
  %v2313 = vpop.f32.mrf.mxu0
  %v2314 = vpop.f32.mrf.mxu0
  %v2315 = vadd.f32 %v2266, %v2314
  %v2316 = vpop.f32.mrf.mxu0
  %2317 = vdwg.mxu0
  %2318 = vmatprep.subr.bf16.mxu0 0
  %2319 = vmatpush1.bf16.msra.mxu0 %v1661
  %2320 = vmatprep.subr.bf16.mxu0 0
  %2321 = vmatpush1.bf16.msra.mxu0 %v1660
  %2322 = vmatprep.subr.bf16.mxu0 0
  %2323 = vmatpush1.bf16.msra.mxu0 %v1659
  %2324 = vmatprep.subr.bf16.mxu0 0
  %2325 = vmatpush1.bf16.msra.mxu0 %v1658
  %2326 = vmatprep.subr.bf16.mxu0 0
  %2327 = vmatpush1.bf16.msra.mxu0 %v1657
  %2328 = vmatprep.subr.bf16.mxu0 0
  %2329 = vmatpush1.bf16.msra.mxu0 %v1656
  %2330 = vmatprep.subr.bf16.mxu0 0
  %2331 = vmatpush1.bf16.msra.mxu0 %v1655
  %2332 = vmatprep.subr.bf16.mxu0 0
  %2333 = vmatpush1.bf16.msra.mxu0 %v1654
  %2334 = vmatprep.subr.bf16.mxu0 0
  %2335 = vmatpush2.bf16.msra.mxu0 %v1669
  %2336 = vmatprep.subr.bf16.mxu0 0
  %2337 = vmatpush2.bf16.msra.mxu0 %v1668
  %2338 = vmatprep.subr.bf16.mxu0 0
  %2339 = vmatpush2.bf16.msra.mxu0 %v1667
  %2340 = vmatprep.subr.bf16.mxu0 0
  %2341 = vmatpush2.bf16.msra.mxu0 %v1666
  %2342 = vmatprep.subr.bf16.mxu0 0
  %2343 = vmatpush2.bf16.msra.mxu0 %v1665
  %2344 = vmatprep.subr.bf16.mxu0 0
  %2345 = vmatpush2.bf16.msra.mxu0 %v1664
  %2346 = vmatprep.subr.bf16.mxu0 0
  %2347 = vmatpush2.bf16.msra.mxu0 %v1663
  %2348 = vmatprep.subr.bf16.mxu0 0
  %2349 = vmatpush2.bf16.msra.mxu0 %v1662
  %2350 = vmatprep.mubr.bf16.mxu0 %v643
  %2351 = vmatmul.mubr.bf16.gmra.mxu0 %v642
  %v2352 = vpop.f32.mrf.mxu0
  %v2353 = vadd.f32 %v2304, %v2352
  %v2354 = vpop.f32.mrf.mxu0
  %v2355 = vpop.f32.mrf.mxu0
  %v2356 = vadd.f32 %v2307, %v2355
  %v2357 = vpop.f32.mrf.mxu0
  %2358 = vmatprep.mubr.bf16.mxu0 %v668
  %2359 = vmatmul.mubr.bf16.gmra.mxu0 %v667
  %v2360 = vpop.f32.mrf.mxu0
  %v2361 = vadd.f32 %v2312, %v2360
  %v2362 = vpop.f32.mrf.mxu0
  %v2363 = vpop.f32.mrf.mxu0
  %v2364 = vadd.f32 %v2315, %v2363
  %v2365 = vpop.f32.mrf.mxu0
  %2366 = vdwg.mxu0
  %2367 = vmatprep.subr.bf16.mxu0 0
  %2368 = vmatpush1.bf16.msra.mxu0 %v1677
  %2369 = vmatprep.subr.bf16.mxu0 0
  %2370 = vmatpush1.bf16.msra.mxu0 %v1676
  %2371 = vmatprep.subr.bf16.mxu0 0
  %2372 = vmatpush1.bf16.msra.mxu0 %v1675
  %2373 = vmatprep.subr.bf16.mxu0 0
  %2374 = vmatpush1.bf16.msra.mxu0 %v1674
  %2375 = vmatprep.subr.bf16.mxu0 0
  %2376 = vmatpush1.bf16.msra.mxu0 %v1673
  %2377 = vmatprep.subr.bf16.mxu0 0
  %2378 = vmatpush1.bf16.msra.mxu0 %v1672
  %2379 = vmatprep.subr.bf16.mxu0 0
  %2380 = vmatpush1.bf16.msra.mxu0 %v1671
  %2381 = vmatprep.subr.bf16.mxu0 0
  %2382 = vmatpush1.bf16.msra.mxu0 %v1670
  %2383 = vmatprep.subr.bf16.mxu0 0
  %2384 = vmatpush2.bf16.msra.mxu0 %v1685
  %2385 = vmatprep.subr.bf16.mxu0 0
  %2386 = vmatpush2.bf16.msra.mxu0 %v1684
  %2387 = vmatprep.subr.bf16.mxu0 0
  %2388 = vmatpush2.bf16.msra.mxu0 %v1683
  %2389 = vmatprep.subr.bf16.mxu0 0
  %2390 = vmatpush2.bf16.msra.mxu0 %v1682
  %2391 = vmatprep.subr.bf16.mxu0 0
  %2392 = vmatpush2.bf16.msra.mxu0 %v1681
  %2393 = vmatprep.subr.bf16.mxu0 0
  %2394 = vmatpush2.bf16.msra.mxu0 %v1680
  %2395 = vmatprep.subr.bf16.mxu0 0
  %2396 = vmatpush2.bf16.msra.mxu0 %v1679
  %2397 = vmatprep.subr.bf16.mxu0 0
  %2398 = vmatpush2.bf16.msra.mxu0 %v1678
  %2399 = vmatprep.mubr.bf16.mxu0 %v645
  %2400 = vmatmul.mubr.bf16.gmra.mxu0 %v644
  %v2401 = vpop.f32.mrf.mxu0
  %v2402 = vadd.f32 %v2353, %v2401
  %v2403 = vpop.f32.mrf.mxu0
  %v2404 = vpop.f32.mrf.mxu0
  %v2405 = vadd.f32 %v2356, %v2404
  %v2406 = vpop.f32.mrf.mxu0
  %2407 = vmatprep.mubr.bf16.mxu0 %v670
  %2408 = vmatmul.mubr.bf16.gmra.mxu0 %v669
  %v2409 = vpop.f32.mrf.mxu0
  %v2410 = vadd.f32 %v2361, %v2409
  %v2411 = vpop.f32.mrf.mxu0
  %v2412 = vpop.f32.mrf.mxu0
  %v2413 = vadd.f32 %v2364, %v2412
  %v2414 = vpop.f32.mrf.mxu0
  %2415 = vdwg.mxu0
  %2416 = vmatprep.subr.bf16.mxu0 0
  %2417 = vmatpush1.bf16.msra.mxu0 %v1693
  %2418 = vmatprep.subr.bf16.mxu0 0
  %2419 = vmatpush1.bf16.msra.mxu0 %v1692
  %2420 = vmatprep.subr.bf16.mxu0 0
  %2421 = vmatpush1.bf16.msra.mxu0 %v1691
  %2422 = vmatprep.subr.bf16.mxu0 0
  %2423 = vmatpush1.bf16.msra.mxu0 %v1690
  %2424 = vmatprep.subr.bf16.mxu0 0
  %2425 = vmatpush1.bf16.msra.mxu0 %v1689
  %2426 = vmatprep.subr.bf16.mxu0 0
  %2427 = vmatpush1.bf16.msra.mxu0 %v1688
  %2428 = vmatprep.subr.bf16.mxu0 0
  %2429 = vmatpush1.bf16.msra.mxu0 %v1687
  %2430 = vmatprep.subr.bf16.mxu0 0
  %2431 = vmatpush1.bf16.msra.mxu0 %v1686
  %2432 = vmatprep.subr.bf16.mxu0 0
  %2433 = vmatpush2.bf16.msra.mxu0 %v1701
  %2434 = vmatprep.subr.bf16.mxu0 0
  %2435 = vmatpush2.bf16.msra.mxu0 %v1700
  %2436 = vmatprep.subr.bf16.mxu0 0
  %2437 = vmatpush2.bf16.msra.mxu0 %v1699
  %2438 = vmatprep.subr.bf16.mxu0 0
  %2439 = vmatpush2.bf16.msra.mxu0 %v1698
  %2440 = vmatprep.subr.bf16.mxu0 0
  %2441 = vmatpush2.bf16.msra.mxu0 %v1697
  %2442 = vmatprep.subr.bf16.mxu0 0
  %2443 = vmatpush2.bf16.msra.mxu0 %v1696
  %2444 = vmatprep.subr.bf16.mxu0 0
  %2445 = vmatpush2.bf16.msra.mxu0 %v1695
  %2446 = vmatprep.subr.bf16.mxu0 0
  %2447 = vmatpush2.bf16.msra.mxu0 %v1694
  %2448 = vmatprep.mubr.bf16.mxu0 %v647
  %2449 = vmatmul.mubr.bf16.gmra.mxu0 %v646
  %v2450 = vpop.f32.mrf.mxu0
  %v2451 = vadd.f32 %v2402, %v2450
  %v2452 = vpop.f32.mrf.mxu0
  %v2453 = vpop.f32.mrf.mxu0
  %v2454 = vadd.f32 %v2405, %v2453
  %v2455 = vpop.f32.mrf.mxu0
  %2456 = vmatprep.mubr.bf16.mxu0 %v672
  %2457 = vmatmul.mubr.bf16.gmra.mxu0 %v671
  %v2458 = vpop.f32.mrf.mxu0
  %v2459 = vadd.f32 %v2410, %v2458
  %v2460 = vpop.f32.mrf.mxu0
  %v2461 = vpop.f32.mrf.mxu0
  %v2462 = vadd.f32 %v2413, %v2461
  %v2463 = vpop.f32.mrf.mxu0
  %2464 = vdwg.mxu0
  %2465 = vmatprep.subr.bf16.mxu0 0
  %2466 = vmatpush1.bf16.msra.mxu0 %v1709
  %2467 = vmatprep.subr.bf16.mxu0 0
  %2468 = vmatpush1.bf16.msra.mxu0 %v1708
  %2469 = vmatprep.subr.bf16.mxu0 0
  %2470 = vmatpush1.bf16.msra.mxu0 %v1707
  %2471 = vmatprep.subr.bf16.mxu0 0
  %2472 = vmatpush1.bf16.msra.mxu0 %v1706
  %2473 = vmatprep.subr.bf16.mxu0 0
  %2474 = vmatpush1.bf16.msra.mxu0 %v1705
  %2475 = vmatprep.subr.bf16.mxu0 0
  %2476 = vmatpush1.bf16.msra.mxu0 %v1704
  %2477 = vmatprep.subr.bf16.mxu0 0
  %2478 = vmatpush1.bf16.msra.mxu0 %v1703
  %2479 = vmatprep.subr.bf16.mxu0 0
  %2480 = vmatpush1.bf16.msra.mxu0 %v1702
  %2481 = vmatprep.subr.bf16.mxu0 0
  %2482 = vmatpush2.bf16.msra.mxu0 %v1717
  %2483 = vmatprep.subr.bf16.mxu0 0
  %2484 = vmatpush2.bf16.msra.mxu0 %v1716
  %2485 = vmatprep.subr.bf16.mxu0 0
  %2486 = vmatpush2.bf16.msra.mxu0 %v1715
  %2487 = vmatprep.subr.bf16.mxu0 0
  %2488 = vmatpush2.bf16.msra.mxu0 %v1714
  %2489 = vmatprep.subr.bf16.mxu0 0
  %2490 = vmatpush2.bf16.msra.mxu0 %v1713
  %2491 = vmatprep.subr.bf16.mxu0 0
  %2492 = vmatpush2.bf16.msra.mxu0 %v1712
  %2493 = vmatprep.subr.bf16.mxu0 0
  %2494 = vmatpush2.bf16.msra.mxu0 %v1711
  %2495 = vmatprep.subr.bf16.mxu0 0
  %2496 = vmatpush2.bf16.msra.mxu0 %v1710
  %2497 = vmatprep.mubr.bf16.mxu0 %v649
  %2498 = vmatmul.mubr.bf16.gmra.mxu0 %v648
  %v2499 = vpop.f32.mrf.mxu0
  %v2500 = vadd.f32 %v2451, %v2499
  %v2501 = vpop.f32.mrf.mxu0
  %v2502 = vpop.f32.mrf.mxu0
  %v2503 = vadd.f32 %v2454, %v2502
  %v2504 = vpop.f32.mrf.mxu0
  %2505 = vmatprep.mubr.bf16.mxu0 %v674
  %2506 = vmatmul.mubr.bf16.gmra.mxu0 %v673
  %v2507 = vpop.f32.mrf.mxu0
  %v2508 = vadd.f32 %v2459, %v2507
  %v2509 = vpop.f32.mrf.mxu0
  %v2510 = vpop.f32.mrf.mxu0
  %v2511 = vadd.f32 %v2462, %v2510
  %v2512 = vpop.f32.mrf.mxu0
  %2513 = vdwg.mxu0
  %2514 = vmatprep.subr.bf16.mxu0 0
  %2515 = vmatpush1.bf16.msra.mxu0 %v1725
  %2516 = vmatprep.subr.bf16.mxu0 0
  %2517 = vmatpush1.bf16.msra.mxu0 %v1724
  %2518 = vmatprep.subr.bf16.mxu0 0
  %2519 = vmatpush1.bf16.msra.mxu0 %v1723
  %2520 = vmatprep.subr.bf16.mxu0 0
  %2521 = vmatpush1.bf16.msra.mxu0 %v1722
  %2522 = vmatprep.subr.bf16.mxu0 0
  %2523 = vmatpush1.bf16.msra.mxu0 %v1721
  %2524 = vmatprep.subr.bf16.mxu0 0
  %2525 = vmatpush1.bf16.msra.mxu0 %v1720
  %2526 = vmatprep.subr.bf16.mxu0 0
  %2527 = vmatpush1.bf16.msra.mxu0 %v1719
  %2528 = vmatprep.subr.bf16.mxu0 0
  %2529 = vmatpush1.bf16.msra.mxu0 %v1718
  %2530 = vmatprep.subr.bf16.mxu0 0
  %2531 = vmatpush2.bf16.msra.mxu0 0
  %2532 = vmatprep.subr.bf16.mxu0 0
  %2533 = vmatpush2.bf16.msra.mxu0 0
  %2534 = vmatprep.subr.bf16.mxu0 0
  %2535 = vmatpush2.bf16.msra.mxu0 0
  %2536 = vmatprep.subr.bf16.mxu0 0
  %2537 = vmatpush2.bf16.msra.mxu0 0
  %2538 = vmatprep.subr.bf16.mxu0 0
  %2539 = vmatpush2.bf16.msra.mxu0 0
  %2540 = vmatprep.subr.bf16.mxu0 0
  %2541 = vmatpush2.bf16.msra.mxu0 0
  %2542 = vmatprep.subr.bf16.mxu0 0
  %2543 = vmatpush2.bf16.msra.mxu0 0
  %2544 = vmatprep.subr.bf16.mxu0 0
  %2545 = vmatpush2.bf16.msra.mxu0 0
  %2546 = vmatprep.mubr.bf16.mxu0 0
  %2547 = vmatmul.mubr.bf16.gmra.mxu0 %v650
  %v2548 = vpop.f32.mrf.mxu0
  %v2549 = vadd.f32 %v2500, %v2548
  %v2550 = vpop.f32.mrf.mxu0
  %v2551 = vpop.f32.mrf.mxu0
  %v2552 = vadd.f32 %v2503, %v2551
  %v2553 = vpop.f32.mrf.mxu0
  %2554 = vmatprep.mubr.bf16.mxu0 0
  %2555 = vmatmul.mubr.bf16.gmra.mxu0 %v675
  %v2556 = vpop.f32.mrf.mxu0
  %v2557 = vadd.f32 %v2508, %v2556
  %v2558 = vpop.f32.mrf.mxu0
  %v2559 = vpop.f32.mrf.mxu0
  %v2560 = vadd.f32 %v2511, %v2559
  %v2561 = vpop.f32.mrf.mxu0
  %2562 = vdwg.mxu0
  %v2563 = vmax.f32 %v2549, 0.0
  %v2564 = vmax.f32 %v2552, 0.0
  %v2565 = vmax.f32 %v2557, 0.0
  %v2566 = vmax.f32 %v2560, 0.0
  %v2567 = vpack.c.bf16 %v2564, %v2563
  %v2568 = vpack.c.bf16 %v2566, %v2565
  %v2571 = vunpack.c.l.b16 %v2567
  %v2572 = vunpack.c.h.b16 %v2567
  %v2573 = vunpack.c.l.b16 %v2568
  %v2574 = vunpack.c.h.b16 %v2568
  %v2575 = vpack.c.b16 %v2571, %v2571
  %v2576 = vpack.c.b16 %v2572, %v2572
  %v2577 = vpack.c.b16 %v2573, %v2573
  %v2578 = vpack.c.b16 %v2574, %v2574
  %2583 = vst [vmem:[%s3] sm:$0xf] %v2575
  %2584 = vst [vmem:[%s3 + $0x4] sm:$0xf] %v2576
  %2585 = vst [vmem:[%s3 + $0x8] sm:$0xf] %v2577
  %2586 = vst [vmem:[%s3 + $0xc] sm:$0xf] %v2578
  // Predicated region
  $region14: #{class_aux_vae_forward.6} parent=0 // pred_check
    _
  $region15: #{class_aux_vae_forward.6} parent=0 // pred_check_branch
    %2588 = sbr.rel (0) target = $region17
  $region16: #{class_aux_vae_forward.6} parent=0 // pred_region
    _
  $region17: #{class_aux_vae_forward.6} parent=0 // pred_fallthru
    _
  // Predicated region
  $region18: #{class_aux_vae_forward.6} parent=0 // pred_check
    _
  $region19: #{class_aux_vae_forward.6} parent=0 // pred_check_branch
    %2590 = sbr.rel (0) target = $region21
  $region20: #{class_aux_vae_forward.6} parent=0 // pred_region
    _
  $region21: #{class_aux_vae_forward.6} parent=0 // pred_fallthru
    _

// kernel: class_aux_vae_forward.7
$region0: #{class_aux_vae_forward.7}
  #allocation0 [shape = 'u32[]', space=smem, size = 0x4, offset = 0x4, fixed_abs, tag = 'smem constant byte address 0x4 - core index']
  #allocation1 [shape = 'u32[144,128]{1,0:T(1,128)}', space=vmem, size = 0x12000, scoped, tag = 'internal scratch']
  %s0 = inlined_call_operand.vmem [shape: bf16[8,2048], index: 0, kind: input, shape index: {}]
  %s1 = inlined_call_operand.vmem [shape: f32[8,128], index: 1, kind: input, shape index: {}]
  %s2 = inlined_call_operand.vmem [shape: bf16[2048,128], index: 2, kind: input, shape index: {}]
  %s3 = inlined_call_operand.vmem [shape: f32[1,128], index: 3, kind: input, shape index: {}]
  %s4 = inlined_call_operand.vmem [shape: bf16[128,256], index: 4, kind: input, shape index: {}]
  %s5 = inlined_call_operand.vmem [shape: f32[1,256], index: 5, kind: input, shape index: {}]
  %s6 = inlined_call_operand.vmem [shape: bf16[128,128], index: 6, kind: input, shape index: {}]
  %s7 = inlined_call_operand.vmem [shape: f32[1,128], index: 7, kind: input, shape index: {}]
  %s8 = inlined_call_operand.vmem [shape: bf16[128,1664], index: 8, kind: input, shape index: {}]
  %s9 = inlined_call_operand.vmem [shape: f32[1,1664], index: 9, kind: input, shape index: {}]
  %s10 = inlined_call_operand.vmem [shape: bf16[128,128], index: 10, kind: input, shape index: {}]
  %s11 = inlined_call_operand.vmem [shape: f32[1,128], index: 11, kind: input, shape index: {}]
  %s12 = inlined_call_operand.vmem [shape: bf16[128,128], index: 12, kind: input, shape index: {}]
  %s13 = inlined_call_operand.vmem [shape: f32[1,128], index: 13, kind: input, shape index: {}]
  %s14 = inlined_call_operand.vmem [shape: f32[8,128], index: 14, kind: output, shape index: {0}]
  %s15 = inlined_call_operand.vmem [shape: f32[8,128], index: 15, kind: output, shape index: {1}]
  %s16 = inlined_call_operand.vmem [shape: f32[8,1664], index: 16, kind: output, shape index: {2}]
  %s17 = inlined_call_operand.vmem [shape: f32[8,128], index: 17, kind: output, shape index: {3}]
  %18 = xla_tuple %s14, %s15, %s16, %s17
  %s19 = sld [smem:[#allocation0]]
  $region90: #{class_aux_vae_forward.7} parent=0
    _
  %s21 = ssub.s32 1, %s19
  %s22 = scalar_select 0, %s21, %s19
  // Predicated region
  $region2: #{class_aux_vae_forward.7} parent=0 // pred_check
    _
  $region3: #{class_aux_vae_forward.7} parent=0 // pred_check_branch
    %24 = sbr.rel (0) target = $region5
  $region4: #{class_aux_vae_forward.7} parent=0 // pred_region
    _
  $region5: #{class_aux_vae_forward.7} parent=0 // pred_fallthru
    _
  // Predicated region
  $region6: #{class_aux_vae_forward.7} parent=0 // pred_check
    _
  $region7: #{class_aux_vae_forward.7} parent=0 // pred_check_branch
    %26 = sbr.rel (0) target = $region9
  $region8: #{class_aux_vae_forward.7} parent=0 // pred_region
    _
  $region9: #{class_aux_vae_forward.7} parent=0 // pred_fallthru
    _
  // Predicated region
  $region10: #{class_aux_vae_forward.7} parent=0 // pred_check
    _
  $region11: #{class_aux_vae_forward.7} parent=0 // pred_check_branch
    %28 = sbr.rel (0) target = $region13
  $region12: #{class_aux_vae_forward.7} parent=0 // pred_region
    _
  $region13: #{class_aux_vae_forward.7} parent=0 // pred_fallthru
    _
  // Predicated region
  $region14: #{class_aux_vae_forward.7} parent=0 // pred_check
    _
  $region15: #{class_aux_vae_forward.7} parent=0 // pred_check_branch
    %30 = sbr.rel (0) target = $region17
  $region16: #{class_aux_vae_forward.7} parent=0 // pred_region
    _
  $region17: #{class_aux_vae_forward.7} parent=0 // pred_fallthru
    _
  // Predicated region
  $region18: #{class_aux_vae_forward.7} parent=0 // pred_check
    _
  $region19: #{class_aux_vae_forward.7} parent=0 // pred_check_branch
    %32 = sbr.rel (0) target = $region21
  $region20: #{class_aux_vae_forward.7} parent=0 // pred_region
    _
  $region21: #{class_aux_vae_forward.7} parent=0 // pred_fallthru
    _
  // Predicated region
  $region22: #{class_aux_vae_forward.7} parent=0 // pred_check
    _
  $region23: #{class_aux_vae_forward.7} parent=0 // pred_check_branch
    %34 = sbr.rel (0) target = $region25
  $region24: #{class_aux_vae_forward.7} parent=0 // pred_region
    _
  $region25: #{class_aux_vae_forward.7} parent=0 // pred_fallthru
    _
  // Predicated region
  $region26: #{class_aux_vae_forward.7} parent=0 // pred_check
    _
  $region27: #{class_aux_vae_forward.7} parent=0 // pred_check_branch
    %36 = sbr.rel (0) target = $region29
  $region28: #{class_aux_vae_forward.7} parent=0 // pred_region
    _
  $region29: #{class_aux_vae_forward.7} parent=0 // pred_fallthru
    _
  // Predicated region
  $region30: #{class_aux_vae_forward.7} parent=0 // pred_check
    _
  $region31: #{class_aux_vae_forward.7} parent=0 // pred_check_branch
    %38 = sbr.rel (0) target = $region33
  $region32: #{class_aux_vae_forward.7} parent=0 // pred_region
    _
  $region33: #{class_aux_vae_forward.7} parent=0 // pred_fallthru
    _
  // Predicated region
  $region34: #{class_aux_vae_forward.7} parent=0 // pred_check
    _
  $region35: #{class_aux_vae_forward.7} parent=0 // pred_check_branch
    %40 = sbr.rel (0) target = $region37
  $region36: #{class_aux_vae_forward.7} parent=0 // pred_region
    _
  $region37: #{class_aux_vae_forward.7} parent=0 // pred_fallthru
    _
  // Predicated region
  $region38: #{class_aux_vae_forward.7} parent=0 // pred_check
    _
  $region39: #{class_aux_vae_forward.7} parent=0 // pred_check_branch
    %42 = sbr.rel (0) target = $region41
  $region40: #{class_aux_vae_forward.7} parent=0 // pred_region
    _
  $region41: #{class_aux_vae_forward.7} parent=0 // pred_fallthru
    _
  // Predicated region
  $region42: #{class_aux_vae_forward.7} parent=0 // pred_check
    _
  $region43: #{class_aux_vae_forward.7} parent=0 // pred_check_branch
    %44 = sbr.rel (0) target = $region45
  $region44: #{class_aux_vae_forward.7} parent=0 // pred_region
    _
  $region45: #{class_aux_vae_forward.7} parent=0 // pred_fallthru
    _
  // Predicated region
  $region46: #{class_aux_vae_forward.7} parent=0 // pred_check
    _
  $region47: #{class_aux_vae_forward.7} parent=0 // pred_check_branch
    %46 = sbr.rel (0) target = $region49
  $region48: #{class_aux_vae_forward.7} parent=0 // pred_region
    _
  $region49: #{class_aux_vae_forward.7} parent=0 // pred_fallthru
    _
  // Predicated region
  $region50: #{class_aux_vae_forward.7} parent=0 // pred_check
    _
  $region51: #{class_aux_vae_forward.7} parent=0 // pred_check_branch
    %48 = sbr.rel (0) target = $region53
  $region52: #{class_aux_vae_forward.7} parent=0 // pred_region
    _
  $region53: #{class_aux_vae_forward.7} parent=0 // pred_fallthru
    _
  // Predicated region
  $region54: #{class_aux_vae_forward.7} parent=0 // pred_check
    _
  $region55: #{class_aux_vae_forward.7} parent=0 // pred_check_branch
    %50 = sbr.rel (0) target = $region57
  $region56: #{class_aux_vae_forward.7} parent=0 // pred_region
    _
  $region57: #{class_aux_vae_forward.7} parent=0 // pred_fallthru
    _
  %v52 = vld [vmem:[%s0] sm:$0xff]
  %v53 = vld [vmem:[%s0 + $0x8] sm:$0xff]
  %v54 = vld [vmem:[%s0 + $0x10] sm:$0xff]
  %v55 = vld [vmem:[%s0 + $0x18] sm:$0xff]
  %v56 = vld [vmem:[%s0 + $0x20] sm:$0xff]
  %v57 = vld [vmem:[%s0 + $0x28] sm:$0xff]
  %v58 = vld [vmem:[%s0 + $0x30] sm:$0xff]
  %v59 = vld [vmem:[%s0 + $0x38] sm:$0xff]
  %v60 = vld [vmem:[%s2] sm:$0xf]
  %v61 = vld [vmem:[%s2 + $0x4] sm:$0xf]
  %v62 = vld [vmem:[%s2 + $0x8] sm:$0xf]
  %v63 = vld [vmem:[%s2 + $0xc] sm:$0xf]
  %v64 = vld [vmem:[%s2 + $0x10] sm:$0xf]
  %v65 = vld [vmem:[%s2 + $0x14] sm:$0xf]
  %v66 = vld [vmem:[%s2 + $0x18] sm:$0xf]
  %v67 = vld [vmem:[%s2 + $0x1c] sm:$0xf]
  %v68 = vld [vmem:[%s2 + $0x20] sm:$0xf]
  %v69 = vld [vmem:[%s2 + $0x24] sm:$0xf]
  %v70 = vld [vmem:[%s2 + $0x28] sm:$0xf]
  %v71 = vld [vmem:[%s2 + $0x2c] sm:$0xf]
  %v72 = vld [vmem:[%s2 + $0x30] sm:$0xf]
  %v73 = vld [vmem:[%s2 + $0x34] sm:$0xf]
  %v74 = vld [vmem:[%s2 + $0x38] sm:$0xf]
  %v75 = vld [vmem:[%s2 + $0x3c] sm:$0xf]
  %v76 = vld [vmem:[%s2 + $0x40] sm:$0xf]
  %v77 = vld [vmem:[%s2 + $0x44] sm:$0xf]
  %v78 = vld [vmem:[%s2 + $0x48] sm:$0xf]
  %v79 = vld [vmem:[%s2 + $0x4c] sm:$0xf]
  %v80 = vld [vmem:[%s2 + $0x50] sm:$0xf]
  %v81 = vld [vmem:[%s2 + $0x54] sm:$0xf]
  %v82 = vld [vmem:[%s2 + $0x58] sm:$0xf]
  %v83 = vld [vmem:[%s2 + $0x5c] sm:$0xf]
  %v84 = vld [vmem:[%s2 + $0x60] sm:$0xf]
  %v85 = vld [vmem:[%s2 + $0x64] sm:$0xf]
  %v86 = vld [vmem:[%s2 + $0x68] sm:$0xf]
  %v87 = vld [vmem:[%s2 + $0x6c] sm:$0xf]
  %v88 = vld [vmem:[%s2 + $0x70] sm:$0xf]
  %v89 = vld [vmem:[%s2 + $0x74] sm:$0xf]
  %v90 = vld [vmem:[%s2 + $0x78] sm:$0xf]
  %v91 = vld [vmem:[%s2 + $0x7c] sm:$0xf]
  %v92 = vld [vmem:[%s2 + $0x80] sm:$0xf]
  %v93 = vld [vmem:[%s2 + $0x84] sm:$0xf]
  %v94 = vld [vmem:[%s2 + $0x88] sm:$0xf]
  %v95 = vld [vmem:[%s2 + $0x8c] sm:$0xf]
  %v96 = vld [vmem:[%s2 + $0x90] sm:$0xf]
  %v97 = vld [vmem:[%s2 + $0x94] sm:$0xf]
  %v98 = vld [vmem:[%s2 + $0x98] sm:$0xf]
  %v99 = vld [vmem:[%s2 + $0x9c] sm:$0xf]
  %v100 = vld [vmem:[%s2 + $0xa0] sm:$0xf]
  %v101 = vld [vmem:[%s2 + $0xa4] sm:$0xf]
  %v102 = vld [vmem:[%s2 + $0xa8] sm:$0xf]
  %v103 = vld [vmem:[%s2 + $0xac] sm:$0xf]
  %v104 = vld [vmem:[%s2 + $0xb0] sm:$0xf]
  %v105 = vld [vmem:[%s2 + $0xb4] sm:$0xf]
  %v106 = vld [vmem:[%s2 + $0xb8] sm:$0xf]
  %v107 = vld [vmem:[%s2 + $0xbc] sm:$0xf]
  %v108 = vld [vmem:[%s2 + $0xc0] sm:$0xf]
  %v109 = vld [vmem:[%s2 + $0xc4] sm:$0xf]
  %v110 = vld [vmem:[%s2 + $0xc8] sm:$0xf]
  %v111 = vld [vmem:[%s2 + $0xcc] sm:$0xf]
  %v112 = vld [vmem:[%s2 + $0xd0] sm:$0xf]
  %v113 = vld [vmem:[%s2 + $0xd4] sm:$0xf]
  %v114 = vld [vmem:[%s2 + $0xd8] sm:$0xf]
  %v115 = vld [vmem:[%s2 + $0xdc] sm:$0xf]
  %v116 = vld [vmem:[%s2 + $0xe0] sm:$0xf]
  %v117 = vld [vmem:[%s2 + $0xe4] sm:$0xf]
  %v118 = vld [vmem:[%s2 + $0xe8] sm:$0xf]
  %v119 = vld [vmem:[%s2 + $0xec] sm:$0xf]
  %v120 = vld [vmem:[%s2 + $0xf0] sm:$0xf]
  %v121 = vld [vmem:[%s2 + $0xf4] sm:$0xf]
  %v122 = vld [vmem:[%s2 + $0xf8] sm:$0xf]
  %v123 = vld [vmem:[%s2 + $0xfc] sm:$0xf]
  %v124 = vld [vmem:[%s2 + $0x100] sm:$0xf]
  %v125 = vld [vmem:[%s2 + $0x104] sm:$0xf]
  %v126 = vld [vmem:[%s2 + $0x108] sm:$0xf]
  %v127 = vld [vmem:[%s2 + $0x10c] sm:$0xf]
  %v128 = vld [vmem:[%s2 + $0x110] sm:$0xf]
  %v129 = vld [vmem:[%s2 + $0x114] sm:$0xf]
  %v130 = vld [vmem:[%s2 + $0x118] sm:$0xf]
  %v131 = vld [vmem:[%s2 + $0x11c] sm:$0xf]
  %v132 = vld [vmem:[%s2 + $0x120] sm:$0xf]
  %v133 = vld [vmem:[%s2 + $0x124] sm:$0xf]
  %v134 = vld [vmem:[%s2 + $0x128] sm:$0xf]
  %v135 = vld [vmem:[%s2 + $0x12c] sm:$0xf]
  %v136 = vld [vmem:[%s2 + $0x130] sm:$0xf]
  %v137 = vld [vmem:[%s2 + $0x134] sm:$0xf]
  %v138 = vld [vmem:[%s2 + $0x138] sm:$0xf]
  %v139 = vld [vmem:[%s2 + $0x13c] sm:$0xf]
  %v140 = vld [vmem:[%s2 + $0x140] sm:$0xf]
  %v141 = vld [vmem:[%s2 + $0x144] sm:$0xf]
  %v142 = vld [vmem:[%s2 + $0x148] sm:$0xf]
  %v143 = vld [vmem:[%s2 + $0x14c] sm:$0xf]
  %v144 = vld [vmem:[%s2 + $0x150] sm:$0xf]
  %v145 = vld [vmem:[%s2 + $0x154] sm:$0xf]
  %v146 = vld [vmem:[%s2 + $0x158] sm:$0xf]
  %v147 = vld [vmem:[%s2 + $0x15c] sm:$0xf]
  %v148 = vld [vmem:[%s2 + $0x160] sm:$0xf]
  %v149 = vld [vmem:[%s2 + $0x164] sm:$0xf]
  %v150 = vld [vmem:[%s2 + $0x168] sm:$0xf]
  %v151 = vld [vmem:[%s2 + $0x16c] sm:$0xf]
  %v152 = vld [vmem:[%s2 + $0x170] sm:$0xf]
  %v153 = vld [vmem:[%s2 + $0x174] sm:$0xf]
  %v154 = vld [vmem:[%s2 + $0x178] sm:$0xf]
  %v155 = vld [vmem:[%s2 + $0x17c] sm:$0xf]
  %v156 = vld [vmem:[%s2 + $0x180] sm:$0xf]
  %v157 = vld [vmem:[%s2 + $0x184] sm:$0xf]
  %v158 = vld [vmem:[%s2 + $0x188] sm:$0xf]
  %v159 = vld [vmem:[%s2 + $0x18c] sm:$0xf]
  %v160 = vld [vmem:[%s2 + $0x190] sm:$0xf]
  %v161 = vld [vmem:[%s2 + $0x194] sm:$0xf]
  %v162 = vld [vmem:[%s2 + $0x198] sm:$0xf]
  %v163 = vld [vmem:[%s2 + $0x19c] sm:$0xf]
  %v164 = vld [vmem:[%s2 + $0x1a0] sm:$0xf]
  %v165 = vld [vmem:[%s2 + $0x1a4] sm:$0xf]
  %v166 = vld [vmem:[%s2 + $0x1a8] sm:$0xf]
  %v167 = vld [vmem:[%s2 + $0x1ac] sm:$0xf]
  %v168 = vld [vmem:[%s2 + $0x1b0] sm:$0xf]
  %v169 = vld [vmem:[%s2 + $0x1b4] sm:$0xf]
  %v170 = vld [vmem:[%s2 + $0x1b8] sm:$0xf]
  %v171 = vld [vmem:[%s2 + $0x1bc] sm:$0xf]
  %v172 = vld [vmem:[%s2 + $0x1c0] sm:$0xf]
  %v173 = vld [vmem:[%s2 + $0x1c4] sm:$0xf]
  %v174 = vld [vmem:[%s2 + $0x1c8] sm:$0xf]
  %v175 = vld [vmem:[%s2 + $0x1cc] sm:$0xf]
  %v176 = vld [vmem:[%s2 + $0x1d0] sm:$0xf]
  %v177 = vld [vmem:[%s2 + $0x1d4] sm:$0xf]
  %v178 = vld [vmem:[%s2 + $0x1d8] sm:$0xf]
  %v179 = vld [vmem:[%s2 + $0x1dc] sm:$0xf]
  %v180 = vld [vmem:[%s2 + $0x1e0] sm:$0xf]
  %v181 = vld [vmem:[%s2 + $0x1e4] sm:$0xf]
  %v182 = vld [vmem:[%s2 + $0x1e8] sm:$0xf]
  %v183 = vld [vmem:[%s2 + $0x1ec] sm:$0xf]
  %v184 = vld [vmem:[%s2 + $0x1f0] sm:$0xf]
  %v185 = vld [vmem:[%s2 + $0x1f4] sm:$0xf]
  %v186 = vld [vmem:[%s2 + $0x1f8] sm:$0xf]
  %v187 = vld [vmem:[%s2 + $0x1fc] sm:$0xf]
  %v188 = vld [vmem:[%s2 + $0x200] sm:$0xf]
  %v189 = vld [vmem:[%s2 + $0x204] sm:$0xf]
  %v190 = vld [vmem:[%s2 + $0x208] sm:$0xf]
  %v191 = vld [vmem:[%s2 + $0x20c] sm:$0xf]
  %v192 = vld [vmem:[%s2 + $0x210] sm:$0xf]
  %v193 = vld [vmem:[%s2 + $0x214] sm:$0xf]
  %v194 = vld [vmem:[%s2 + $0x218] sm:$0xf]
  %v195 = vld [vmem:[%s2 + $0x21c] sm:$0xf]
  %v196 = vld [vmem:[%s2 + $0x220] sm:$0xf]
  %v197 = vld [vmem:[%s2 + $0x224] sm:$0xf]
  %v198 = vld [vmem:[%s2 + $0x228] sm:$0xf]
  %v199 = vld [vmem:[%s2 + $0x22c] sm:$0xf]
  %v200 = vld [vmem:[%s2 + $0x230] sm:$0xf]
  %v201 = vld [vmem:[%s2 + $0x234] sm:$0xf]
  %v202 = vld [vmem:[%s2 + $0x238] sm:$0xf]
  %v203 = vld [vmem:[%s2 + $0x23c] sm:$0xf]
  %v204 = vld [vmem:[%s2 + $0x240] sm:$0xf]
  %v205 = vld [vmem:[%s2 + $0x244] sm:$0xf]
  %v206 = vld [vmem:[%s2 + $0x248] sm:$0xf]
  %v207 = vld [vmem:[%s2 + $0x24c] sm:$0xf]
  %v208 = vld [vmem:[%s2 + $0x250] sm:$0xf]
  %v209 = vld [vmem:[%s2 + $0x254] sm:$0xf]
  %v210 = vld [vmem:[%s2 + $0x258] sm:$0xf]
  %v211 = vld [vmem:[%s2 + $0x25c] sm:$0xf]
  %v212 = vld [vmem:[%s2 + $0x260] sm:$0xf]
  %v213 = vld [vmem:[%s2 + $0x264] sm:$0xf]
  %v214 = vld [vmem:[%s2 + $0x268] sm:$0xf]
  %v215 = vld [vmem:[%s2 + $0x26c] sm:$0xf]
  %v216 = vld [vmem:[%s2 + $0x270] sm:$0xf]
  %v217 = vld [vmem:[%s2 + $0x274] sm:$0xf]
  %v218 = vld [vmem:[%s2 + $0x278] sm:$0xf]
  %v219 = vld [vmem:[%s2 + $0x27c] sm:$0xf]
  %v220 = vld [vmem:[%s2 + $0x280] sm:$0xf]
  %v221 = vld [vmem:[%s2 + $0x284] sm:$0xf]
  %v222 = vld [vmem:[%s2 + $0x288] sm:$0xf]
  %v223 = vld [vmem:[%s2 + $0x28c] sm:$0xf]
  %v224 = vld [vmem:[%s2 + $0x290] sm:$0xf]
  %v225 = vld [vmem:[%s2 + $0x294] sm:$0xf]
  %v226 = vld [vmem:[%s2 + $0x298] sm:$0xf]
  %v227 = vld [vmem:[%s2 + $0x29c] sm:$0xf]
  %v228 = vld [vmem:[%s2 + $0x2a0] sm:$0xf]
  %v229 = vld [vmem:[%s2 + $0x2a4] sm:$0xf]
  %v230 = vld [vmem:[%s2 + $0x2a8] sm:$0xf]
  %v231 = vld [vmem:[%s2 + $0x2ac] sm:$0xf]
  %v232 = vld [vmem:[%s2 + $0x2b0] sm:$0xf]
  %v233 = vld [vmem:[%s2 + $0x2b4] sm:$0xf]
  %v234 = vld [vmem:[%s2 + $0x2b8] sm:$0xf]
  %v235 = vld [vmem:[%s2 + $0x2bc] sm:$0xf]
  %v236 = vld [vmem:[%s2 + $0x2c0] sm:$0xf]
  %v237 = vld [vmem:[%s2 + $0x2c4] sm:$0xf]
  %v238 = vld [vmem:[%s2 + $0x2c8] sm:$0xf]
  %v239 = vld [vmem:[%s2 + $0x2cc] sm:$0xf]
  %v240 = vld [vmem:[%s2 + $0x2d0] sm:$0xf]
  %v241 = vld [vmem:[%s2 + $0x2d4] sm:$0xf]
  %v242 = vld [vmem:[%s2 + $0x2d8] sm:$0xf]
  %v243 = vld [vmem:[%s2 + $0x2dc] sm:$0xf]
  %v244 = vld [vmem:[%s2 + $0x2e0] sm:$0xf]
  %v245 = vld [vmem:[%s2 + $0x2e4] sm:$0xf]
  %v246 = vld [vmem:[%s2 + $0x2e8] sm:$0xf]
  %v247 = vld [vmem:[%s2 + $0x2ec] sm:$0xf]
  %v248 = vld [vmem:[%s2 + $0x2f0] sm:$0xf]
  %v249 = vld [vmem:[%s2 + $0x2f4] sm:$0xf]
  %v250 = vld [vmem:[%s2 + $0x2f8] sm:$0xf]
  %v251 = vld [vmem:[%s2 + $0x2fc] sm:$0xf]
  %v252 = vld [vmem:[%s2 + $0x300] sm:$0xf]
  %v253 = vld [vmem:[%s2 + $0x304] sm:$0xf]
  %v254 = vld [vmem:[%s2 + $0x308] sm:$0xf]
  %v255 = vld [vmem:[%s2 + $0x30c] sm:$0xf]
  %v256 = vld [vmem:[%s2 + $0x310] sm:$0xf]
  %v257 = vld [vmem:[%s2 + $0x314] sm:$0xf]
  %v258 = vld [vmem:[%s2 + $0x318] sm:$0xf]
  %v259 = vld [vmem:[%s2 + $0x31c] sm:$0xf]
  %v260 = vld [vmem:[%s2 + $0x320] sm:$0xf]
  %v261 = vld [vmem:[%s2 + $0x324] sm:$0xf]
  %v262 = vld [vmem:[%s2 + $0x328] sm:$0xf]
  %v263 = vld [vmem:[%s2 + $0x32c] sm:$0xf]
  %v264 = vld [vmem:[%s2 + $0x330] sm:$0xf]
  %v265 = vld [vmem:[%s2 + $0x334] sm:$0xf]
  %v266 = vld [vmem:[%s2 + $0x338] sm:$0xf]
  %v267 = vld [vmem:[%s2 + $0x33c] sm:$0xf]
  %v268 = vld [vmem:[%s2 + $0x340] sm:$0xf]
  %v269 = vld [vmem:[%s2 + $0x344] sm:$0xf]
  %v270 = vld [vmem:[%s2 + $0x348] sm:$0xf]
  %v271 = vld [vmem:[%s2 + $0x34c] sm:$0xf]
  %v272 = vld [vmem:[%s2 + $0x350] sm:$0xf]
  %v273 = vld [vmem:[%s2 + $0x354] sm:$0xf]
  %v274 = vld [vmem:[%s2 + $0x358] sm:$0xf]
  %v275 = vld [vmem:[%s2 + $0x35c] sm:$0xf]
  %v276 = vld [vmem:[%s2 + $0x360] sm:$0xf]
  %v277 = vld [vmem:[%s2 + $0x364] sm:$0xf]
  %v278 = vld [vmem:[%s2 + $0x368] sm:$0xf]
  %v279 = vld [vmem:[%s2 + $0x36c] sm:$0xf]
  %v280 = vld [vmem:[%s2 + $0x370] sm:$0xf]
  %v281 = vld [vmem:[%s2 + $0x374] sm:$0xf]
  %v282 = vld [vmem:[%s2 + $0x378] sm:$0xf]
  %v283 = vld [vmem:[%s2 + $0x37c] sm:$0xf]
  %v284 = vld [vmem:[%s2 + $0x380] sm:$0xf]
  %v285 = vld [vmem:[%s2 + $0x384] sm:$0xf]
  %v286 = vld [vmem:[%s2 + $0x388] sm:$0xf]
  %v287 = vld [vmem:[%s2 + $0x38c] sm:$0xf]
  %v288 = vld [vmem:[%s2 + $0x390] sm:$0xf]
  %v289 = vld [vmem:[%s2 + $0x394] sm:$0xf]
  %v290 = vld [vmem:[%s2 + $0x398] sm:$0xf]
  %v291 = vld [vmem:[%s2 + $0x39c] sm:$0xf]
  %v292 = vld [vmem:[%s2 + $0x3a0] sm:$0xf]
  %v293 = vld [vmem:[%s2 + $0x3a4] sm:$0xf]
  %v294 = vld [vmem:[%s2 + $0x3a8] sm:$0xf]
  %v295 = vld [vmem:[%s2 + $0x3ac] sm:$0xf]
  %v296 = vld [vmem:[%s2 + $0x3b0] sm:$0xf]
  %v297 = vld [vmem:[%s2 + $0x3b4] sm:$0xf]
  %v298 = vld [vmem:[%s2 + $0x3b8] sm:$0xf]
  %v299 = vld [vmem:[%s2 + $0x3bc] sm:$0xf]
  %v300 = vld [vmem:[%s2 + $0x3c0] sm:$0xf]
  %v301 = vld [vmem:[%s2 + $0x3c4] sm:$0xf]
  %v302 = vld [vmem:[%s2 + $0x3c8] sm:$0xf]
  %v303 = vld [vmem:[%s2 + $0x3cc] sm:$0xf]
  %v304 = vld [vmem:[%s2 + $0x3d0] sm:$0xf]
  %v305 = vld [vmem:[%s2 + $0x3d4] sm:$0xf]
  %v306 = vld [vmem:[%s2 + $0x3d8] sm:$0xf]
  %v307 = vld [vmem:[%s2 + $0x3dc] sm:$0xf]
  %v308 = vld [vmem:[%s2 + $0x3e0] sm:$0xf]
  %v309 = vld [vmem:[%s2 + $0x3e4] sm:$0xf]
  %v310 = vld [vmem:[%s2 + $0x3e8] sm:$0xf]
  %v311 = vld [vmem:[%s2 + $0x3ec] sm:$0xf]
  %v312 = vld [vmem:[%s2 + $0x3f0] sm:$0xf]
  %v313 = vld [vmem:[%s2 + $0x3f4] sm:$0xf]
  %v314 = vld [vmem:[%s2 + $0x3f8] sm:$0xf]
  %v315 = vld [vmem:[%s2 + $0x3fc] sm:$0xf]
  %v316 = vld [vmem:[%s3] sm:$0x1]
  %v318 = vlaneseq
  %v319 = vshrl.u32 %v318, 7
  %v320 = vsub.s32 0, %v319
  %v321 = vrot.slane %v316, %v320
  %v331 = vunpack.c.l.b16 %v52
  %v332 = vunpack.c.h.b16 %v52
  %v333 = vunpack.c.l.b16 %v53
  %v334 = vunpack.c.h.b16 %v53
  %v335 = vunpack.c.l.b16 %v54
  %v336 = vunpack.c.h.b16 %v54
  %v337 = vunpack.c.l.b16 %v55
  %v338 = vunpack.c.h.b16 %v55
  %v339 = vunpack.c.l.b16 %v56
  %v340 = vunpack.c.h.b16 %v56
  %v341 = vunpack.c.l.b16 %v57
  %v342 = vunpack.c.h.b16 %v57
  %v343 = vunpack.c.l.b16 %v58
  %v344 = vunpack.c.h.b16 %v58
  %v345 = vunpack.c.l.b16 %v59
  %v346 = vunpack.c.h.b16 %v59
  %v347 = vpack.c.b16 %v331, %v331
  %v348 = vpack.c.b16 %v332, %v332
  %v349 = vpack.c.b16 %v333, %v333
  %v350 = vpack.c.b16 %v334, %v334
  %v351 = vpack.c.b16 %v335, %v335
  %v352 = vpack.c.b16 %v336, %v336
  %v353 = vpack.c.b16 %v337, %v337
  %v354 = vpack.c.b16 %v338, %v338
  %v355 = vpack.c.b16 %v339, %v339
  %v356 = vpack.c.b16 %v340, %v340
  %v357 = vpack.c.b16 %v341, %v341
  %v358 = vpack.c.b16 %v342, %v342
  %v359 = vpack.c.b16 %v343, %v343
  %v360 = vpack.c.b16 %v344, %v344
  %v361 = vpack.c.b16 %v345, %v345
  %v362 = vpack.c.b16 %v346, %v346
  %v635 = vunpack.c.l.b16 %v60
  %v636 = vunpack.c.l.b16 %v61
  %v637 = vunpack.c.l.b16 %v62
  %v638 = vunpack.c.l.b16 %v63
  %v639 = vunpack.c.l.b16 %v64
  %v640 = vunpack.c.l.b16 %v65
  %v641 = vunpack.c.l.b16 %v66
  %v642 = vunpack.c.l.b16 %v67
  %v643 = vunpack.c.l.b16 %v68
  %v644 = vunpack.c.l.b16 %v69
  %v645 = vunpack.c.l.b16 %v70
  %v646 = vunpack.c.l.b16 %v71
  %v647 = vunpack.c.l.b16 %v72
  %v648 = vunpack.c.l.b16 %v73
  %v649 = vunpack.c.l.b16 %v74
  %v650 = vunpack.c.l.b16 %v75
  %v651 = vunpack.c.l.b16 %v76
  %v652 = vunpack.c.l.b16 %v77
  %v653 = vunpack.c.l.b16 %v78
  %v654 = vunpack.c.l.b16 %v79
  %v655 = vunpack.c.l.b16 %v80
  %v656 = vunpack.c.l.b16 %v81
  %v657 = vunpack.c.l.b16 %v82
  %v658 = vunpack.c.l.b16 %v83
  %v659 = vunpack.c.l.b16 %v84
  %v660 = vunpack.c.l.b16 %v85
  %v661 = vunpack.c.l.b16 %v86
  %v662 = vunpack.c.l.b16 %v87
  %v663 = vunpack.c.l.b16 %v88
  %v664 = vunpack.c.l.b16 %v89
  %v665 = vunpack.c.l.b16 %v90
  %v666 = vunpack.c.l.b16 %v91
  %v667 = vunpack.c.l.b16 %v92
  %v668 = vunpack.c.l.b16 %v93
  %v669 = vunpack.c.l.b16 %v94
  %v670 = vunpack.c.l.b16 %v95
  %v671 = vunpack.c.l.b16 %v96
  %v672 = vunpack.c.l.b16 %v97
  %v673 = vunpack.c.l.b16 %v98
  %v674 = vunpack.c.l.b16 %v99
  %v675 = vunpack.c.l.b16 %v100
  %v676 = vunpack.c.l.b16 %v101
  %v677 = vunpack.c.l.b16 %v102
  %v678 = vunpack.c.l.b16 %v103
  %v679 = vunpack.c.l.b16 %v104
  %v680 = vunpack.c.l.b16 %v105
  %v681 = vunpack.c.l.b16 %v106
  %v682 = vunpack.c.l.b16 %v107
  %v683 = vunpack.c.l.b16 %v108
  %v684 = vunpack.c.l.b16 %v109
  %v685 = vunpack.c.l.b16 %v110
  %v686 = vunpack.c.l.b16 %v111
  %v687 = vunpack.c.l.b16 %v112
  %v688 = vunpack.c.l.b16 %v113
  %v689 = vunpack.c.l.b16 %v114
  %v690 = vunpack.c.l.b16 %v115
  %v691 = vunpack.c.l.b16 %v116
  %v692 = vunpack.c.l.b16 %v117
  %v693 = vunpack.c.l.b16 %v118
  %v694 = vunpack.c.l.b16 %v119
  %v695 = vunpack.c.l.b16 %v120
  %v696 = vunpack.c.l.b16 %v121
  %v697 = vunpack.c.l.b16 %v122
  %v698 = vunpack.c.l.b16 %v123
  %v699 = vunpack.c.l.b16 %v124
  %v700 = vunpack.c.l.b16 %v125
  %v701 = vunpack.c.l.b16 %v126
  %v702 = vunpack.c.l.b16 %v127
  %v703 = vunpack.c.l.b16 %v128
  %v704 = vunpack.c.l.b16 %v129
  %v705 = vunpack.c.l.b16 %v130
  %v706 = vunpack.c.l.b16 %v131
  %v707 = vunpack.c.l.b16 %v132
  %v708 = vunpack.c.l.b16 %v133
  %v709 = vunpack.c.l.b16 %v134
  %v710 = vunpack.c.l.b16 %v135
  %v711 = vunpack.c.l.b16 %v136
  %v712 = vunpack.c.l.b16 %v137
  %v713 = vunpack.c.l.b16 %v138
  %v714 = vunpack.c.l.b16 %v139
  %v715 = vunpack.c.l.b16 %v140
  %v716 = vunpack.c.l.b16 %v141
  %v717 = vunpack.c.l.b16 %v142
  %v718 = vunpack.c.l.b16 %v143
  %v719 = vunpack.c.l.b16 %v144
  %v720 = vunpack.c.l.b16 %v145
  %v721 = vunpack.c.l.b16 %v146
  %v722 = vunpack.c.l.b16 %v147
  %v723 = vunpack.c.l.b16 %v148
  %v724 = vunpack.c.l.b16 %v149
  %v725 = vunpack.c.l.b16 %v150
  %v726 = vunpack.c.l.b16 %v151
  %v727 = vunpack.c.l.b16 %v152
  %v728 = vunpack.c.l.b16 %v153
  %v729 = vunpack.c.l.b16 %v154
  %v730 = vunpack.c.l.b16 %v155
  %v731 = vunpack.c.l.b16 %v156
  %v732 = vunpack.c.l.b16 %v157
  %v733 = vunpack.c.l.b16 %v158
  %v734 = vunpack.c.l.b16 %v159
  %v735 = vunpack.c.l.b16 %v160
  %v736 = vunpack.c.l.b16 %v161
  %v737 = vunpack.c.l.b16 %v162
  %v738 = vunpack.c.l.b16 %v163
  %v739 = vunpack.c.l.b16 %v164
  %v740 = vunpack.c.l.b16 %v165
  %v741 = vunpack.c.l.b16 %v166
  %v742 = vunpack.c.l.b16 %v167
  %v743 = vunpack.c.l.b16 %v168
  %v744 = vunpack.c.l.b16 %v169
  %v745 = vunpack.c.l.b16 %v170
  %v746 = vunpack.c.l.b16 %v171
  %v747 = vunpack.c.l.b16 %v172
  %v748 = vunpack.c.l.b16 %v173
  %v749 = vunpack.c.l.b16 %v174
  %v750 = vunpack.c.l.b16 %v175
  %v751 = vunpack.c.l.b16 %v176
  %v752 = vunpack.c.l.b16 %v177
  %v753 = vunpack.c.l.b16 %v178
  %v754 = vunpack.c.l.b16 %v179
  %v755 = vunpack.c.l.b16 %v180
  %v756 = vunpack.c.l.b16 %v181
  %v757 = vunpack.c.l.b16 %v182
  %v758 = vunpack.c.l.b16 %v183
  %v759 = vunpack.c.l.b16 %v184
  %v760 = vunpack.c.l.b16 %v185
  %v761 = vunpack.c.l.b16 %v186
  %v762 = vunpack.c.l.b16 %v187
  %v763 = vunpack.c.l.b16 %v188
  %v764 = vunpack.c.l.b16 %v189
  %v765 = vunpack.c.l.b16 %v190
  %v766 = vunpack.c.l.b16 %v191
  %v767 = vunpack.c.l.b16 %v192
  %v768 = vunpack.c.l.b16 %v193
  %v769 = vunpack.c.l.b16 %v194
  %v770 = vunpack.c.l.b16 %v195
  %v771 = vunpack.c.l.b16 %v196
  %v772 = vunpack.c.l.b16 %v197
  %v773 = vunpack.c.l.b16 %v198
  %v774 = vunpack.c.l.b16 %v199
  %v775 = vunpack.c.l.b16 %v200
  %v776 = vunpack.c.l.b16 %v201
  %v777 = vunpack.c.l.b16 %v202
  %v778 = vunpack.c.l.b16 %v203
  %v779 = vunpack.c.l.b16 %v204
  %v780 = vunpack.c.l.b16 %v205
  %v781 = vunpack.c.l.b16 %v206
  %v782 = vunpack.c.l.b16 %v207
  %v783 = vunpack.c.l.b16 %v208
  %v784 = vunpack.c.l.b16 %v209
  %v785 = vunpack.c.l.b16 %v210
  %v786 = vunpack.c.l.b16 %v211
  %v787 = vunpack.c.l.b16 %v212
  %v788 = vunpack.c.l.b16 %v213
  %v789 = vunpack.c.l.b16 %v214
  %v790 = vunpack.c.l.b16 %v215
  %v791 = vunpack.c.l.b16 %v216
  %v792 = vunpack.c.l.b16 %v217
  %v793 = vunpack.c.l.b16 %v218
  %v794 = vunpack.c.l.b16 %v219
  %v795 = vunpack.c.l.b16 %v220
  %v796 = vunpack.c.l.b16 %v221
  %v797 = vunpack.c.l.b16 %v222
  %v798 = vunpack.c.l.b16 %v223
  %v799 = vunpack.c.l.b16 %v224
  %v800 = vunpack.c.l.b16 %v225
  %v801 = vunpack.c.l.b16 %v226
  %v802 = vunpack.c.l.b16 %v227
  %v803 = vunpack.c.l.b16 %v228
  %v804 = vunpack.c.l.b16 %v229
  %v805 = vunpack.c.l.b16 %v230
  %v806 = vunpack.c.l.b16 %v231
  %v807 = vunpack.c.l.b16 %v232
  %v808 = vunpack.c.l.b16 %v233
  %v809 = vunpack.c.l.b16 %v234
  %v810 = vunpack.c.l.b16 %v235
  %v811 = vunpack.c.l.b16 %v236
  %v812 = vunpack.c.l.b16 %v237
  %v813 = vunpack.c.l.b16 %v238
  %v814 = vunpack.c.l.b16 %v239
  %v815 = vunpack.c.l.b16 %v240
  %v816 = vunpack.c.l.b16 %v241
  %v817 = vunpack.c.l.b16 %v242
  %v818 = vunpack.c.l.b16 %v243
  %v819 = vunpack.c.l.b16 %v244
  %v820 = vunpack.c.l.b16 %v245
  %v821 = vunpack.c.l.b16 %v246
  %v822 = vunpack.c.l.b16 %v247
  %v823 = vunpack.c.l.b16 %v248
  %v824 = vunpack.c.l.b16 %v249
  %v825 = vunpack.c.l.b16 %v250
  %v826 = vunpack.c.l.b16 %v251
  %v827 = vunpack.c.l.b16 %v252
  %v828 = vunpack.c.l.b16 %v253
  %v829 = vunpack.c.l.b16 %v254
  %v830 = vunpack.c.l.b16 %v255
  %v831 = vunpack.c.l.b16 %v256
  %v832 = vunpack.c.l.b16 %v257
  %v833 = vunpack.c.l.b16 %v258
  %v834 = vunpack.c.l.b16 %v259
  %v835 = vunpack.c.l.b16 %v260
  %v836 = vunpack.c.l.b16 %v261
  %v837 = vunpack.c.l.b16 %v262
  %v838 = vunpack.c.l.b16 %v263
  %v839 = vunpack.c.l.b16 %v264
  %v840 = vunpack.c.l.b16 %v265
  %v841 = vunpack.c.l.b16 %v266
  %v842 = vunpack.c.l.b16 %v267
  %v843 = vunpack.c.l.b16 %v268
  %v844 = vunpack.c.l.b16 %v269
  %v845 = vunpack.c.l.b16 %v270
  %v846 = vunpack.c.l.b16 %v271
  %v847 = vunpack.c.l.b16 %v272
  %v848 = vunpack.c.l.b16 %v273
  %v849 = vunpack.c.l.b16 %v274
  %v850 = vunpack.c.l.b16 %v275
  %v851 = vunpack.c.l.b16 %v276
  %v852 = vunpack.c.l.b16 %v277
  %v853 = vunpack.c.l.b16 %v278
  %v854 = vunpack.c.l.b16 %v279
  %v855 = vunpack.c.l.b16 %v280
  %v856 = vunpack.c.l.b16 %v281
  %v857 = vunpack.c.l.b16 %v282
  %v858 = vunpack.c.l.b16 %v283
  %v859 = vunpack.c.l.b16 %v284
  %v860 = vunpack.c.l.b16 %v285
  %v861 = vunpack.c.l.b16 %v286
  %v862 = vunpack.c.l.b16 %v287
  %v863 = vunpack.c.l.b16 %v288
  %v864 = vunpack.c.l.b16 %v289
  %v865 = vunpack.c.l.b16 %v290
  %v866 = vunpack.c.l.b16 %v291
  %v867 = vunpack.c.l.b16 %v292
  %v868 = vunpack.c.l.b16 %v293
  %v869 = vunpack.c.l.b16 %v294
  %v870 = vunpack.c.l.b16 %v295
  %v871 = vunpack.c.l.b16 %v296
  %v872 = vunpack.c.l.b16 %v297
  %v873 = vunpack.c.l.b16 %v298
  %v874 = vunpack.c.l.b16 %v299
  %v875 = vunpack.c.l.b16 %v300
  %v876 = vunpack.c.l.b16 %v301
  %v877 = vunpack.c.l.b16 %v302
  %v878 = vunpack.c.l.b16 %v303
  %v879 = vunpack.c.l.b16 %v304
  %v880 = vunpack.c.l.b16 %v305
  %v881 = vunpack.c.l.b16 %v306
  %v882 = vunpack.c.l.b16 %v307
  %v883 = vunpack.c.l.b16 %v308
  %v884 = vunpack.c.l.b16 %v309
  %v885 = vunpack.c.l.b16 %v310
  %v886 = vunpack.c.l.b16 %v311
  %v887 = vunpack.c.l.b16 %v312
  %v888 = vunpack.c.l.b16 %v313
  %v889 = vunpack.c.l.b16 %v314
  %v890 = vunpack.c.l.b16 %v315
  %v891 = vpack.c.b16 %v636, %v635
  %v892 = vpack.c.b16 %v638, %v637
  %v893 = vpack.c.b16 %v640, %v639
  %v894 = vpack.c.b16 %v642, %v641
  %v895 = vpack.c.b16 %v644, %v643
  %v896 = vpack.c.b16 %v646, %v645
  %v897 = vpack.c.b16 %v648, %v647
  %v898 = vpack.c.b16 %v650, %v649
  %v899 = vpack.c.b16 %v652, %v651
  %v900 = vpack.c.b16 %v654, %v653
  %v901 = vpack.c.b16 %v656, %v655
  %v902 = vpack.c.b16 %v658, %v657
  %v903 = vpack.c.b16 %v660, %v659
  %v904 = vpack.c.b16 %v662, %v661
  %v905 = vpack.c.b16 %v664, %v663
  %v906 = vpack.c.b16 %v666, %v665
  %v907 = vpack.c.b16 %v668, %v667
  %v908 = vpack.c.b16 %v670, %v669
  %v909 = vpack.c.b16 %v672, %v671
  %v910 = vpack.c.b16 %v674, %v673
  %v911 = vpack.c.b16 %v676, %v675
  %v912 = vpack.c.b16 %v678, %v677
  %v913 = vpack.c.b16 %v680, %v679
  %v914 = vpack.c.b16 %v682, %v681
  %v915 = vpack.c.b16 %v684, %v683
  %v916 = vpack.c.b16 %v686, %v685
  %v917 = vpack.c.b16 %v688, %v687
  %v918 = vpack.c.b16 %v690, %v689
  %v919 = vpack.c.b16 %v692, %v691
  %v920 = vpack.c.b16 %v694, %v693
  %v921 = vpack.c.b16 %v696, %v695
  %v922 = vpack.c.b16 %v698, %v697
  %v923 = vpack.c.b16 %v700, %v699
  %v924 = vpack.c.b16 %v702, %v701
  %v925 = vpack.c.b16 %v704, %v703
  %v926 = vpack.c.b16 %v706, %v705
  %v927 = vpack.c.b16 %v708, %v707
  %v928 = vpack.c.b16 %v710, %v709
  %v929 = vpack.c.b16 %v712, %v711
  %v930 = vpack.c.b16 %v714, %v713
  %v931 = vpack.c.b16 %v716, %v715
  %v932 = vpack.c.b16 %v718, %v717
  %v933 = vpack.c.b16 %v720, %v719
  %v934 = vpack.c.b16 %v722, %v721
  %v935 = vpack.c.b16 %v724, %v723
  %v936 = vpack.c.b16 %v726, %v725
  %v937 = vpack.c.b16 %v728, %v727
  %v938 = vpack.c.b16 %v730, %v729
  %v939 = vpack.c.b16 %v732, %v731
  %v940 = vpack.c.b16 %v734, %v733
  %v941 = vpack.c.b16 %v736, %v735
  %v942 = vpack.c.b16 %v738, %v737
  %v943 = vpack.c.b16 %v740, %v739
  %v944 = vpack.c.b16 %v742, %v741
  %v945 = vpack.c.b16 %v744, %v743
  %v946 = vpack.c.b16 %v746, %v745
  %v947 = vpack.c.b16 %v748, %v747
  %v948 = vpack.c.b16 %v750, %v749
  %v949 = vpack.c.b16 %v752, %v751
  %v950 = vpack.c.b16 %v754, %v753
  %v951 = vpack.c.b16 %v756, %v755
  %v952 = vpack.c.b16 %v758, %v757
  %v953 = vpack.c.b16 %v760, %v759
  %v954 = vpack.c.b16 %v762, %v761
  %v955 = vpack.c.b16 %v764, %v763
  %v956 = vpack.c.b16 %v766, %v765
  %v957 = vpack.c.b16 %v768, %v767
  %v958 = vpack.c.b16 %v770, %v769
  %v959 = vpack.c.b16 %v772, %v771
  %v960 = vpack.c.b16 %v774, %v773
  %v961 = vpack.c.b16 %v776, %v775
  %v962 = vpack.c.b16 %v778, %v777
  %v963 = vpack.c.b16 %v780, %v779
  %v964 = vpack.c.b16 %v782, %v781
  %v965 = vpack.c.b16 %v784, %v783
  %v966 = vpack.c.b16 %v786, %v785
  %v967 = vpack.c.b16 %v788, %v787
  %v968 = vpack.c.b16 %v790, %v789
  %v969 = vpack.c.b16 %v792, %v791
  %v970 = vpack.c.b16 %v794, %v793
  %v971 = vpack.c.b16 %v796, %v795
  %v972 = vpack.c.b16 %v798, %v797
  %v973 = vpack.c.b16 %v800, %v799
  %v974 = vpack.c.b16 %v802, %v801
  %v975 = vpack.c.b16 %v804, %v803
  %v976 = vpack.c.b16 %v806, %v805
  %v977 = vpack.c.b16 %v808, %v807
  %v978 = vpack.c.b16 %v810, %v809
  %v979 = vpack.c.b16 %v812, %v811
  %v980 = vpack.c.b16 %v814, %v813
  %v981 = vpack.c.b16 %v816, %v815
  %v982 = vpack.c.b16 %v818, %v817
  %v983 = vpack.c.b16 %v820, %v819
  %v984 = vpack.c.b16 %v822, %v821
  %v985 = vpack.c.b16 %v824, %v823
  %v986 = vpack.c.b16 %v826, %v825
  %v987 = vpack.c.b16 %v828, %v827
  %v988 = vpack.c.b16 %v830, %v829
  %v989 = vpack.c.b16 %v832, %v831
  %v990 = vpack.c.b16 %v834, %v833
  %v991 = vpack.c.b16 %v836, %v835
  %v992 = vpack.c.b16 %v838, %v837
  %v993 = vpack.c.b16 %v840, %v839
  %v994 = vpack.c.b16 %v842, %v841
  %v995 = vpack.c.b16 %v844, %v843
  %v996 = vpack.c.b16 %v846, %v845
  %v997 = vpack.c.b16 %v848, %v847
  %v998 = vpack.c.b16 %v850, %v849
  %v999 = vpack.c.b16 %v852, %v851
  %v1000 = vpack.c.b16 %v854, %v853
  %v1001 = vpack.c.b16 %v856, %v855
  %v1002 = vpack.c.b16 %v858, %v857
  %v1003 = vpack.c.b16 %v860, %v859
  %v1004 = vpack.c.b16 %v862, %v861
  %v1005 = vpack.c.b16 %v864, %v863
  %v1006 = vpack.c.b16 %v866, %v865
  %v1007 = vpack.c.b16 %v868, %v867
  %v1008 = vpack.c.b16 %v870, %v869
  %v1009 = vpack.c.b16 %v872, %v871
  %v1010 = vpack.c.b16 %v874, %v873
  %v1011 = vpack.c.b16 %v876, %v875
  %v1012 = vpack.c.b16 %v878, %v877
  %v1013 = vpack.c.b16 %v880, %v879
  %v1014 = vpack.c.b16 %v882, %v881
  %v1015 = vpack.c.b16 %v884, %v883
  %v1016 = vpack.c.b16 %v886, %v885
  %v1017 = vpack.c.b16 %v888, %v887
  %v1018 = vpack.c.b16 %v890, %v889
  %1147 = vmatprep.subr.bf16.mxu0 0
  %1148 = vmatpush1.bf16.msra.mxu0 %v898
  %1149 = vmatprep.subr.bf16.mxu0 0
  %1150 = vmatpush1.bf16.msra.mxu0 %v897
  %1151 = vmatprep.subr.bf16.mxu0 0
  %1152 = vmatpush1.bf16.msra.mxu0 %v896
  %1153 = vmatprep.subr.bf16.mxu0 0
  %1154 = vmatpush1.bf16.msra.mxu0 %v895
  %1155 = vmatprep.subr.bf16.mxu0 0
  %1156 = vmatpush1.bf16.msra.mxu0 %v894
  %1157 = vmatprep.subr.bf16.mxu0 0
  %1158 = vmatpush1.bf16.msra.mxu0 %v893
  %1159 = vmatprep.subr.bf16.mxu0 0
  %1160 = vmatpush1.bf16.msra.mxu0 %v892
  %1161 = vmatprep.subr.bf16.mxu0 0
  %1162 = vmatpush1.bf16.msra.mxu0 %v891
  %1163 = vmatprep.subr.bf16.mxu0 0
  %1164 = vmatpush2.bf16.msra.mxu0 %v906
  %1165 = vmatprep.subr.bf16.mxu0 0
  %1166 = vmatpush2.bf16.msra.mxu0 %v905
  %1167 = vmatprep.subr.bf16.mxu0 0
  %1168 = vmatpush2.bf16.msra.mxu0 %v904
  %1169 = vmatprep.subr.bf16.mxu0 0
  %1170 = vmatpush2.bf16.msra.mxu0 %v903
  %1171 = vmatprep.subr.bf16.mxu0 0
  %1172 = vmatpush2.bf16.msra.mxu0 %v902
  %1173 = vmatprep.subr.bf16.mxu0 0
  %1174 = vmatpush2.bf16.msra.mxu0 %v901
  %1175 = vmatprep.subr.bf16.mxu0 0
  %1176 = vmatpush2.bf16.msra.mxu0 %v900
  %1177 = vmatprep.subr.bf16.mxu0 0
  %1178 = vmatpush2.bf16.msra.mxu0 %v899
  %1179 = vmatprep.mubr.bf16.mxu0 %v348
  %1180 = vmatmul.mubr.bf16.gmra.mxu0 %v347
  %v1181 = vpop.f32.mrf.mxu0
  %v1182 = vadd.f32 %v321, %v1181
  %v1183 = vpop.f32.mrf.mxu0
  %v1184 = vpop.f32.mrf.mxu0
  %v1185 = vpop.f32.mrf.mxu0
  %1186 = vdwg.mxu0
  %1187 = vmatprep.subr.bf16.mxu0 0
  %1188 = vmatpush1.bf16.msra.mxu0 %v914
  %1189 = vmatprep.subr.bf16.mxu0 0
  %1190 = vmatpush1.bf16.msra.mxu0 %v913
  %1191 = vmatprep.subr.bf16.mxu0 0
  %1192 = vmatpush1.bf16.msra.mxu0 %v912
  %1193 = vmatprep.subr.bf16.mxu0 0
  %1194 = vmatpush1.bf16.msra.mxu0 %v911
  %1195 = vmatprep.subr.bf16.mxu0 0
  %1196 = vmatpush1.bf16.msra.mxu0 %v910
  %1197 = vmatprep.subr.bf16.mxu0 0
  %1198 = vmatpush1.bf16.msra.mxu0 %v909
  %1199 = vmatprep.subr.bf16.mxu0 0
  %1200 = vmatpush1.bf16.msra.mxu0 %v908
  %1201 = vmatprep.subr.bf16.mxu0 0
  %1202 = vmatpush1.bf16.msra.mxu0 %v907
  %1203 = vmatprep.subr.bf16.mxu0 0
  %1204 = vmatpush2.bf16.msra.mxu0 %v922
  %1205 = vmatprep.subr.bf16.mxu0 0
  %1206 = vmatpush2.bf16.msra.mxu0 %v921
  %1207 = vmatprep.subr.bf16.mxu0 0
  %1208 = vmatpush2.bf16.msra.mxu0 %v920
  %1209 = vmatprep.subr.bf16.mxu0 0
  %1210 = vmatpush2.bf16.msra.mxu0 %v919
  %1211 = vmatprep.subr.bf16.mxu0 0
  %1212 = vmatpush2.bf16.msra.mxu0 %v918
  %1213 = vmatprep.subr.bf16.mxu0 0
  %1214 = vmatpush2.bf16.msra.mxu0 %v917
  %1215 = vmatprep.subr.bf16.mxu0 0
  %1216 = vmatpush2.bf16.msra.mxu0 %v916
  %1217 = vmatprep.subr.bf16.mxu0 0
  %1218 = vmatpush2.bf16.msra.mxu0 %v915
  %1219 = vmatprep.mubr.bf16.mxu0 %v350
  %1220 = vmatmul.mubr.bf16.gmra.mxu0 %v349
  %v1221 = vpop.f32.mrf.mxu0
  %v1222 = vadd.f32 %v1182, %v1221
  %v1223 = vpop.f32.mrf.mxu0
  %v1224 = vpop.f32.mrf.mxu0
  %v1225 = vpop.f32.mrf.mxu0
  %1226 = vdwg.mxu0
  %1227 = vmatprep.subr.bf16.mxu0 0
  %1228 = vmatpush1.bf16.msra.mxu0 %v930
  %1229 = vmatprep.subr.bf16.mxu0 0
  %1230 = vmatpush1.bf16.msra.mxu0 %v929
  %1231 = vmatprep.subr.bf16.mxu0 0
  %1232 = vmatpush1.bf16.msra.mxu0 %v928
  %1233 = vmatprep.subr.bf16.mxu0 0
  %1234 = vmatpush1.bf16.msra.mxu0 %v927
  %1235 = vmatprep.subr.bf16.mxu0 0
  %1236 = vmatpush1.bf16.msra.mxu0 %v926
  %1237 = vmatprep.subr.bf16.mxu0 0
  %1238 = vmatpush1.bf16.msra.mxu0 %v925
  %1239 = vmatprep.subr.bf16.mxu0 0
  %1240 = vmatpush1.bf16.msra.mxu0 %v924
  %1241 = vmatprep.subr.bf16.mxu0 0
  %1242 = vmatpush1.bf16.msra.mxu0 %v923
  %1243 = vmatprep.subr.bf16.mxu0 0
  %1244 = vmatpush2.bf16.msra.mxu0 %v938
  %1245 = vmatprep.subr.bf16.mxu0 0
  %1246 = vmatpush2.bf16.msra.mxu0 %v937
  %1247 = vmatprep.subr.bf16.mxu0 0
  %1248 = vmatpush2.bf16.msra.mxu0 %v936
  %1249 = vmatprep.subr.bf16.mxu0 0
  %1250 = vmatpush2.bf16.msra.mxu0 %v935
  %1251 = vmatprep.subr.bf16.mxu0 0
  %1252 = vmatpush2.bf16.msra.mxu0 %v934
  %1253 = vmatprep.subr.bf16.mxu0 0
  %1254 = vmatpush2.bf16.msra.mxu0 %v933
  %1255 = vmatprep.subr.bf16.mxu0 0
  %1256 = vmatpush2.bf16.msra.mxu0 %v932
  %1257 = vmatprep.subr.bf16.mxu0 0
  %1258 = vmatpush2.bf16.msra.mxu0 %v931
  %1259 = vmatprep.mubr.bf16.mxu0 %v352
  %1260 = vmatmul.mubr.bf16.gmra.mxu0 %v351
  %v1261 = vpop.f32.mrf.mxu0
  %v1262 = vadd.f32 %v1222, %v1261
  %v1263 = vpop.f32.mrf.mxu0
  %v1264 = vpop.f32.mrf.mxu0
  %v1265 = vpop.f32.mrf.mxu0
  %1266 = vdwg.mxu0
  %1267 = vmatprep.subr.bf16.mxu0 0
  %1268 = vmatpush1.bf16.msra.mxu0 %v946
  %1269 = vmatprep.subr.bf16.mxu0 0
  %1270 = vmatpush1.bf16.msra.mxu0 %v945
  %1271 = vmatprep.subr.bf16.mxu0 0
  %1272 = vmatpush1.bf16.msra.mxu0 %v944
  %1273 = vmatprep.subr.bf16.mxu0 0
  %1274 = vmatpush1.bf16.msra.mxu0 %v943
  %1275 = vmatprep.subr.bf16.mxu0 0
  %1276 = vmatpush1.bf16.msra.mxu0 %v942
  %1277 = vmatprep.subr.bf16.mxu0 0
  %1278 = vmatpush1.bf16.msra.mxu0 %v941
  %1279 = vmatprep.subr.bf16.mxu0 0
  %1280 = vmatpush1.bf16.msra.mxu0 %v940
  %1281 = vmatprep.subr.bf16.mxu0 0
  %1282 = vmatpush1.bf16.msra.mxu0 %v939
  %1283 = vmatprep.subr.bf16.mxu0 0
  %1284 = vmatpush2.bf16.msra.mxu0 %v954
  %1285 = vmatprep.subr.bf16.mxu0 0
  %1286 = vmatpush2.bf16.msra.mxu0 %v953
  %1287 = vmatprep.subr.bf16.mxu0 0
  %1288 = vmatpush2.bf16.msra.mxu0 %v952
  %1289 = vmatprep.subr.bf16.mxu0 0
  %1290 = vmatpush2.bf16.msra.mxu0 %v951
  %1291 = vmatprep.subr.bf16.mxu0 0
  %1292 = vmatpush2.bf16.msra.mxu0 %v950
  %1293 = vmatprep.subr.bf16.mxu0 0
  %1294 = vmatpush2.bf16.msra.mxu0 %v949
  %1295 = vmatprep.subr.bf16.mxu0 0
  %1296 = vmatpush2.bf16.msra.mxu0 %v948
  %1297 = vmatprep.subr.bf16.mxu0 0
  %1298 = vmatpush2.bf16.msra.mxu0 %v947
  %1299 = vmatprep.mubr.bf16.mxu0 %v354
  %1300 = vmatmul.mubr.bf16.gmra.mxu0 %v353
  %v1301 = vpop.f32.mrf.mxu0
  %v1302 = vadd.f32 %v1262, %v1301
  %v1303 = vpop.f32.mrf.mxu0
  %v1304 = vpop.f32.mrf.mxu0
  %v1305 = vpop.f32.mrf.mxu0
  %1306 = vdwg.mxu0
  %1307 = vmatprep.subr.bf16.mxu0 0
  %1308 = vmatpush1.bf16.msra.mxu0 %v962
  %1309 = vmatprep.subr.bf16.mxu0 0
  %1310 = vmatpush1.bf16.msra.mxu0 %v961
  %1311 = vmatprep.subr.bf16.mxu0 0
  %1312 = vmatpush1.bf16.msra.mxu0 %v960
  %1313 = vmatprep.subr.bf16.mxu0 0
  %1314 = vmatpush1.bf16.msra.mxu0 %v959
  %1315 = vmatprep.subr.bf16.mxu0 0
  %1316 = vmatpush1.bf16.msra.mxu0 %v958
  %1317 = vmatprep.subr.bf16.mxu0 0
  %1318 = vmatpush1.bf16.msra.mxu0 %v957
  %1319 = vmatprep.subr.bf16.mxu0 0
  %1320 = vmatpush1.bf16.msra.mxu0 %v956
  %1321 = vmatprep.subr.bf16.mxu0 0
  %1322 = vmatpush1.bf16.msra.mxu0 %v955
  %1323 = vmatprep.subr.bf16.mxu0 0
  %1324 = vmatpush2.bf16.msra.mxu0 %v970
  %1325 = vmatprep.subr.bf16.mxu0 0
  %1326 = vmatpush2.bf16.msra.mxu0 %v969
  %1327 = vmatprep.subr.bf16.mxu0 0
  %1328 = vmatpush2.bf16.msra.mxu0 %v968
  %1329 = vmatprep.subr.bf16.mxu0 0
  %1330 = vmatpush2.bf16.msra.mxu0 %v967
  %1331 = vmatprep.subr.bf16.mxu0 0
  %1332 = vmatpush2.bf16.msra.mxu0 %v966
  %1333 = vmatprep.subr.bf16.mxu0 0
  %1334 = vmatpush2.bf16.msra.mxu0 %v965
  %1335 = vmatprep.subr.bf16.mxu0 0
  %1336 = vmatpush2.bf16.msra.mxu0 %v964
  %1337 = vmatprep.subr.bf16.mxu0 0
  %1338 = vmatpush2.bf16.msra.mxu0 %v963
  %1339 = vmatprep.mubr.bf16.mxu0 %v356
  %1340 = vmatmul.mubr.bf16.gmra.mxu0 %v355
  %v1341 = vpop.f32.mrf.mxu0
  %v1342 = vadd.f32 %v1302, %v1341
  %v1343 = vpop.f32.mrf.mxu0
  %v1344 = vpop.f32.mrf.mxu0
  %v1345 = vpop.f32.mrf.mxu0
  %1346 = vdwg.mxu0
  %1347 = vmatprep.subr.bf16.mxu0 0
  %1348 = vmatpush1.bf16.msra.mxu0 %v978
  %1349 = vmatprep.subr.bf16.mxu0 0
  %1350 = vmatpush1.bf16.msra.mxu0 %v977
  %1351 = vmatprep.subr.bf16.mxu0 0
  %1352 = vmatpush1.bf16.msra.mxu0 %v976
  %1353 = vmatprep.subr.bf16.mxu0 0
  %1354 = vmatpush1.bf16.msra.mxu0 %v975
  %1355 = vmatprep.subr.bf16.mxu0 0
  %1356 = vmatpush1.bf16.msra.mxu0 %v974
  %1357 = vmatprep.subr.bf16.mxu0 0
  %1358 = vmatpush1.bf16.msra.mxu0 %v973
  %1359 = vmatprep.subr.bf16.mxu0 0
  %1360 = vmatpush1.bf16.msra.mxu0 %v972
  %1361 = vmatprep.subr.bf16.mxu0 0
  %1362 = vmatpush1.bf16.msra.mxu0 %v971
  %1363 = vmatprep.subr.bf16.mxu0 0
  %1364 = vmatpush2.bf16.msra.mxu0 %v986
  %1365 = vmatprep.subr.bf16.mxu0 0
  %1366 = vmatpush2.bf16.msra.mxu0 %v985
  %1367 = vmatprep.subr.bf16.mxu0 0
  %1368 = vmatpush2.bf16.msra.mxu0 %v984
  %1369 = vmatprep.subr.bf16.mxu0 0
  %1370 = vmatpush2.bf16.msra.mxu0 %v983
  %1371 = vmatprep.subr.bf16.mxu0 0
  %1372 = vmatpush2.bf16.msra.mxu0 %v982
  %1373 = vmatprep.subr.bf16.mxu0 0
  %1374 = vmatpush2.bf16.msra.mxu0 %v981
  %1375 = vmatprep.subr.bf16.mxu0 0
  %1376 = vmatpush2.bf16.msra.mxu0 %v980
  %1377 = vmatprep.subr.bf16.mxu0 0
  %1378 = vmatpush2.bf16.msra.mxu0 %v979
  %1379 = vmatprep.mubr.bf16.mxu0 %v358
  %1380 = vmatmul.mubr.bf16.gmra.mxu0 %v357
  %v1381 = vpop.f32.mrf.mxu0
  %v1382 = vadd.f32 %v1342, %v1381
  %v1383 = vpop.f32.mrf.mxu0
  %v1384 = vpop.f32.mrf.mxu0
  %v1385 = vpop.f32.mrf.mxu0
  %1386 = vdwg.mxu0
  %1387 = vmatprep.subr.bf16.mxu0 0
  %1388 = vmatpush1.bf16.msra.mxu0 %v994
  %1389 = vmatprep.subr.bf16.mxu0 0
  %1390 = vmatpush1.bf16.msra.mxu0 %v993
  %1391 = vmatprep.subr.bf16.mxu0 0
  %1392 = vmatpush1.bf16.msra.mxu0 %v992
  %1393 = vmatprep.subr.bf16.mxu0 0
  %1394 = vmatpush1.bf16.msra.mxu0 %v991
  %1395 = vmatprep.subr.bf16.mxu0 0
  %1396 = vmatpush1.bf16.msra.mxu0 %v990
  %1397 = vmatprep.subr.bf16.mxu0 0
  %1398 = vmatpush1.bf16.msra.mxu0 %v989
  %1399 = vmatprep.subr.bf16.mxu0 0
  %1400 = vmatpush1.bf16.msra.mxu0 %v988
  %1401 = vmatprep.subr.bf16.mxu0 0
  %1402 = vmatpush1.bf16.msra.mxu0 %v987
  %1403 = vmatprep.subr.bf16.mxu0 0
  %1404 = vmatpush2.bf16.msra.mxu0 %v1002
  %1405 = vmatprep.subr.bf16.mxu0 0
  %1406 = vmatpush2.bf16.msra.mxu0 %v1001
  %1407 = vmatprep.subr.bf16.mxu0 0
  %1408 = vmatpush2.bf16.msra.mxu0 %v1000
  %1409 = vmatprep.subr.bf16.mxu0 0
  %1410 = vmatpush2.bf16.msra.mxu0 %v999
  %1411 = vmatprep.subr.bf16.mxu0 0
  %1412 = vmatpush2.bf16.msra.mxu0 %v998
  %1413 = vmatprep.subr.bf16.mxu0 0
  %1414 = vmatpush2.bf16.msra.mxu0 %v997
  %1415 = vmatprep.subr.bf16.mxu0 0
  %1416 = vmatpush2.bf16.msra.mxu0 %v996
  %1417 = vmatprep.subr.bf16.mxu0 0
  %1418 = vmatpush2.bf16.msra.mxu0 %v995
  %1419 = vmatprep.mubr.bf16.mxu0 %v360
  %1420 = vmatmul.mubr.bf16.gmra.mxu0 %v359
  %v1421 = vpop.f32.mrf.mxu0
  %v1422 = vadd.f32 %v1382, %v1421
  %v1423 = vpop.f32.mrf.mxu0
  %v1424 = vpop.f32.mrf.mxu0
  %v1425 = vpop.f32.mrf.mxu0
  %1426 = vdwg.mxu0
  %1427 = vmatprep.subr.bf16.mxu0 0
  %1428 = vmatpush1.bf16.msra.mxu0 %v1010
  %1429 = vmatprep.subr.bf16.mxu0 0
  %1430 = vmatpush1.bf16.msra.mxu0 %v1009
  %1431 = vmatprep.subr.bf16.mxu0 0
  %1432 = vmatpush1.bf16.msra.mxu0 %v1008
  %1433 = vmatprep.subr.bf16.mxu0 0
  %1434 = vmatpush1.bf16.msra.mxu0 %v1007
  %1435 = vmatprep.subr.bf16.mxu0 0
  %1436 = vmatpush1.bf16.msra.mxu0 %v1006
  %1437 = vmatprep.subr.bf16.mxu0 0
  %1438 = vmatpush1.bf16.msra.mxu0 %v1005
  %1439 = vmatprep.subr.bf16.mxu0 0
  %1440 = vmatpush1.bf16.msra.mxu0 %v1004
  %1441 = vmatprep.subr.bf16.mxu0 0
  %1442 = vmatpush1.bf16.msra.mxu0 %v1003
  %1443 = vmatprep.subr.bf16.mxu0 0
  %1444 = vmatpush2.bf16.msra.mxu0 %v1018
  %1445 = vmatprep.subr.bf16.mxu0 0
  %1446 = vmatpush2.bf16.msra.mxu0 %v1017
  %1447 = vmatprep.subr.bf16.mxu0 0
  %1448 = vmatpush2.bf16.msra.mxu0 %v1016
  %1449 = vmatprep.subr.bf16.mxu0 0
  %1450 = vmatpush2.bf16.msra.mxu0 %v1015
  %1451 = vmatprep.subr.bf16.mxu0 0
  %1452 = vmatpush2.bf16.msra.mxu0 %v1014
  %1453 = vmatprep.subr.bf16.mxu0 0
  %1454 = vmatpush2.bf16.msra.mxu0 %v1013
  %1455 = vmatprep.subr.bf16.mxu0 0
  %1456 = vmatpush2.bf16.msra.mxu0 %v1012
  %1457 = vmatprep.subr.bf16.mxu0 0
  %1458 = vmatpush2.bf16.msra.mxu0 %v1011
  %1459 = vmatprep.mubr.bf16.mxu0 %v362
  %1460 = vmatmul.mubr.bf16.gmra.mxu0 %v361
  %v1461 = vpop.f32.mrf.mxu0
  %v1462 = vadd.f32 %v1422, %v1461
  %v1463 = vpop.f32.mrf.mxu0
  %v1464 = vpop.f32.mrf.mxu0
  %v1465 = vpop.f32.mrf.mxu0
  %1466 = vdwg.mxu0
  %v1467 = vmax.f32 %v1462, 0.0
  %v1468 = vpack.c.bf16 %v1467, %v1467
  %v1469 = vld [vmem:[%s4] sm:$0xff]
  %v1470 = vld [vmem:[%s4 + $0x8] sm:$0xff]
  %v1471 = vld [vmem:[%s4 + $0x10] sm:$0xff]
  %v1472 = vld [vmem:[%s4 + $0x18] sm:$0xff]
  %v1473 = vld [vmem:[%s4 + $0x20] sm:$0xff]
  %v1474 = vld [vmem:[%s4 + $0x28] sm:$0xff]
  %v1475 = vld [vmem:[%s4 + $0x30] sm:$0xff]
  %v1476 = vld [vmem:[%s4 + $0x38] sm:$0xff]
  %v1477 = vld [vmem:[%s4 + $0x40] sm:$0xff]
  %v1478 = vld [vmem:[%s4 + $0x48] sm:$0xff]
  %v1479 = vld [vmem:[%s4 + $0x50] sm:$0xff]
  %v1480 = vld [vmem:[%s4 + $0x58] sm:$0xff]
  %v1481 = vld [vmem:[%s4 + $0x60] sm:$0xff]
  %v1482 = vld [vmem:[%s4 + $0x68] sm:$0xff]
  %v1483 = vld [vmem:[%s4 + $0x70] sm:$0xff]
  %v1484 = vld [vmem:[%s4 + $0x78] sm:$0xff]
  %v1485 = vld [vmem:[%s5] sm:$0x3]
  %v1487 = vlaneseq
  %v1488 = vshrl.u32 %v1487, 7
  %v1489 = vsub.s32 0, %v1488
  %v1490 = vrot.slane %v1485, %v1489
  %v1491 = vlaneseq
  %v1492 = vshrl.u32 %v1491, 7
  %v1493 = vsub.s32 1, %v1492
  %v1494 = vrot.slane %v1485, %v1493
  %v1513 = vunpack.c.l.b16 %v1469
  %v1514 = vunpack.c.h.b16 %v1469
  %v1515 = vunpack.c.l.b16 %v1470
  %v1516 = vunpack.c.h.b16 %v1470
  %v1517 = vunpack.c.l.b16 %v1471
  %v1518 = vunpack.c.h.b16 %v1471
  %v1519 = vunpack.c.l.b16 %v1472
  %v1520 = vunpack.c.h.b16 %v1472
  %v1521 = vunpack.c.l.b16 %v1473
  %v1522 = vunpack.c.h.b16 %v1473
  %v1523 = vunpack.c.l.b16 %v1474
  %v1524 = vunpack.c.h.b16 %v1474
  %v1525 = vunpack.c.l.b16 %v1475
  %v1526 = vunpack.c.h.b16 %v1475
  %v1527 = vunpack.c.l.b16 %v1476
  %v1528 = vunpack.c.h.b16 %v1476
  %v1529 = vunpack.c.l.b16 %v1477
  %v1530 = vunpack.c.h.b16 %v1477
  %v1531 = vunpack.c.l.b16 %v1478
  %v1532 = vunpack.c.h.b16 %v1478
  %v1533 = vunpack.c.l.b16 %v1479
  %v1534 = vunpack.c.h.b16 %v1479
  %v1535 = vunpack.c.l.b16 %v1480
  %v1536 = vunpack.c.h.b16 %v1480
  %v1537 = vunpack.c.l.b16 %v1481
  %v1538 = vunpack.c.h.b16 %v1481
  %v1539 = vunpack.c.l.b16 %v1482
  %v1540 = vunpack.c.h.b16 %v1482
  %v1541 = vunpack.c.l.b16 %v1483
  %v1542 = vunpack.c.h.b16 %v1483
  %v1543 = vunpack.c.l.b16 %v1484
  %v1544 = vunpack.c.h.b16 %v1484
  %v1545 = vpack.c.b16 %v1515, %v1513
  %v1546 = vpack.c.b16 %v1516, %v1514
  %v1547 = vpack.c.b16 %v1519, %v1517
  %v1548 = vpack.c.b16 %v1520, %v1518
  %v1549 = vpack.c.b16 %v1523, %v1521
  %v1550 = vpack.c.b16 %v1524, %v1522
  %v1551 = vpack.c.b16 %v1527, %v1525
  %v1552 = vpack.c.b16 %v1528, %v1526
  %v1553 = vpack.c.b16 %v1531, %v1529
  %v1554 = vpack.c.b16 %v1532, %v1530
  %v1555 = vpack.c.b16 %v1535, %v1533
  %v1556 = vpack.c.b16 %v1536, %v1534
  %v1557 = vpack.c.b16 %v1539, %v1537
  %v1558 = vpack.c.b16 %v1540, %v1538
  %v1559 = vpack.c.b16 %v1543, %v1541
  %v1560 = vpack.c.b16 %v1544, %v1542
  %1577 = vmatprep.subr.bf16.mxu0 %v1560
  %1578 = vmatpush1.bf16.msra.mxu0 %v1559
  %1579 = vmatprep.subr.bf16.mxu0 %v1558
  %1580 = vmatpush1.bf16.msra.mxu0 %v1557
  %1581 = vmatprep.subr.bf16.mxu0 %v1556
  %1582 = vmatpush1.bf16.msra.mxu0 %v1555
  %1583 = vmatprep.subr.bf16.mxu0 %v1554
  %1584 = vmatpush1.bf16.msra.mxu0 %v1553
  %1585 = vmatprep.subr.bf16.mxu0 %v1552
  %1586 = vmatpush1.bf16.msra.mxu0 %v1551
  %1587 = vmatprep.subr.bf16.mxu0 %v1550
  %1588 = vmatpush1.bf16.msra.mxu0 %v1549
  %1589 = vmatprep.subr.bf16.mxu0 %v1548
  %1590 = vmatpush1.bf16.msra.mxu0 %v1547
  %1591 = vmatprep.subr.bf16.mxu0 %v1546
  %1592 = vmatpush1.bf16.msra.mxu0 %v1545
  %1593 = vmatprep.subr.bf16.mxu0 0
  %1594 = vmatpush2.bf16.msra.mxu0 0
  %1595 = vmatprep.subr.bf16.mxu0 0
  %1596 = vmatpush2.bf16.msra.mxu0 0
  %1597 = vmatprep.subr.bf16.mxu0 0
  %1598 = vmatpush2.bf16.msra.mxu0 0
  %1599 = vmatprep.subr.bf16.mxu0 0
  %1600 = vmatpush2.bf16.msra.mxu0 0
  %1601 = vmatprep.subr.bf16.mxu0 0
  %1602 = vmatpush2.bf16.msra.mxu0 0
  %1603 = vmatprep.subr.bf16.mxu0 0
  %1604 = vmatpush2.bf16.msra.mxu0 0
  %1605 = vmatprep.subr.bf16.mxu0 0
  %1606 = vmatpush2.bf16.msra.mxu0 0
  %1607 = vmatprep.subr.bf16.mxu0 0
  %1608 = vmatpush2.bf16.msra.mxu0 0
  %1609 = vmatprep.mubr.bf16.mxu0 0
  %1610 = vmatmul.mubr.bf16.gmra.mxu0 %v1468
  %v1611 = vpop.f32.mrf.mxu0
  %v1612 = vadd.f32 %v1490, %v1611
  %v1613 = vpop.f32.mrf.mxu0
  %v1614 = vadd.f32 %v1494, %v1613
  %v1615 = vpop.f32.mrf.mxu0
  %v1616 = vpop.f32.mrf.mxu0
  %1617 = vdwg.mxu0
  %1618 = vst [vmem:[%s14] sm:$0xff] %v1612
  %1619 = vst [vmem:[%s15] sm:$0xff] %v1614
  %v1620 = vld [vmem:[%s1] sm:$0xff]
  %v1621 = vmul.f32 %v1614, 0.5
  %v1622 = vmul.f32 %v1621, 1.442695
  %v1623 = vpow.pop %v1622
  %v1624 = vmul.f32 %v1620, %v1623
  %v1625 = vadd.f32 %v1612, %v1624
  %v1626 = vpack.c.bf16 %v1625, %v1625
  %v1627 = vld [vmem:[%s6] sm:$0xf]
  %v1628 = vld [vmem:[%s6 + $0x4] sm:$0xf]
  %v1629 = vld [vmem:[%s6 + $0x8] sm:$0xf]
  %v1630 = vld [vmem:[%s6 + $0xc] sm:$0xf]
  %v1631 = vld [vmem:[%s6 + $0x10] sm:$0xf]
  %v1632 = vld [vmem:[%s6 + $0x14] sm:$0xf]
  %v1633 = vld [vmem:[%s6 + $0x18] sm:$0xf]
  %v1634 = vld [vmem:[%s6 + $0x1c] sm:$0xf]
  %v1635 = vld [vmem:[%s6 + $0x20] sm:$0xf]
  %v1636 = vld [vmem:[%s6 + $0x24] sm:$0xf]
  %v1637 = vld [vmem:[%s6 + $0x28] sm:$0xf]
  %v1638 = vld [vmem:[%s6 + $0x2c] sm:$0xf]
  %v1639 = vld [vmem:[%s6 + $0x30] sm:$0xf]
  %v1640 = vld [vmem:[%s6 + $0x34] sm:$0xf]
  %v1641 = vld [vmem:[%s6 + $0x38] sm:$0xf]
  %v1642 = vld [vmem:[%s6 + $0x3c] sm:$0xf]
  %v1643 = vld [vmem:[%s7] sm:$0x1]
  %v1645 = vlaneseq
  %v1646 = vshrl.u32 %v1645, 7
  %v1647 = vsub.s32 0, %v1646
  %v1648 = vrot.slane %v1643, %v1647
  %v1666 = vunpack.c.l.b16 %v1627
  %v1667 = vunpack.c.l.b16 %v1628
  %v1668 = vunpack.c.l.b16 %v1629
  %v1669 = vunpack.c.l.b16 %v1630
  %v1670 = vunpack.c.l.b16 %v1631
  %v1671 = vunpack.c.l.b16 %v1632
  %v1672 = vunpack.c.l.b16 %v1633
  %v1673 = vunpack.c.l.b16 %v1634
  %v1674 = vunpack.c.l.b16 %v1635
  %v1675 = vunpack.c.l.b16 %v1636
  %v1676 = vunpack.c.l.b16 %v1637
  %v1677 = vunpack.c.l.b16 %v1638
  %v1678 = vunpack.c.l.b16 %v1639
  %v1679 = vunpack.c.l.b16 %v1640
  %v1680 = vunpack.c.l.b16 %v1641
  %v1681 = vunpack.c.l.b16 %v1642
  %v1682 = vpack.c.b16 %v1667, %v1666
  %v1683 = vpack.c.b16 %v1669, %v1668
  %v1684 = vpack.c.b16 %v1671, %v1670
  %v1685 = vpack.c.b16 %v1673, %v1672
  %v1686 = vpack.c.b16 %v1675, %v1674
  %v1687 = vpack.c.b16 %v1677, %v1676
  %v1688 = vpack.c.b16 %v1679, %v1678
  %v1689 = vpack.c.b16 %v1681, %v1680
  %1698 = vmatprep.subr.bf16.mxu0 0
  %1699 = vmatpush1.bf16.msra.mxu0 %v1689
  %1700 = vmatprep.subr.bf16.mxu0 0
  %1701 = vmatpush1.bf16.msra.mxu0 %v1688
  %1702 = vmatprep.subr.bf16.mxu0 0
  %1703 = vmatpush1.bf16.msra.mxu0 %v1687
  %1704 = vmatprep.subr.bf16.mxu0 0
  %1705 = vmatpush1.bf16.msra.mxu0 %v1686
  %1706 = vmatprep.subr.bf16.mxu0 0
  %1707 = vmatpush1.bf16.msra.mxu0 %v1685
  %1708 = vmatprep.subr.bf16.mxu0 0
  %1709 = vmatpush1.bf16.msra.mxu0 %v1684
  %1710 = vmatprep.subr.bf16.mxu0 0
  %1711 = vmatpush1.bf16.msra.mxu0 %v1683
  %1712 = vmatprep.subr.bf16.mxu0 0
  %1713 = vmatpush1.bf16.msra.mxu0 %v1682
  %1714 = vmatprep.subr.bf16.mxu0 0
  %1715 = vmatpush2.bf16.msra.mxu0 0
  %1716 = vmatprep.subr.bf16.mxu0 0
  %1717 = vmatpush2.bf16.msra.mxu0 0
  %1718 = vmatprep.subr.bf16.mxu0 0
  %1719 = vmatpush2.bf16.msra.mxu0 0
  %1720 = vmatprep.subr.bf16.mxu0 0
  %1721 = vmatpush2.bf16.msra.mxu0 0
  %1722 = vmatprep.subr.bf16.mxu0 0
  %1723 = vmatpush2.bf16.msra.mxu0 0
  %1724 = vmatprep.subr.bf16.mxu0 0
  %1725 = vmatpush2.bf16.msra.mxu0 0
  %1726 = vmatprep.subr.bf16.mxu0 0
  %1727 = vmatpush2.bf16.msra.mxu0 0
  %1728 = vmatprep.subr.bf16.mxu0 0
  %1729 = vmatpush2.bf16.msra.mxu0 0
  %1730 = vmatprep.mubr.bf16.mxu0 0
  %1731 = vmatmul.mubr.bf16.gmra.mxu0 %v1626
  %v1732 = vpop.f32.mrf.mxu0
  %v1733 = vadd.f32 %v1648, %v1732
  %v1734 = vpop.f32.mrf.mxu0
  %v1735 = vpop.f32.mrf.mxu0
  %v1736 = vpop.f32.mrf.mxu0
  %1737 = vdwg.mxu0
  %v1738 = vmax.f32 %v1733, 0.0
  %v1739 = vpack.c.bf16 %v1738, %v1738
  %v1740 = vld [vmem:[%s8] sm:$0xff]
  %v1741 = vld [vmem:[%s8 + $0x8] sm:$0xff]
  %v1742 = vld [vmem:[%s8 + $0x10] sm:$0xff]
  %v1743 = vld [vmem:[%s8 + $0x18] sm:$0xff]
  %v1744 = vld [vmem:[%s8 + $0x20] sm:$0xff]
  %v1745 = vld [vmem:[%s8 + $0x28] sm:$0xff]
  %v1746 = vld [vmem:[%s8 + $0x30] sm:$0xf]
  %v1747 = vld [vmem:[%s8 + $0x34] sm:$0xff]
  %v1748 = vld [vmem:[%s8 + $0x3c] sm:$0xff]
  %v1749 = vld [vmem:[%s8 + $0x44] sm:$0xff]
  %v1750 = vld [vmem:[%s8 + $0x4c] sm:$0xff]
  %v1751 = vld [vmem:[%s8 + $0x54] sm:$0xff]
  %v1752 = vld [vmem:[%s8 + $0x5c] sm:$0xff]
  %v1753 = vld [vmem:[%s8 + $0x64] sm:$0xf]
  %v1754 = vld [vmem:[%s8 + $0x68] sm:$0xff]
  %v1755 = vld [vmem:[%s8 + $0x70] sm:$0xff]
  %v1756 = vld [vmem:[%s8 + $0x78] sm:$0xff]
  %v1757 = vld [vmem:[%s8 + $0x80] sm:$0xff]
  %v1758 = vld [vmem:[%s8 + $0x88] sm:$0xff]
  %v1759 = vld [vmem:[%s8 + $0x90] sm:$0xff]
  %v1760 = vld [vmem:[%s8 + $0x98] sm:$0xf]
  %v1761 = vld [vmem:[%s8 + $0x9c] sm:$0xff]
  %v1762 = vld [vmem:[%s8 + $0xa4] sm:$0xff]
  %v1763 = vld [vmem:[%s8 + $0xac] sm:$0xff]
  %v1764 = vld [vmem:[%s8 + $0xb4] sm:$0xff]
  %v1765 = vld [vmem:[%s8 + $0xbc] sm:$0xff]
  %v1766 = vld [vmem:[%s8 + $0xc4] sm:$0xff]
  %v1767 = vld [vmem:[%s8 + $0xcc] sm:$0xf]
  %v1768 = vld [vmem:[%s8 + $0xd0] sm:$0xff]
  %v1769 = vld [vmem:[%s8 + $0xd8] sm:$0xff]
  %v1770 = vld [vmem:[%s8 + $0xe0] sm:$0xff]
  %v1771 = vld [vmem:[%s8 + $0xe8] sm:$0xff]
  %v1772 = vld [vmem:[%s8 + $0xf0] sm:$0xff]
  %v1773 = vld [vmem:[%s8 + $0xf8] sm:$0xff]
  %v1774 = vld [vmem:[%s8 + $0x100] sm:$0xf]
  %v1775 = vld [vmem:[%s8 + $0x104] sm:$0xff]
  %v1776 = vld [vmem:[%s8 + $0x10c] sm:$0xff]
  %v1777 = vld [vmem:[%s8 + $0x114] sm:$0xff]
  %v1778 = vld [vmem:[%s8 + $0x11c] sm:$0xff]
  %v1779 = vld [vmem:[%s8 + $0x124] sm:$0xff]
  %v1780 = vld [vmem:[%s8 + $0x12c] sm:$0xff]
  %v1781 = vld [vmem:[%s8 + $0x134] sm:$0xf]
  %v1782 = vld [vmem:[%s8 + $0x138] sm:$0xff]
  %v1783 = vld [vmem:[%s8 + $0x140] sm:$0xff]
  %v1784 = vld [vmem:[%s8 + $0x148] sm:$0xff]
  %v1785 = vld [vmem:[%s8 + $0x150] sm:$0xff]
  %v1786 = vld [vmem:[%s8 + $0x158] sm:$0xff]
  %v1787 = vld [vmem:[%s8 + $0x160] sm:$0xff]
  %v1788 = vld [vmem:[%s8 + $0x168] sm:$0xf]
  %v1789 = vld [vmem:[%s8 + $0x16c] sm:$0xff]
  %v1790 = vld [vmem:[%s8 + $0x174] sm:$0xff]
  %v1791 = vld [vmem:[%s8 + $0x17c] sm:$0xff]
  %v1792 = vld [vmem:[%s8 + $0x184] sm:$0xff]
  %v1793 = vld [vmem:[%s8 + $0x18c] sm:$0xff]
  %v1794 = vld [vmem:[%s8 + $0x194] sm:$0xff]
  %v1795 = vld [vmem:[%s8 + $0x19c] sm:$0xf]
  %v1796 = vld [vmem:[%s8 + $0x1a0] sm:$0xff]
  %v1797 = vld [vmem:[%s8 + $0x1a8] sm:$0xff]
  %v1798 = vld [vmem:[%s8 + $0x1b0] sm:$0xff]
  %v1799 = vld [vmem:[%s8 + $0x1b8] sm:$0xff]
  %v1800 = vld [vmem:[%s8 + $0x1c0] sm:$0xff]
  %v1801 = vld [vmem:[%s8 + $0x1c8] sm:$0xff]
  %v1802 = vld [vmem:[%s8 + $0x1d0] sm:$0xf]
  %v1803 = vld [vmem:[%s8 + $0x1d4] sm:$0xff]
  %v1804 = vld [vmem:[%s8 + $0x1dc] sm:$0xff]
  %v1805 = vld [vmem:[%s8 + $0x1e4] sm:$0xff]
  %v1806 = vld [vmem:[%s8 + $0x1ec] sm:$0xff]
  %v1807 = vld [vmem:[%s8 + $0x1f4] sm:$0xff]
  %v1808 = vld [vmem:[%s8 + $0x1fc] sm:$0xff]
  %v1809 = vld [vmem:[%s8 + $0x204] sm:$0xf]
  %v1810 = vld [vmem:[%s8 + $0x208] sm:$0xff]
  %v1811 = vld [vmem:[%s8 + $0x210] sm:$0xff]
  %v1812 = vld [vmem:[%s8 + $0x218] sm:$0xff]
  %v1813 = vld [vmem:[%s8 + $0x220] sm:$0xff]
  %v1814 = vld [vmem:[%s8 + $0x228] sm:$0xff]
  %v1815 = vld [vmem:[%s8 + $0x230] sm:$0xff]
  %v1816 = vld [vmem:[%s8 + $0x238] sm:$0xf]
  %v1817 = vld [vmem:[%s8 + $0x23c] sm:$0xff]
  %v1818 = vld [vmem:[%s8 + $0x244] sm:$0xff]
  %v1819 = vld [vmem:[%s8 + $0x24c] sm:$0xff]
  %v1820 = vld [vmem:[%s8 + $0x254] sm:$0xff]
  %v1821 = vld [vmem:[%s8 + $0x25c] sm:$0xff]
  %v1822 = vld [vmem:[%s8 + $0x264] sm:$0xff]
  %v1823 = vld [vmem:[%s8 + $0x26c] sm:$0xf]
  %v1824 = vld [vmem:[%s8 + $0x270] sm:$0xff]
  %v1825 = vld [vmem:[%s8 + $0x278] sm:$0xff]
  %v1826 = vld [vmem:[%s8 + $0x280] sm:$0xff]
  %v1827 = vld [vmem:[%s8 + $0x288] sm:$0xff]
  %v1828 = vld [vmem:[%s8 + $0x290] sm:$0xff]
  %v1829 = vld [vmem:[%s8 + $0x298] sm:$0xff]
  %v1830 = vld [vmem:[%s8 + $0x2a0] sm:$0xf]
  %v1831 = vld [vmem:[%s8 + $0x2a4] sm:$0xff]
  %v1832 = vld [vmem:[%s8 + $0x2ac] sm:$0xff]
  %v1833 = vld [vmem:[%s8 + $0x2b4] sm:$0xff]
  %v1834 = vld [vmem:[%s8 + $0x2bc] sm:$0xff]
  %v1835 = vld [vmem:[%s8 + $0x2c4] sm:$0xff]
  %v1836 = vld [vmem:[%s8 + $0x2cc] sm:$0xff]
  %v1837 = vld [vmem:[%s8 + $0x2d4] sm:$0xf]
  %v1838 = vld [vmem:[%s8 + $0x2d8] sm:$0xff]
  %v1839 = vld [vmem:[%s8 + $0x2e0] sm:$0xff]
  %v1840 = vld [vmem:[%s8 + $0x2e8] sm:$0xff]
  %v1841 = vld [vmem:[%s8 + $0x2f0] sm:$0xff]
  %v1842 = vld [vmem:[%s8 + $0x2f8] sm:$0xff]
  %v1843 = vld [vmem:[%s8 + $0x300] sm:$0xff]
  %v1844 = vld [vmem:[%s8 + $0x308] sm:$0xf]
  %v1845 = vld [vmem:[%s8 + $0x30c] sm:$0xff]
  %v1846 = vld [vmem:[%s8 + $0x314] sm:$0xff]
  %v1847 = vld [vmem:[%s8 + $0x31c] sm:$0xff]
  %v1848 = vld [vmem:[%s8 + $0x324] sm:$0xff]
  %v1849 = vld [vmem:[%s8 + $0x32c] sm:$0xff]
  %v1850 = vld [vmem:[%s8 + $0x334] sm:$0xff]
  %v1851 = vld [vmem:[%s8 + $0x33c] sm:$0xf]
  %v1852 = vld [vmem:[%s9] sm:$0xff]
  %v1853 = vld [vmem:[%s9 + $0x8] sm:$0x1f]
  %v1856 = vlaneseq
  %v1857 = vshrl.u32 %v1856, 7
  %v1858 = vsub.s32 0, %v1857
  %v1859 = vrot.slane %v1852, %v1858
  %v1860 = vlaneseq
  %v1861 = vshrl.u32 %v1860, 7
  %v1862 = vsub.s32 1, %v1861
  %v1863 = vrot.slane %v1852, %v1862
  %v1864 = vlaneseq
  %v1865 = vshrl.u32 %v1864, 7
  %v1866 = vsub.s32 2, %v1865
  %v1867 = vrot.slane %v1852, %v1866
  %v1868 = vlaneseq
  %v1869 = vshrl.u32 %v1868, 7
  %v1870 = vsub.s32 3, %v1869
  %v1871 = vrot.slane %v1852, %v1870
  %v1872 = vlaneseq
  %v1873 = vshrl.u32 %v1872, 7
  %v1874 = vsub.s32 4, %v1873
  %v1875 = vrot.slane %v1852, %v1874
  %v1876 = vlaneseq
  %v1877 = vshrl.u32 %v1876, 7
  %v1878 = vsub.s32 5, %v1877
  %v1879 = vrot.slane %v1852, %v1878
  %v1880 = vlaneseq
  %v1881 = vshrl.u32 %v1880, 7
  %v1882 = vsub.s32 6, %v1881
  %v1883 = vrot.slane %v1852, %v1882
  %v1884 = vlaneseq
  %v1885 = vshrl.u32 %v1884, 7
  %v1886 = vsub.s32 7, %v1885
  %v1887 = vrot.slane %v1852, %v1886
  %v1888 = vlaneseq
  %v1889 = vshrl.u32 %v1888, 7
  %v1890 = vsub.s32 0, %v1889
  %v1891 = vrot.slane %v1853, %v1890
  %v1892 = vlaneseq
  %v1893 = vshrl.u32 %v1892, 7
  %v1894 = vsub.s32 1, %v1893
  %v1895 = vrot.slane %v1853, %v1894
  %v1896 = vlaneseq
  %v1897 = vshrl.u32 %v1896, 7
  %v1898 = vsub.s32 2, %v1897
  %v1899 = vrot.slane %v1853, %v1898
  %v1900 = vlaneseq
  %v1901 = vshrl.u32 %v1900, 7
  %v1902 = vsub.s32 3, %v1901
  %v1903 = vrot.slane %v1853, %v1902
  %v1904 = vlaneseq
  %v1905 = vshrl.u32 %v1904, 7
  %v1906 = vsub.s32 4, %v1905
  %v1907 = vrot.slane %v1853, %v1906
  %v2033 = vunpack.c.l.b16 %v1740
  %v2034 = vunpack.c.h.b16 %v1740
  %v2035 = vunpack.c.l.b16 %v1741
  %v2036 = vunpack.c.h.b16 %v1741
  %v2037 = vunpack.c.l.b16 %v1742
  %v2038 = vunpack.c.h.b16 %v1742
  %v2039 = vunpack.c.l.b16 %v1743
  %v2040 = vunpack.c.h.b16 %v1743
  %v2041 = vunpack.c.l.b16 %v1744
  %v2042 = vunpack.c.h.b16 %v1744
  %v2043 = vunpack.c.l.b16 %v1745
  %v2044 = vunpack.c.h.b16 %v1745
  %v2045 = vunpack.c.l.b16 %v1746
  %v2046 = vunpack.c.l.b16 %v1747
  %v2047 = vunpack.c.h.b16 %v1747
  %v2048 = vunpack.c.l.b16 %v1748
  %v2049 = vunpack.c.h.b16 %v1748
  %v2050 = vunpack.c.l.b16 %v1749
  %v2051 = vunpack.c.h.b16 %v1749
  %v2052 = vunpack.c.l.b16 %v1750
  %v2053 = vunpack.c.h.b16 %v1750
  %v2054 = vunpack.c.l.b16 %v1751
  %v2055 = vunpack.c.h.b16 %v1751
  %v2056 = vunpack.c.l.b16 %v1752
  %v2057 = vunpack.c.h.b16 %v1752
  %v2058 = vunpack.c.l.b16 %v1753
  %v2059 = vunpack.c.l.b16 %v1754
  %v2060 = vunpack.c.h.b16 %v1754
  %v2061 = vunpack.c.l.b16 %v1755
  %v2062 = vunpack.c.h.b16 %v1755
  %v2063 = vunpack.c.l.b16 %v1756
  %v2064 = vunpack.c.h.b16 %v1756
  %v2065 = vunpack.c.l.b16 %v1757
  %v2066 = vunpack.c.h.b16 %v1757
  %v2067 = vunpack.c.l.b16 %v1758
  %v2068 = vunpack.c.h.b16 %v1758
  %v2069 = vunpack.c.l.b16 %v1759
  %v2070 = vunpack.c.h.b16 %v1759
  %v2071 = vunpack.c.l.b16 %v1760
  %v2072 = vunpack.c.l.b16 %v1761
  %v2073 = vunpack.c.h.b16 %v1761
  %v2074 = vunpack.c.l.b16 %v1762
  %v2075 = vunpack.c.h.b16 %v1762
  %v2076 = vunpack.c.l.b16 %v1763
  %v2077 = vunpack.c.h.b16 %v1763
  %v2078 = vunpack.c.l.b16 %v1764
  %v2079 = vunpack.c.h.b16 %v1764
  %v2080 = vunpack.c.l.b16 %v1765
  %v2081 = vunpack.c.h.b16 %v1765
  %v2082 = vunpack.c.l.b16 %v1766
  %v2083 = vunpack.c.h.b16 %v1766
  %v2084 = vunpack.c.l.b16 %v1767
  %v2085 = vunpack.c.l.b16 %v1768
  %v2086 = vunpack.c.h.b16 %v1768
  %v2087 = vunpack.c.l.b16 %v1769
  %v2088 = vunpack.c.h.b16 %v1769
  %v2089 = vunpack.c.l.b16 %v1770
  %v2090 = vunpack.c.h.b16 %v1770
  %v2091 = vunpack.c.l.b16 %v1771
  %v2092 = vunpack.c.h.b16 %v1771
  %v2093 = vunpack.c.l.b16 %v1772
  %v2094 = vunpack.c.h.b16 %v1772
  %v2095 = vunpack.c.l.b16 %v1773
  %v2096 = vunpack.c.h.b16 %v1773
  %v2097 = vunpack.c.l.b16 %v1774
  %v2098 = vunpack.c.l.b16 %v1775
  %v2099 = vunpack.c.h.b16 %v1775
  %v2100 = vunpack.c.l.b16 %v1776
  %v2101 = vunpack.c.h.b16 %v1776
  %v2102 = vunpack.c.l.b16 %v1777
  %v2103 = vunpack.c.h.b16 %v1777
  %v2104 = vunpack.c.l.b16 %v1778
  %v2105 = vunpack.c.h.b16 %v1778
  %v2106 = vunpack.c.l.b16 %v1779
  %v2107 = vunpack.c.h.b16 %v1779
  %v2108 = vunpack.c.l.b16 %v1780
  %v2109 = vunpack.c.h.b16 %v1780
  %v2110 = vunpack.c.l.b16 %v1781
  %v2111 = vunpack.c.l.b16 %v1782
  %v2112 = vunpack.c.h.b16 %v1782
  %v2113 = vunpack.c.l.b16 %v1783
  %v2114 = vunpack.c.h.b16 %v1783
  %v2115 = vunpack.c.l.b16 %v1784
  %v2116 = vunpack.c.h.b16 %v1784
  %v2117 = vunpack.c.l.b16 %v1785
  %v2118 = vunpack.c.h.b16 %v1785
  %v2119 = vunpack.c.l.b16 %v1786
  %v2120 = vunpack.c.h.b16 %v1786
  %v2121 = vunpack.c.l.b16 %v1787
  %v2122 = vunpack.c.h.b16 %v1787
  %v2123 = vunpack.c.l.b16 %v1788
  %v2124 = vunpack.c.l.b16 %v1789
  %v2125 = vunpack.c.h.b16 %v1789
  %v2126 = vunpack.c.l.b16 %v1790
  %v2127 = vunpack.c.h.b16 %v1790
  %v2128 = vunpack.c.l.b16 %v1791
  %v2129 = vunpack.c.h.b16 %v1791
  %v2130 = vunpack.c.l.b16 %v1792
  %v2131 = vunpack.c.h.b16 %v1792
  %v2132 = vunpack.c.l.b16 %v1793
  %v2133 = vunpack.c.h.b16 %v1793
  %v2134 = vunpack.c.l.b16 %v1794
  %v2135 = vunpack.c.h.b16 %v1794
  %v2136 = vunpack.c.l.b16 %v1795
  %v2137 = vunpack.c.l.b16 %v1796
  %v2138 = vunpack.c.h.b16 %v1796
  %v2139 = vunpack.c.l.b16 %v1797
  %v2140 = vunpack.c.h.b16 %v1797
  %v2141 = vunpack.c.l.b16 %v1798
  %v2142 = vunpack.c.h.b16 %v1798
  %v2143 = vunpack.c.l.b16 %v1799
  %v2144 = vunpack.c.h.b16 %v1799
  %v2145 = vunpack.c.l.b16 %v1800
  %v2146 = vunpack.c.h.b16 %v1800
  %v2147 = vunpack.c.l.b16 %v1801
  %v2148 = vunpack.c.h.b16 %v1801
  %v2149 = vunpack.c.l.b16 %v1802
  %v2150 = vunpack.c.l.b16 %v1803
  %v2151 = vunpack.c.h.b16 %v1803
  %v2152 = vunpack.c.l.b16 %v1804
  %v2153 = vunpack.c.h.b16 %v1804
  %v2154 = vunpack.c.l.b16 %v1805
  %v2155 = vunpack.c.h.b16 %v1805
  %v2156 = vunpack.c.l.b16 %v1806
  %v2157 = vunpack.c.h.b16 %v1806
  %v2158 = vunpack.c.l.b16 %v1807
  %v2159 = vunpack.c.h.b16 %v1807
  %v2160 = vunpack.c.l.b16 %v1808
  %v2161 = vunpack.c.h.b16 %v1808
  %v2162 = vunpack.c.l.b16 %v1809
  %v2163 = vunpack.c.l.b16 %v1810
  %v2164 = vunpack.c.h.b16 %v1810
  %v2165 = vunpack.c.l.b16 %v1811
  %v2166 = vunpack.c.h.b16 %v1811
  %v2167 = vunpack.c.l.b16 %v1812
  %v2168 = vunpack.c.h.b16 %v1812
  %v2169 = vunpack.c.l.b16 %v1813
  %v2170 = vunpack.c.h.b16 %v1813
  %v2171 = vunpack.c.l.b16 %v1814
  %v2172 = vunpack.c.h.b16 %v1814
  %v2173 = vunpack.c.l.b16 %v1815
  %v2174 = vunpack.c.h.b16 %v1815
  %v2175 = vunpack.c.l.b16 %v1816
  %v2176 = vunpack.c.l.b16 %v1817
  %v2177 = vunpack.c.h.b16 %v1817
  %v2178 = vunpack.c.l.b16 %v1818
  %v2179 = vunpack.c.h.b16 %v1818
  %v2180 = vunpack.c.l.b16 %v1819
  %v2181 = vunpack.c.h.b16 %v1819
  %v2182 = vunpack.c.l.b16 %v1820
  %v2183 = vunpack.c.h.b16 %v1820
  %v2184 = vunpack.c.l.b16 %v1821
  %v2185 = vunpack.c.h.b16 %v1821
  %v2186 = vunpack.c.l.b16 %v1822
  %v2187 = vunpack.c.h.b16 %v1822
  %v2188 = vunpack.c.l.b16 %v1823
  %v2189 = vunpack.c.l.b16 %v1824
  %v2190 = vunpack.c.h.b16 %v1824
  %v2191 = vunpack.c.l.b16 %v1825
  %v2192 = vunpack.c.h.b16 %v1825
  %v2193 = vunpack.c.l.b16 %v1826
  %v2194 = vunpack.c.h.b16 %v1826
  %v2195 = vunpack.c.l.b16 %v1827
  %v2196 = vunpack.c.h.b16 %v1827
  %v2197 = vunpack.c.l.b16 %v1828
  %v2198 = vunpack.c.h.b16 %v1828
  %v2199 = vunpack.c.l.b16 %v1829
  %v2200 = vunpack.c.h.b16 %v1829
  %v2201 = vunpack.c.l.b16 %v1830
  %v2202 = vunpack.c.l.b16 %v1831
  %v2203 = vunpack.c.h.b16 %v1831
  %v2204 = vunpack.c.l.b16 %v1832
  %v2205 = vunpack.c.h.b16 %v1832
  %v2206 = vunpack.c.l.b16 %v1833
  %v2207 = vunpack.c.h.b16 %v1833
  %v2208 = vunpack.c.l.b16 %v1834
  %v2209 = vunpack.c.h.b16 %v1834
  %v2210 = vunpack.c.l.b16 %v1835
  %v2211 = vunpack.c.h.b16 %v1835
  %v2212 = vunpack.c.l.b16 %v1836
  %v2213 = vunpack.c.h.b16 %v1836
  %v2214 = vunpack.c.l.b16 %v1837
  %v2215 = vunpack.c.l.b16 %v1838
  %v2216 = vunpack.c.h.b16 %v1838
  %v2217 = vunpack.c.l.b16 %v1839
  %v2218 = vunpack.c.h.b16 %v1839
  %v2219 = vunpack.c.l.b16 %v1840
  %v2220 = vunpack.c.h.b16 %v1840
  %v2221 = vunpack.c.l.b16 %v1841
  %v2222 = vunpack.c.h.b16 %v1841
  %v2223 = vunpack.c.l.b16 %v1842
  %v2224 = vunpack.c.h.b16 %v1842
  %v2225 = vunpack.c.l.b16 %v1843
  %v2226 = vunpack.c.h.b16 %v1843
  %v2227 = vunpack.c.l.b16 %v1844
  %v2228 = vunpack.c.l.b16 %v1845
  %v2229 = vunpack.c.h.b16 %v1845
  %v2230 = vunpack.c.l.b16 %v1846
  %v2231 = vunpack.c.h.b16 %v1846
  %v2232 = vunpack.c.l.b16 %v1847
  %v2233 = vunpack.c.h.b16 %v1847
  %v2234 = vunpack.c.l.b16 %v1848
  %v2235 = vunpack.c.h.b16 %v1848
  %v2236 = vunpack.c.l.b16 %v1849
  %v2237 = vunpack.c.h.b16 %v1849
  %v2238 = vunpack.c.l.b16 %v1850
  %v2239 = vunpack.c.h.b16 %v1850
  %v2240 = vunpack.c.l.b16 %v1851
  %v2241 = vpack.c.b16 %v2046, %v2033
  %v2242 = vpack.c.b16 %v2047, %v2034
  %v2243 = vpack.c.b16 %v2048, %v2035
  %v2244 = vpack.c.b16 %v2049, %v2036
  %v2245 = vpack.c.b16 %v2050, %v2037
  %v2246 = vpack.c.b16 %v2051, %v2038
  %v2247 = vpack.c.b16 %v2052, %v2039
  %v2248 = vpack.c.b16 %v2053, %v2040
  %v2249 = vpack.c.b16 %v2054, %v2041
  %v2250 = vpack.c.b16 %v2055, %v2042
  %v2251 = vpack.c.b16 %v2056, %v2043
  %v2252 = vpack.c.b16 %v2057, %v2044
  %v2253 = vpack.c.b16 %v2058, %v2045
  %v2254 = vpack.c.b16 %v2072, %v2059
  %v2255 = vpack.c.b16 %v2073, %v2060
  %v2256 = vpack.c.b16 %v2074, %v2061
  %v2257 = vpack.c.b16 %v2075, %v2062
  %v2258 = vpack.c.b16 %v2076, %v2063
  %v2259 = vpack.c.b16 %v2077, %v2064
  %v2260 = vpack.c.b16 %v2078, %v2065
  %v2261 = vpack.c.b16 %v2079, %v2066
  %v2262 = vpack.c.b16 %v2080, %v2067
  %v2263 = vpack.c.b16 %v2081, %v2068
  %v2264 = vpack.c.b16 %v2082, %v2069
  %v2265 = vpack.c.b16 %v2083, %v2070
  %v2266 = vpack.c.b16 %v2084, %v2071
  %v2267 = vpack.c.b16 %v2098, %v2085
  %v2268 = vpack.c.b16 %v2099, %v2086
  %v2269 = vpack.c.b16 %v2100, %v2087
  %v2270 = vpack.c.b16 %v2101, %v2088
  %v2271 = vpack.c.b16 %v2102, %v2089
  %v2272 = vpack.c.b16 %v2103, %v2090
  %v2273 = vpack.c.b16 %v2104, %v2091
  %v2274 = vpack.c.b16 %v2105, %v2092
  %v2275 = vpack.c.b16 %v2106, %v2093
  %v2276 = vpack.c.b16 %v2107, %v2094
  %v2277 = vpack.c.b16 %v2108, %v2095
  %v2278 = vpack.c.b16 %v2109, %v2096
  %v2279 = vpack.c.b16 %v2110, %v2097
  %v2280 = vpack.c.b16 %v2124, %v2111
  %v2281 = vpack.c.b16 %v2125, %v2112
  %v2282 = vpack.c.b16 %v2126, %v2113
  %v2283 = vpack.c.b16 %v2127, %v2114
  %v2284 = vpack.c.b16 %v2128, %v2115
  %v2285 = vpack.c.b16 %v2129, %v2116
  %v2286 = vpack.c.b16 %v2130, %v2117
  %v2287 = vpack.c.b16 %v2131, %v2118
  %v2288 = vpack.c.b16 %v2132, %v2119
  %v2289 = vpack.c.b16 %v2133, %v2120
  %v2290 = vpack.c.b16 %v2134, %v2121
  %v2291 = vpack.c.b16 %v2135, %v2122
  %v2292 = vpack.c.b16 %v2136, %v2123
  %v2293 = vpack.c.b16 %v2150, %v2137
  %v2294 = vpack.c.b16 %v2151, %v2138
  %v2295 = vpack.c.b16 %v2152, %v2139
  %v2296 = vpack.c.b16 %v2153, %v2140
  %v2297 = vpack.c.b16 %v2154, %v2141
  %v2298 = vpack.c.b16 %v2155, %v2142
  %v2299 = vpack.c.b16 %v2156, %v2143
  %v2300 = vpack.c.b16 %v2157, %v2144
  %v2301 = vpack.c.b16 %v2158, %v2145
  %v2302 = vpack.c.b16 %v2159, %v2146
  %v2303 = vpack.c.b16 %v2160, %v2147
  %v2304 = vpack.c.b16 %v2161, %v2148
  %v2305 = vpack.c.b16 %v2162, %v2149
  %v2306 = vpack.c.b16 %v2176, %v2163
  %v2307 = vpack.c.b16 %v2177, %v2164
  %v2308 = vpack.c.b16 %v2178, %v2165
  %v2309 = vpack.c.b16 %v2179, %v2166
  %v2310 = vpack.c.b16 %v2180, %v2167
  %v2311 = vpack.c.b16 %v2181, %v2168
  %v2312 = vpack.c.b16 %v2182, %v2169
  %v2313 = vpack.c.b16 %v2183, %v2170
  %v2314 = vpack.c.b16 %v2184, %v2171
  %v2315 = vpack.c.b16 %v2185, %v2172
  %v2316 = vpack.c.b16 %v2186, %v2173
  %v2317 = vpack.c.b16 %v2187, %v2174
  %v2318 = vpack.c.b16 %v2188, %v2175
  %v2319 = vpack.c.b16 %v2202, %v2189
  %v2320 = vpack.c.b16 %v2203, %v2190
  %v2321 = vpack.c.b16 %v2204, %v2191
  %v2322 = vpack.c.b16 %v2205, %v2192
  %v2323 = vpack.c.b16 %v2206, %v2193
  %v2324 = vpack.c.b16 %v2207, %v2194
  %v2325 = vpack.c.b16 %v2208, %v2195
  %v2326 = vpack.c.b16 %v2209, %v2196
  %v2327 = vpack.c.b16 %v2210, %v2197
  %v2328 = vpack.c.b16 %v2211, %v2198
  %v2329 = vpack.c.b16 %v2212, %v2199
  %v2330 = vpack.c.b16 %v2213, %v2200
  %v2331 = vpack.c.b16 %v2214, %v2201
  %v2332 = vpack.c.b16 %v2228, %v2215
  %v2333 = vpack.c.b16 %v2229, %v2216
  %v2334 = vpack.c.b16 %v2230, %v2217
  %v2335 = vpack.c.b16 %v2231, %v2218
  %v2336 = vpack.c.b16 %v2232, %v2219
  %v2337 = vpack.c.b16 %v2233, %v2220
  %v2338 = vpack.c.b16 %v2234, %v2221
  %v2339 = vpack.c.b16 %v2235, %v2222
  %v2340 = vpack.c.b16 %v2236, %v2223
  %v2341 = vpack.c.b16 %v2237, %v2224
  %v2342 = vpack.c.b16 %v2238, %v2225
  %v2343 = vpack.c.b16 %v2239, %v2226
  %v2344 = vpack.c.b16 %v2240, %v2227
  %2449 = vmatprep.subr.bf16.mxu0 %v2333
  %2450 = vmatpush1.bf16.msra.mxu0 %v2332
  %2451 = vmatprep.subr.bf16.mxu0 %v2320
  %2452 = vmatpush1.bf16.msra.mxu0 %v2319
  %2453 = vmatprep.subr.bf16.mxu0 %v2307
  %2454 = vmatpush1.bf16.msra.mxu0 %v2306
  %2455 = vmatprep.subr.bf16.mxu0 %v2294
  %2456 = vmatpush1.bf16.msra.mxu0 %v2293
  %2457 = vmatprep.subr.bf16.mxu0 %v2281
  %2458 = vmatpush1.bf16.msra.mxu0 %v2280
  %2459 = vmatprep.subr.bf16.mxu0 %v2268
  %2460 = vmatpush1.bf16.msra.mxu0 %v2267
  %2461 = vmatprep.subr.bf16.mxu0 %v2255
  %2462 = vmatpush1.bf16.msra.mxu0 %v2254
  %2463 = vmatprep.subr.bf16.mxu0 %v2242
  %2464 = vmatpush1.bf16.msra.mxu0 %v2241
  %2465 = vmatprep.subr.bf16.mxu0 0
  %2466 = vmatpush2.bf16.msra.mxu0 0
  %2467 = vmatprep.subr.bf16.mxu0 0
  %2468 = vmatpush2.bf16.msra.mxu0 0
  %2469 = vmatprep.subr.bf16.mxu0 0
  %2470 = vmatpush2.bf16.msra.mxu0 0
  %2471 = vmatprep.subr.bf16.mxu0 0
  %2472 = vmatpush2.bf16.msra.mxu0 0
  %2473 = vmatprep.subr.bf16.mxu0 0
  %2474 = vmatpush2.bf16.msra.mxu0 0
  %2475 = vmatprep.subr.bf16.mxu0 0
  %2476 = vmatpush2.bf16.msra.mxu0 0
  %2477 = vmatprep.subr.bf16.mxu0 0
  %2478 = vmatpush2.bf16.msra.mxu0 0
  %2479 = vmatprep.subr.bf16.mxu0 0
  %2480 = vmatpush2.bf16.msra.mxu0 0
  %2481 = vmatprep.mubr.bf16.mxu0 0
  %2482 = vmatmul.mubr.bf16.gmra.mxu0 %v1739
  %v2483 = vpop.f32.mrf.mxu0
  %v2484 = vadd.f32 %v1859, %v2483
  %v2485 = vpop.f32.mrf.mxu0
  %v2486 = vadd.f32 %v1863, %v2485
  %v2487 = vpop.f32.mrf.mxu0
  %v2488 = vpop.f32.mrf.mxu0
  %2489 = vdwg.mxu0
  %2490 = vmatprep.subr.bf16.mxu0 %v2335
  %2491 = vmatpush1.bf16.msra.mxu0 %v2334
  %2492 = vmatprep.subr.bf16.mxu0 %v2322
  %2493 = vmatpush1.bf16.msra.mxu0 %v2321
  %2494 = vmatprep.subr.bf16.mxu0 %v2309
  %2495 = vmatpush1.bf16.msra.mxu0 %v2308
  %2496 = vmatprep.subr.bf16.mxu0 %v2296
  %2497 = vmatpush1.bf16.msra.mxu0 %v2295
  %2498 = vmatprep.subr.bf16.mxu0 %v2283
  %2499 = vmatpush1.bf16.msra.mxu0 %v2282
  %2500 = vmatprep.subr.bf16.mxu0 %v2270
  %2501 = vmatpush1.bf16.msra.mxu0 %v2269
  %2502 = vmatprep.subr.bf16.mxu0 %v2257
  %2503 = vmatpush1.bf16.msra.mxu0 %v2256
  %2504 = vmatprep.subr.bf16.mxu0 %v2244
  %2505 = vmatpush1.bf16.msra.mxu0 %v2243
  %2506 = vmatprep.subr.bf16.mxu0 0
  %2507 = vmatpush2.bf16.msra.mxu0 0
  %2508 = vmatprep.subr.bf16.mxu0 0
  %2509 = vmatpush2.bf16.msra.mxu0 0
  %2510 = vmatprep.subr.bf16.mxu0 0
  %2511 = vmatpush2.bf16.msra.mxu0 0
  %2512 = vmatprep.subr.bf16.mxu0 0
  %2513 = vmatpush2.bf16.msra.mxu0 0
  %2514 = vmatprep.subr.bf16.mxu0 0
  %2515 = vmatpush2.bf16.msra.mxu0 0
  %2516 = vmatprep.subr.bf16.mxu0 0
  %2517 = vmatpush2.bf16.msra.mxu0 0
  %2518 = vmatprep.subr.bf16.mxu0 0
  %2519 = vmatpush2.bf16.msra.mxu0 0
  %2520 = vmatprep.subr.bf16.mxu0 0
  %2521 = vmatpush2.bf16.msra.mxu0 0
  %2522 = vmatprep.mubr.bf16.mxu0 0
  %2523 = vmatmul.mubr.bf16.gmra.mxu0 %v1739
  %v2524 = vpop.f32.mrf.mxu0
  %v2525 = vadd.f32 %v1867, %v2524
  %v2526 = vpop.f32.mrf.mxu0
  %v2527 = vadd.f32 %v1871, %v2526
  %v2528 = vpop.f32.mrf.mxu0
  %v2529 = vpop.f32.mrf.mxu0
  %2530 = vdwg.mxu0
  %2531 = vmatprep.subr.bf16.mxu0 %v2337
  %2532 = vmatpush1.bf16.msra.mxu0 %v2336
  %2533 = vmatprep.subr.bf16.mxu0 %v2324
  %2534 = vmatpush1.bf16.msra.mxu0 %v2323
  %2535 = vmatprep.subr.bf16.mxu0 %v2311
  %2536 = vmatpush1.bf16.msra.mxu0 %v2310
  %2537 = vmatprep.subr.bf16.mxu0 %v2298
  %2538 = vmatpush1.bf16.msra.mxu0 %v2297
  %2539 = vmatprep.subr.bf16.mxu0 %v2285
  %2540 = vmatpush1.bf16.msra.mxu0 %v2284
  %2541 = vmatprep.subr.bf16.mxu0 %v2272
  %2542 = vmatpush1.bf16.msra.mxu0 %v2271
  %2543 = vmatprep.subr.bf16.mxu0 %v2259
  %2544 = vmatpush1.bf16.msra.mxu0 %v2258
  %2545 = vmatprep.subr.bf16.mxu0 %v2246
  %2546 = vmatpush1.bf16.msra.mxu0 %v2245
  %2547 = vmatprep.subr.bf16.mxu0 0
  %2548 = vmatpush2.bf16.msra.mxu0 0
  %2549 = vmatprep.subr.bf16.mxu0 0
  %2550 = vmatpush2.bf16.msra.mxu0 0
  %2551 = vmatprep.subr.bf16.mxu0 0
  %2552 = vmatpush2.bf16.msra.mxu0 0
  %2553 = vmatprep.subr.bf16.mxu0 0
  %2554 = vmatpush2.bf16.msra.mxu0 0
  %2555 = vmatprep.subr.bf16.mxu0 0
  %2556 = vmatpush2.bf16.msra.mxu0 0
  %2557 = vmatprep.subr.bf16.mxu0 0
  %2558 = vmatpush2.bf16.msra.mxu0 0
  %2559 = vmatprep.subr.bf16.mxu0 0
  %2560 = vmatpush2.bf16.msra.mxu0 0
  %2561 = vmatprep.subr.bf16.mxu0 0
  %2562 = vmatpush2.bf16.msra.mxu0 0
  %2563 = vmatprep.mubr.bf16.mxu0 0
  %2564 = vmatmul.mubr.bf16.gmra.mxu0 %v1739
  %v2565 = vpop.f32.mrf.mxu0
  %v2566 = vadd.f32 %v1875, %v2565
  %v2567 = vpop.f32.mrf.mxu0
  %v2568 = vadd.f32 %v1879, %v2567
  %v2569 = vpop.f32.mrf.mxu0
  %v2570 = vpop.f32.mrf.mxu0
  %2571 = vdwg.mxu0
  %2572 = vmatprep.subr.bf16.mxu0 %v2339
  %2573 = vmatpush1.bf16.msra.mxu0 %v2338
  %2574 = vmatprep.subr.bf16.mxu0 %v2326
  %2575 = vmatpush1.bf16.msra.mxu0 %v2325
  %2576 = vmatprep.subr.bf16.mxu0 %v2313
  %2577 = vmatpush1.bf16.msra.mxu0 %v2312
  %2578 = vmatprep.subr.bf16.mxu0 %v2300
  %2579 = vmatpush1.bf16.msra.mxu0 %v2299
  %2580 = vmatprep.subr.bf16.mxu0 %v2287
  %2581 = vmatpush1.bf16.msra.mxu0 %v2286
  %2582 = vmatprep.subr.bf16.mxu0 %v2274
  %2583 = vmatpush1.bf16.msra.mxu0 %v2273
  %2584 = vmatprep.subr.bf16.mxu0 %v2261
  %2585 = vmatpush1.bf16.msra.mxu0 %v2260
  %2586 = vmatprep.subr.bf16.mxu0 %v2248
  %2587 = vmatpush1.bf16.msra.mxu0 %v2247
  %2588 = vmatprep.subr.bf16.mxu0 0
  %2589 = vmatpush2.bf16.msra.mxu0 0
  %2590 = vmatprep.subr.bf16.mxu0 0
  %2591 = vmatpush2.bf16.msra.mxu0 0
  %2592 = vmatprep.subr.bf16.mxu0 0
  %2593 = vmatpush2.bf16.msra.mxu0 0
  %2594 = vmatprep.subr.bf16.mxu0 0
  %2595 = vmatpush2.bf16.msra.mxu0 0
  %2596 = vmatprep.subr.bf16.mxu0 0
  %2597 = vmatpush2.bf16.msra.mxu0 0
  %2598 = vmatprep.subr.bf16.mxu0 0
  %2599 = vmatpush2.bf16.msra.mxu0 0
  %2600 = vmatprep.subr.bf16.mxu0 0
  %2601 = vmatpush2.bf16.msra.mxu0 0
  %2602 = vmatprep.subr.bf16.mxu0 0
  %2603 = vmatpush2.bf16.msra.mxu0 0
  %2604 = vmatprep.mubr.bf16.mxu0 0
  %2605 = vmatmul.mubr.bf16.gmra.mxu0 %v1739
  %v2606 = vpop.f32.mrf.mxu0
  %v2607 = vadd.f32 %v1883, %v2606
  %v2608 = vpop.f32.mrf.mxu0
  %v2609 = vadd.f32 %v1887, %v2608
  %v2610 = vpop.f32.mrf.mxu0
  %v2611 = vpop.f32.mrf.mxu0
  %2612 = vdwg.mxu0
  %2613 = vmatprep.subr.bf16.mxu0 %v2341
  %2614 = vmatpush1.bf16.msra.mxu0 %v2340
  %2615 = vmatprep.subr.bf16.mxu0 %v2328
  %2616 = vmatpush1.bf16.msra.mxu0 %v2327
  %2617 = vmatprep.subr.bf16.mxu0 %v2315
  %2618 = vmatpush1.bf16.msra.mxu0 %v2314
  %2619 = vmatprep.subr.bf16.mxu0 %v2302
  %2620 = vmatpush1.bf16.msra.mxu0 %v2301
  %2621 = vmatprep.subr.bf16.mxu0 %v2289
  %2622 = vmatpush1.bf16.msra.mxu0 %v2288
  %2623 = vmatprep.subr.bf16.mxu0 %v2276
  %2624 = vmatpush1.bf16.msra.mxu0 %v2275
  %2625 = vmatprep.subr.bf16.mxu0 %v2263
  %2626 = vmatpush1.bf16.msra.mxu0 %v2262
  %2627 = vmatprep.subr.bf16.mxu0 %v2250
  %2628 = vmatpush1.bf16.msra.mxu0 %v2249
  %2629 = vmatprep.subr.bf16.mxu0 0
  %2630 = vmatpush2.bf16.msra.mxu0 0
  %2631 = vmatprep.subr.bf16.mxu0 0
  %2632 = vmatpush2.bf16.msra.mxu0 0
  %2633 = vmatprep.subr.bf16.mxu0 0
  %2634 = vmatpush2.bf16.msra.mxu0 0
  %2635 = vmatprep.subr.bf16.mxu0 0
  %2636 = vmatpush2.bf16.msra.mxu0 0
  %2637 = vmatprep.subr.bf16.mxu0 0
  %2638 = vmatpush2.bf16.msra.mxu0 0
  %2639 = vmatprep.subr.bf16.mxu0 0
  %2640 = vmatpush2.bf16.msra.mxu0 0
  %2641 = vmatprep.subr.bf16.mxu0 0
  %2642 = vmatpush2.bf16.msra.mxu0 0
  %2643 = vmatprep.subr.bf16.mxu0 0
  %2644 = vmatpush2.bf16.msra.mxu0 0
  %2645 = vmatprep.mubr.bf16.mxu0 0
  %2646 = vmatmul.mubr.bf16.gmra.mxu0 %v1739
  %v2647 = vpop.f32.mrf.mxu0
  %v2648 = vadd.f32 %v1891, %v2647
  %v2649 = vpop.f32.mrf.mxu0
  %v2650 = vadd.f32 %v1895, %v2649
  %v2651 = vpop.f32.mrf.mxu0
  %v2652 = vpop.f32.mrf.mxu0
  %2653 = vdwg.mxu0
  %2654 = vmatprep.subr.bf16.mxu0 %v2343
  %2655 = vmatpush1.bf16.msra.mxu0 %v2342
  %2656 = vmatprep.subr.bf16.mxu0 %v2330
  %2657 = vmatpush1.bf16.msra.mxu0 %v2329
  %2658 = vmatprep.subr.bf16.mxu0 %v2317
  %2659 = vmatpush1.bf16.msra.mxu0 %v2316
  %2660 = vmatprep.subr.bf16.mxu0 %v2304
  %2661 = vmatpush1.bf16.msra.mxu0 %v2303
  %2662 = vmatprep.subr.bf16.mxu0 %v2291
  %2663 = vmatpush1.bf16.msra.mxu0 %v2290
  %2664 = vmatprep.subr.bf16.mxu0 %v2278
  %2665 = vmatpush1.bf16.msra.mxu0 %v2277
  %2666 = vmatprep.subr.bf16.mxu0 %v2265
  %2667 = vmatpush1.bf16.msra.mxu0 %v2264
  %2668 = vmatprep.subr.bf16.mxu0 %v2252
  %2669 = vmatpush1.bf16.msra.mxu0 %v2251
  %2670 = vmatprep.subr.bf16.mxu0 0
  %2671 = vmatpush2.bf16.msra.mxu0 0
  %2672 = vmatprep.subr.bf16.mxu0 0
  %2673 = vmatpush2.bf16.msra.mxu0 0
  %2674 = vmatprep.subr.bf16.mxu0 0
  %2675 = vmatpush2.bf16.msra.mxu0 0
  %2676 = vmatprep.subr.bf16.mxu0 0
  %2677 = vmatpush2.bf16.msra.mxu0 0
  %2678 = vmatprep.subr.bf16.mxu0 0
  %2679 = vmatpush2.bf16.msra.mxu0 0
  %2680 = vmatprep.subr.bf16.mxu0 0
  %2681 = vmatpush2.bf16.msra.mxu0 0
  %2682 = vmatprep.subr.bf16.mxu0 0
  %2683 = vmatpush2.bf16.msra.mxu0 0
  %2684 = vmatprep.subr.bf16.mxu0 0
  %2685 = vmatpush2.bf16.msra.mxu0 0
  %2686 = vmatprep.mubr.bf16.mxu0 0
  %2687 = vmatmul.mubr.bf16.gmra.mxu0 %v1739
  %v2688 = vpop.f32.mrf.mxu0
  %v2689 = vadd.f32 %v1899, %v2688
  %v2690 = vpop.f32.mrf.mxu0
  %v2691 = vadd.f32 %v1903, %v2690
  %v2692 = vpop.f32.mrf.mxu0
  %v2693 = vpop.f32.mrf.mxu0
  %2694 = vdwg.mxu0
  %2695 = vmatprep.subr.bf16.mxu0 0
  %2696 = vmatpush1.bf16.msra.mxu0 %v2344
  %2697 = vmatprep.subr.bf16.mxu0 0
  %2698 = vmatpush1.bf16.msra.mxu0 %v2331
  %2699 = vmatprep.subr.bf16.mxu0 0
  %2700 = vmatpush1.bf16.msra.mxu0 %v2318
  %2701 = vmatprep.subr.bf16.mxu0 0
  %2702 = vmatpush1.bf16.msra.mxu0 %v2305
  %2703 = vmatprep.subr.bf16.mxu0 0
  %2704 = vmatpush1.bf16.msra.mxu0 %v2292
  %2705 = vmatprep.subr.bf16.mxu0 0
  %2706 = vmatpush1.bf16.msra.mxu0 %v2279
  %2707 = vmatprep.subr.bf16.mxu0 0
  %2708 = vmatpush1.bf16.msra.mxu0 %v2266
  %2709 = vmatprep.subr.bf16.mxu0 0
  %2710 = vmatpush1.bf16.msra.mxu0 %v2253
  %2711 = vmatprep.subr.bf16.mxu0 0
  %2712 = vmatpush2.bf16.msra.mxu0 0
  %2713 = vmatprep.subr.bf16.mxu0 0
  %2714 = vmatpush2.bf16.msra.mxu0 0
  %2715 = vmatprep.subr.bf16.mxu0 0
  %2716 = vmatpush2.bf16.msra.mxu0 0
  %2717 = vmatprep.subr.bf16.mxu0 0
  %2718 = vmatpush2.bf16.msra.mxu0 0
  %2719 = vmatprep.subr.bf16.mxu0 0
  %2720 = vmatpush2.bf16.msra.mxu0 0
  %2721 = vmatprep.subr.bf16.mxu0 0
  %2722 = vmatpush2.bf16.msra.mxu0 0
  %2723 = vmatprep.subr.bf16.mxu0 0
  %2724 = vmatpush2.bf16.msra.mxu0 0
  %2725 = vmatprep.subr.bf16.mxu0 0
  %2726 = vmatpush2.bf16.msra.mxu0 0
  %2727 = vmatprep.mubr.bf16.mxu0 0
  %2728 = vmatmul.mubr.bf16.gmra.mxu0 %v1739
  %v2729 = vpop.f32.mrf.mxu0
  %v2730 = vadd.f32 %v1907, %v2729
  %v2731 = vpop.f32.mrf.mxu0
  %v2732 = vpop.f32.mrf.mxu0
  %v2733 = vpop.f32.mrf.mxu0
  %2734 = vdwg.mxu0
  %v2735 = vlaneseq
  %v2736 = vand.u32 %v2735, 127
  %v2737 = vadd.s32 %v2736, 128
  %v2738 = vadd.s32 %v2736, 256
  %v2739 = vadd.s32 %v2736, 384
  %v2740 = vadd.s32 %v2736, 512
  %v2741 = vadd.s32 %v2736, 640
  %v2742 = vadd.s32 %v2736, 768
  %v2743 = vadd.s32 %v2736, 896
  %v2744 = vadd.s32 %v2736, 1024
  %v2745 = vadd.s32 %v2736, 1152
  %v2746 = vadd.s32 %v2736, 1280
  %v2747 = vadd.s32 %v2736, 1408
  %v2748 = vadd.s32 %v2736, 1536
  %vm2749 = vcmp.lt.s32.totalorder %v2736, 784
  %vm2750 = vcmp.lt.s32.totalorder %v2737, 784
  %vm2751 = vcmp.lt.s32.totalorder %v2738, 784
  %vm2752 = vcmp.lt.s32.totalorder %v2739, 784
  %vm2753 = vcmp.lt.s32.totalorder %v2740, 784
  %vm2754 = vcmp.lt.s32.totalorder %v2741, 784
  %vm2755 = vcmp.lt.s32.totalorder %v2742, 784
  %vm2756 = vcmp.lt.s32.totalorder %v2743, 784
  %vm2757 = vcmp.lt.s32.totalorder %v2744, 784
  %vm2758 = vcmp.lt.s32.totalorder %v2745, 784
  %vm2759 = vcmp.lt.s32.totalorder %v2746, 784
  %vm2760 = vcmp.lt.s32.totalorder %v2747, 784
  %vm2761 = vcmp.lt.s32.totalorder %v2748, 784
  %v2762 = vxor.u32 %v2484, 2147483648
  %v2763 = vxor.u32 %v2486, 2147483648
  %v2764 = vxor.u32 %v2525, 2147483648
  %v2765 = vxor.u32 %v2527, 2147483648
  %v2766 = vxor.u32 %v2566, 2147483648
  %v2767 = vxor.u32 %v2568, 2147483648
  %v2768 = vxor.u32 %v2607, 2147483648
  %v2769 = vxor.u32 %v2609, 2147483648
  %v2770 = vxor.u32 %v2648, 2147483648
  %v2771 = vxor.u32 %v2650, 2147483648
  %v2772 = vxor.u32 %v2689, 2147483648
  %v2773 = vxor.u32 %v2691, 2147483648
  %v2774 = vxor.u32 %v2730, 2147483648
  %v2775 = vmul.f32 %v2762, 1.442695
  %v2776 = vpow.pop %v2775
  %v2777 = vmul.f32 %v2763, 1.442695
  %v2778 = vpow.pop %v2777
  %v2779 = vmul.f32 %v2764, 1.442695
  %v2780 = vpow.pop %v2779
  %v2781 = vmul.f32 %v2765, 1.442695
  %v2782 = vpow.pop %v2781
  %v2783 = vmul.f32 %v2766, 1.442695
  %v2784 = vpow.pop %v2783
  %v2785 = vmul.f32 %v2767, 1.442695
  %v2786 = vpow.pop %v2785
  %v2787 = vmul.f32 %v2768, 1.442695
  %v2788 = vpow.pop %v2787
  %v2789 = vmul.f32 %v2769, 1.442695
  %v2790 = vpow.pop %v2789
  %v2791 = vmul.f32 %v2770, 1.442695
  %v2792 = vpow.pop %v2791
  %v2793 = vmul.f32 %v2771, 1.442695
  %v2794 = vpow.pop %v2793
  %v2795 = vmul.f32 %v2772, 1.442695
  %v2796 = vpow.pop %v2795
  %v2797 = vmul.f32 %v2773, 1.442695
  %v2798 = vpow.pop %v2797
  %v2799 = vmul.f32 %v2774, 1.442695
  %v2800 = vpow.pop %v2799
  %v2801 = vadd.f32 %v2776, 1.0
  %v2802 = vadd.f32 %v2778, 1.0
  %v2803 = vadd.f32 %v2780, 1.0
  %v2804 = vadd.f32 %v2782, 1.0
  %v2805 = vadd.f32 %v2784, 1.0
  %v2806 = vadd.f32 %v2786, 1.0
  %v2807 = vadd.f32 %v2788, 1.0
  %v2808 = vadd.f32 %v2790, 1.0
  %v2809 = vadd.f32 %v2792, 1.0
  %v2810 = vadd.f32 %v2794, 1.0
  %v2811 = vadd.f32 %v2796, 1.0
  %v2812 = vadd.f32 %v2798, 1.0
  %v2813 = vadd.f32 %v2800, 1.0
  %v2814 = vrcp.pop %v2801
  %v2815 = vmul.f32 1.0, %v2814
  %v2816 = vrcp.pop %v2802
  %v2817 = vmul.f32 1.0, %v2816
  %v2818 = vrcp.pop %v2803
  %v2819 = vmul.f32 1.0, %v2818
  %v2820 = vrcp.pop %v2804
  %v2821 = vmul.f32 1.0, %v2820
  %v2822 = vrcp.pop %v2805
  %v2823 = vmul.f32 1.0, %v2822
  %v2824 = vrcp.pop %v2806
  %v2825 = vmul.f32 1.0, %v2824
  %v2826 = vrcp.pop %v2807
  %v2827 = vmul.f32 1.0, %v2826
  %v2828 = vrcp.pop %v2808
  %v2829 = vmul.f32 1.0, %v2828
  %v2830 = vrcp.pop %v2809
  %v2831 = vmul.f32 1.0, %v2830
  %v2832 = vrcp.pop %v2810
  %v2833 = vmul.f32 1.0, %v2832
  %v2834 = vrcp.pop %v2811
  %v2835 = vmul.f32 1.0, %v2834
  %v2836 = vrcp.pop %v2812
  %v2837 = vmul.f32 1.0, %v2836
  %v2838 = vrcp.pop %v2813
  %v2839 = vmul.f32 1.0, %v2838
  %v2840 = vtanh.pop %v2484
  %v2841 = vtanh.pop %v2486
  %v2842 = vtanh.pop %v2525
  %v2843 = vtanh.pop %v2527
  %v2844 = vtanh.pop %v2566
  %v2845 = vtanh.pop %v2568
  %v2846 = vtanh.pop %v2607
  %v2847 = vtanh.pop %v2609
  %v2848 = vtanh.pop %v2648
  %v2849 = vtanh.pop %v2650
  %v2850 = vtanh.pop %v2689
  %v2851 = vtanh.pop %v2691
  %v2852 = vtanh.pop %v2730
  %v2853 = vsel %vm2749, %v2815, %v2840
  %v2854 = vsel %vm2750, %v2817, %v2841
  %v2855 = vsel %vm2751, %v2819, %v2842
  %v2856 = vsel %vm2752, %v2821, %v2843
  %v2857 = vsel %vm2753, %v2823, %v2844
  %v2858 = vsel %vm2754, %v2825, %v2845
  %v2859 = vsel %vm2755, %v2827, %v2846
  %v2860 = vsel %vm2756, %v2829, %v2847
  %v2861 = vsel %vm2757, %v2831, %v2848
  %v2862 = vsel %vm2758, %v2833, %v2849
  %v2863 = vsel %vm2759, %v2835, %v2850
  %v2864 = vsel %vm2760, %v2837, %v2851
  %v2865 = vsel %vm2761, %v2839, %v2852
  %2866 = vst [vmem:[%s16] sm:$0xff] %v2853
  %2867 = vst [vmem:[%s16 + $0x8] sm:$0xff] %v2854
  %2868 = vst [vmem:[%s16 + $0x10] sm:$0xff] %v2855
  %2869 = vst [vmem:[%s16 + $0x18] sm:$0xff] %v2856
  %2870 = vst [vmem:[%s16 + $0x20] sm:$0xff] %v2857
  %2871 = vst [vmem:[%s16 + $0x28] sm:$0xff] %v2858
  %2872 = vst [vmem:[%s16 + $0x30] sm:$0xff] %v2859
  %2873 = vst [vmem:[%s16 + $0x38] sm:$0xff] %v2860
  %2874 = vst [vmem:[%s16 + $0x40] sm:$0xff] %v2861
  %2875 = vst [vmem:[%s16 + $0x48] sm:$0xff] %v2862
  %2876 = vst [vmem:[%s16 + $0x50] sm:$0xff] %v2863
  %2877 = vst [vmem:[%s16 + $0x58] sm:$0xff] %v2864
  %2878 = vst [vmem:[%s16 + $0x60] sm:$0xff] %v2865
  %v2879 = vld [vmem:[%s10] sm:$0xf]
  %v2880 = vld [vmem:[%s10 + $0x4] sm:$0xf]
  %v2881 = vld [vmem:[%s10 + $0x8] sm:$0xf]
  %v2882 = vld [vmem:[%s10 + $0xc] sm:$0xf]
  %v2883 = vld [vmem:[%s10 + $0x10] sm:$0xf]
  %v2884 = vld [vmem:[%s10 + $0x14] sm:$0xf]
  %v2885 = vld [vmem:[%s10 + $0x18] sm:$0xf]
  %v2886 = vld [vmem:[%s10 + $0x1c] sm:$0xf]
  %v2887 = vld [vmem:[%s10 + $0x20] sm:$0xf]
  %v2888 = vld [vmem:[%s10 + $0x24] sm:$0xf]
  %v2889 = vld [vmem:[%s10 + $0x28] sm:$0xf]
  %v2890 = vld [vmem:[%s10 + $0x2c] sm:$0xf]
  %v2891 = vld [vmem:[%s10 + $0x30] sm:$0xf]
  %v2892 = vld [vmem:[%s10 + $0x34] sm:$0xf]
  %v2893 = vld [vmem:[%s10 + $0x38] sm:$0xf]
  %v2894 = vld [vmem:[%s10 + $0x3c] sm:$0xf]
  %v2895 = vld [vmem:[%s11] sm:$0x1]
  %v2897 = vlaneseq
  %v2898 = vshrl.u32 %v2897, 7
  %v2899 = vsub.s32 0, %v2898
  %v2900 = vrot.slane %v2895, %v2899
  %v2918 = vunpack.c.l.b16 %v2879
  %v2919 = vunpack.c.l.b16 %v2880
  %v2920 = vunpack.c.l.b16 %v2881
  %v2921 = vunpack.c.l.b16 %v2882
  %v2922 = vunpack.c.l.b16 %v2883
  %v2923 = vunpack.c.l.b16 %v2884
  %v2924 = vunpack.c.l.b16 %v2885
  %v2925 = vunpack.c.l.b16 %v2886
  %v2926 = vunpack.c.l.b16 %v2887
  %v2927 = vunpack.c.l.b16 %v2888
  %v2928 = vunpack.c.l.b16 %v2889
  %v2929 = vunpack.c.l.b16 %v2890
  %v2930 = vunpack.c.l.b16 %v2891
  %v2931 = vunpack.c.l.b16 %v2892
  %v2932 = vunpack.c.l.b16 %v2893
  %v2933 = vunpack.c.l.b16 %v2894
  %v2934 = vpack.c.b16 %v2919, %v2918
  %v2935 = vpack.c.b16 %v2921, %v2920
  %v2936 = vpack.c.b16 %v2923, %v2922
  %v2937 = vpack.c.b16 %v2925, %v2924
  %v2938 = vpack.c.b16 %v2927, %v2926
  %v2939 = vpack.c.b16 %v2929, %v2928
  %v2940 = vpack.c.b16 %v2931, %v2930
  %v2941 = vpack.c.b16 %v2933, %v2932
  %2950 = vmatprep.subr.bf16.mxu0 0
  %2951 = vmatpush1.bf16.msra.mxu0 %v2941
  %2952 = vmatprep.subr.bf16.mxu0 0
  %2953 = vmatpush1.bf16.msra.mxu0 %v2940
  %2954 = vmatprep.subr.bf16.mxu0 0
  %2955 = vmatpush1.bf16.msra.mxu0 %v2939
  %2956 = vmatprep.subr.bf16.mxu0 0
  %2957 = vmatpush1.bf16.msra.mxu0 %v2938
  %2958 = vmatprep.subr.bf16.mxu0 0
  %2959 = vmatpush1.bf16.msra.mxu0 %v2937
  %2960 = vmatprep.subr.bf16.mxu0 0
  %2961 = vmatpush1.bf16.msra.mxu0 %v2936
  %2962 = vmatprep.subr.bf16.mxu0 0
  %2963 = vmatpush1.bf16.msra.mxu0 %v2935
  %2964 = vmatprep.subr.bf16.mxu0 0
  %2965 = vmatpush1.bf16.msra.mxu0 %v2934
  %2966 = vmatprep.subr.bf16.mxu0 0
  %2967 = vmatpush2.bf16.msra.mxu0 0
  %2968 = vmatprep.subr.bf16.mxu0 0
  %2969 = vmatpush2.bf16.msra.mxu0 0
  %2970 = vmatprep.subr.bf16.mxu0 0
  %2971 = vmatpush2.bf16.msra.mxu0 0
  %2972 = vmatprep.subr.bf16.mxu0 0
  %2973 = vmatpush2.bf16.msra.mxu0 0
  %2974 = vmatprep.subr.bf16.mxu0 0
  %2975 = vmatpush2.bf16.msra.mxu0 0
  %2976 = vmatprep.subr.bf16.mxu0 0
  %2977 = vmatpush2.bf16.msra.mxu0 0
  %2978 = vmatprep.subr.bf16.mxu0 0
  %2979 = vmatpush2.bf16.msra.mxu0 0
  %2980 = vmatprep.subr.bf16.mxu0 0
  %2981 = vmatpush2.bf16.msra.mxu0 0
  %2982 = vmatprep.mubr.bf16.mxu0 0
  %2983 = vmatmul.mubr.bf16.gmra.mxu0 %v1626
  %v2984 = vpop.f32.mrf.mxu0
  %v2985 = vadd.f32 %v2900, %v2984
  %v2986 = vpop.f32.mrf.mxu0
  %v2987 = vpop.f32.mrf.mxu0
  %v2988 = vpop.f32.mrf.mxu0
  %2989 = vdwg.mxu0
  %v2990 = vmax.f32 %v2985, 0.0
  %v2991 = vpack.c.bf16 %v2990, %v2990
  %v2992 = vld [vmem:[%s12] sm:$0xf]
  %v2993 = vld [vmem:[%s12 + $0x4] sm:$0xf]
  %v2994 = vld [vmem:[%s12 + $0x8] sm:$0xf]
  %v2995 = vld [vmem:[%s12 + $0xc] sm:$0xf]
  %v2996 = vld [vmem:[%s12 + $0x10] sm:$0xf]
  %v2997 = vld [vmem:[%s12 + $0x14] sm:$0xf]
  %v2998 = vld [vmem:[%s12 + $0x18] sm:$0xf]
  %v2999 = vld [vmem:[%s12 + $0x1c] sm:$0xf]
  %v3000 = vld [vmem:[%s12 + $0x20] sm:$0xf]
  %v3001 = vld [vmem:[%s12 + $0x24] sm:$0xf]
  %v3002 = vld [vmem:[%s12 + $0x28] sm:$0xf]
  %v3003 = vld [vmem:[%s12 + $0x2c] sm:$0xf]
  %v3004 = vld [vmem:[%s12 + $0x30] sm:$0xf]
  %v3005 = vld [vmem:[%s12 + $0x34] sm:$0xf]
  %v3006 = vld [vmem:[%s12 + $0x38] sm:$0xf]
  %v3007 = vld [vmem:[%s12 + $0x3c] sm:$0xf]
  %v3008 = vld [vmem:[%s13] sm:$0x1]
  %v3010 = vlaneseq
  %v3011 = vshrl.u32 %v3010, 7
  %v3012 = vsub.s32 0, %v3011
  %v3013 = vrot.slane %v3008, %v3012
  %v3031 = vunpack.c.l.b16 %v2992
  %v3032 = vunpack.c.l.b16 %v2993
  %v3033 = vunpack.c.l.b16 %v2994
  %v3034 = vunpack.c.l.b16 %v2995
  %v3035 = vunpack.c.l.b16 %v2996
  %v3036 = vunpack.c.l.b16 %v2997
  %v3037 = vunpack.c.l.b16 %v2998
  %v3038 = vunpack.c.l.b16 %v2999
  %v3039 = vunpack.c.l.b16 %v3000
  %v3040 = vunpack.c.l.b16 %v3001
  %v3041 = vunpack.c.l.b16 %v3002
  %v3042 = vunpack.c.l.b16 %v3003
  %v3043 = vunpack.c.l.b16 %v3004
  %v3044 = vunpack.c.l.b16 %v3005
  %v3045 = vunpack.c.l.b16 %v3006
  %v3046 = vunpack.c.l.b16 %v3007
  %v3047 = vpack.c.b16 %v3032, %v3031
  %v3048 = vpack.c.b16 %v3034, %v3033
  %v3049 = vpack.c.b16 %v3036, %v3035
  %v3050 = vpack.c.b16 %v3038, %v3037
  %v3051 = vpack.c.b16 %v3040, %v3039
  %v3052 = vpack.c.b16 %v3042, %v3041
  %v3053 = vpack.c.b16 %v3044, %v3043
  %v3054 = vpack.c.b16 %v3046, %v3045
  %3063 = vmatprep.subr.bf16.mxu0 0
  %3064 = vmatpush1.bf16.msra.mxu0 %v3054
  %3065 = vmatprep.subr.bf16.mxu0 0
  %3066 = vmatpush1.bf16.msra.mxu0 %v3053
  %3067 = vmatprep.subr.bf16.mxu0 0
  %3068 = vmatpush1.bf16.msra.mxu0 %v3052
  %3069 = vmatprep.subr.bf16.mxu0 0
  %3070 = vmatpush1.bf16.msra.mxu0 %v3051
  %3071 = vmatprep.subr.bf16.mxu0 0
  %3072 = vmatpush1.bf16.msra.mxu0 %v3050
  %3073 = vmatprep.subr.bf16.mxu0 0
  %3074 = vmatpush1.bf16.msra.mxu0 %v3049
  %3075 = vmatprep.subr.bf16.mxu0 0
  %3076 = vmatpush1.bf16.msra.mxu0 %v3048
  %3077 = vmatprep.subr.bf16.mxu0 0
  %3078 = vmatpush1.bf16.msra.mxu0 %v3047
  %3079 = vmatprep.subr.bf16.mxu0 0
  %3080 = vmatpush2.bf16.msra.mxu0 0
  %3081 = vmatprep.subr.bf16.mxu0 0
  %3082 = vmatpush2.bf16.msra.mxu0 0
  %3083 = vmatprep.subr.bf16.mxu0 0
  %3084 = vmatpush2.bf16.msra.mxu0 0
  %3085 = vmatprep.subr.bf16.mxu0 0
  %3086 = vmatpush2.bf16.msra.mxu0 0
  %3087 = vmatprep.subr.bf16.mxu0 0
  %3088 = vmatpush2.bf16.msra.mxu0 0
  %3089 = vmatprep.subr.bf16.mxu0 0
  %3090 = vmatpush2.bf16.msra.mxu0 0
  %3091 = vmatprep.subr.bf16.mxu0 0
  %3092 = vmatpush2.bf16.msra.mxu0 0
  %3093 = vmatprep.subr.bf16.mxu0 0
  %3094 = vmatpush2.bf16.msra.mxu0 0
  %3095 = vmatprep.mubr.bf16.mxu0 0
  %3096 = vmatmul.mubr.bf16.gmra.mxu0 %v2991
  %v3097 = vpop.f32.mrf.mxu0
  %v3098 = vadd.f32 %v3013, %v3097
  %v3099 = vpop.f32.mrf.mxu0
  %v3100 = vpop.f32.mrf.mxu0
  %v3101 = vpop.f32.mrf.mxu0
  %3102 = vdwg.mxu0
  %3103 = vst [vmem:[%s17] sm:$0xff] %v3098
  // Predicated region
  $region58: #{class_aux_vae_forward.7} parent=0 // pred_check
    _
  $region59: #{class_aux_vae_forward.7} parent=0 // pred_check_branch
    %3105 = sbr.rel (0) target = $region61
  $region60: #{class_aux_vae_forward.7} parent=0 // pred_region
    _
  $region61: #{class_aux_vae_forward.7} parent=0 // pred_fallthru
    _
  // Predicated region
  $region62: #{class_aux_vae_forward.7} parent=0 // pred_check
    _
  $region63: #{class_aux_vae_forward.7} parent=0 // pred_check_branch
    %3107 = sbr.rel (0) target = $region65
  $region64: #{class_aux_vae_forward.7} parent=0 // pred_region
    _
  $region65: #{class_aux_vae_forward.7} parent=0 // pred_fallthru
    _
  // Predicated region
  $region66: #{class_aux_vae_forward.7} parent=0 // pred_check
    _
  $region67: #{class_aux_vae_forward.7} parent=0 // pred_check_branch
    %3109 = sbr.rel (0) target = $region69
  $region68: #{class_aux_vae_forward.7} parent=0 // pred_region
    _
  $region69: #{class_aux_vae_forward.7} parent=0 // pred_fallthru
    _
  // Predicated region
  $region70: #{class_aux_vae_forward.7} parent=0 // pred_check
    _
  $region71: #{class_aux_vae_forward.7} parent=0 // pred_check_branch
    %3111 = sbr.rel (0) target = $region73
  $region72: #{class_aux_vae_forward.7} parent=0 // pred_region
    _
  $region73: #{class_aux_vae_forward.7} parent=0 // pred_fallthru
    _
  // Predicated region
  $region74: #{class_aux_vae_forward.7} parent=0 // pred_check
    _
  $region75: #{class_aux_vae_forward.7} parent=0 // pred_check_branch
    %3113 = sbr.rel (0) target = $region77
  $region76: #{class_aux_vae_forward.7} parent=0 // pred_region
    _
  $region77: #{class_aux_vae_forward.7} parent=0 // pred_fallthru
    _
  // Predicated region
  $region78: #{class_aux_vae_forward.7} parent=0 // pred_check
    _
  $region79: #{class_aux_vae_forward.7} parent=0 // pred_check_branch
    %3115 = sbr.rel (0) target = $region81
  $region80: #{class_aux_vae_forward.7} parent=0 // pred_region
    _
  $region81: #{class_aux_vae_forward.7} parent=0 // pred_fallthru
    _
  // Predicated region
  $region82: #{class_aux_vae_forward.7} parent=0 // pred_check
    _
  $region83: #{class_aux_vae_forward.7} parent=0 // pred_check_branch
    %3117 = sbr.rel (0) target = $region85
  $region84: #{class_aux_vae_forward.7} parent=0 // pred_region
    _
  $region85: #{class_aux_vae_forward.7} parent=0 // pred_fallthru
    _
  // Predicated region
  $region86: #{class_aux_vae_forward.7} parent=0 // pred_check
    _
  $region87: #{class_aux_vae_forward.7} parent=0 // pred_check_branch
    %3119 = sbr.rel (0) target = $region89
  $region88: #{class_aux_vae_forward.7} parent=0 // pred_region
    _
  $region89: #{class_aux_vae_forward.7} parent=0 // pred_fallthru
    _

</llo_original>
